<compile_context>
chip_gen: v5e
topology: v5e:2x2
jax: 0.10.0
libtpu: 0.0.40
codegen_flags: <defaults>
</compile_context>

<pallas_src>
import functools

import jax
import jax.numpy as jnp
from jax.experimental import pallas as pl
from jax.experimental.pallas import tpu as pltpu


def _round_up(x, m):
    return ((x + m - 1) // m) * m


def _pick_tm(m, cap=1024, min_split=512):
    """M tile: as big as allowed, but keep >=2 M-blocks when M is large (v7x 2 TCs)."""
    tm = min(cap, _round_up(m, 8))
    if m > min_split and _round_up(m, tm) == tm:      # would be a single M block
        tm = _round_up((m + 1) // 2, 8)
    return tm


def _pick_hw_chunk(hw):
    """Spatial chunk for instance norm: bound VMEM for large images."""
    if hw <= 4096:
        return hw
    for cand in (4096, 2048, 1024, 512, 256, 128, 64, 32, 16, 8):
        if hw % cand == 0:
            return cand
    # TODO(synk): odd large H*W falls back to a monolithic block.
    return hw


# ---------------------------------------------------------------------------
# Pallas kernels
# ---------------------------------------------------------------------------

def _matmul_act_kernel(a_ref, w_ref, o_ref, acc_ref, *, negative_slope):
    """Tiled C = A @ W (+ optional LeakyReLU) with an f32 VMEM accumulator.

    Grid = (M/TM, N/TN, K/TK); K innermost ("arbitrary") reduction axis.
    A/W tiles are bf16 on the MXU; the epilogue casts to the (bf16) output block.
    """
    k = pl.program_id(2)

    @pl.when(k == 0)
    def _():
        acc_ref[...] = jnp.zeros_like(acc_ref)

    acc_ref[...] += jnp.dot(a_ref[...], w_ref[...],
                            preferred_element_type=jnp.float32)

    @pl.when(k == pl.num_programs(2) - 1)
    def _():
        y = acc_ref[...]
        if negative_slope is not None:
            y = jnp.where(y > 0, y, negative_slope * y)
        o_ref[...] = y.astype(o_ref.dtype)


def _dot_reduce_kernel(a_ref, w_ref, o_ref, acc_ref):
    """out[m] = sum_k A[m, k] * w[k]  (Cout == 1 final conv; VPU mul + reduce)."""
    k = pl.program_id(1)

    @pl.when(k == 0)
    def _():
        acc_ref[...] = jnp.zeros_like(acc_ref)

    a = a_ref[...].astype(jnp.float32)
    acc_ref[...] += jnp.sum(a * w_ref[...], axis=1, keepdims=True)

    @pl.when(k == pl.num_programs(1) - 1)
    def _():
        o_ref[...] = acc_ref[...].astype(o_ref.dtype)


def _instnorm_stats_kernel(x_ref, mean_ref, rstd_ref, *, hw, eps):
    """Accumulate per-(n, c) sum / sumsq over H*W chunks; finalize mean / rstd."""
    h = pl.program_id(2)
    x = x_ref[...].astype(jnp.float32)                     # (1, thw, tc)

    @pl.when(h == 0)
    def _():
        mean_ref[...] = jnp.zeros_like(mean_ref)
        rstd_ref[...] = jnp.zeros_like(rstd_ref)

    mean_ref[...] += jnp.sum(x, axis=1, keepdims=True)
    rstd_ref[...] += jnp.sum(x * x, axis=1, keepdims=True)

    @pl.when(h == pl.num_programs(2) - 1)
    def _():
        mu = mean_ref[...] / hw
        var = rstd_ref[...] / hw - mu * mu                 # biased var (PyTorch)
        mean_ref[...] = mu
        rstd_ref[...] = jax.lax.rsqrt(var + eps)


def _instnorm_apply_kernel(x_ref, mean_ref, rstd_ref, o_ref, *, negative_slope):
    """(x - mean) * rstd, then LeakyReLU; f32 math, bf16 store."""
    x = x_ref[...].astype(jnp.float32)
    y = (x - mean_ref[...]) * rstd_ref[...]
    o_ref[...] = jnp.where(y > 0, y, negative_slope * y).astype(o_ref.dtype)


# ---------------------------------------------------------------------------
# Plain-JAX glue: im2col patch extraction (indexing only, no conv math)
# ---------------------------------------------------------------------------

def _im2col(x_nhwc, ksize, stride, pad):
    n, h, w, c = x_nhwc.shape
    xp = jnp.pad(x_nhwc, ((0, 0), (pad, pad), (pad, pad), (0, 0)))
    xp = xp.astype(jnp.bfloat16)          # bf16 im2col matrix in HBM
    ho = (h + 2 * pad - ksize) // stride + 1
    wo = (w + 2 * pad - ksize) // stride + 1
    cols = []
    for kh in range(ksize):
        for kw in range(ksize):
            cols.append(xp[:, kh:kh + stride * ho:stride, kw:kw + stride * wo:stride, :])
    # rows ordered (kh, kw, c), matching the weight transpose below
    patches = jnp.stack(cols, axis=3).reshape(n * ho * wo, ksize * ksize * c)
    return patches, ho, wo


# ---------------------------------------------------------------------------
# Layer wrappers
# ---------------------------------------------------------------------------

_VMEM_LIMIT = 32 * 1024 * 1024   # fits all generations; > v5e 16 MiB default scoped


def conv2d_pallas(x_nhwc, w_oihw, stride, pad, negative_slope=None,
                  out_dtype=jnp.bfloat16):
    """Conv2d (no bias) via im2col + tiled MXU matmul, optional fused LeakyReLU."""
    cout, cin, kh, kw = w_oihw.shape
    n = x_nhwc.shape[0]

    a, ho, wo = _im2col(x_nhwc, kh, stride, pad)                  # [M, K] bf16
    m, k = a.shape
    # PyTorch OIHW -> (kh, kw, Cin, Cout) -> [K, Cout]; matches im2col row order.
    wm = jnp.transpose(w_oihw, (2, 3, 1, 0)).reshape(k, cout)

    tn = min(512, _round_up(cout, 128))    # tn always covers Cout -> A streamed once
    tk = min(512, _round_up(k, 128))
    tm = _pick_tm(m)
    mp = _round_up(m, tm)
    kp = _round_up(k, tk)
    npad = _round_up(cout, tn)

    # Conditional pads: layers 2-5 have K a multiple of 512, so no K pad round-trip.
    a_p = a if (mp == m and kp == k) else jnp.pad(a, ((0, mp - m), (0, kp - k)))
    w_p = wm if (kp == k and npad == cout) else jnp.pad(wm, ((0, kp - k), (0, npad - cout)))
    w_p = w_p.astype(jnp.bfloat16)

    grid = (mp // tm, npad // tn, kp // tk)
    out_bytes = jnp.dtype(out_dtype).itemsize
    cost = pl.CostEstimate(
        flops=2 * mp * kp * npad,
        transcendentals=0,
        bytes_accessed=mp * kp * 2 + kp * npad * 2 + mp * npad * out_bytes)

    kernel = functools.partial(_matmul_act_kernel, negative_slope=negative_slope)
    y = pl.pallas_call(
        kernel,
        out_shape=jax.ShapeDtypeStruct((mp, npad), out_dtype),
        grid_spec=pltpu.PrefetchScalarGridSpec(
            num_scalar_prefetch=0,
            grid=grid,
            in_specs=[
                pl.BlockSpec((tm, tk), lambda i, j, kk: (i, kk)),     # A tile
                pl.BlockSpec((tk, tn), lambda i, j, kk: (kk, j)),     # W tile
            ],
            out_specs=pl.BlockSpec((tm, tn), lambda i, j, kk: (i, j)),
            scratch_shapes=[pltpu.VMEM((tm, tn), jnp.float32)],
        ),
        compiler_params=pltpu.CompilerParams(
            dimension_semantics=("parallel", "parallel", "arbitrary"),
            vmem_limit_bytes=_VMEM_LIMIT),
        cost_estimate=cost,
    )(a_p, w_p)

    y = y[:m, :cout]
    return y.reshape(n, ho, wo, cout)


def conv2d_1out_pallas(x_nhwc, w_oihw, stride, pad):
    """Final Conv2d with Cout == 1: per-pixel dot reduction (no padded MXU matmul)."""
    cout, cin, kh, kw = w_oihw.shape
    assert cout == 1
    n = x_nhwc.shape[0]

    a, ho, wo = _im2col(x_nhwc, kh, stride, pad)                  # [M, K] bf16
    m, k = a.shape
    w_row = jnp.transpose(w_oihw, (2, 3, 1, 0)).reshape(1, k).astype(jnp.float32)

    tm = min(512, _round_up(m, 8))
    tk = min(512, _round_up(k, 128))
    mp = _round_up(m, tm)
    kp = _round_up(k, tk)
    a_p = a if (mp == m and kp == k) else jnp.pad(a, ((0, mp - m), (0, kp - k)))
    w_p = w_row if kp == k else jnp.pad(w_row, ((0, 0), (0, kp - k)))

    grid = (mp // tm, kp // tk)
    cost = pl.CostEstimate(flops=2 * mp * kp, transcendentals=0,
                           bytes_accessed=mp * kp * 2 + kp * 4 + mp * 4)

    y = pl.pallas_call(
        _dot_reduce_kernel,
        out_shape=jax.ShapeDtypeStruct((mp, 1), jnp.float32),
        grid_spec=pltpu.PrefetchScalarGridSpec(
            num_scalar_prefetch=0,
            grid=grid,
            in_specs=[
                pl.BlockSpec((tm, tk), lambda i, kk: (i, kk)),
                pl.BlockSpec((1, tk), lambda i, kk: (0, kk)),
            ],
            out_specs=pl.BlockSpec((tm, 1), lambda i, kk: (i, 0)),
            scratch_shapes=[pltpu.VMEM((tm, 1), jnp.float32)],
        ),
        compiler_params=pltpu.CompilerParams(
            dimension_semantics=("parallel", "arbitrary"),
            vmem_limit_bytes=_VMEM_LIMIT),
        cost_estimate=cost,
    )(a_p, w_p)

    return y[:m, :].reshape(n, ho, wo, 1)


def instance_norm_lrelu_pallas(x_nhwc, eps=1e-5, negative_slope=0.2):
    """InstanceNorm2d (affine=False) + LeakyReLU, two Pallas passes, bf16 out."""
    n, h, w, c = x_nhwc.shape
    hw = h * w
    x3 = x_nhwc.reshape(n, hw, c)

    tc = 256 if c % 256 == 0 else c          # c is 128 / 256 / 512 in this model
    thw = _pick_hw_chunk(hw)
    grid = (n, c // tc, hw // thw)

    # Pass 1: per-(n, c) mean & rstd, accumulated over H*W chunks.
    stats_cost = pl.CostEstimate(flops=3 * n * hw * c, transcendentals=n * c,
                                 bytes_accessed=n * hw * c * 2 + 2 * n * c * 4)
    mean, rstd = pl.pallas_call(
        functools.partial(_instnorm_stats_kernel, hw=hw, eps=eps),
        out_shape=(jax.ShapeDtypeStruct((n, 1, c), jnp.float32),
                   jax.ShapeDtypeStruct((n, 1, c), jnp.float32)),
        grid_spec=pltpu.PrefetchScalarGridSpec(
            num_scalar_prefetch=0,
            grid=grid,
            in_specs=[pl.BlockSpec((1, thw, tc), lambda i, j, h_: (i, h_, j))],
            out_specs=[pl.BlockSpec((1, 1, tc), lambda i, j, h_: (i, 0, j)),
                       pl.BlockSpec((1, 1, tc), lambda i, j, h_: (i, 0, j))],
        ),
        compiler_params=pltpu.CompilerParams(
            dimension_semantics=("parallel", "parallel", "arbitrary"),
            vmem_limit_bytes=_VMEM_LIMIT),
        cost_estimate=stats_cost,
    )(x3)

    # Pass 2: normalize + LeakyReLU, bf16 out.
    apply_cost = pl.CostEstimate(flops=4 * n * hw * c, transcendentals=0,
                                 bytes_accessed=2 * n * hw * c * 2 + 2 * n * c * 4)
    y = pl.pallas_call(
        functools.partial(_instnorm_apply_kernel, negative_slope=negative_slope),
        out_shape=jax.ShapeDtypeStruct((n, hw, c), jnp.bfloat16),
        grid_spec=pltpu.PrefetchScalarGridSpec(
            num_scalar_prefetch=0,
            grid=grid,
            in_specs=[pl.BlockSpec((1, thw, tc), lambda i, j, h_: (i, h_, j)),
                      pl.BlockSpec((1, 1, tc), lambda i, j, h_: (i, 0, j)),
                      pl.BlockSpec((1, 1, tc), lambda i, j, h_: (i, 0, j))],
            out_specs=pl.BlockSpec((1, thw, tc), lambda i, j, h_: (i, h_, j)),
        ),
        compiler_params=pltpu.CompilerParams(
            dimension_semantics=("parallel", "parallel", "parallel"),
            vmem_limit_bytes=_VMEM_LIMIT),
        cost_estimate=apply_cost,
    )(x3, mean, rstd)

    return y.reshape(n, h, w, c)


# ---------------------------------------------------------------------------
# ImageDiscriminator forward
# ---------------------------------------------------------------------------

def init_params(key):
    ks = jax.random.split(key, 8)
    scale = 0.05
    p = {
        # Conv2d(3, 64, 4, 2, 1, bias=False)
        "w1": jax.random.normal(ks[0], (64, 3, 4, 4), jnp.float32) * scale,
        # Conv2d(64, 128, 4, 2, 1)   (bias kept for param parity; see forward note)
        "w2": jax.random.normal(ks[1], (128, 64, 4, 4), jnp.float32) * scale,
        "b2": jax.random.normal(ks[2], (128,), jnp.float32) * scale,
        # Conv2d(128, 256, 4, 2, 1)
        "w3": jax.random.normal(ks[3], (256, 128, 4, 4), jnp.float32) * scale,
        "b3": jax.random.normal(ks[4], (256,), jnp.float32) * scale,
        # Conv2d(256, 512, 4, 1, 1)
        "w4": jax.random.normal(ks[5], (512, 256, 4, 4), jnp.float32) * scale,
        "b4": jax.random.normal(ks[6], (512,), jnp.float32) * scale,
        # Conv2d(512, 1, 4, 1, padding=1, bias=False)
        "w5": jax.random.normal(ks[7], (1, 512, 4, 4), jnp.float32) * scale,
    }
    return p


@jax.jit
def image_discriminator(x_nchw, params):
    # NCHW (PyTorch convention) -> NHWC internally (C on the lane axis)
    x = jnp.transpose(x_nchw, (0, 2, 3, 1)).astype(jnp.float32)

    # Conv(3->64, s2, bias=False) + LeakyReLU(0.2) fused in the matmul epilogue.
    x = conv2d_pallas(x, params["w1"], stride=2, pad=1, negative_slope=0.2)

    # Conv(64->128, s2) + InstanceNorm + LeakyReLU(0.2).
    # The conv bias (b2/b3/b4) is a per-channel constant and is exactly cancelled
    # by the InstanceNorm mean subtraction, so it is not applied (identical output).
    x = conv2d_pallas(x, params["w2"], stride=2, pad=1)
    x = instance_norm_lrelu_pallas(x)

    # Conv(128->256, s2) + InstanceNorm + LeakyReLU(0.2)
    x = conv2d_pallas(x, params["w3"], stride=2, pad=1)
    x = instance_norm_lrelu_pallas(x)

    # Conv(256->512, s1) + InstanceNorm + LeakyReLU(0.2)
    x = conv2d_pallas(x, params["w4"], stride=1, pad=1)
    x = instance_norm_lrelu_pallas(x)

    # Conv(512->1, s1, bias=False): per-pixel dot reduction kernel (Cout == 1)
    x = conv2d_1out_pallas(x, params["w5"], stride=1, pad=1)

    # back to NCHW, f32 output
    return jnp.transpose(x, (0, 3, 1, 2)).astype(jnp.float32)


if __name__ == "__main__":
    key = jax.random.PRNGKey(0)
    k_x, k_p = jax.random.split(key)
    # Small but valid input: 32x32 so the final 4x4 / stride-1 conv still has >0 output.
    x = jax.random.normal(k_x, (2, 3, 32, 32), jnp.float32)
    params = init_params(k_p)

    out = image_discriminator(x, params)
    out = jax.block_until_ready(out)
    assert out.shape == (2, 1, 2, 2), out.shape
    assert bool(jnp.all(jnp.isfinite(out)))
    print("KERNEL_OK")
</pallas_src>

<mosaic_0001>
module attributes {stable_mosaic.version = 11 : i64} {
  func.func @_matmul_act_kernel(%arg0: i32, %arg1: i32, %arg2: i32, %arg3: memref<512x128xbf16, #tpu.memory_space<vmem>>, %arg4: memref<128x128xbf16, #tpu.memory_space<vmem>>, %arg5: memref<512x128xbf16, #tpu.memory_space<vmem>>, %arg6: memref<512x128xf32, #tpu.memory_space<vmem>>) attributes {dimension_semantics = [#tpu.dimension_semantics<parallel>, #tpu.dimension_semantics<parallel>, #tpu.dimension_semantics<arbitrary>], iteration_bounds = array<i64: 1, 1, 1>, scalar_prefetch = 0 : i64, scratch_operands = 1 : i64, tpu.core_type = #tpu.core_type<tc>, window_params = [{transform_indices = @transform_0, window_bounds = array<i64: 512, 128>}, {transform_indices = @transform_1, window_bounds = array<i64: 128, 128>}, {transform_indices = @transform_2, window_bounds = array<i64: 512, 128>}]} {
    %c0_i32 = arith.constant 0 : i32
    %0 = arith.cmpi eq, %arg2, %c0_i32 : i32
    %1 = arith.extui %0 : i1 to i32
    %c0_i32_0 = arith.constant 0 : i32
    %2 = arith.cmpi ne, %1, %c0_i32_0 : i32
    scf.if %2 {
      %cst_10 = arith.constant 0.000000e+00 : f32
      %12 = vector.broadcast %cst_10 : f32 to vector<512x128xf32>
      %c0_11 = arith.constant 0 : index
      %c0_12 = arith.constant 0 : index
      %13 = vector.load %arg6[%c0_11, %c0_12] : memref<512x128xf32, #tpu.memory_space<vmem>>, vector<512x128xf32>
      tpu.vector_store %arg6[%c0_11, %c0_12], %12 {strides = array<i32>} : memref<512x128xf32, #tpu.memory_space<vmem>>, vector<512x128xf32>,
    } else {
    }
    %c0 = arith.constant 0 : index
    %c0_1 = arith.constant 0 : index
    %3 = vector.load %arg6[%c0, %c0_1] : memref<512x128xf32, #tpu.memory_space<vmem>>, vector<512x128xf32>
    %c0_2 = arith.constant 0 : index
    %c0_3 = arith.constant 0 : index
    %4 = vector.load %arg3[%c0_2, %c0_3] : memref<512x128xbf16, #tpu.memory_space<vmem>>, vector<512x128xbf16>
    %c0_4 = arith.constant 0 : index
    %c0_5 = arith.constant 0 : index
    %5 = vector.load %arg4[%c0_4, %c0_5] : memref<128x128xbf16, #tpu.memory_space<vmem>>, vector<128x128xbf16>
    %cst = arith.constant dense<0.000000e+00> : vector<512x128xf32>
    %6 = tpu.matmul %4, %5, %cst {dimension_numbers = #tpu.dot_dimension_numbers<[1], [0], [0], [1], [0, 0, 1, 1], [], []>} : vector<512x128xbf16>, vector<128x128xbf16>, vector<512x128xf32> -> vector<512x128xf32>
    %7 = arith.addf %3, %6 : vector<512x128xf32>
    %c0_6 = arith.constant 0 : index
    %c0_7 = arith.constant 0 : index
    %8 = vector.load %arg6[%c0_6, %c0_7] : memref<512x128xf32, #tpu.memory_space<vmem>>, vector<512x128xf32>
    tpu.vector_store %arg6[%c0_6, %c0_7], %7 {strides = array<i32>} : memref<512x128xf32, #tpu.memory_space<vmem>>, vector<512x128xf32>,
    %c0_i32_8 = arith.constant 0 : i32
    %9 = arith.cmpi eq, %arg2, %c0_i32_8 : i32
    %10 = arith.extui %9 : i1 to i32
    %c0_i32_9 = arith.constant 0 : i32
    %11 = arith.cmpi ne, %10, %c0_i32_9 : i32
    scf.if %11 {
      %c0_10 = arith.constant 0 : index
      %c0_11 = arith.constant 0 : index
      %12 = vector.load %arg6[%c0_10, %c0_11] : memref<512x128xf32, #tpu.memory_space<vmem>>, vector<512x128xf32>
      %cst_12 = arith.constant 0.000000e+00 : f32
      %13 = vector.broadcast %cst_12 : f32 to vector<512x128xf32>
      %14 = arith.cmpf ogt, %12, %13 : vector<512x128xf32>
      %cst_13 = arith.constant 2.000000e-01 : f32
      %15 = vector.broadcast %cst_13 : f32 to vector<512x128xf32>
      %16 = arith.mulf %15, %12 : vector<512x128xf32>
      %17 = arith.select %14, %12, %16 : vector<512x128xi1>, vector<512x128xf32>
      %18 = arith.truncf %17 : vector<512x128xf32> to vector<512x128xbf16>
      %c0_14 = arith.constant 0 : index
      %c0_15 = arith.constant 0 : index
      %19 = vector.load %arg5[%c0_14, %c0_15] : memref<512x128xbf16, #tpu.memory_space<vmem>>, vector<512x128xbf16>
      tpu.vector_store %arg5[%c0_14, %c0_15], %18 {strides = array<i32>} : memref<512x128xbf16, #tpu.memory_space<vmem>>, vector<512x128xbf16>,
    } else {
    }
    return
  }
  func.func @transform_0(%arg0: i32, %arg1: i32, %arg2: i32) -> (i32, i32) {
    %c0_i32 = arith.constant 0 : i32
    return %arg0, %arg2 : i32, i32
  }
  func.func @transform_1(%arg0: i32, %arg1: i32, %arg2: i32) -> (i32, i32) {
    %c0_i32 = arith.constant 0 : i32
    return %arg2, %arg1 : i32, i32
  }
  func.func @transform_2(%arg0: i32, %arg1: i32, %arg2: i32) -> (i32, i32) {
    %c0_i32 = arith.constant 0 : i32
    return %arg0, %arg1 : i32, i32
  }
}

module attributes {stable_mosaic.version = 11 : i64} {
  func.func @_matmul_act_kernel(%arg0: i32, %arg1: i32, %arg2: i32, %arg3: memref<128x512xbf16, #tpu.memory_space<vmem>>, %arg4: memref<512x128xbf16, #tpu.memory_space<vmem>>, %arg5: memref<128x128xbf16, #tpu.memory_space<vmem>>, %arg6: memref<128x128xf32, #tpu.memory_space<vmem>>) attributes {dimension_semantics = [#tpu.dimension_semantics<parallel>, #tpu.dimension_semantics<parallel>, #tpu.dimension_semantics<arbitrary>], iteration_bounds = array<i64: 1, 1, 2>, scalar_prefetch = 0 : i64, scratch_operands = 1 : i64, tpu.core_type = #tpu.core_type<tc>, window_params = [{transform_indices = @transform_0, window_bounds = array<i64: 128, 512>}, {transform_indices = @transform_1, window_bounds = array<i64: 512, 128>}, {transform_indices = @transform_2, window_bounds = array<i64: 128, 128>}]} {
    %c0_i32 = arith.constant 0 : i32
    %0 = arith.cmpi eq, %arg2, %c0_i32 : i32
    %1 = arith.extui %0 : i1 to i32
    %c0_i32_0 = arith.constant 0 : i32
    %2 = arith.cmpi ne, %1, %c0_i32_0 : i32
    scf.if %2 {
      %cst_9 = arith.constant 0.000000e+00 : f32
      %12 = vector.broadcast %cst_9 : f32 to vector<128x128xf32>
      %c0_10 = arith.constant 0 : index
      %c0_11 = arith.constant 0 : index
      %13 = vector.load %arg6[%c0_10, %c0_11] : memref<128x128xf32, #tpu.memory_space<vmem>>, vector<128x128xf32>
      tpu.vector_store %arg6[%c0_10, %c0_11], %12 {strides = array<i32>} : memref<128x128xf32, #tpu.memory_space<vmem>>, vector<128x128xf32>,
    } else {
    }
    %c0 = arith.constant 0 : index
    %c0_1 = arith.constant 0 : index
    %3 = vector.load %arg6[%c0, %c0_1] : memref<128x128xf32, #tpu.memory_space<vmem>>, vector<128x128xf32>
    %c0_2 = arith.constant 0 : index
    %c0_3 = arith.constant 0 : index
    %4 = vector.load %arg3[%c0_2, %c0_3] : memref<128x512xbf16, #tpu.memory_space<vmem>>, vector<128x512xbf16>
    %c0_4 = arith.constant 0 : index
    %c0_5 = arith.constant 0 : index
    %5 = vector.load %arg4[%c0_4, %c0_5] : memref<512x128xbf16, #tpu.memory_space<vmem>>, vector<512x128xbf16>
    %cst = arith.constant dense<0.000000e+00> : vector<128x128xf32>
    %6 = tpu.matmul %4, %5, %cst {dimension_numbers = #tpu.dot_dimension_numbers<[1], [0], [0], [1], [0, 0, 1, 1], [], []>} : vector<128x512xbf16>, vector<512x128xbf16>, vector<128x128xf32> -> vector<128x128xf32>
    %7 = arith.addf %3, %6 : vector<128x128xf32>
    %c0_6 = arith.constant 0 : index
    %c0_7 = arith.constant 0 : index
    %8 = vector.load %arg6[%c0_6, %c0_7] : memref<128x128xf32, #tpu.memory_space<vmem>>, vector<128x128xf32>
    tpu.vector_store %arg6[%c0_6, %c0_7], %7 {strides = array<i32>} : memref<128x128xf32, #tpu.memory_space<vmem>>, vector<128x128xf32>,
    %c1_i32 = arith.constant 1 : i32
    %9 = arith.cmpi eq, %arg2, %c1_i32 : i32
    %10 = arith.extui %9 : i1 to i32
    %c0_i32_8 = arith.constant 0 : i32
    %11 = arith.cmpi ne, %10, %c0_i32_8 : i32
    scf.if %11 {
      %c0_9 = arith.constant 0 : index
      %c0_10 = arith.constant 0 : index
      %12 = vector.load %arg6[%c0_9, %c0_10] : memref<128x128xf32, #tpu.memory_space<vmem>>, vector<128x128xf32>
      %13 = arith.truncf %12 : vector<128x128xf32> to vector<128x128xbf16>
      %c0_11 = arith.constant 0 : index
      %c0_12 = arith.constant 0 : index
      %14 = vector.load %arg5[%c0_11, %c0_12] : memref<128x128xbf16, #tpu.memory_space<vmem>>, vector<128x128xbf16>
      tpu.vector_store %arg5[%c0_11, %c0_12], %13 {strides = array<i32>} : memref<128x128xbf16, #tpu.memory_space<vmem>>, vector<128x128xbf16>,
    } else {
    }
    return
  }
  func.func @transform_0(%arg0: i32, %arg1: i32, %arg2: i32) -> (i32, i32) {
    %c0_i32 = arith.constant 0 : i32
    return %arg0, %arg2 : i32, i32
  }
  func.func @transform_1(%arg0: i32, %arg1: i32, %arg2: i32) -> (i32, i32) {
    %c0_i32 = arith.constant 0 : i32
    return %arg2, %arg1 : i32, i32
  }
  func.func @transform_2(%arg0: i32, %arg1: i32, %arg2: i32) -> (i32, i32) {
    %c0_i32 = arith.constant 0 : i32
    return %arg0, %arg1 : i32, i32
  }
}

module attributes {stable_mosaic.version = 11 : i64} {
  func.func @_instnorm_stats_kernel(%arg0: i32, %arg1: i32, %arg2: i32, %arg3: memref<1x64x128xbf16, #tpu.memory_space<vmem>>, %arg4: memref<1x1x128xf32, #tpu.memory_space<vmem>>, %arg5: memref<1x1x128xf32, #tpu.memory_space<vmem>>) attributes {dimension_semantics = [#tpu.dimension_semantics<parallel>, #tpu.dimension_semantics<parallel>, #tpu.dimension_semantics<arbitrary>], iteration_bounds = array<i64: 2, 1, 1>, scalar_prefetch = 0 : i64, scratch_operands = 0 : i64, tpu.core_type = #tpu.core_type<tc>, window_params = [{transform_indices = @transform_0, window_bounds = array<i64: 1, 64, 128>}, {transform_indices = @transform_1, window_bounds = array<i64: 1, 1, 128>}, {transform_indices = @transform_2, window_bounds = array<i64: 1, 1, 128>}]} {
    %c0 = arith.constant 0 : index
    %c0_0 = arith.constant 0 : index
    %c0_1 = arith.constant 0 : index
    %0 = vector.load %arg3[%c0, %c0_0, %c0_1] : memref<1x64x128xbf16, #tpu.memory_space<vmem>>, vector<1x64x128xbf16>
    %1 = arith.extf %0 : vector<1x64x128xbf16> to vector<1x64x128xf32>
    %c0_i32 = arith.constant 0 : i32
    %2 = arith.cmpi eq, %arg2, %c0_i32 : i32
    %3 = arith.extui %2 : i1 to i32
    %c0_i32_2 = arith.constant 0 : i32
    %4 = arith.cmpi ne, %3, %c0_i32_2 : i32
    scf.if %4 {
      %cst_18 = arith.constant 0.000000e+00 : f32
      %19 = vector.broadcast %cst_18 : f32 to vector<1x1x128xf32>
      %c0_19 = arith.constant 0 : index
      %c0_20 = arith.constant 0 : index
      %c0_21 = arith.constant 0 : index
      %20 = vector.load %arg4[%c0_19, %c0_20, %c0_21] : memref<1x1x128xf32, #tpu.memory_space<vmem>>, vector<1x1x128xf32>
      tpu.vector_store %arg4[%c0_19, %c0_20, %c0_21], %19 {strides = array<i32>} : memref<1x1x128xf32, #tpu.memory_space<vmem>>, vector<1x1x128xf32>,
      %cst_22 = arith.constant 0.000000e+00 : f32
      %21 = vector.broadcast %cst_22 : f32 to vector<1x1x128xf32>
      %c0_23 = arith.constant 0 : index
      %c0_24 = arith.constant 0 : index
      %c0_25 = arith.constant 0 : index
      %22 = vector.load %arg5[%c0_23, %c0_24, %c0_25] : memref<1x1x128xf32, #tpu.memory_space<vmem>>, vector<1x1x128xf32>
      tpu.vector_store %arg5[%c0_23, %c0_24, %c0_25], %21 {strides = array<i32>} : memref<1x1x128xf32, #tpu.memory_space<vmem>>, vector<1x1x128xf32>,
    } else {
    }
    %c0_3 = arith.constant 0 : index
    %c0_4 = arith.constant 0 : index
    %c0_5 = arith.constant 0 : index
    %5 = vector.load %arg4[%c0_3, %c0_4, %c0_5] : memref<1x1x128xf32, #tpu.memory_space<vmem>>, vector<1x1x128xf32>
    %cst = arith.constant dense<0.000000e+00> : vector<1x128xf32>
    %6 = vector.multi_reduction <add>, %1, %cst [1] : vector<1x64x128xf32> to vector<1x128xf32>
    %7 = vector.shape_cast %6 : vector<1x128xf32> to vector<1x1x128xf32>
    %8 = arith.addf %5, %7 : vector<1x1x128xf32>
    %c0_6 = arith.constant 0 : index
    %c0_7 = arith.constant 0 : index
    %c0_8 = arith.constant 0 : index
    %9 = vector.load %arg4[%c0_6, %c0_7, %c0_8] : memref<1x1x128xf32, #tpu.memory_space<vmem>>, vector<1x1x128xf32>
    tpu.vector_store %arg4[%c0_6, %c0_7, %c0_8], %8 {strides = array<i32>} : memref<1x1x128xf32, #tpu.memory_space<vmem>>, vector<1x1x128xf32>,
    %c0_9 = arith.constant 0 : index
    %c0_10 = arith.constant 0 : index
    %c0_11 = arith.constant 0 : index
    %10 = vector.load %arg5[%c0_9, %c0_10, %c0_11] : memref<1x1x128xf32, #tpu.memory_space<vmem>>, vector<1x1x128xf32>
    %11 = arith.mulf %1, %1 : vector<1x64x128xf32>
    %cst_12 = arith.constant dense<0.000000e+00> : vector<1x128xf32>
    %12 = vector.multi_reduction <add>, %11, %cst_12 [1] : vector<1x64x128xf32> to vector<1x128xf32>
    %13 = vector.shape_cast %12 : vector<1x128xf32> to vector<1x1x128xf32>
    %14 = arith.addf %10, %13 : vector<1x1x128xf32>
    %c0_13 = arith.constant 0 : index
    %c0_14 = arith.constant 0 : index
    %c0_15 = arith.constant 0 : index
    %15 = vector.load %arg5[%c0_13, %c0_14, %c0_15] : memref<1x1x128xf32, #tpu.memory_space<vmem>>, vector<1x1x128xf32>
    tpu.vector_store %arg5[%c0_13, %c0_14, %c0_15], %14 {strides = array<i32>} : memref<1x1x128xf32, #tpu.memory_space<vmem>>, vector<1x1x128xf32>,
    %c0_i32_16 = arith.constant 0 : i32
    %16 = arith.cmpi eq, %arg2, %c0_i32_16 : i32
    %17 = arith.extui %16 : i1 to i32
    %c0_i32_17 = arith.constant 0 : i32
    %18 = arith.cmpi ne, %17, %c0_i32_17 : i32
    scf.if %18 {
      %c0_18 = arith.constant 0 : index
      %c0_19 = arith.constant 0 : index
      %c0_20 = arith.constant 0 : index
      %19 = vector.load %arg4[%c0_18, %c0_19, %c0_20] : memref<1x1x128xf32, #tpu.memory_space<vmem>>, vector<1x1x128xf32>
      %cst_21 = arith.constant 6.400000e+01 : f32
      %20 = vector.broadcast %cst_21 : f32 to vector<1x1x128xf32>
      %21 = arith.divf %19, %20 : vector<1x1x128xf32>
      %c0_22 = arith.constant 0 : index
      %c0_23 = arith.constant 0 : index
      %c0_24 = arith.constant 0 : index
      %22 = vector.load %arg5[%c0_22, %c0_23, %c0_24] : memref<1x1x128xf32, #tpu.memory_space<vmem>>, vector<1x1x128xf32>
      %cst_25 = arith.constant 6.400000e+01 : f32
      %23 = vector.broadcast %cst_25 : f32 to vector<1x1x128xf32>
      %24 = arith.divf %22, %23 : vector<1x1x128xf32>
      %25 = arith.mulf %21, %21 : vector<1x1x128xf32>
      %26 = arith.subf %24, %25 : vector<1x1x128xf32>
      %c0_26 = arith.constant 0 : index
      %c0_27 = arith.constant 0 : index
      %c0_28 = arith.constant 0 : index
      %27 = vector.load %arg4[%c0_26, %c0_27, %c0_28] : memref<1x1x128xf32, #tpu.memory_space<vmem>>, vector<1x1x128xf32>
      tpu.vector_store %arg4[%c0_26, %c0_27, %c0_28], %21 {strides = array<i32>} : memref<1x1x128xf32, #tpu.memory_space<vmem>>, vector<1x1x128xf32>,
      %cst_29 = arith.constant 9.99999974E-6 : f32
      %28 = vector.broadcast %cst_29 : f32 to vector<1x1x128xf32>
      %29 = arith.addf %26, %28 : vector<1x1x128xf32>
      %30 = math.rsqrt %29 : vector<1x1x128xf32>
      %c0_30 = arith.constant 0 : index
      %c0_31 = arith.constant 0 : index
      %c0_32 = arith.constant 0 : index
      %31 = vector.load %arg5[%c0_30, %c0_31, %c0_32] : memref<1x1x128xf32, #tpu.memory_space<vmem>>, vector<1x1x128xf32>
      tpu.vector_store %arg5[%c0_30, %c0_31, %c0_32], %30 {strides = array<i32>} : memref<1x1x128xf32, #tpu.memory_space<vmem>>, vector<1x1x128xf32>,
    } else {
    }
    return
  }
  func.func @transform_0(%arg0: i32, %arg1: i32, %arg2: i32) -> (i32, i32, i32) {
    %c0_i32 = arith.constant 0 : i32
    return %arg0, %arg2, %arg1 : i32, i32, i32
  }
  func.func @transform_1(%arg0: i32, %arg1: i32, %arg2: i32) -> (i32, i32, i32) {
    %c0_i32 = arith.constant 0 : i32
    %c0_i32_0 = arith.constant 0 : i32
    return %arg0, %c0_i32, %arg1 : i32, i32, i32
  }
  func.func @transform_2(%arg0: i32, %arg1: i32, %arg2: i32) -> (i32, i32, i32) {
    %c0_i32 = arith.constant 0 : i32
    %c0_i32_0 = arith.constant 0 : i32
    return %arg0, %c0_i32, %arg1 : i32, i32, i32
  }
}

module attributes {stable_mosaic.version = 11 : i64} {
  func.func @_instnorm_apply_kernel(%arg0: i32, %arg1: i32, %arg2: i32, %arg3: memref<1x64x128xbf16, #tpu.memory_space<vmem>>, %arg4: memref<1x1x128xf32, #tpu.memory_space<vmem>>, %arg5: memref<1x1x128xf32, #tpu.memory_space<vmem>>, %arg6: memref<1x64x128xbf16, #tpu.memory_space<vmem>>) attributes {dimension_semantics = [#tpu.dimension_semantics<parallel>, #tpu.dimension_semantics<parallel>, #tpu.dimension_semantics<parallel>], iteration_bounds = array<i64: 2, 1, 1>, scalar_prefetch = 0 : i64, scratch_operands = 0 : i64, tpu.core_type = #tpu.core_type<tc>, window_params = [{transform_indices = @transform_0, window_bounds = array<i64: 1, 64, 128>}, {transform_indices = @transform_1, window_bounds = array<i64: 1, 1, 128>}, {transform_indices = @transform_2, window_bounds = array<i64: 1, 1, 128>}, {transform_indices = @transform_3, window_bounds = array<i64: 1, 64, 128>}]} {
    %c0 = arith.constant 0 : index
    %c0_0 = arith.constant 0 : index
    %c0_1 = arith.constant 0 : index
    %0 = vector.load %arg3[%c0, %c0_0, %c0_1] : memref<1x64x128xbf16, #tpu.memory_space<vmem>>, vector<1x64x128xbf16>
    %1 = arith.extf %0 : vector<1x64x128xbf16> to vector<1x64x128xf32>
    %c0_2 = arith.constant 0 : index
    %c0_3 = arith.constant 0 : index
    %c0_4 = arith.constant 0 : index
    %2 = vector.load %arg4[%c0_2, %c0_3, %c0_4] : memref<1x1x128xf32, #tpu.memory_space<vmem>>, vector<1x1x128xf32>
    %3 = vector.broadcast %2 : vector<1x1x128xf32> to vector<1x64x128xf32>
    %4 = arith.subf %1, %3 : vector<1x64x128xf32>
    %c0_5 = arith.constant 0 : index
    %c0_6 = arith.constant 0 : index
    %c0_7 = arith.constant 0 : index
    %5 = vector.load %arg5[%c0_5, %c0_6, %c0_7] : memref<1x1x128xf32, #tpu.memory_space<vmem>>, vector<1x1x128xf32>
    %6 = vector.broadcast %5 : vector<1x1x128xf32> to vector<1x64x128xf32>
    %7 = arith.mulf %4, %6 : vector<1x64x128xf32>
    %cst = arith.constant 0.000000e+00 : f32
    %8 = vector.broadcast %cst : f32 to vector<1x64x128xf32>
    %9 = arith.cmpf ogt, %7, %8 : vector<1x64x128xf32>
    %cst_8 = arith.constant 2.000000e-01 : f32
    %10 = vector.broadcast %cst_8 : f32 to vector<1x64x128xf32>
    %11 = arith.mulf %10, %7 : vector<1x64x128xf32>
    %12 = arith.select %9, %7, %11 : vector<1x64x128xi1>, vector<1x64x128xf32>
    %13 = arith.truncf %12 : vector<1x64x128xf32> to vector<1x64x128xbf16>
    %c0_9 = arith.constant 0 : index
    %c0_10 = arith.constant 0 : index
    %c0_11 = arith.constant 0 : index
    %14 = vector.load %arg6[%c0_9, %c0_10, %c0_11] : memref<1x64x128xbf16, #tpu.memory_space<vmem>>, vector<1x64x128xbf16>
    tpu.vector_store %arg6[%c0_9, %c0_10, %c0_11], %13 {strides = array<i32>} : memref<1x64x128xbf16, #tpu.memory_space<vmem>>, vector<1x64x128xbf16>,
    return
  }
  func.func @transform_0(%arg0: i32, %arg1: i32, %arg2: i32) -> (i32, i32, i32) {
    %c0_i32 = arith.constant 0 : i32
    return %arg0, %arg2, %arg1 : i32, i32, i32
  }
  func.func @transform_1(%arg0: i32, %arg1: i32, %arg2: i32) -> (i32, i32, i32) {
    %c0_i32 = arith.constant 0 : i32
    %c0_i32_0 = arith.constant 0 : i32
    return %arg0, %c0_i32, %arg1 : i32, i32, i32
  }
  func.func @transform_2(%arg0: i32, %arg1: i32, %arg2: i32) -> (i32, i32, i32) {
    %c0_i32 = arith.constant 0 : i32
    %c0_i32_0 = arith.constant 0 : i32
    return %arg0, %c0_i32, %arg1 : i32, i32, i32
  }
  func.func @transform_3(%arg0: i32, %arg1: i32, %arg2: i32) -> (i32, i32, i32) {
    %c0_i32 = arith.constant 0 : i32
    return %arg0, %arg2, %arg1 : i32, i32, i32
  }
}

module attributes {stable_mosaic.version = 11 : i64} {
  func.func @_instnorm_stats_kernel(%arg0: i32, %arg1: i32, %arg2: i32, %arg3: memref<1x16x256xbf16, #tpu.memory_space<vmem>>, %arg4: memref<1x1x256xf32, #tpu.memory_space<vmem>>, %arg5: memref<1x1x256xf32, #tpu.memory_space<vmem>>) attributes {dimension_semantics = [#tpu.dimension_semantics<parallel>, #tpu.dimension_semantics<parallel>, #tpu.dimension_semantics<arbitrary>], iteration_bounds = array<i64: 2, 1, 1>, scalar_prefetch = 0 : i64, scratch_operands = 0 : i64, tpu.core_type = #tpu.core_type<tc>, window_params = [{transform_indices = @transform_0, window_bounds = array<i64: 1, 16, 256>}, {transform_indices = @transform_1, window_bounds = array<i64: 1, 1, 256>}, {transform_indices = @transform_2, window_bounds = array<i64: 1, 1, 256>}]} {
    %c0 = arith.constant 0 : index
    %c0_0 = arith.constant 0 : index
    %c0_1 = arith.constant 0 : index
    %0 = vector.load %arg3[%c0, %c0_0, %c0_1] : memref<1x16x256xbf16, #tpu.memory_space<vmem>>, vector<1x16x256xbf16>
    %1 = arith.extf %0 : vector<1x16x256xbf16> to vector<1x16x256xf32>
    %c0_i32 = arith.constant 0 : i32
    %2 = arith.cmpi eq, %arg2, %c0_i32 : i32
    %3 = arith.extui %2 : i1 to i32
    %c0_i32_2 = arith.constant 0 : i32
    %4 = arith.cmpi ne, %3, %c0_i32_2 : i32
    scf.if %4 {
      %cst_18 = arith.constant 0.000000e+00 : f32
      %19 = vector.broadcast %cst_18 : f32 to vector<1x1x256xf32>
      %c0_19 = arith.constant 0 : index
      %c0_20 = arith.constant 0 : index
      %c0_21 = arith.constant 0 : index
      %20 = vector.load %arg4[%c0_19, %c0_20, %c0_21] : memref<1x1x256xf32, #tpu.memory_space<vmem>>, vector<1x1x256xf32>
      tpu.vector_store %arg4[%c0_19, %c0_20, %c0_21], %19 {strides = array<i32>} : memref<1x1x256xf32, #tpu.memory_space<vmem>>, vector<1x1x256xf32>,
      %cst_22 = arith.constant 0.000000e+00 : f32
      %21 = vector.broadcast %cst_22 : f32 to vector<1x1x256xf32>
      %c0_23 = arith.constant 0 : index
      %c0_24 = arith.constant 0 : index
      %c0_25 = arith.constant 0 : index
      %22 = vector.load %arg5[%c0_23, %c0_24, %c0_25] : memref<1x1x256xf32, #tpu.memory_space<vmem>>, vector<1x1x256xf32>
      tpu.vector_store %arg5[%c0_23, %c0_24, %c0_25], %21 {strides = array<i32>} : memref<1x1x256xf32, #tpu.memory_space<vmem>>, vector<1x1x256xf32>,
    } else {
    }
    %c0_3 = arith.constant 0 : index
    %c0_4 = arith.constant 0 : index
    %c0_5 = arith.constant 0 : index
    %5 = vector.load %arg4[%c0_3, %c0_4, %c0_5] : memref<1x1x256xf32, #tpu.memory_space<vmem>>, vector<1x1x256xf32>
    %cst = arith.constant dense<0.000000e+00> : vector<1x256xf32>
    %6 = vector.multi_reduction <add>, %1, %cst [1] : vector<1x16x256xf32> to vector<1x256xf32>
    %7 = vector.shape_cast %6 : vector<1x256xf32> to vector<1x1x256xf32>
    %8 = arith.addf %5, %7 : vector<1x1x256xf32>
    %c0_6 = arith.constant 0 : index
    %c0_7 = arith.constant 0 : index
    %c0_8 = arith.constant 0 : index
    %9 = vector.load %arg4[%c0_6, %c0_7, %c0_8] : memref<1x1x256xf32, #tpu.memory_space<vmem>>, vector<1x1x256xf32>
    tpu.vector_store %arg4[%c0_6, %c0_7, %c0_8], %8 {strides = array<i32>} : memref<1x1x256xf32, #tpu.memory_space<vmem>>, vector<1x1x256xf32>,
    %c0_9 = arith.constant 0 : index
    %c0_10 = arith.constant 0 : index
    %c0_11 = arith.constant 0 : index
    %10 = vector.load %arg5[%c0_9, %c0_10, %c0_11] : memref<1x1x256xf32, #tpu.memory_space<vmem>>, vector<1x1x256xf32>
    %11 = arith.mulf %1, %1 : vector<1x16x256xf32>
    %cst_12 = arith.constant dense<0.000000e+00> : vector<1x256xf32>
    %12 = vector.multi_reduction <add>, %11, %cst_12 [1] : vector<1x16x256xf32> to vector<1x256xf32>
    %13 = vector.shape_cast %12 : vector<1x256xf32> to vector<1x1x256xf32>
    %14 = arith.addf %10, %13 : vector<1x1x256xf32>
    %c0_13 = arith.constant 0 : index
    %c0_14 = arith.constant 0 : index
    %c0_15 = arith.constant 0 : index
    %15 = vector.load %arg5[%c0_13, %c0_14, %c0_15] : memref<1x1x256xf32, #tpu.memory_space<vmem>>, vector<1x1x256xf32>
    tpu.vector_store %arg5[%c0_13, %c0_14, %c0_15], %14 {strides = array<i32>} : memref<1x1x256xf32, #tpu.memory_space<vmem>>, vector<1x1x256xf32>,
    %c0_i32_16 = arith.constant 0 : i32
    %16 = arith.cmpi eq, %arg2, %c0_i32_16 : i32
    %17 = arith.extui %16 : i1 to i32
    %c0_i32_17 = arith.constant 0 : i32
    %18 = arith.cmpi ne, %17, %c0_i32_17 : i32
    scf.if %18 {
      %c0_18 = arith.constant 0 : index
      %c0_19 = arith.constant 0 : index
      %c0_20 = arith.constant 0 : index
      %19 = vector.load %arg4[%c0_18, %c0_19, %c0_20] : memref<1x1x256xf32, #tpu.memory_space<vmem>>, vector<1x1x256xf32>
      %cst_21 = arith.constant 1.600000e+01 : f32
      %20 = vector.broadcast %cst_21 : f32 to vector<1x1x256xf32>
      %21 = arith.divf %19, %20 : vector<1x1x256xf32>
      %c0_22 = arith.constant 0 : index
      %c0_23 = arith.constant 0 : index
      %c0_24 = arith.constant 0 : index
      %22 = vector.load %arg5[%c0_22, %c0_23, %c0_24] : memref<1x1x256xf32, #tpu.memory_space<vmem>>, vector<1x1x256xf32>
      %cst_25 = arith.constant 1.600000e+01 : f32
      %23 = vector.broadcast %cst_25 : f32 to vector<1x1x256xf32>
      %24 = arith.divf %22, %23 : vector<1x1x256xf32>
      %25 = arith.mulf %21, %21 : vector<1x1x256xf32>
      %26 = arith.subf %24, %25 : vector<1x1x256xf32>
      %c0_26 = arith.constant 0 : index
      %c0_27 = arith.constant 0 : index
      %c0_28 = arith.constant 0 : index
      %27 = vector.load %arg4[%c0_26, %c0_27, %c0_28] : memref<1x1x256xf32, #tpu.memory_space<vmem>>, vector<1x1x256xf32>
      tpu.vector_store %arg4[%c0_26, %c0_27, %c0_28], %21 {strides = array<i32>} : memref<1x1x256xf32, #tpu.memory_space<vmem>>, vector<1x1x256xf32>,
      %cst_29 = arith.constant 9.99999974E-6 : f32
      %28 = vector.broadcast %cst_29 : f32 to vector<1x1x256xf32>
      %29 = arith.addf %26, %28 : vector<1x1x256xf32>
      %30 = math.rsqrt %29 : vector<1x1x256xf32>
      %c0_30 = arith.constant 0 : index
      %c0_31 = arith.constant 0 : index
      %c0_32 = arith.constant 0 : index
      %31 = vector.load %arg5[%c0_30, %c0_31, %c0_32] : memref<1x1x256xf32, #tpu.memory_space<vmem>>, vector<1x1x256xf32>
      tpu.vector_store %arg5[%c0_30, %c0_31, %c0_32], %30 {strides = array<i32>} : memref<1x1x256xf32, #tpu.memory_space<vmem>>, vector<1x1x256xf32>,
    } else {
    }
    return
  }
  func.func @transform_0(%arg0: i32, %arg1: i32, %arg2: i32) -> (i32, i32, i32) {
    %c0_i32 = arith.constant 0 : i32
    return %arg0, %arg2, %arg1 : i32, i32, i32
  }
  func.func @transform_1(%arg0: i32, %arg1: i32, %arg2: i32) -> (i32, i32, i32) {
    %c0_i32 = arith.constant 0 : i32
    %c0_i32_0 = arith.constant 0 : i32
    return %arg0, %c0_i32, %arg1 : i32, i32, i32
  }
  func.func @transform_2(%arg0: i32, %arg1: i32, %arg2: i32) -> (i32, i32, i32) {
    %c0_i32 = arith.constant 0 : i32
    %c0_i32_0 = arith.constant 0 : i32
    return %arg0, %c0_i32, %arg1 : i32, i32, i32
  }
}

module attributes {stable_mosaic.version = 11 : i64} {
  func.func @_matmul_act_kernel(%arg0: i32, %arg1: i32, %arg2: i32, %arg3: memref<32x512xbf16, #tpu.memory_space<vmem>>, %arg4: memref<512x256xbf16, #tpu.memory_space<vmem>>, %arg5: memref<32x256xbf16, #tpu.memory_space<vmem>>, %arg6: memref<32x256xf32, #tpu.memory_space<vmem>>) attributes {dimension_semantics = [#tpu.dimension_semantics<parallel>, #tpu.dimension_semantics<parallel>, #tpu.dimension_semantics<arbitrary>], iteration_bounds = array<i64: 1, 1, 4>, scalar_prefetch = 0 : i64, scratch_operands = 1 : i64, tpu.core_type = #tpu.core_type<tc>, window_params = [{transform_indices = @transform_0, window_bounds = array<i64: 32, 512>}, {transform_indices = @transform_1, window_bounds = array<i64: 512, 256>}, {transform_indices = @transform_2, window_bounds = array<i64: 32, 256>}]} {
    %c0_i32 = arith.constant 0 : i32
    %0 = arith.cmpi eq, %arg2, %c0_i32 : i32
    %1 = arith.extui %0 : i1 to i32
    %c0_i32_0 = arith.constant 0 : i32
    %2 = arith.cmpi ne, %1, %c0_i32_0 : i32
    scf.if %2 {
      %cst_9 = arith.constant 0.000000e+00 : f32
      %12 = vector.broadcast %cst_9 : f32 to vector<32x256xf32>
      %c0_10 = arith.constant 0 : index
      %c0_11 = arith.constant 0 : index
      %13 = vector.load %arg6[%c0_10, %c0_11] : memref<32x256xf32, #tpu.memory_space<vmem>>, vector<32x256xf32>
      tpu.vector_store %arg6[%c0_10, %c0_11], %12 {strides = array<i32>} : memref<32x256xf32, #tpu.memory_space<vmem>>, vector<32x256xf32>,
    } else {
    }
    %c0 = arith.constant 0 : index
    %c0_1 = arith.constant 0 : index
    %3 = vector.load %arg6[%c0, %c0_1] : memref<32x256xf32, #tpu.memory_space<vmem>>, vector<32x256xf32>
    %c0_2 = arith.constant 0 : index
    %c0_3 = arith.constant 0 : index
    %4 = vector.load %arg3[%c0_2, %c0_3] : memref<32x512xbf16, #tpu.memory_space<vmem>>, vector<32x512xbf16>
    %c0_4 = arith.constant 0 : index
    %c0_5 = arith.constant 0 : index
    %5 = vector.load %arg4[%c0_4, %c0_5] : memref<512x256xbf16, #tpu.memory_space<vmem>>, vector<512x256xbf16>
    %cst = arith.constant dense<0.000000e+00> : vector<32x256xf32>
    %6 = tpu.matmul %4, %5, %cst {dimension_numbers = #tpu.dot_dimension_numbers<[1], [0], [0], [1], [0, 0, 1, 1], [], []>} : vector<32x512xbf16>, vector<512x256xbf16>, vector<32x256xf32> -> vector<32x256xf32>
    %7 = arith.addf %3, %6 : vector<32x256xf32>
    %c0_6 = arith.constant 0 : index
    %c0_7 = arith.constant 0 : index
    %8 = vector.load %arg6[%c0_6, %c0_7] : memref<32x256xf32, #tpu.memory_space<vmem>>, vector<32x256xf32>
    tpu.vector_store %arg6[%c0_6, %c0_7], %7 {strides = array<i32>} : memref<32x256xf32, #tpu.memory_space<vmem>>, vector<32x256xf32>,
    %c3_i32 = arith.constant 3 : i32
    %9 = arith.cmpi eq, %arg2, %c3_i32 : i32
    %10 = arith.extui %9 : i1 to i32
    %c0_i32_8 = arith.constant 0 : i32
    %11 = arith.cmpi ne, %10, %c0_i32_8 : i32
    scf.if %11 {
      %c0_9 = arith.constant 0 : index
      %c0_10 = arith.constant 0 : index
      %12 = vector.load %arg6[%c0_9, %c0_10] : memref<32x256xf32, #tpu.memory_space<vmem>>, vector<32x256xf32>
      %13 = arith.truncf %12 : vector<32x256xf32> to vector<32x256xbf16>
      %c0_11 = arith.constant 0 : index
      %c0_12 = arith.constant 0 : index
      %14 = vector.load %arg5[%c0_11, %c0_12] : memref<32x256xbf16, #tpu.memory_space<vmem>>, vector<32x256xbf16>
      tpu.vector_store %arg5[%c0_11, %c0_12], %13 {strides = array<i32>} : memref<32x256xbf16, #tpu.memory_space<vmem>>, vector<32x256xbf16>,
    } else {
    }
    return
  }
  func.func @transform_0(%arg0: i32, %arg1: i32, %arg2: i32) -> (i32, i32) {
    %c0_i32 = arith.constant 0 : i32
    return %arg0, %arg2 : i32, i32
  }
  func.func @transform_1(%arg0: i32, %arg1: i32, %arg2: i32) -> (i32, i32) {
    %c0_i32 = arith.constant 0 : i32
    return %arg2, %arg1 : i32, i32
  }
  func.func @transform_2(%arg0: i32, %arg1: i32, %arg2: i32) -> (i32, i32) {
    %c0_i32 = arith.constant 0 : i32
    return %arg0, %arg1 : i32, i32
  }
}

module attributes {stable_mosaic.version = 11 : i64} {
  func.func @_instnorm_apply_kernel(%arg0: i32, %arg1: i32, %arg2: i32, %arg3: memref<1x16x256xbf16, #tpu.memory_space<vmem>>, %arg4: memref<1x1x256xf32, #tpu.memory_space<vmem>>, %arg5: memref<1x1x256xf32, #tpu.memory_space<vmem>>, %arg6: memref<1x16x256xbf16, #tpu.memory_space<vmem>>) attributes {dimension_semantics = [#tpu.dimension_semantics<parallel>, #tpu.dimension_semantics<parallel>, #tpu.dimension_semantics<parallel>], iteration_bounds = array<i64: 2, 1, 1>, scalar_prefetch = 0 : i64, scratch_operands = 0 : i64, tpu.core_type = #tpu.core_type<tc>, window_params = [{transform_indices = @transform_0, window_bounds = array<i64: 1, 16, 256>}, {transform_indices = @transform_1, window_bounds = array<i64: 1, 1, 256>}, {transform_indices = @transform_2, window_bounds = array<i64: 1, 1, 256>}, {transform_indices = @transform_3, window_bounds = array<i64: 1, 16, 256>}]} {
    %c0 = arith.constant 0 : index
    %c0_0 = arith.constant 0 : index
    %c0_1 = arith.constant 0 : index
    %0 = vector.load %arg3[%c0, %c0_0, %c0_1] : memref<1x16x256xbf16, #tpu.memory_space<vmem>>, vector<1x16x256xbf16>
    %1 = arith.extf %0 : vector<1x16x256xbf16> to vector<1x16x256xf32>
    %c0_2 = arith.constant 0 : index
    %c0_3 = arith.constant 0 : index
    %c0_4 = arith.constant 0 : index
    %2 = vector.load %arg4[%c0_2, %c0_3, %c0_4] : memref<1x1x256xf32, #tpu.memory_space<vmem>>, vector<1x1x256xf32>
    %3 = vector.broadcast %2 : vector<1x1x256xf32> to vector<1x16x256xf32>
    %4 = arith.subf %1, %3 : vector<1x16x256xf32>
    %c0_5 = arith.constant 0 : index
    %c0_6 = arith.constant 0 : index
    %c0_7 = arith.constant 0 : index
    %5 = vector.load %arg5[%c0_5, %c0_6, %c0_7] : memref<1x1x256xf32, #tpu.memory_space<vmem>>, vector<1x1x256xf32>
    %6 = vector.broadcast %5 : vector<1x1x256xf32> to vector<1x16x256xf32>
    %7 = arith.mulf %4, %6 : vector<1x16x256xf32>
    %cst = arith.constant 0.000000e+00 : f32
    %8 = vector.broadcast %cst : f32 to vector<1x16x256xf32>
    %9 = arith.cmpf ogt, %7, %8 : vector<1x16x256xf32>
    %cst_8 = arith.constant 2.000000e-01 : f32
    %10 = vector.broadcast %cst_8 : f32 to vector<1x16x256xf32>
    %11 = arith.mulf %10, %7 : vector<1x16x256xf32>
    %12 = arith.select %9, %7, %11 : vector<1x16x256xi1>, vector<1x16x256xf32>
    %13 = arith.truncf %12 : vector<1x16x256xf32> to vector<1x16x256xbf16>
    %c0_9 = arith.constant 0 : index
    %c0_10 = arith.constant 0 : index
    %c0_11 = arith.constant 0 : index
    %14 = vector.load %arg6[%c0_9, %c0_10, %c0_11] : memref<1x16x256xbf16, #tpu.memory_space<vmem>>, vector<1x16x256xbf16>
    tpu.vector_store %arg6[%c0_9, %c0_10, %c0_11], %13 {strides = array<i32>} : memref<1x16x256xbf16, #tpu.memory_space<vmem>>, vector<1x16x256xbf16>,
    return
  }
  func.func @transform_0(%arg0: i32, %arg1: i32, %arg2: i32) -> (i32, i32, i32) {
    %c0_i32 = arith.constant 0 : i32
    return %arg0, %arg2, %arg1 : i32, i32, i32
  }
  func.func @transform_1(%arg0: i32, %arg1: i32, %arg2: i32) -> (i32, i32, i32) {
    %c0_i32 = arith.constant 0 : i32
    %c0_i32_0 = arith.constant 0 : i32
    return %arg0, %c0_i32, %arg1 : i32, i32, i32
  }
  func.func @transform_2(%arg0: i32, %arg1: i32, %arg2: i32) -> (i32, i32, i32) {
    %c0_i32 = arith.constant 0 : i32
    %c0_i32_0 = arith.constant 0 : i32
    return %arg0, %c0_i32, %arg1 : i32, i32, i32
  }
  func.func @transform_3(%arg0: i32, %arg1: i32, %arg2: i32) -> (i32, i32, i32) {
    %c0_i32 = arith.constant 0 : i32
    return %arg0, %arg2, %arg1 : i32, i32, i32
  }
}

module attributes {stable_mosaic.version = 11 : i64} {
  func.func @_matmul_act_kernel(%arg0: i32, %arg1: i32, %arg2: i32, %arg3: memref<24x512xbf16, #tpu.memory_space<vmem>>, %arg4: memref<512x512xbf16, #tpu.memory_space<vmem>>, %arg5: memref<24x512xbf16, #tpu.memory_space<vmem>>, %arg6: memref<24x512xf32, #tpu.memory_space<vmem>>) attributes {dimension_semantics = [#tpu.dimension_semantics<parallel>, #tpu.dimension_semantics<parallel>, #tpu.dimension_semantics<arbitrary>], iteration_bounds = array<i64: 1, 1, 8>, scalar_prefetch = 0 : i64, scratch_operands = 1 : i64, tpu.core_type = #tpu.core_type<tc>, window_params = [{transform_indices = @transform_0, window_bounds = array<i64: 24, 512>}, {transform_indices = @transform_1, window_bounds = array<i64: 512, 512>}, {transform_indices = @transform_2, window_bounds = array<i64: 24, 512>}]} {
    %c0_i32 = arith.constant 0 : i32
    %0 = arith.cmpi eq, %arg2, %c0_i32 : i32
    %1 = arith.extui %0 : i1 to i32
    %c0_i32_0 = arith.constant 0 : i32
    %2 = arith.cmpi ne, %1, %c0_i32_0 : i32
    scf.if %2 {
      %cst_9 = arith.constant 0.000000e+00 : f32
      %12 = vector.broadcast %cst_9 : f32 to vector<24x512xf32>
      %c0_10 = arith.constant 0 : index
      %c0_11 = arith.constant 0 : index
      %13 = vector.load %arg6[%c0_10, %c0_11] : memref<24x512xf32, #tpu.memory_space<vmem>>, vector<24x512xf32>
      tpu.vector_store %arg6[%c0_10, %c0_11], %12 {strides = array<i32>} : memref<24x512xf32, #tpu.memory_space<vmem>>, vector<24x512xf32>,
    } else {
    }
    %c0 = arith.constant 0 : index
    %c0_1 = arith.constant 0 : index
    %3 = vector.load %arg6[%c0, %c0_1] : memref<24x512xf32, #tpu.memory_space<vmem>>, vector<24x512xf32>
    %c0_2 = arith.constant 0 : index
    %c0_3 = arith.constant 0 : index
    %4 = vector.load %arg3[%c0_2, %c0_3] : memref<24x512xbf16, #tpu.memory_space<vmem>>, vector<24x512xbf16>
    %c0_4 = arith.constant 0 : index
    %c0_5 = arith.constant 0 : index
    %5 = vector.load %arg4[%c0_4, %c0_5] : memref<512x512xbf16, #tpu.memory_space<vmem>>, vector<512x512xbf16>
    %cst = arith.constant dense<0.000000e+00> : vector<24x512xf32>
    %6 = tpu.matmul %4, %5, %cst {dimension_numbers = #tpu.dot_dimension_numbers<[1], [0], [0], [1], [0, 0, 1, 1], [], []>} : vector<24x512xbf16>, vector<512x512xbf16>, vector<24x512xf32> -> vector<24x512xf32>
    %7 = arith.addf %3, %6 : vector<24x512xf32>
    %c0_6 = arith.constant 0 : index
    %c0_7 = arith.constant 0 : index
    %8 = vector.load %arg6[%c0_6, %c0_7] : memref<24x512xf32, #tpu.memory_space<vmem>>, vector<24x512xf32>
    tpu.vector_store %arg6[%c0_6, %c0_7], %7 {strides = array<i32>} : memref<24x512xf32, #tpu.memory_space<vmem>>, vector<24x512xf32>,
    %c7_i32 = arith.constant 7 : i32
    %9 = arith.cmpi eq, %arg2, %c7_i32 : i32
    %10 = arith.extui %9 : i1 to i32
    %c0_i32_8 = arith.constant 0 : i32
    %11 = arith.cmpi ne, %10, %c0_i32_8 : i32
    scf.if %11 {
      %c0_9 = arith.constant 0 : index
      %c0_10 = arith.constant 0 : index
      %12 = vector.load %arg6[%c0_9, %c0_10] : memref<24x512xf32, #tpu.memory_space<vmem>>, vector<24x512xf32>
      %13 = arith.truncf %12 : vector<24x512xf32> to vector<24x512xbf16>
      %c0_11 = arith.constant 0 : index
      %c0_12 = arith.constant 0 : index
      %14 = vector.load %arg5[%c0_11, %c0_12] : memref<24x512xbf16, #tpu.memory_space<vmem>>, vector<24x512xbf16>
      tpu.vector_store %arg5[%c0_11, %c0_12], %13 {strides = array<i32>} : memref<24x512xbf16, #tpu.memory_space<vmem>>, vector<24x512xbf16>,
    } else {
    }
    return
  }
  func.func @transform_0(%arg0: i32, %arg1: i32, %arg2: i32) -> (i32, i32) {
    %c0_i32 = arith.constant 0 : i32
    return %arg0, %arg2 : i32, i32
  }
  func.func @transform_1(%arg0: i32, %arg1: i32, %arg2: i32) -> (i32, i32) {
    %c0_i32 = arith.constant 0 : i32
    return %arg2, %arg1 : i32, i32
  }
  func.func @transform_2(%arg0: i32, %arg1: i32, %arg2: i32) -> (i32, i32) {
    %c0_i32 = arith.constant 0 : i32
    return %arg0, %arg1 : i32, i32
  }
}

module attributes {stable_mosaic.version = 11 : i64} {
  func.func @_instnorm_stats_kernel(%arg0: i32, %arg1: i32, %arg2: i32, %arg3: memref<1x9x256xbf16, #tpu.memory_space<vmem>>, %arg4: memref<1x1x256xf32, #tpu.memory_space<vmem>>, %arg5: memref<1x1x256xf32, #tpu.memory_space<vmem>>) attributes {dimension_semantics = [#tpu.dimension_semantics<parallel>, #tpu.dimension_semantics<parallel>, #tpu.dimension_semantics<arbitrary>], iteration_bounds = array<i64: 2, 2, 1>, scalar_prefetch = 0 : i64, scratch_operands = 0 : i64, tpu.core_type = #tpu.core_type<tc>, window_params = [{transform_indices = @transform_0, window_bounds = array<i64: 1, 9, 256>}, {transform_indices = @transform_1, window_bounds = array<i64: 1, 1, 256>}, {transform_indices = @transform_2, window_bounds = array<i64: 1, 1, 256>}]} {
    %c0 = arith.constant 0 : index
    %c0_0 = arith.constant 0 : index
    %c0_1 = arith.constant 0 : index
    %0 = vector.load %arg3[%c0, %c0_0, %c0_1] : memref<1x9x256xbf16, #tpu.memory_space<vmem>>, vector<1x9x256xbf16>
    %1 = arith.extf %0 : vector<1x9x256xbf16> to vector<1x9x256xf32>
    %c0_i32 = arith.constant 0 : i32
    %2 = arith.cmpi eq, %arg2, %c0_i32 : i32
    %3 = arith.extui %2 : i1 to i32
    %c0_i32_2 = arith.constant 0 : i32
    %4 = arith.cmpi ne, %3, %c0_i32_2 : i32
    scf.if %4 {
      %cst_18 = arith.constant 0.000000e+00 : f32
      %19 = vector.broadcast %cst_18 : f32 to vector<1x1x256xf32>
      %c0_19 = arith.constant 0 : index
      %c0_20 = arith.constant 0 : index
      %c0_21 = arith.constant 0 : index
      %20 = vector.load %arg4[%c0_19, %c0_20, %c0_21] : memref<1x1x256xf32, #tpu.memory_space<vmem>>, vector<1x1x256xf32>
      tpu.vector_store %arg4[%c0_19, %c0_20, %c0_21], %19 {strides = array<i32>} : memref<1x1x256xf32, #tpu.memory_space<vmem>>, vector<1x1x256xf32>,
      %cst_22 = arith.constant 0.000000e+00 : f32
      %21 = vector.broadcast %cst_22 : f32 to vector<1x1x256xf32>
      %c0_23 = arith.constant 0 : index
      %c0_24 = arith.constant 0 : index
      %c0_25 = arith.constant 0 : index
      %22 = vector.load %arg5[%c0_23, %c0_24, %c0_25] : memref<1x1x256xf32, #tpu.memory_space<vmem>>, vector<1x1x256xf32>
      tpu.vector_store %arg5[%c0_23, %c0_24, %c0_25], %21 {strides = array<i32>} : memref<1x1x256xf32, #tpu.memory_space<vmem>>, vector<1x1x256xf32>,
    } else {
    }
    %c0_3 = arith.constant 0 : index
    %c0_4 = arith.constant 0 : index
    %c0_5 = arith.constant 0 : index
    %5 = vector.load %arg4[%c0_3, %c0_4, %c0_5] : memref<1x1x256xf32, #tpu.memory_space<vmem>>, vector<1x1x256xf32>
    %cst = arith.constant dense<0.000000e+00> : vector<1x256xf32>
    %6 = vector.multi_reduction <add>, %1, %cst [1] : vector<1x9x256xf32> to vector<1x256xf32>
    %7 = vector.shape_cast %6 : vector<1x256xf32> to vector<1x1x256xf32>
    %8 = arith.addf %5, %7 : vector<1x1x256xf32>
    %c0_6 = arith.constant 0 : index
    %c0_7 = arith.constant 0 : index
    %c0_8 = arith.constant 0 : index
    %9 = vector.load %arg4[%c0_6, %c0_7, %c0_8] : memref<1x1x256xf32, #tpu.memory_space<vmem>>, vector<1x1x256xf32>
    tpu.vector_store %arg4[%c0_6, %c0_7, %c0_8], %8 {strides = array<i32>} : memref<1x1x256xf32, #tpu.memory_space<vmem>>, vector<1x1x256xf32>,
    %c0_9 = arith.constant 0 : index
    %c0_10 = arith.constant 0 : index
    %c0_11 = arith.constant 0 : index
    %10 = vector.load %arg5[%c0_9, %c0_10, %c0_11] : memref<1x1x256xf32, #tpu.memory_space<vmem>>, vector<1x1x256xf32>
    %11 = arith.mulf %1, %1 : vector<1x9x256xf32>
    %cst_12 = arith.constant dense<0.000000e+00> : vector<1x256xf32>
    %12 = vector.multi_reduction <add>, %11, %cst_12 [1] : vector<1x9x256xf32> to vector<1x256xf32>
    %13 = vector.shape_cast %12 : vector<1x256xf32> to vector<1x1x256xf32>
    %14 = arith.addf %10, %13 : vector<1x1x256xf32>
    %c0_13 = arith.constant 0 : index
    %c0_14 = arith.constant 0 : index
    %c0_15 = arith.constant 0 : index
    %15 = vector.load %arg5[%c0_13, %c0_14, %c0_15] : memref<1x1x256xf32, #tpu.memory_space<vmem>>, vector<1x1x256xf32>
    tpu.vector_store %arg5[%c0_13, %c0_14, %c0_15], %14 {strides = array<i32>} : memref<1x1x256xf32, #tpu.memory_space<vmem>>, vector<1x1x256xf32>,
    %c0_i32_16 = arith.constant 0 : i32
    %16 = arith.cmpi eq, %arg2, %c0_i32_16 : i32
    %17 = arith.extui %16 : i1 to i32
    %c0_i32_17 = arith.constant 0 : i32
    %18 = arith.cmpi ne, %17, %c0_i32_17 : i32
    scf.if %18 {
      %c0_18 = arith.constant 0 : index
      %c0_19 = arith.constant 0 : index
      %c0_20 = arith.constant 0 : index
      %19 = vector.load %arg4[%c0_18, %c0_19, %c0_20] : memref<1x1x256xf32, #tpu.memory_space<vmem>>, vector<1x1x256xf32>
      %cst_21 = arith.constant 9.000000e+00 : f32
      %20 = vector.broadcast %cst_21 : f32 to vector<1x1x256xf32>
      %21 = arith.divf %19, %20 : vector<1x1x256xf32>
      %c0_22 = arith.constant 0 : index
      %c0_23 = arith.constant 0 : index
      %c0_24 = arith.constant 0 : index
      %22 = vector.load %arg5[%c0_22, %c0_23, %c0_24] : memref<1x1x256xf32, #tpu.memory_space<vmem>>, vector<1x1x256xf32>
      %cst_25 = arith.constant 9.000000e+00 : f32
      %23 = vector.broadcast %cst_25 : f32 to vector<1x1x256xf32>
      %24 = arith.divf %22, %23 : vector<1x1x256xf32>
      %25 = arith.mulf %21, %21 : vector<1x1x256xf32>
      %26 = arith.subf %24, %25 : vector<1x1x256xf32>
      %c0_26 = arith.constant 0 : index
      %c0_27 = arith.constant 0 : index
      %c0_28 = arith.constant 0 : index
      %27 = vector.load %arg4[%c0_26, %c0_27, %c0_28] : memref<1x1x256xf32, #tpu.memory_space<vmem>>, vector<1x1x256xf32>
      tpu.vector_store %arg4[%c0_26, %c0_27, %c0_28], %21 {strides = array<i32>} : memref<1x1x256xf32, #tpu.memory_space<vmem>>, vector<1x1x256xf32>,
      %cst_29 = arith.constant 9.99999974E-6 : f32
      %28 = vector.broadcast %cst_29 : f32 to vector<1x1x256xf32>
      %29 = arith.addf %26, %28 : vector<1x1x256xf32>
      %30 = math.rsqrt %29 : vector<1x1x256xf32>
      %c0_30 = arith.constant 0 : index
      %c0_31 = arith.constant 0 : index
      %c0_32 = arith.constant 0 : index
      %31 = vector.load %arg5[%c0_30, %c0_31, %c0_32] : memref<1x1x256xf32, #tpu.memory_space<vmem>>, vector<1x1x256xf32>
      tpu.vector_store %arg5[%c0_30, %c0_31, %c0_32], %30 {strides = array<i32>} : memref<1x1x256xf32, #tpu.memory_space<vmem>>, vector<1x1x256xf32>,
    } else {
    }
    return
  }
  func.func @transform_0(%arg0: i32, %arg1: i32, %arg2: i32) -> (i32, i32, i32) {
    %c0_i32 = arith.constant 0 : i32
    return %arg0, %arg2, %arg1 : i32, i32, i32
  }
  func.func @transform_1(%arg0: i32, %arg1: i32, %arg2: i32) -> (i32, i32, i32) {
    %c0_i32 = arith.constant 0 : i32
    %c0_i32_0 = arith.constant 0 : i32
    return %arg0, %c0_i32, %arg1 : i32, i32, i32
  }
  func.func @transform_2(%arg0: i32, %arg1: i32, %arg2: i32) -> (i32, i32, i32) {
    %c0_i32 = arith.constant 0 : i32
    %c0_i32_0 = arith.constant 0 : i32
    return %arg0, %c0_i32, %arg1 : i32, i32, i32
  }
}

module attributes {stable_mosaic.version = 11 : i64} {
  func.func @_instnorm_apply_kernel(%arg0: i32, %arg1: i32, %arg2: i32, %arg3: memref<1x9x256xbf16, #tpu.memory_space<vmem>>, %arg4: memref<1x1x256xf32, #tpu.memory_space<vmem>>, %arg5: memref<1x1x256xf32, #tpu.memory_space<vmem>>, %arg6: memref<1x9x256xbf16, #tpu.memory_space<vmem>>) attributes {dimension_semantics = [#tpu.dimension_semantics<parallel>, #tpu.dimension_semantics<parallel>, #tpu.dimension_semantics<parallel>], iteration_bounds = array<i64: 2, 2, 1>, scalar_prefetch = 0 : i64, scratch_operands = 0 : i64, tpu.core_type = #tpu.core_type<tc>, window_params = [{transform_indices = @transform_0, window_bounds = array<i64: 1, 9, 256>}, {transform_indices = @transform_1, window_bounds = array<i64: 1, 1, 256>}, {transform_indices = @transform_2, window_bounds = array<i64: 1, 1, 256>}, {transform_indices = @transform_3, window_bounds = array<i64: 1, 9, 256>}]} {
    %c0 = arith.constant 0 : index
    %c0_0 = arith.constant 0 : index
    %c0_1 = arith.constant 0 : index
    %0 = vector.load %arg3[%c0, %c0_0, %c0_1] : memref<1x9x256xbf16, #tpu.memory_space<vmem>>, vector<1x9x256xbf16>
    %1 = arith.extf %0 : vector<1x9x256xbf16> to vector<1x9x256xf32>
    %c0_2 = arith.constant 0 : index
    %c0_3 = arith.constant 0 : index
    %c0_4 = arith.constant 0 : index
    %2 = vector.load %arg4[%c0_2, %c0_3, %c0_4] : memref<1x1x256xf32, #tpu.memory_space<vmem>>, vector<1x1x256xf32>
    %3 = vector.broadcast %2 : vector<1x1x256xf32> to vector<1x9x256xf32>
    %4 = arith.subf %1, %3 : vector<1x9x256xf32>
    %c0_5 = arith.constant 0 : index
    %c0_6 = arith.constant 0 : index
    %c0_7 = arith.constant 0 : index
    %5 = vector.load %arg5[%c0_5, %c0_6, %c0_7] : memref<1x1x256xf32, #tpu.memory_space<vmem>>, vector<1x1x256xf32>
    %6 = vector.broadcast %5 : vector<1x1x256xf32> to vector<1x9x256xf32>
    %7 = arith.mulf %4, %6 : vector<1x9x256xf32>
    %cst = arith.constant 0.000000e+00 : f32
    %8 = vector.broadcast %cst : f32 to vector<1x9x256xf32>
    %9 = arith.cmpf ogt, %7, %8 : vector<1x9x256xf32>
    %cst_8 = arith.constant 2.000000e-01 : f32
    %10 = vector.broadcast %cst_8 : f32 to vector<1x9x256xf32>
    %11 = arith.mulf %10, %7 : vector<1x9x256xf32>
    %12 = arith.select %9, %7, %11 : vector<1x9x256xi1>, vector<1x9x256xf32>
    %13 = arith.truncf %12 : vector<1x9x256xf32> to vector<1x9x256xbf16>
    %c0_9 = arith.constant 0 : index
    %c0_10 = arith.constant 0 : index
    %c0_11 = arith.constant 0 : index
    %14 = vector.load %arg6[%c0_9, %c0_10, %c0_11] : memref<1x9x256xbf16, #tpu.memory_space<vmem>>, vector<1x9x256xbf16>
    tpu.vector_store %arg6[%c0_9, %c0_10, %c0_11], %13 {strides = array<i32>} : memref<1x9x256xbf16, #tpu.memory_space<vmem>>, vector<1x9x256xbf16>,
    return
  }
  func.func @transform_0(%arg0: i32, %arg1: i32, %arg2: i32) -> (i32, i32, i32) {
    %c0_i32 = arith.constant 0 : i32
    return %arg0, %arg2, %arg1 : i32, i32, i32
  }
  func.func @transform_1(%arg0: i32, %arg1: i32, %arg2: i32) -> (i32, i32, i32) {
    %c0_i32 = arith.constant 0 : i32
    %c0_i32_0 = arith.constant 0 : i32
    return %arg0, %c0_i32, %arg1 : i32, i32, i32
  }
  func.func @transform_2(%arg0: i32, %arg1: i32, %arg2: i32) -> (i32, i32, i32) {
    %c0_i32 = arith.constant 0 : i32
    %c0_i32_0 = arith.constant 0 : i32
    return %arg0, %c0_i32, %arg1 : i32, i32, i32
  }
  func.func @transform_3(%arg0: i32, %arg1: i32, %arg2: i32) -> (i32, i32, i32) {
    %c0_i32 = arith.constant 0 : i32
    return %arg0, %arg2, %arg1 : i32, i32, i32
  }
}

module attributes {stable_mosaic.version = 11 : i64} {
  func.func @_dot_reduce_kernel(%arg0: i32, %arg1: i32, %arg2: memref<8x512xbf16, #tpu.memory_space<vmem>>, %arg3: memref<1x512xf32, #tpu.memory_space<vmem>>, %arg4: memref<8x1xf32, #tpu.memory_space<vmem>>, %arg5: memref<8x1xf32, #tpu.memory_space<vmem>>) attributes {dimension_semantics = [#tpu.dimension_semantics<parallel>, #tpu.dimension_semantics<arbitrary>], iteration_bounds = array<i64: 1, 16>, scalar_prefetch = 0 : i64, scratch_operands = 1 : i64, tpu.core_type = #tpu.core_type<tc>, window_params = [{transform_indices = @transform_0, window_bounds = array<i64: 8, 512>}, {transform_indices = @transform_1, window_bounds = array<i64: 1, 512>}, {transform_indices = @transform_2, window_bounds = array<i64: 8, 1>}]} {
    %c0_i32 = arith.constant 0 : i32
    %0 = arith.cmpi eq, %arg1, %c0_i32 : i32
    %1 = arith.extui %0 : i1 to i32
    %c0_i32_0 = arith.constant 0 : i32
    %2 = arith.cmpi ne, %1, %c0_i32_0 : i32
    scf.if %2 {
      %cst_9 = arith.constant 0.000000e+00 : f32
      %16 = vector.broadcast %cst_9 : f32 to vector<8x1xf32>
      %c0_10 = arith.constant 0 : index
      %c0_11 = arith.constant 0 : index
      %17 = vector.load %arg5[%c0_10, %c0_11] : memref<8x1xf32, #tpu.memory_space<vmem>>, vector<8x1xf32>
      tpu.vector_store %arg5[%c0_10, %c0_11], %16 {strides = array<i32>} : memref<8x1xf32, #tpu.memory_space<vmem>>, vector<8x1xf32>,
    } else {
    }
    %c0 = arith.constant 0 : index
    %c0_1 = arith.constant 0 : index
    %3 = vector.load %arg2[%c0, %c0_1] : memref<8x512xbf16, #tpu.memory_space<vmem>>, vector<8x512xbf16>
    %4 = arith.extf %3 : vector<8x512xbf16> to vector<8x512xf32>
    %c0_2 = arith.constant 0 : index
    %c0_3 = arith.constant 0 : index
    %5 = vector.load %arg5[%c0_2, %c0_3] : memref<8x1xf32, #tpu.memory_space<vmem>>, vector<8x1xf32>
    %c0_4 = arith.constant 0 : index
    %c0_5 = arith.constant 0 : index
    %6 = vector.load %arg3[%c0_4, %c0_5] : memref<1x512xf32, #tpu.memory_space<vmem>>, vector<1x512xf32>
    %7 = vector.broadcast %6 : vector<1x512xf32> to vector<8x512xf32>
    %8 = arith.mulf %4, %7 : vector<8x512xf32>
    %cst = arith.constant dense<0.000000e+00> : vector<8xf32>
    %9 = vector.multi_reduction <add>, %8, %cst [1] : vector<8x512xf32> to vector<8xf32>
    %10 = vector.shape_cast %9 : vector<8xf32> to vector<8x1xf32>
    %11 = arith.addf %5, %10 : vector<8x1xf32>
    %c0_6 = arith.constant 0 : index
    %c0_7 = arith.constant 0 : index
    %12 = vector.load %arg5[%c0_6, %c0_7] : memref<8x1xf32, #tpu.memory_space<vmem>>, vector<8x1xf32>
    tpu.vector_store %arg5[%c0_6, %c0_7], %11 {strides = array<i32>} : memref<8x1xf32, #tpu.memory_space<vmem>>, vector<8x1xf32>,
    %c15_i32 = arith.constant 15 : i32
    %13 = arith.cmpi eq, %arg1, %c15_i32 : i32
    %14 = arith.extui %13 : i1 to i32
    %c0_i32_8 = arith.constant 0 : i32
    %15 = arith.cmpi ne, %14, %c0_i32_8 : i32
    scf.if %15 {
      %c0_9 = arith.constant 0 : index
      %c0_10 = arith.constant 0 : index
      %16 = vector.load %arg5[%c0_9, %c0_10] : memref<8x1xf32, #tpu.memory_space<vmem>>, vector<8x1xf32>
      %c0_11 = arith.constant 0 : index
      %c0_12 = arith.constant 0 : index
      %17 = vector.load %arg4[%c0_11, %c0_12] : memref<8x1xf32, #tpu.memory_space<vmem>>, vector<8x1xf32>
      tpu.vector_store %arg4[%c0_11, %c0_12], %16 {strides = array<i32>} : memref<8x1xf32, #tpu.memory_space<vmem>>, vector<8x1xf32>,
    } else {
    }
    return
  }
  func.func @transform_0(%arg0: i32, %arg1: i32) -> (i32, i32) {
    %c0_i32 = arith.constant 0 : i32
    return %arg0, %arg1 : i32, i32
  }
  func.func @transform_1(%arg0: i32, %arg1: i32) -> (i32, i32) {
    %c0_i32 = arith.constant 0 : i32
    %c0_i32_0 = arith.constant 0 : i32
    return %c0_i32, %arg1 : i32, i32
  }
  func.func @transform_2(%arg0: i32, %arg1: i32) -> (i32, i32) {
    %c0_i32 = arith.constant 0 : i32
    %c0_i32_0 = arith.constant 0 : i32
    return %arg0, %c0_i32 : i32, i32
  }
}

</mosaic_0001>

<llo_original>
// kernel: image_discriminator.11
$region0: #{image_discriminator.11}
  #allocation0 [shape = 'u32[]', space=smem, size = 0x4, offset = 0x4, fixed_abs, tag = 'smem constant byte address 0x4 - core index']
  #allocation1 [shape = 'u32[72,128]{1,0:T(1,128)}', space=vmem, size = 0x9000, scoped, tag = 'internal scratch']
  #allocation2 [shape = 'f32[512,128]{1,0:T(8,128)}', space=vmem, size = 0x40000, scoped, tag = 'scratch operand']
  %s0 = inlined_call_operand.vmem [shape: bf16[512,128], index: 0, kind: input, shape index: {}]
  %s1 = inlined_call_operand.vmem [shape: bf16[128,128], index: 1, kind: input, shape index: {}]
  %s2 = inlined_call_operand.vmem [shape: bf16[512,128], index: 2, kind: output, shape index: {}]
  %s3 = sld [smem:[#allocation0]]
  $region26: #{image_discriminator.11} parent=0
    _
  %s5 = ssub.s32 1, %s3
  %s6 = scalar_select 0, %s5, %s3
  // Predicated region
  $region2: #{image_discriminator.11} parent=0 // pred_check
    _
  $region3: #{image_discriminator.11} parent=0 // pred_check_branch
    %8 = sbr.rel (0) target = $region5
  $region4: #{image_discriminator.11} parent=0 // pred_region
    _
  $region5: #{image_discriminator.11} parent=0 // pred_fallthru
    _
  // Predicated region
  $region6: #{image_discriminator.11} parent=0 // pred_check
    _
  $region7: #{image_discriminator.11} parent=0 // pred_check_branch
    %10 = sbr.rel (0) target = $region9
  $region8: #{image_discriminator.11} parent=0 // pred_region
    _
  $region9: #{image_discriminator.11} parent=0 // pred_fallthru
    _
  %p11 = scmp.eq.s32.totalorder 0, 0
  // Predicated region
  $region10: #{image_discriminator.11} parent=0 // pred_check
    %p12 = pneg %p11
  $region11: #{image_discriminator.11} parent=0 // pred_check_branch
    %14 = sbr.rel (%p12) target = $region13
  $region12: #{image_discriminator.11} parent=0 // pred_region
    %15 = vst [vmem:[#allocation2] sm:$0xff] 0.0
    %16 = vst [vmem:[#allocation2 + $0x8] sm:$0xff] 0.0
    %17 = vst [vmem:[#allocation2 + $0x10] sm:$0xff] 0.0
    %18 = vst [vmem:[#allocation2 + $0x18] sm:$0xff] 0.0
    %19 = vst [vmem:[#allocation2 + $0x20] sm:$0xff] 0.0
    %20 = vst [vmem:[#allocation2 + $0x28] sm:$0xff] 0.0
    %21 = vst [vmem:[#allocation2 + $0x30] sm:$0xff] 0.0
    %22 = vst [vmem:[#allocation2 + $0x38] sm:$0xff] 0.0
    %23 = vst [vmem:[#allocation2 + $0x40] sm:$0xff] 0.0
    %24 = vst [vmem:[#allocation2 + $0x48] sm:$0xff] 0.0
    %25 = vst [vmem:[#allocation2 + $0x50] sm:$0xff] 0.0
    %26 = vst [vmem:[#allocation2 + $0x58] sm:$0xff] 0.0
    %27 = vst [vmem:[#allocation2 + $0x60] sm:$0xff] 0.0
    %28 = vst [vmem:[#allocation2 + $0x68] sm:$0xff] 0.0
    %29 = vst [vmem:[#allocation2 + $0x70] sm:$0xff] 0.0
    %30 = vst [vmem:[#allocation2 + $0x78] sm:$0xff] 0.0
    %31 = vst [vmem:[#allocation2 + $0x80] sm:$0xff] 0.0
    %32 = vst [vmem:[#allocation2 + $0x88] sm:$0xff] 0.0
    %33 = vst [vmem:[#allocation2 + $0x90] sm:$0xff] 0.0
    %34 = vst [vmem:[#allocation2 + $0x98] sm:$0xff] 0.0
    %35 = vst [vmem:[#allocation2 + $0xa0] sm:$0xff] 0.0
    %36 = vst [vmem:[#allocation2 + $0xa8] sm:$0xff] 0.0
    %37 = vst [vmem:[#allocation2 + $0xb0] sm:$0xff] 0.0
    %38 = vst [vmem:[#allocation2 + $0xb8] sm:$0xff] 0.0
    %39 = vst [vmem:[#allocation2 + $0xc0] sm:$0xff] 0.0
    %40 = vst [vmem:[#allocation2 + $0xc8] sm:$0xff] 0.0
    %41 = vst [vmem:[#allocation2 + $0xd0] sm:$0xff] 0.0
    %42 = vst [vmem:[#allocation2 + $0xd8] sm:$0xff] 0.0
    %43 = vst [vmem:[#allocation2 + $0xe0] sm:$0xff] 0.0
    %44 = vst [vmem:[#allocation2 + $0xe8] sm:$0xff] 0.0
    %45 = vst [vmem:[#allocation2 + $0xf0] sm:$0xff] 0.0
    %46 = vst [vmem:[#allocation2 + $0xf8] sm:$0xff] 0.0
    %47 = vst [vmem:[#allocation2 + $0x100] sm:$0xff] 0.0
    %48 = vst [vmem:[#allocation2 + $0x108] sm:$0xff] 0.0
    %49 = vst [vmem:[#allocation2 + $0x110] sm:$0xff] 0.0
    %50 = vst [vmem:[#allocation2 + $0x118] sm:$0xff] 0.0
    %51 = vst [vmem:[#allocation2 + $0x120] sm:$0xff] 0.0
    %52 = vst [vmem:[#allocation2 + $0x128] sm:$0xff] 0.0
    %53 = vst [vmem:[#allocation2 + $0x130] sm:$0xff] 0.0
    %54 = vst [vmem:[#allocation2 + $0x138] sm:$0xff] 0.0
    %55 = vst [vmem:[#allocation2 + $0x140] sm:$0xff] 0.0
    %56 = vst [vmem:[#allocation2 + $0x148] sm:$0xff] 0.0
    %57 = vst [vmem:[#allocation2 + $0x150] sm:$0xff] 0.0
    %58 = vst [vmem:[#allocation2 + $0x158] sm:$0xff] 0.0
    %59 = vst [vmem:[#allocation2 + $0x160] sm:$0xff] 0.0
    %60 = vst [vmem:[#allocation2 + $0x168] sm:$0xff] 0.0
    %61 = vst [vmem:[#allocation2 + $0x170] sm:$0xff] 0.0
    %62 = vst [vmem:[#allocation2 + $0x178] sm:$0xff] 0.0
    %63 = vst [vmem:[#allocation2 + $0x180] sm:$0xff] 0.0
    %64 = vst [vmem:[#allocation2 + $0x188] sm:$0xff] 0.0
    %65 = vst [vmem:[#allocation2 + $0x190] sm:$0xff] 0.0
    %66 = vst [vmem:[#allocation2 + $0x198] sm:$0xff] 0.0
    %67 = vst [vmem:[#allocation2 + $0x1a0] sm:$0xff] 0.0
    %68 = vst [vmem:[#allocation2 + $0x1a8] sm:$0xff] 0.0
    %69 = vst [vmem:[#allocation2 + $0x1b0] sm:$0xff] 0.0
    %70 = vst [vmem:[#allocation2 + $0x1b8] sm:$0xff] 0.0
    %71 = vst [vmem:[#allocation2 + $0x1c0] sm:$0xff] 0.0
    %72 = vst [vmem:[#allocation2 + $0x1c8] sm:$0xff] 0.0
    %73 = vst [vmem:[#allocation2 + $0x1d0] sm:$0xff] 0.0
    %74 = vst [vmem:[#allocation2 + $0x1d8] sm:$0xff] 0.0
    %75 = vst [vmem:[#allocation2 + $0x1e0] sm:$0xff] 0.0
    %76 = vst [vmem:[#allocation2 + $0x1e8] sm:$0xff] 0.0
    %77 = vst [vmem:[#allocation2 + $0x1f0] sm:$0xff] 0.0
    %78 = vst [vmem:[#allocation2 + $0x1f8] sm:$0xff] 0.0
  $region13: #{image_discriminator.11} parent=0 // pred_fallthru
    _
  %v79 = vld [vmem:[#allocation2] sm:$0xff]
  %v80 = vld [vmem:[#allocation2 + $0x8] sm:$0xff]
  %v81 = vld [vmem:[#allocation2 + $0x10] sm:$0xff]
  %v82 = vld [vmem:[#allocation2 + $0x18] sm:$0xff]
  %v83 = vld [vmem:[#allocation2 + $0x20] sm:$0xff]
  %v84 = vld [vmem:[#allocation2 + $0x28] sm:$0xff]
  %v85 = vld [vmem:[#allocation2 + $0x30] sm:$0xff]
  %v86 = vld [vmem:[#allocation2 + $0x38] sm:$0xff]
  %v87 = vld [vmem:[#allocation2 + $0x40] sm:$0xff]
  %v88 = vld [vmem:[#allocation2 + $0x48] sm:$0xff]
  %v89 = vld [vmem:[#allocation2 + $0x50] sm:$0xff]
  %v90 = vld [vmem:[#allocation2 + $0x58] sm:$0xff]
  %v91 = vld [vmem:[#allocation2 + $0x60] sm:$0xff]
  %v92 = vld [vmem:[#allocation2 + $0x68] sm:$0xff]
  %v93 = vld [vmem:[#allocation2 + $0x70] sm:$0xff]
  %v94 = vld [vmem:[#allocation2 + $0x78] sm:$0xff]
  %v95 = vld [vmem:[#allocation2 + $0x80] sm:$0xff]
  %v96 = vld [vmem:[#allocation2 + $0x88] sm:$0xff]
  %v97 = vld [vmem:[#allocation2 + $0x90] sm:$0xff]
  %v98 = vld [vmem:[#allocation2 + $0x98] sm:$0xff]
  %v99 = vld [vmem:[#allocation2 + $0xa0] sm:$0xff]
  %v100 = vld [vmem:[#allocation2 + $0xa8] sm:$0xff]
  %v101 = vld [vmem:[#allocation2 + $0xb0] sm:$0xff]
  %v102 = vld [vmem:[#allocation2 + $0xb8] sm:$0xff]
  %v103 = vld [vmem:[#allocation2 + $0xc0] sm:$0xff]
  %v104 = vld [vmem:[#allocation2 + $0xc8] sm:$0xff]
  %v105 = vld [vmem:[#allocation2 + $0xd0] sm:$0xff]
  %v106 = vld [vmem:[#allocation2 + $0xd8] sm:$0xff]
  %v107 = vld [vmem:[#allocation2 + $0xe0] sm:$0xff]
  %v108 = vld [vmem:[#allocation2 + $0xe8] sm:$0xff]
  %v109 = vld [vmem:[#allocation2 + $0xf0] sm:$0xff]
  %v110 = vld [vmem:[#allocation2 + $0xf8] sm:$0xff]
  %v111 = vld [vmem:[#allocation2 + $0x100] sm:$0xff]
  %v112 = vld [vmem:[#allocation2 + $0x108] sm:$0xff]
  %v113 = vld [vmem:[#allocation2 + $0x110] sm:$0xff]
  %v114 = vld [vmem:[#allocation2 + $0x118] sm:$0xff]
  %v115 = vld [vmem:[#allocation2 + $0x120] sm:$0xff]
  %v116 = vld [vmem:[#allocation2 + $0x128] sm:$0xff]
  %v117 = vld [vmem:[#allocation2 + $0x130] sm:$0xff]
  %v118 = vld [vmem:[#allocation2 + $0x138] sm:$0xff]
  %v119 = vld [vmem:[#allocation2 + $0x140] sm:$0xff]
  %v120 = vld [vmem:[#allocation2 + $0x148] sm:$0xff]
  %v121 = vld [vmem:[#allocation2 + $0x150] sm:$0xff]
  %v122 = vld [vmem:[#allocation2 + $0x158] sm:$0xff]
  %v123 = vld [vmem:[#allocation2 + $0x160] sm:$0xff]
  %v124 = vld [vmem:[#allocation2 + $0x168] sm:$0xff]
  %v125 = vld [vmem:[#allocation2 + $0x170] sm:$0xff]
  %v126 = vld [vmem:[#allocation2 + $0x178] sm:$0xff]
  %v127 = vld [vmem:[#allocation2 + $0x180] sm:$0xff]
  %v128 = vld [vmem:[#allocation2 + $0x188] sm:$0xff]
  %v129 = vld [vmem:[#allocation2 + $0x190] sm:$0xff]
  %v130 = vld [vmem:[#allocation2 + $0x198] sm:$0xff]
  %v131 = vld [vmem:[#allocation2 + $0x1a0] sm:$0xff]
  %v132 = vld [vmem:[#allocation2 + $0x1a8] sm:$0xff]
  %v133 = vld [vmem:[#allocation2 + $0x1b0] sm:$0xff]
  %v134 = vld [vmem:[#allocation2 + $0x1b8] sm:$0xff]
  %v135 = vld [vmem:[#allocation2 + $0x1c0] sm:$0xff]
  %v136 = vld [vmem:[#allocation2 + $0x1c8] sm:$0xff]
  %v137 = vld [vmem:[#allocation2 + $0x1d0] sm:$0xff]
  %v138 = vld [vmem:[#allocation2 + $0x1d8] sm:$0xff]
  %v139 = vld [vmem:[#allocation2 + $0x1e0] sm:$0xff]
  %v140 = vld [vmem:[#allocation2 + $0x1e8] sm:$0xff]
  %v141 = vld [vmem:[#allocation2 + $0x1f0] sm:$0xff]
  %v142 = vld [vmem:[#allocation2 + $0x1f8] sm:$0xff]
  %v143 = vld [vmem:[%s0] sm:$0xf]
  %v144 = vld [vmem:[%s0 + $0x4] sm:$0xf]
  %v145 = vld [vmem:[%s0 + $0x8] sm:$0xf]
  %v146 = vld [vmem:[%s0 + $0xc] sm:$0xf]
  %v147 = vld [vmem:[%s0 + $0x10] sm:$0xf]
  %v148 = vld [vmem:[%s0 + $0x14] sm:$0xf]
  %v149 = vld [vmem:[%s0 + $0x18] sm:$0xf]
  %v150 = vld [vmem:[%s0 + $0x1c] sm:$0xf]
  %v151 = vld [vmem:[%s0 + $0x20] sm:$0xf]
  %v152 = vld [vmem:[%s0 + $0x24] sm:$0xf]
  %v153 = vld [vmem:[%s0 + $0x28] sm:$0xf]
  %v154 = vld [vmem:[%s0 + $0x2c] sm:$0xf]
  %v155 = vld [vmem:[%s0 + $0x30] sm:$0xf]
  %v156 = vld [vmem:[%s0 + $0x34] sm:$0xf]
  %v157 = vld [vmem:[%s0 + $0x38] sm:$0xf]
  %v158 = vld [vmem:[%s0 + $0x3c] sm:$0xf]
  %v159 = vld [vmem:[%s0 + $0x40] sm:$0xf]
  %v160 = vld [vmem:[%s0 + $0x44] sm:$0xf]
  %v161 = vld [vmem:[%s0 + $0x48] sm:$0xf]
  %v162 = vld [vmem:[%s0 + $0x4c] sm:$0xf]
  %v163 = vld [vmem:[%s0 + $0x50] sm:$0xf]
  %v164 = vld [vmem:[%s0 + $0x54] sm:$0xf]
  %v165 = vld [vmem:[%s0 + $0x58] sm:$0xf]
  %v166 = vld [vmem:[%s0 + $0x5c] sm:$0xf]
  %v167 = vld [vmem:[%s0 + $0x60] sm:$0xf]
  %v168 = vld [vmem:[%s0 + $0x64] sm:$0xf]
  %v169 = vld [vmem:[%s0 + $0x68] sm:$0xf]
  %v170 = vld [vmem:[%s0 + $0x6c] sm:$0xf]
  %v171 = vld [vmem:[%s0 + $0x70] sm:$0xf]
  %v172 = vld [vmem:[%s0 + $0x74] sm:$0xf]
  %v173 = vld [vmem:[%s0 + $0x78] sm:$0xf]
  %v174 = vld [vmem:[%s0 + $0x7c] sm:$0xf]
  %v175 = vld [vmem:[%s0 + $0x80] sm:$0xf]
  %v176 = vld [vmem:[%s0 + $0x84] sm:$0xf]
  %v177 = vld [vmem:[%s0 + $0x88] sm:$0xf]
  %v178 = vld [vmem:[%s0 + $0x8c] sm:$0xf]
  %v179 = vld [vmem:[%s0 + $0x90] sm:$0xf]
  %v180 = vld [vmem:[%s0 + $0x94] sm:$0xf]
  %v181 = vld [vmem:[%s0 + $0x98] sm:$0xf]
  %v182 = vld [vmem:[%s0 + $0x9c] sm:$0xf]
  %v183 = vld [vmem:[%s0 + $0xa0] sm:$0xf]
  %v184 = vld [vmem:[%s0 + $0xa4] sm:$0xf]
  %v185 = vld [vmem:[%s0 + $0xa8] sm:$0xf]
  %v186 = vld [vmem:[%s0 + $0xac] sm:$0xf]
  %v187 = vld [vmem:[%s0 + $0xb0] sm:$0xf]
  %v188 = vld [vmem:[%s0 + $0xb4] sm:$0xf]
  %v189 = vld [vmem:[%s0 + $0xb8] sm:$0xf]
  %v190 = vld [vmem:[%s0 + $0xbc] sm:$0xf]
  %v191 = vld [vmem:[%s0 + $0xc0] sm:$0xf]
  %v192 = vld [vmem:[%s0 + $0xc4] sm:$0xf]
  %v193 = vld [vmem:[%s0 + $0xc8] sm:$0xf]
  %v194 = vld [vmem:[%s0 + $0xcc] sm:$0xf]
  %v195 = vld [vmem:[%s0 + $0xd0] sm:$0xf]
  %v196 = vld [vmem:[%s0 + $0xd4] sm:$0xf]
  %v197 = vld [vmem:[%s0 + $0xd8] sm:$0xf]
  %v198 = vld [vmem:[%s0 + $0xdc] sm:$0xf]
  %v199 = vld [vmem:[%s0 + $0xe0] sm:$0xf]
  %v200 = vld [vmem:[%s0 + $0xe4] sm:$0xf]
  %v201 = vld [vmem:[%s0 + $0xe8] sm:$0xf]
  %v202 = vld [vmem:[%s0 + $0xec] sm:$0xf]
  %v203 = vld [vmem:[%s0 + $0xf0] sm:$0xf]
  %v204 = vld [vmem:[%s0 + $0xf4] sm:$0xf]
  %v205 = vld [vmem:[%s0 + $0xf8] sm:$0xf]
  %v206 = vld [vmem:[%s0 + $0xfc] sm:$0xf]
  %v207 = vld [vmem:[%s1] sm:$0xf]
  %v208 = vld [vmem:[%s1 + $0x4] sm:$0xf]
  %v209 = vld [vmem:[%s1 + $0x8] sm:$0xf]
  %v210 = vld [vmem:[%s1 + $0xc] sm:$0xf]
  %v211 = vld [vmem:[%s1 + $0x10] sm:$0xf]
  %v212 = vld [vmem:[%s1 + $0x14] sm:$0xf]
  %v213 = vld [vmem:[%s1 + $0x18] sm:$0xf]
  %v214 = vld [vmem:[%s1 + $0x1c] sm:$0xf]
  %v215 = vld [vmem:[%s1 + $0x20] sm:$0xf]
  %v216 = vld [vmem:[%s1 + $0x24] sm:$0xf]
  %v217 = vld [vmem:[%s1 + $0x28] sm:$0xf]
  %v218 = vld [vmem:[%s1 + $0x2c] sm:$0xf]
  %v219 = vld [vmem:[%s1 + $0x30] sm:$0xf]
  %v220 = vld [vmem:[%s1 + $0x34] sm:$0xf]
  %v221 = vld [vmem:[%s1 + $0x38] sm:$0xf]
  %v222 = vld [vmem:[%s1 + $0x3c] sm:$0xf]
  %v287 = vunpack.c.l.b16 %v143
  %v288 = vunpack.c.l.b16 %v144
  %v289 = vunpack.c.l.b16 %v145
  %v290 = vunpack.c.l.b16 %v146
  %v291 = vunpack.c.l.b16 %v147
  %v292 = vunpack.c.l.b16 %v148
  %v293 = vunpack.c.l.b16 %v149
  %v294 = vunpack.c.l.b16 %v150
  %v295 = vunpack.c.l.b16 %v151
  %v296 = vunpack.c.l.b16 %v152
  %v297 = vunpack.c.l.b16 %v153
  %v298 = vunpack.c.l.b16 %v154
  %v299 = vunpack.c.l.b16 %v155
  %v300 = vunpack.c.l.b16 %v156
  %v301 = vunpack.c.l.b16 %v157
  %v302 = vunpack.c.l.b16 %v158
  %v303 = vunpack.c.l.b16 %v159
  %v304 = vunpack.c.l.b16 %v160
  %v305 = vunpack.c.l.b16 %v161
  %v306 = vunpack.c.l.b16 %v162
  %v307 = vunpack.c.l.b16 %v163
  %v308 = vunpack.c.l.b16 %v164
  %v309 = vunpack.c.l.b16 %v165
  %v310 = vunpack.c.l.b16 %v166
  %v311 = vunpack.c.l.b16 %v167
  %v312 = vunpack.c.l.b16 %v168
  %v313 = vunpack.c.l.b16 %v169
  %v314 = vunpack.c.l.b16 %v170
  %v315 = vunpack.c.l.b16 %v171
  %v316 = vunpack.c.l.b16 %v172
  %v317 = vunpack.c.l.b16 %v173
  %v318 = vunpack.c.l.b16 %v174
  %v319 = vunpack.c.l.b16 %v175
  %v320 = vunpack.c.l.b16 %v176
  %v321 = vunpack.c.l.b16 %v177
  %v322 = vunpack.c.l.b16 %v178
  %v323 = vunpack.c.l.b16 %v179
  %v324 = vunpack.c.l.b16 %v180
  %v325 = vunpack.c.l.b16 %v181
  %v326 = vunpack.c.l.b16 %v182
  %v327 = vunpack.c.l.b16 %v183
  %v328 = vunpack.c.l.b16 %v184
  %v329 = vunpack.c.l.b16 %v185
  %v330 = vunpack.c.l.b16 %v186
  %v331 = vunpack.c.l.b16 %v187
  %v332 = vunpack.c.l.b16 %v188
  %v333 = vunpack.c.l.b16 %v189
  %v334 = vunpack.c.l.b16 %v190
  %v335 = vunpack.c.l.b16 %v191
  %v336 = vunpack.c.l.b16 %v192
  %v337 = vunpack.c.l.b16 %v193
  %v338 = vunpack.c.l.b16 %v194
  %v339 = vunpack.c.l.b16 %v195
  %v340 = vunpack.c.l.b16 %v196
  %v341 = vunpack.c.l.b16 %v197
  %v342 = vunpack.c.l.b16 %v198
  %v343 = vunpack.c.l.b16 %v199
  %v344 = vunpack.c.l.b16 %v200
  %v345 = vunpack.c.l.b16 %v201
  %v346 = vunpack.c.l.b16 %v202
  %v347 = vunpack.c.l.b16 %v203
  %v348 = vunpack.c.l.b16 %v204
  %v349 = vunpack.c.l.b16 %v205
  %v350 = vunpack.c.l.b16 %v206
  %v351 = vpack.c.b16 %v288, %v287
  %v352 = vpack.c.b16 %v290, %v289
  %v353 = vpack.c.b16 %v292, %v291
  %v354 = vpack.c.b16 %v294, %v293
  %v355 = vpack.c.b16 %v296, %v295
  %v356 = vpack.c.b16 %v298, %v297
  %v357 = vpack.c.b16 %v300, %v299
  %v358 = vpack.c.b16 %v302, %v301
  %v359 = vpack.c.b16 %v304, %v303
  %v360 = vpack.c.b16 %v306, %v305
  %v361 = vpack.c.b16 %v308, %v307
  %v362 = vpack.c.b16 %v310, %v309
  %v363 = vpack.c.b16 %v312, %v311
  %v364 = vpack.c.b16 %v314, %v313
  %v365 = vpack.c.b16 %v316, %v315
  %v366 = vpack.c.b16 %v318, %v317
  %v367 = vpack.c.b16 %v320, %v319
  %v368 = vpack.c.b16 %v322, %v321
  %v369 = vpack.c.b16 %v324, %v323
  %v370 = vpack.c.b16 %v326, %v325
  %v371 = vpack.c.b16 %v328, %v327
  %v372 = vpack.c.b16 %v330, %v329
  %v373 = vpack.c.b16 %v332, %v331
  %v374 = vpack.c.b16 %v334, %v333
  %v375 = vpack.c.b16 %v336, %v335
  %v376 = vpack.c.b16 %v338, %v337
  %v377 = vpack.c.b16 %v340, %v339
  %v378 = vpack.c.b16 %v342, %v341
  %v379 = vpack.c.b16 %v344, %v343
  %v380 = vpack.c.b16 %v346, %v345
  %v381 = vpack.c.b16 %v348, %v347
  %v382 = vpack.c.b16 %v350, %v349
  %v431 = vunpack.c.l.b16 %v207
  %v432 = vunpack.c.l.b16 %v208
  %v433 = vunpack.c.l.b16 %v209
  %v434 = vunpack.c.l.b16 %v210
  %v435 = vunpack.c.l.b16 %v211
  %v436 = vunpack.c.l.b16 %v212
  %v437 = vunpack.c.l.b16 %v213
  %v438 = vunpack.c.l.b16 %v214
  %v439 = vunpack.c.l.b16 %v215
  %v440 = vunpack.c.l.b16 %v216
  %v441 = vunpack.c.l.b16 %v217
  %v442 = vunpack.c.l.b16 %v218
  %v443 = vunpack.c.l.b16 %v219
  %v444 = vunpack.c.l.b16 %v220
  %v445 = vunpack.c.l.b16 %v221
  %v446 = vunpack.c.l.b16 %v222
  %v447 = vpack.c.b16 %v432, %v431
  %v448 = vpack.c.b16 %v434, %v433
  %v449 = vpack.c.b16 %v436, %v435
  %v450 = vpack.c.b16 %v438, %v437
  %v451 = vpack.c.b16 %v440, %v439
  %v452 = vpack.c.b16 %v442, %v441
  %v453 = vpack.c.b16 %v444, %v443
  %v454 = vpack.c.b16 %v446, %v445
  %463 = vmatpush.bf16.msra.mxu0 %v454
  %464 = vmatpush.bf16.msra.mxu0 %v453
  %465 = vmatpush.bf16.msra.mxu0 %v452
  %466 = vmatpush.bf16.msra.mxu0 %v451
  %467 = vmatpush.bf16.msra.mxu0 %v450
  %468 = vmatpush.bf16.msra.mxu0 %v449
  %469 = vmatpush.bf16.msra.mxu0 %v448
  %470 = vmatpush.bf16.msra.mxu0 %v447
  %471 = vmatmul.bf16.gmra.mxu0 %v351
  %v472 = vpop.f32.mrf.mxu0
  %v473 = vadd.f32 0.0, %v472
  %v474 = vpop.f32.mrf.mxu0
  %v475 = vadd.f32 0.0, %v474
  %476 = vmatmul.bf16.gmra.mxu0 %v352
  %v477 = vpop.f32.mrf.mxu0
  %v478 = vadd.f32 0.0, %v477
  %v479 = vpop.f32.mrf.mxu0
  %v480 = vadd.f32 0.0, %v479
  %481 = vmatmul.bf16.gmra.mxu0 %v353
  %v482 = vpop.f32.mrf.mxu0
  %v483 = vadd.f32 0.0, %v482
  %v484 = vpop.f32.mrf.mxu0
  %v485 = vadd.f32 0.0, %v484
  %486 = vmatmul.bf16.gmra.mxu0 %v354
  %v487 = vpop.f32.mrf.mxu0
  %v488 = vadd.f32 0.0, %v487
  %v489 = vpop.f32.mrf.mxu0
  %v490 = vadd.f32 0.0, %v489
  %491 = vmatmul.bf16.gmra.mxu0 %v355
  %v492 = vpop.f32.mrf.mxu0
  %v493 = vadd.f32 0.0, %v492
  %v494 = vpop.f32.mrf.mxu0
  %v495 = vadd.f32 0.0, %v494
  %496 = vmatmul.bf16.gmra.mxu0 %v356
  %v497 = vpop.f32.mrf.mxu0
  %v498 = vadd.f32 0.0, %v497
  %v499 = vpop.f32.mrf.mxu0
  %v500 = vadd.f32 0.0, %v499
  %501 = vmatmul.bf16.gmra.mxu0 %v357
  %v502 = vpop.f32.mrf.mxu0
  %v503 = vadd.f32 0.0, %v502
  %v504 = vpop.f32.mrf.mxu0
  %v505 = vadd.f32 0.0, %v504
  %506 = vmatmul.bf16.gmra.mxu0 %v358
  %v507 = vpop.f32.mrf.mxu0
  %v508 = vadd.f32 0.0, %v507
  %v509 = vpop.f32.mrf.mxu0
  %v510 = vadd.f32 0.0, %v509
  %511 = vmatmul.bf16.gmra.mxu0 %v359
  %v512 = vpop.f32.mrf.mxu0
  %v513 = vadd.f32 0.0, %v512
  %v514 = vpop.f32.mrf.mxu0
  %v515 = vadd.f32 0.0, %v514
  %516 = vmatmul.bf16.gmra.mxu0 %v360
  %v517 = vpop.f32.mrf.mxu0
  %v518 = vadd.f32 0.0, %v517
  %v519 = vpop.f32.mrf.mxu0
  %v520 = vadd.f32 0.0, %v519
  %521 = vmatmul.bf16.gmra.mxu0 %v361
  %v522 = vpop.f32.mrf.mxu0
  %v523 = vadd.f32 0.0, %v522
  %v524 = vpop.f32.mrf.mxu0
  %v525 = vadd.f32 0.0, %v524
  %526 = vmatmul.bf16.gmra.mxu0 %v362
  %v527 = vpop.f32.mrf.mxu0
  %v528 = vadd.f32 0.0, %v527
  %v529 = vpop.f32.mrf.mxu0
  %v530 = vadd.f32 0.0, %v529
  %531 = vmatmul.bf16.gmra.mxu0 %v363
  %v532 = vpop.f32.mrf.mxu0
  %v533 = vadd.f32 0.0, %v532
  %v534 = vpop.f32.mrf.mxu0
  %v535 = vadd.f32 0.0, %v534
  %536 = vmatmul.bf16.gmra.mxu0 %v364
  %v537 = vpop.f32.mrf.mxu0
  %v538 = vadd.f32 0.0, %v537
  %v539 = vpop.f32.mrf.mxu0
  %v540 = vadd.f32 0.0, %v539
  %541 = vmatmul.bf16.gmra.mxu0 %v365
  %v542 = vpop.f32.mrf.mxu0
  %v543 = vadd.f32 0.0, %v542
  %v544 = vpop.f32.mrf.mxu0
  %v545 = vadd.f32 0.0, %v544
  %546 = vmatmul.bf16.gmra.mxu0 %v366
  %v547 = vpop.f32.mrf.mxu0
  %v548 = vadd.f32 0.0, %v547
  %v549 = vpop.f32.mrf.mxu0
  %v550 = vadd.f32 0.0, %v549
  %551 = vmatmul.bf16.gmra.mxu0 %v367
  %v552 = vpop.f32.mrf.mxu0
  %v553 = vadd.f32 0.0, %v552
  %v554 = vpop.f32.mrf.mxu0
  %v555 = vadd.f32 0.0, %v554
  %556 = vmatmul.bf16.gmra.mxu0 %v368
  %v557 = vpop.f32.mrf.mxu0
  %v558 = vadd.f32 0.0, %v557
  %v559 = vpop.f32.mrf.mxu0
  %v560 = vadd.f32 0.0, %v559
  %561 = vmatmul.bf16.gmra.mxu0 %v369
  %v562 = vpop.f32.mrf.mxu0
  %v563 = vadd.f32 0.0, %v562
  %v564 = vpop.f32.mrf.mxu0
  %v565 = vadd.f32 0.0, %v564
  %566 = vmatmul.bf16.gmra.mxu0 %v370
  %v567 = vpop.f32.mrf.mxu0
  %v568 = vadd.f32 0.0, %v567
  %v569 = vpop.f32.mrf.mxu0
  %v570 = vadd.f32 0.0, %v569
  %571 = vmatmul.bf16.gmra.mxu0 %v371
  %v572 = vpop.f32.mrf.mxu0
  %v573 = vadd.f32 0.0, %v572
  %v574 = vpop.f32.mrf.mxu0
  %v575 = vadd.f32 0.0, %v574
  %576 = vmatmul.bf16.gmra.mxu0 %v372
  %v577 = vpop.f32.mrf.mxu0
  %v578 = vadd.f32 0.0, %v577
  %v579 = vpop.f32.mrf.mxu0
  %v580 = vadd.f32 0.0, %v579
  %581 = vmatmul.bf16.gmra.mxu0 %v373
  %v582 = vpop.f32.mrf.mxu0
  %v583 = vadd.f32 0.0, %v582
  %v584 = vpop.f32.mrf.mxu0
  %v585 = vadd.f32 0.0, %v584
  %586 = vmatmul.bf16.gmra.mxu0 %v374
  %v587 = vpop.f32.mrf.mxu0
  %v588 = vadd.f32 0.0, %v587
  %v589 = vpop.f32.mrf.mxu0
  %v590 = vadd.f32 0.0, %v589
  %591 = vmatmul.bf16.gmra.mxu0 %v375
  %v592 = vpop.f32.mrf.mxu0
  %v593 = vadd.f32 0.0, %v592
  %v594 = vpop.f32.mrf.mxu0
  %v595 = vadd.f32 0.0, %v594
  %596 = vmatmul.bf16.gmra.mxu0 %v376
  %v597 = vpop.f32.mrf.mxu0
  %v598 = vadd.f32 0.0, %v597
  %v599 = vpop.f32.mrf.mxu0
  %v600 = vadd.f32 0.0, %v599
  %601 = vmatmul.bf16.gmra.mxu0 %v377
  %v602 = vpop.f32.mrf.mxu0
  %v603 = vadd.f32 0.0, %v602
  %v604 = vpop.f32.mrf.mxu0
  %v605 = vadd.f32 0.0, %v604
  %606 = vmatmul.bf16.gmra.mxu0 %v378
  %v607 = vpop.f32.mrf.mxu0
  %v608 = vadd.f32 0.0, %v607
  %v609 = vpop.f32.mrf.mxu0
  %v610 = vadd.f32 0.0, %v609
  %611 = vmatmul.bf16.gmra.mxu0 %v379
  %v612 = vpop.f32.mrf.mxu0
  %v613 = vadd.f32 0.0, %v612
  %v614 = vpop.f32.mrf.mxu0
  %v615 = vadd.f32 0.0, %v614
  %616 = vmatmul.bf16.gmra.mxu0 %v380
  %v617 = vpop.f32.mrf.mxu0
  %v618 = vadd.f32 0.0, %v617
  %v619 = vpop.f32.mrf.mxu0
  %v620 = vadd.f32 0.0, %v619
  %621 = vmatmul.bf16.gmra.mxu0 %v381
  %v622 = vpop.f32.mrf.mxu0
  %v623 = vadd.f32 0.0, %v622
  %v624 = vpop.f32.mrf.mxu0
  %v625 = vadd.f32 0.0, %v624
  %626 = vmatmul.bf16.gmra.mxu0 %v382
  %v627 = vpop.f32.mrf.mxu0
  %v628 = vadd.f32 0.0, %v627
  %v629 = vpop.f32.mrf.mxu0
  %v630 = vadd.f32 0.0, %v629
  %631 = vdwg.mxu0
  %v632 = vadd.f32 %v79, %v473
  %v633 = vadd.f32 %v80, %v475
  %v634 = vadd.f32 %v81, %v478
  %v635 = vadd.f32 %v82, %v480
  %v636 = vadd.f32 %v83, %v483
  %v637 = vadd.f32 %v84, %v485
  %v638 = vadd.f32 %v85, %v488
  %v639 = vadd.f32 %v86, %v490
  %v640 = vadd.f32 %v87, %v493
  %v641 = vadd.f32 %v88, %v495
  %v642 = vadd.f32 %v89, %v498
  %v643 = vadd.f32 %v90, %v500
  %v644 = vadd.f32 %v91, %v503
  %v645 = vadd.f32 %v92, %v505
  %v646 = vadd.f32 %v93, %v508
  %v647 = vadd.f32 %v94, %v510
  %v648 = vadd.f32 %v95, %v513
  %v649 = vadd.f32 %v96, %v515
  %v650 = vadd.f32 %v97, %v518
  %v651 = vadd.f32 %v98, %v520
  %v652 = vadd.f32 %v99, %v523
  %v653 = vadd.f32 %v100, %v525
  %v654 = vadd.f32 %v101, %v528
  %v655 = vadd.f32 %v102, %v530
  %v656 = vadd.f32 %v103, %v533
  %v657 = vadd.f32 %v104, %v535
  %v658 = vadd.f32 %v105, %v538
  %v659 = vadd.f32 %v106, %v540
  %v660 = vadd.f32 %v107, %v543
  %v661 = vadd.f32 %v108, %v545
  %v662 = vadd.f32 %v109, %v548
  %v663 = vadd.f32 %v110, %v550
  %v664 = vadd.f32 %v111, %v553
  %v665 = vadd.f32 %v112, %v555
  %v666 = vadd.f32 %v113, %v558
  %v667 = vadd.f32 %v114, %v560
  %v668 = vadd.f32 %v115, %v563
  %v669 = vadd.f32 %v116, %v565
  %v670 = vadd.f32 %v117, %v568
  %v671 = vadd.f32 %v118, %v570
  %v672 = vadd.f32 %v119, %v573
  %v673 = vadd.f32 %v120, %v575
  %v674 = vadd.f32 %v121, %v578
  %v675 = vadd.f32 %v122, %v580
  %v676 = vadd.f32 %v123, %v583
  %v677 = vadd.f32 %v124, %v585
  %v678 = vadd.f32 %v125, %v588
  %v679 = vadd.f32 %v126, %v590
  %v680 = vadd.f32 %v127, %v593
  %v681 = vadd.f32 %v128, %v595
  %v682 = vadd.f32 %v129, %v598
  %v683 = vadd.f32 %v130, %v600
  %v684 = vadd.f32 %v131, %v603
  %v685 = vadd.f32 %v132, %v605
  %v686 = vadd.f32 %v133, %v608
  %v687 = vadd.f32 %v134, %v610
  %v688 = vadd.f32 %v135, %v613
  %v689 = vadd.f32 %v136, %v615
  %v690 = vadd.f32 %v137, %v618
  %v691 = vadd.f32 %v138, %v620
  %v692 = vadd.f32 %v139, %v623
  %v693 = vadd.f32 %v140, %v625
  %v694 = vadd.f32 %v141, %v628
  %v695 = vadd.f32 %v142, %v630
  %696 = vst [vmem:[#allocation2] sm:$0xff] %v632
  %697 = vst [vmem:[#allocation2 + $0x8] sm:$0xff] %v633
  %698 = vst [vmem:[#allocation2 + $0x10] sm:$0xff] %v634
  %699 = vst [vmem:[#allocation2 + $0x18] sm:$0xff] %v635
  %700 = vst [vmem:[#allocation2 + $0x20] sm:$0xff] %v636
  %701 = vst [vmem:[#allocation2 + $0x28] sm:$0xff] %v637
  %702 = vst [vmem:[#allocation2 + $0x30] sm:$0xff] %v638
  %703 = vst [vmem:[#allocation2 + $0x38] sm:$0xff] %v639
  %704 = vst [vmem:[#allocation2 + $0x40] sm:$0xff] %v640
  %705 = vst [vmem:[#allocation2 + $0x48] sm:$0xff] %v641
  %706 = vst [vmem:[#allocation2 + $0x50] sm:$0xff] %v642
  %707 = vst [vmem:[#allocation2 + $0x58] sm:$0xff] %v643
  %708 = vst [vmem:[#allocation2 + $0x60] sm:$0xff] %v644
  %709 = vst [vmem:[#allocation2 + $0x68] sm:$0xff] %v645
  %710 = vst [vmem:[#allocation2 + $0x70] sm:$0xff] %v646
  %711 = vst [vmem:[#allocation2 + $0x78] sm:$0xff] %v647
  %712 = vst [vmem:[#allocation2 + $0x80] sm:$0xff] %v648
  %713 = vst [vmem:[#allocation2 + $0x88] sm:$0xff] %v649
  %714 = vst [vmem:[#allocation2 + $0x90] sm:$0xff] %v650
  %715 = vst [vmem:[#allocation2 + $0x98] sm:$0xff] %v651
  %716 = vst [vmem:[#allocation2 + $0xa0] sm:$0xff] %v652
  %717 = vst [vmem:[#allocation2 + $0xa8] sm:$0xff] %v653
  %718 = vst [vmem:[#allocation2 + $0xb0] sm:$0xff] %v654
  %719 = vst [vmem:[#allocation2 + $0xb8] sm:$0xff] %v655
  %720 = vst [vmem:[#allocation2 + $0xc0] sm:$0xff] %v656
  %721 = vst [vmem:[#allocation2 + $0xc8] sm:$0xff] %v657
  %722 = vst [vmem:[#allocation2 + $0xd0] sm:$0xff] %v658
  %723 = vst [vmem:[#allocation2 + $0xd8] sm:$0xff] %v659
  %724 = vst [vmem:[#allocation2 + $0xe0] sm:$0xff] %v660
  %725 = vst [vmem:[#allocation2 + $0xe8] sm:$0xff] %v661
  %726 = vst [vmem:[#allocation2 + $0xf0] sm:$0xff] %v662
  %727 = vst [vmem:[#allocation2 + $0xf8] sm:$0xff] %v663
  %728 = vst [vmem:[#allocation2 + $0x100] sm:$0xff] %v664
  %729 = vst [vmem:[#allocation2 + $0x108] sm:$0xff] %v665
  %730 = vst [vmem:[#allocation2 + $0x110] sm:$0xff] %v666
  %731 = vst [vmem:[#allocation2 + $0x118] sm:$0xff] %v667
  %732 = vst [vmem:[#allocation2 + $0x120] sm:$0xff] %v668
  %733 = vst [vmem:[#allocation2 + $0x128] sm:$0xff] %v669
  %734 = vst [vmem:[#allocation2 + $0x130] sm:$0xff] %v670
  %735 = vst [vmem:[#allocation2 + $0x138] sm:$0xff] %v671
  %736 = vst [vmem:[#allocation2 + $0x140] sm:$0xff] %v672
  %737 = vst [vmem:[#allocation2 + $0x148] sm:$0xff] %v673
  %738 = vst [vmem:[#allocation2 + $0x150] sm:$0xff] %v674
  %739 = vst [vmem:[#allocation2 + $0x158] sm:$0xff] %v675
  %740 = vst [vmem:[#allocation2 + $0x160] sm:$0xff] %v676
  %741 = vst [vmem:[#allocation2 + $0x168] sm:$0xff] %v677
  %742 = vst [vmem:[#allocation2 + $0x170] sm:$0xff] %v678
  %743 = vst [vmem:[#allocation2 + $0x178] sm:$0xff] %v679
  %744 = vst [vmem:[#allocation2 + $0x180] sm:$0xff] %v680
  %745 = vst [vmem:[#allocation2 + $0x188] sm:$0xff] %v681
  %746 = vst [vmem:[#allocation2 + $0x190] sm:$0xff] %v682
  %747 = vst [vmem:[#allocation2 + $0x198] sm:$0xff] %v683
  %748 = vst [vmem:[#allocation2 + $0x1a0] sm:$0xff] %v684
  %749 = vst [vmem:[#allocation2 + $0x1a8] sm:$0xff] %v685
  %750 = vst [vmem:[#allocation2 + $0x1b0] sm:$0xff] %v686
  %751 = vst [vmem:[#allocation2 + $0x1b8] sm:$0xff] %v687
  %752 = vst [vmem:[#allocation2 + $0x1c0] sm:$0xff] %v688
  %753 = vst [vmem:[#allocation2 + $0x1c8] sm:$0xff] %v689
  %754 = vst [vmem:[#allocation2 + $0x1d0] sm:$0xff] %v690
  %755 = vst [vmem:[#allocation2 + $0x1d8] sm:$0xff] %v691
  %756 = vst [vmem:[#allocation2 + $0x1e0] sm:$0xff] %v692
  %757 = vst [vmem:[#allocation2 + $0x1e8] sm:$0xff] %v693
  %758 = vst [vmem:[#allocation2 + $0x1f0] sm:$0xff] %v694
  %759 = vst [vmem:[#allocation2 + $0x1f8] sm:$0xff] %v695
  // Predicated region
  $region14: #{image_discriminator.11} parent=0 // pred_check
    %p760 = pneg %p11
  $region15: #{image_discriminator.11} parent=0 // pred_check_branch
    %762 = sbr.rel (%p760) target = $region17
  $region16: #{image_discriminator.11} parent=0 // pred_region
    %v763 = vld [vmem:[#allocation2] sm:$0xff]
    %v764 = vld [vmem:[#allocation2 + $0x8] sm:$0xff]
    %v765 = vld [vmem:[#allocation2 + $0x10] sm:$0xff]
    %v766 = vld [vmem:[#allocation2 + $0x18] sm:$0xff]
    %v767 = vld [vmem:[#allocation2 + $0x20] sm:$0xff]
    %v768 = vld [vmem:[#allocation2 + $0x28] sm:$0xff]
    %v769 = vld [vmem:[#allocation2 + $0x30] sm:$0xff]
    %v770 = vld [vmem:[#allocation2 + $0x38] sm:$0xff]
    %v771 = vld [vmem:[#allocation2 + $0x40] sm:$0xff]
    %v772 = vld [vmem:[#allocation2 + $0x48] sm:$0xff]
    %v773 = vld [vmem:[#allocation2 + $0x50] sm:$0xff]
    %v774 = vld [vmem:[#allocation2 + $0x58] sm:$0xff]
    %v775 = vld [vmem:[#allocation2 + $0x60] sm:$0xff]
    %v776 = vld [vmem:[#allocation2 + $0x68] sm:$0xff]
    %v777 = vld [vmem:[#allocation2 + $0x70] sm:$0xff]
    %v778 = vld [vmem:[#allocation2 + $0x78] sm:$0xff]
    %v779 = vld [vmem:[#allocation2 + $0x80] sm:$0xff]
    %v780 = vld [vmem:[#allocation2 + $0x88] sm:$0xff]
    %v781 = vld [vmem:[#allocation2 + $0x90] sm:$0xff]
    %v782 = vld [vmem:[#allocation2 + $0x98] sm:$0xff]
    %v783 = vld [vmem:[#allocation2 + $0xa0] sm:$0xff]
    %v784 = vld [vmem:[#allocation2 + $0xa8] sm:$0xff]
    %v785 = vld [vmem:[#allocation2 + $0xb0] sm:$0xff]
    %v786 = vld [vmem:[#allocation2 + $0xb8] sm:$0xff]
    %v787 = vld [vmem:[#allocation2 + $0xc0] sm:$0xff]
    %v788 = vld [vmem:[#allocation2 + $0xc8] sm:$0xff]
    %v789 = vld [vmem:[#allocation2 + $0xd0] sm:$0xff]
    %v790 = vld [vmem:[#allocation2 + $0xd8] sm:$0xff]
    %v791 = vld [vmem:[#allocation2 + $0xe0] sm:$0xff]
    %v792 = vld [vmem:[#allocation2 + $0xe8] sm:$0xff]
    %v793 = vld [vmem:[#allocation2 + $0xf0] sm:$0xff]
    %v794 = vld [vmem:[#allocation2 + $0xf8] sm:$0xff]
    %v795 = vld [vmem:[#allocation2 + $0x100] sm:$0xff]
    %v796 = vld [vmem:[#allocation2 + $0x108] sm:$0xff]
    %v797 = vld [vmem:[#allocation2 + $0x110] sm:$0xff]
    %v798 = vld [vmem:[#allocation2 + $0x118] sm:$0xff]
    %v799 = vld [vmem:[#allocation2 + $0x120] sm:$0xff]
    %v800 = vld [vmem:[#allocation2 + $0x128] sm:$0xff]
    %v801 = vld [vmem:[#allocation2 + $0x130] sm:$0xff]
    %v802 = vld [vmem:[#allocation2 + $0x138] sm:$0xff]
    %v803 = vld [vmem:[#allocation2 + $0x140] sm:$0xff]
    %v804 = vld [vmem:[#allocation2 + $0x148] sm:$0xff]
    %v805 = vld [vmem:[#allocation2 + $0x150] sm:$0xff]
    %v806 = vld [vmem:[#allocation2 + $0x158] sm:$0xff]
    %v807 = vld [vmem:[#allocation2 + $0x160] sm:$0xff]
    %v808 = vld [vmem:[#allocation2 + $0x168] sm:$0xff]
    %v809 = vld [vmem:[#allocation2 + $0x170] sm:$0xff]
    %v810 = vld [vmem:[#allocation2 + $0x178] sm:$0xff]
    %v811 = vld [vmem:[#allocation2 + $0x180] sm:$0xff]
    %v812 = vld [vmem:[#allocation2 + $0x188] sm:$0xff]
    %v813 = vld [vmem:[#allocation2 + $0x190] sm:$0xff]
    %v814 = vld [vmem:[#allocation2 + $0x198] sm:$0xff]
    %v815 = vld [vmem:[#allocation2 + $0x1a0] sm:$0xff]
    %v816 = vld [vmem:[#allocation2 + $0x1a8] sm:$0xff]
    %v817 = vld [vmem:[#allocation2 + $0x1b0] sm:$0xff]
    %v818 = vld [vmem:[#allocation2 + $0x1b8] sm:$0xff]
    %v819 = vld [vmem:[#allocation2 + $0x1c0] sm:$0xff]
    %v820 = vld [vmem:[#allocation2 + $0x1c8] sm:$0xff]
    %v821 = vld [vmem:[#allocation2 + $0x1d0] sm:$0xff]
    %v822 = vld [vmem:[#allocation2 + $0x1d8] sm:$0xff]
    %v823 = vld [vmem:[#allocation2 + $0x1e0] sm:$0xff]
    %v824 = vld [vmem:[#allocation2 + $0x1e8] sm:$0xff]
    %v825 = vld [vmem:[#allocation2 + $0x1f0] sm:$0xff]
    %v826 = vld [vmem:[#allocation2 + $0x1f8] sm:$0xff]
    %vm827 = vcmp.gt.f32.partialorder %v763, 0.0
    %vm828 = vcmp.gt.f32.partialorder %v764, 0.0
    %vm829 = vcmp.gt.f32.partialorder %v765, 0.0
    %vm830 = vcmp.gt.f32.partialorder %v766, 0.0
    %vm831 = vcmp.gt.f32.partialorder %v767, 0.0
    %vm832 = vcmp.gt.f32.partialorder %v768, 0.0
    %vm833 = vcmp.gt.f32.partialorder %v769, 0.0
    %vm834 = vcmp.gt.f32.partialorder %v770, 0.0
    %vm835 = vcmp.gt.f32.partialorder %v771, 0.0
    %vm836 = vcmp.gt.f32.partialorder %v772, 0.0
    %vm837 = vcmp.gt.f32.partialorder %v773, 0.0
    %vm838 = vcmp.gt.f32.partialorder %v774, 0.0
    %vm839 = vcmp.gt.f32.partialorder %v775, 0.0
    %vm840 = vcmp.gt.f32.partialorder %v776, 0.0
    %vm841 = vcmp.gt.f32.partialorder %v777, 0.0
    %vm842 = vcmp.gt.f32.partialorder %v778, 0.0
    %vm843 = vcmp.gt.f32.partialorder %v779, 0.0
    %vm844 = vcmp.gt.f32.partialorder %v780, 0.0
    %vm845 = vcmp.gt.f32.partialorder %v781, 0.0
    %vm846 = vcmp.gt.f32.partialorder %v782, 0.0
    %vm847 = vcmp.gt.f32.partialorder %v783, 0.0
    %vm848 = vcmp.gt.f32.partialorder %v784, 0.0
    %vm849 = vcmp.gt.f32.partialorder %v785, 0.0
    %vm850 = vcmp.gt.f32.partialorder %v786, 0.0
    %vm851 = vcmp.gt.f32.partialorder %v787, 0.0
    %vm852 = vcmp.gt.f32.partialorder %v788, 0.0
    %vm853 = vcmp.gt.f32.partialorder %v789, 0.0
    %vm854 = vcmp.gt.f32.partialorder %v790, 0.0
    %vm855 = vcmp.gt.f32.partialorder %v791, 0.0
    %vm856 = vcmp.gt.f32.partialorder %v792, 0.0
    %vm857 = vcmp.gt.f32.partialorder %v793, 0.0
    %vm858 = vcmp.gt.f32.partialorder %v794, 0.0
    %vm859 = vcmp.gt.f32.partialorder %v795, 0.0
    %vm860 = vcmp.gt.f32.partialorder %v796, 0.0
    %vm861 = vcmp.gt.f32.partialorder %v797, 0.0
    %vm862 = vcmp.gt.f32.partialorder %v798, 0.0
    %vm863 = vcmp.gt.f32.partialorder %v799, 0.0
    %vm864 = vcmp.gt.f32.partialorder %v800, 0.0
    %vm865 = vcmp.gt.f32.partialorder %v801, 0.0
    %vm866 = vcmp.gt.f32.partialorder %v802, 0.0
    %vm867 = vcmp.gt.f32.partialorder %v803, 0.0
    %vm868 = vcmp.gt.f32.partialorder %v804, 0.0
    %vm869 = vcmp.gt.f32.partialorder %v805, 0.0
    %vm870 = vcmp.gt.f32.partialorder %v806, 0.0
    %vm871 = vcmp.gt.f32.partialorder %v807, 0.0
    %vm872 = vcmp.gt.f32.partialorder %v808, 0.0
    %vm873 = vcmp.gt.f32.partialorder %v809, 0.0
    %vm874 = vcmp.gt.f32.partialorder %v810, 0.0
    %vm875 = vcmp.gt.f32.partialorder %v811, 0.0
    %vm876 = vcmp.gt.f32.partialorder %v812, 0.0
    %vm877 = vcmp.gt.f32.partialorder %v813, 0.0
    %vm878 = vcmp.gt.f32.partialorder %v814, 0.0
    %vm879 = vcmp.gt.f32.partialorder %v815, 0.0
    %vm880 = vcmp.gt.f32.partialorder %v816, 0.0
    %vm881 = vcmp.gt.f32.partialorder %v817, 0.0
    %vm882 = vcmp.gt.f32.partialorder %v818, 0.0
    %vm883 = vcmp.gt.f32.partialorder %v819, 0.0
    %vm884 = vcmp.gt.f32.partialorder %v820, 0.0
    %vm885 = vcmp.gt.f32.partialorder %v821, 0.0
    %vm886 = vcmp.gt.f32.partialorder %v822, 0.0
    %vm887 = vcmp.gt.f32.partialorder %v823, 0.0
    %vm888 = vcmp.gt.f32.partialorder %v824, 0.0
    %vm889 = vcmp.gt.f32.partialorder %v825, 0.0
    %vm890 = vcmp.gt.f32.partialorder %v826, 0.0
    %v891 = vmul.f32 %v763, 0.2
    %v892 = vmul.f32 %v764, 0.2
    %v893 = vmul.f32 %v765, 0.2
    %v894 = vmul.f32 %v766, 0.2
    %v895 = vmul.f32 %v767, 0.2
    %v896 = vmul.f32 %v768, 0.2
    %v897 = vmul.f32 %v769, 0.2
    %v898 = vmul.f32 %v770, 0.2
    %v899 = vmul.f32 %v771, 0.2
    %v900 = vmul.f32 %v772, 0.2
    %v901 = vmul.f32 %v773, 0.2
    %v902 = vmul.f32 %v774, 0.2
    %v903 = vmul.f32 %v775, 0.2
    %v904 = vmul.f32 %v776, 0.2
    %v905 = vmul.f32 %v777, 0.2
    %v906 = vmul.f32 %v778, 0.2
    %v907 = vmul.f32 %v779, 0.2
    %v908 = vmul.f32 %v780, 0.2
    %v909 = vmul.f32 %v781, 0.2
    %v910 = vmul.f32 %v782, 0.2
    %v911 = vmul.f32 %v783, 0.2
    %v912 = vmul.f32 %v784, 0.2
    %v913 = vmul.f32 %v785, 0.2
    %v914 = vmul.f32 %v786, 0.2
    %v915 = vmul.f32 %v787, 0.2
    %v916 = vmul.f32 %v788, 0.2
    %v917 = vmul.f32 %v789, 0.2
    %v918 = vmul.f32 %v790, 0.2
    %v919 = vmul.f32 %v791, 0.2
    %v920 = vmul.f32 %v792, 0.2
    %v921 = vmul.f32 %v793, 0.2
    %v922 = vmul.f32 %v794, 0.2
    %v923 = vmul.f32 %v795, 0.2
    %v924 = vmul.f32 %v796, 0.2
    %v925 = vmul.f32 %v797, 0.2
    %v926 = vmul.f32 %v798, 0.2
    %v927 = vmul.f32 %v799, 0.2
    %v928 = vmul.f32 %v800, 0.2
    %v929 = vmul.f32 %v801, 0.2
    %v930 = vmul.f32 %v802, 0.2
    %v931 = vmul.f32 %v803, 0.2
    %v932 = vmul.f32 %v804, 0.2
    %v933 = vmul.f32 %v805, 0.2
    %v934 = vmul.f32 %v806, 0.2
    %v935 = vmul.f32 %v807, 0.2
    %v936 = vmul.f32 %v808, 0.2
    %v937 = vmul.f32 %v809, 0.2
    %v938 = vmul.f32 %v810, 0.2
    %v939 = vmul.f32 %v811, 0.2
    %v940 = vmul.f32 %v812, 0.2
    %v941 = vmul.f32 %v813, 0.2
    %v942 = vmul.f32 %v814, 0.2
    %v943 = vmul.f32 %v815, 0.2
    %v944 = vmul.f32 %v816, 0.2
    %v945 = vmul.f32 %v817, 0.2
    %v946 = vmul.f32 %v818, 0.2
    %v947 = vmul.f32 %v819, 0.2
    %v948 = vmul.f32 %v820, 0.2
    %v949 = vmul.f32 %v821, 0.2
    %v950 = vmul.f32 %v822, 0.2
    %v951 = vmul.f32 %v823, 0.2
    %v952 = vmul.f32 %v824, 0.2
    %v953 = vmul.f32 %v825, 0.2
    %v954 = vmul.f32 %v826, 0.2
    %v955 = vsel %vm827, %v763, %v891
    %v956 = vsel %vm828, %v764, %v892
    %v957 = vsel %vm829, %v765, %v893
    %v958 = vsel %vm830, %v766, %v894
    %v959 = vsel %vm831, %v767, %v895
    %v960 = vsel %vm832, %v768, %v896
    %v961 = vsel %vm833, %v769, %v897
    %v962 = vsel %vm834, %v770, %v898
    %v963 = vsel %vm835, %v771, %v899
    %v964 = vsel %vm836, %v772, %v900
    %v965 = vsel %vm837, %v773, %v901
    %v966 = vsel %vm838, %v774, %v902
    %v967 = vsel %vm839, %v775, %v903
    %v968 = vsel %vm840, %v776, %v904
    %v969 = vsel %vm841, %v777, %v905
    %v970 = vsel %vm842, %v778, %v906
    %v971 = vsel %vm843, %v779, %v907
    %v972 = vsel %vm844, %v780, %v908
    %v973 = vsel %vm845, %v781, %v909
    %v974 = vsel %vm846, %v782, %v910
    %v975 = vsel %vm847, %v783, %v911
    %v976 = vsel %vm848, %v784, %v912
    %v977 = vsel %vm849, %v785, %v913
    %v978 = vsel %vm850, %v786, %v914
    %v979 = vsel %vm851, %v787, %v915
    %v980 = vsel %vm852, %v788, %v916
    %v981 = vsel %vm853, %v789, %v917
    %v982 = vsel %vm854, %v790, %v918
    %v983 = vsel %vm855, %v791, %v919
    %v984 = vsel %vm856, %v792, %v920
    %v985 = vsel %vm857, %v793, %v921
    %v986 = vsel %vm858, %v794, %v922
    %v987 = vsel %vm859, %v795, %v923
    %v988 = vsel %vm860, %v796, %v924
    %v989 = vsel %vm861, %v797, %v925
    %v990 = vsel %vm862, %v798, %v926
    %v991 = vsel %vm863, %v799, %v927
    %v992 = vsel %vm864, %v800, %v928
    %v993 = vsel %vm865, %v801, %v929
    %v994 = vsel %vm866, %v802, %v930
    %v995 = vsel %vm867, %v803, %v931
    %v996 = vsel %vm868, %v804, %v932
    %v997 = vsel %vm869, %v805, %v933
    %v998 = vsel %vm870, %v806, %v934
    %v999 = vsel %vm871, %v807, %v935
    %v1000 = vsel %vm872, %v808, %v936
    %v1001 = vsel %vm873, %v809, %v937
    %v1002 = vsel %vm874, %v810, %v938
    %v1003 = vsel %vm875, %v811, %v939
    %v1004 = vsel %vm876, %v812, %v940
    %v1005 = vsel %vm877, %v813, %v941
    %v1006 = vsel %vm878, %v814, %v942
    %v1007 = vsel %vm879, %v815, %v943
    %v1008 = vsel %vm880, %v816, %v944
    %v1009 = vsel %vm881, %v817, %v945
    %v1010 = vsel %vm882, %v818, %v946
    %v1011 = vsel %vm883, %v819, %v947
    %v1012 = vsel %vm884, %v820, %v948
    %v1013 = vsel %vm885, %v821, %v949
    %v1014 = vsel %vm886, %v822, %v950
    %v1015 = vsel %vm887, %v823, %v951
    %v1016 = vsel %vm888, %v824, %v952
    %v1017 = vsel %vm889, %v825, %v953
    %v1018 = vsel %vm890, %v826, %v954
    %v1019 = vpack.c.bf16 %v955, %v955
    %v1020 = vpack.c.bf16 %v956, %v956
    %v1021 = vpack.c.bf16 %v957, %v957
    %v1022 = vpack.c.bf16 %v958, %v958
    %v1023 = vpack.c.bf16 %v959, %v959
    %v1024 = vpack.c.bf16 %v960, %v960
    %v1025 = vpack.c.bf16 %v961, %v961
    %v1026 = vpack.c.bf16 %v962, %v962
    %v1027 = vpack.c.bf16 %v963, %v963
    %v1028 = vpack.c.bf16 %v964, %v964
    %v1029 = vpack.c.bf16 %v965, %v965
    %v1030 = vpack.c.bf16 %v966, %v966
    %v1031 = vpack.c.bf16 %v967, %v967
    %v1032 = vpack.c.bf16 %v968, %v968
    %v1033 = vpack.c.bf16 %v969, %v969
    %v1034 = vpack.c.bf16 %v970, %v970
    %v1035 = vpack.c.bf16 %v971, %v971
    %v1036 = vpack.c.bf16 %v972, %v972
    %v1037 = vpack.c.bf16 %v973, %v973
    %v1038 = vpack.c.bf16 %v974, %v974
    %v1039 = vpack.c.bf16 %v975, %v975
    %v1040 = vpack.c.bf16 %v976, %v976
    %v1041 = vpack.c.bf16 %v977, %v977
    %v1042 = vpack.c.bf16 %v978, %v978
    %v1043 = vpack.c.bf16 %v979, %v979
    %v1044 = vpack.c.bf16 %v980, %v980
    %v1045 = vpack.c.bf16 %v981, %v981
    %v1046 = vpack.c.bf16 %v982, %v982
    %v1047 = vpack.c.bf16 %v983, %v983
    %v1048 = vpack.c.bf16 %v984, %v984
    %v1049 = vpack.c.bf16 %v985, %v985
    %v1050 = vpack.c.bf16 %v986, %v986
    %v1051 = vpack.c.bf16 %v987, %v987
    %v1052 = vpack.c.bf16 %v988, %v988
    %v1053 = vpack.c.bf16 %v989, %v989
    %v1054 = vpack.c.bf16 %v990, %v990
    %v1055 = vpack.c.bf16 %v991, %v991
    %v1056 = vpack.c.bf16 %v992, %v992
    %v1057 = vpack.c.bf16 %v993, %v993
    %v1058 = vpack.c.bf16 %v994, %v994
    %v1059 = vpack.c.bf16 %v995, %v995
    %v1060 = vpack.c.bf16 %v996, %v996
    %v1061 = vpack.c.bf16 %v997, %v997
    %v1062 = vpack.c.bf16 %v998, %v998
    %v1063 = vpack.c.bf16 %v999, %v999
    %v1064 = vpack.c.bf16 %v1000, %v1000
    %v1065 = vpack.c.bf16 %v1001, %v1001
    %v1066 = vpack.c.bf16 %v1002, %v1002
    %v1067 = vpack.c.bf16 %v1003, %v1003
    %v1068 = vpack.c.bf16 %v1004, %v1004
    %v1069 = vpack.c.bf16 %v1005, %v1005
    %v1070 = vpack.c.bf16 %v1006, %v1006
    %v1071 = vpack.c.bf16 %v1007, %v1007
    %v1072 = vpack.c.bf16 %v1008, %v1008
    %v1073 = vpack.c.bf16 %v1009, %v1009
    %v1074 = vpack.c.bf16 %v1010, %v1010
    %v1075 = vpack.c.bf16 %v1011, %v1011
    %v1076 = vpack.c.bf16 %v1012, %v1012
    %v1077 = vpack.c.bf16 %v1013, %v1013
    %v1078 = vpack.c.bf16 %v1014, %v1014
    %v1079 = vpack.c.bf16 %v1015, %v1015
    %v1080 = vpack.c.bf16 %v1016, %v1016
    %v1081 = vpack.c.bf16 %v1017, %v1017
    %v1082 = vpack.c.bf16 %v1018, %v1018
    %1083 = vst [vmem:[%s2] sm:$0xf] %v1019
    %1084 = vst [vmem:[%s2 + $0x4] sm:$0xf] %v1020
    %1085 = vst [vmem:[%s2 + $0x8] sm:$0xf] %v1021
    %1086 = vst [vmem:[%s2 + $0xc] sm:$0xf] %v1022
    %1087 = vst [vmem:[%s2 + $0x10] sm:$0xf] %v1023
    %1088 = vst [vmem:[%s2 + $0x14] sm:$0xf] %v1024
    %1089 = vst [vmem:[%s2 + $0x18] sm:$0xf] %v1025
    %1090 = vst [vmem:[%s2 + $0x1c] sm:$0xf] %v1026
    %1091 = vst [vmem:[%s2 + $0x20] sm:$0xf] %v1027
    %1092 = vst [vmem:[%s2 + $0x24] sm:$0xf] %v1028
    %1093 = vst [vmem:[%s2 + $0x28] sm:$0xf] %v1029
    %1094 = vst [vmem:[%s2 + $0x2c] sm:$0xf] %v1030
    %1095 = vst [vmem:[%s2 + $0x30] sm:$0xf] %v1031
    %1096 = vst [vmem:[%s2 + $0x34] sm:$0xf] %v1032
    %1097 = vst [vmem:[%s2 + $0x38] sm:$0xf] %v1033
    %1098 = vst [vmem:[%s2 + $0x3c] sm:$0xf] %v1034
    %1099 = vst [vmem:[%s2 + $0x40] sm:$0xf] %v1035
    %1100 = vst [vmem:[%s2 + $0x44] sm:$0xf] %v1036
    %1101 = vst [vmem:[%s2 + $0x48] sm:$0xf] %v1037
    %1102 = vst [vmem:[%s2 + $0x4c] sm:$0xf] %v1038
    %1103 = vst [vmem:[%s2 + $0x50] sm:$0xf] %v1039
    %1104 = vst [vmem:[%s2 + $0x54] sm:$0xf] %v1040
    %1105 = vst [vmem:[%s2 + $0x58] sm:$0xf] %v1041
    %1106 = vst [vmem:[%s2 + $0x5c] sm:$0xf] %v1042
    %1107 = vst [vmem:[%s2 + $0x60] sm:$0xf] %v1043
    %1108 = vst [vmem:[%s2 + $0x64] sm:$0xf] %v1044
    %1109 = vst [vmem:[%s2 + $0x68] sm:$0xf] %v1045
    %1110 = vst [vmem:[%s2 + $0x6c] sm:$0xf] %v1046
    %1111 = vst [vmem:[%s2 + $0x70] sm:$0xf] %v1047
    %1112 = vst [vmem:[%s2 + $0x74] sm:$0xf] %v1048
    %1113 = vst [vmem:[%s2 + $0x78] sm:$0xf] %v1049
    %1114 = vst [vmem:[%s2 + $0x7c] sm:$0xf] %v1050
    %1115 = vst [vmem:[%s2 + $0x80] sm:$0xf] %v1051
    %1116 = vst [vmem:[%s2 + $0x84] sm:$0xf] %v1052
    %1117 = vst [vmem:[%s2 + $0x88] sm:$0xf] %v1053
    %1118 = vst [vmem:[%s2 + $0x8c] sm:$0xf] %v1054
    %1119 = vst [vmem:[%s2 + $0x90] sm:$0xf] %v1055
    %1120 = vst [vmem:[%s2 + $0x94] sm:$0xf] %v1056
    %1121 = vst [vmem:[%s2 + $0x98] sm:$0xf] %v1057
    %1122 = vst [vmem:[%s2 + $0x9c] sm:$0xf] %v1058
    %1123 = vst [vmem:[%s2 + $0xa0] sm:$0xf] %v1059
    %1124 = vst [vmem:[%s2 + $0xa4] sm:$0xf] %v1060
    %1125 = vst [vmem:[%s2 + $0xa8] sm:$0xf] %v1061
    %1126 = vst [vmem:[%s2 + $0xac] sm:$0xf] %v1062
    %1127 = vst [vmem:[%s2 + $0xb0] sm:$0xf] %v1063
    %1128 = vst [vmem:[%s2 + $0xb4] sm:$0xf] %v1064
    %1129 = vst [vmem:[%s2 + $0xb8] sm:$0xf] %v1065
    %1130 = vst [vmem:[%s2 + $0xbc] sm:$0xf] %v1066
    %1131 = vst [vmem:[%s2 + $0xc0] sm:$0xf] %v1067
    %1132 = vst [vmem:[%s2 + $0xc4] sm:$0xf] %v1068
    %1133 = vst [vmem:[%s2 + $0xc8] sm:$0xf] %v1069
    %1134 = vst [vmem:[%s2 + $0xcc] sm:$0xf] %v1070
    %1135 = vst [vmem:[%s2 + $0xd0] sm:$0xf] %v1071
    %1136 = vst [vmem:[%s2 + $0xd4] sm:$0xf] %v1072
    %1137 = vst [vmem:[%s2 + $0xd8] sm:$0xf] %v1073
    %1138 = vst [vmem:[%s2 + $0xdc] sm:$0xf] %v1074
    %1139 = vst [vmem:[%s2 + $0xe0] sm:$0xf] %v1075
    %1140 = vst [vmem:[%s2 + $0xe4] sm:$0xf] %v1076
    %1141 = vst [vmem:[%s2 + $0xe8] sm:$0xf] %v1077
    %1142 = vst [vmem:[%s2 + $0xec] sm:$0xf] %v1078
    %1143 = vst [vmem:[%s2 + $0xf0] sm:$0xf] %v1079
    %1144 = vst [vmem:[%s2 + $0xf4] sm:$0xf] %v1080
    %1145 = vst [vmem:[%s2 + $0xf8] sm:$0xf] %v1081
    %1146 = vst [vmem:[%s2 + $0xfc] sm:$0xf] %v1082
  $region17: #{image_discriminator.11} parent=0 // pred_fallthru
    _
  // Predicated region
  $region18: #{image_discriminator.11} parent=0 // pred_check
    _
  $region19: #{image_discriminator.11} parent=0 // pred_check_branch
    %1148 = sbr.rel (0) target = $region21
  $region20: #{image_discriminator.11} parent=0 // pred_region
    _
  $region21: #{image_discriminator.11} parent=0 // pred_fallthru
    _
  // Predicated region
  $region22: #{image_discriminator.11} parent=0 // pred_check
    _
  $region23: #{image_discriminator.11} parent=0 // pred_check_branch
    %1150 = sbr.rel (0) target = $region25
  $region24: #{image_discriminator.11} parent=0 // pred_region
    _
  $region25: #{image_discriminator.11} parent=0 // pred_fallthru
    _

// kernel: image_discriminator.13
$region0: #{image_discriminator.13}
  #allocation0 [shape = 'u32[]', space=smem, size = 0x4, offset = 0x4, fixed_abs, tag = 'smem constant byte address 0x4 - core index']
  #allocation1 [shape = 'u32[72,128]{1,0:T(1,128)}', space=vmem, size = 0x9000, scoped, tag = 'internal scratch']
  %s0 = inlined_call_operand.vmem [shape: bf16[2,64,128], index: 0, kind: input, shape index: {}]
  %s1 = inlined_call_operand.vmem [shape: f32[2,1,128], index: 1, kind: output, shape index: {0}]
  %s2 = inlined_call_operand.vmem [shape: f32[2,1,128], index: 2, kind: output, shape index: {1}]
  %3 = xla_tuple %s1, %s2
  %s4 = sld [smem:[#allocation0]]
  $region53: #{image_discriminator.13} parent=0
    _
  %s6 = ssub.s32 1, %s4
  %s7 = scalar_select 0, %s6, %s4
  loop: start=0, step=1, limit=4
  $region2: #{image_discriminator.13} parent=0 // loop_pre_header
    _
  $region3: #{image_discriminator.13} parent=0 // loop_header
    %s9 = sphi 0, %s13
    %p10 = scmp.ge.s32.totalorder %s9, 4
    %s16 = sphi 0, %s35
    %s17 = sphi 0, %s31
    %s18 = sphi 0, %s27
    %s19 = sphi 0, %s16
    %s20 = sphi 0, %s17
    %s21 = sphi 0, %s18
    %s22 = sphi 0, %s19
    %s23 = sphi 0, %s20
    %s24 = sphi 0, %s21
    %s42 = sphi 0, %s44
    %s45 = sphi 0, %s42
    %s46 = sphi 0, %s45
    %s62 = sphi 0, %s46
    %s70 = sphi 0, %s72
    %s73 = sphi 0, %s70
    %s74 = sphi 0, %s73
    %s90 = sphi 0, %s74
    %s98 = sphi 0, %s100
    %s101 = sphi 0, %s98
    %s102 = sphi 0, %s101
    %s118 = sphi 0, %s102
  $region4: #{image_discriminator.13} parent=0 // loop_header_branch
    %12 = sbr.rel (%p10) target = $region8
  $region5: #{image_discriminator.13} parent=0 // loop_body
    %s14 = ssub.s32 %s9, 1
    %s15 = ssub.s32 %s9, 2
    %s25 = sadd.s32 1, %s18
    %p26 = scmp.ge.s32.totalorder %s25, 1
    %s27 = scalar_select %p26, 0, %s25
    %s28 = sadd.s32 1, %s17
    %s29 = scalar_select %p26, %s28, %s17
    %p30 = scmp.ge.s32.totalorder %s29, 1
    %s31 = scalar_select %p30, 0, %s29
    %s32 = sadd.s32 1, %s16
    %s33 = scalar_select %p30, %s32, %s16
    %p34 = scmp.ge.s32.totalorder %s33, 2
    %s35 = scalar_select %p34, 0, %s33
    %s36 = ssub.s32 %s16, %s35
    %s37 = ssub.s32 %s18, %s27
    %s38 = sor.u32 %s36, %s37
    %s39 = ssub.s32 %s17, %s31
    %s40 = sor.u32 %s38, %s39
    %p41 = scmp.eq.s32.totalorder %s40, 0
    %s43 = sadd.s32 %s42, 1
    %s44 = scalar_select %p41, %s42, %s43
    %p47 = pneg %p41
    %p48 = scmp.eq.s32.totalorder %s9, 1
    %p49 = por %p47, %p48
    %p50 = scmp.ne.s32.totalorder %s42, %s45
    %p51 = scmp.eq.s32.totalorder %s9, 0
    %p52 = por %p50, %p51
    %p53 = scmp.ne.s32.totalorder %s42, %s45
    %p54 = scmp.eq.s32.totalorder %s14, 1
    %p55 = por %p53, %p54
    %p56 = scmp.ne.s32.totalorder %s45, %s46
    %p57 = scmp.eq.s32.totalorder %s14, 0
    %p58 = por %p56, %p57
    %p59 = scmp.ne.s32.totalorder %s45, %s46
    %p60 = scmp.eq.s32.totalorder %s15, 1
    %p61 = por %p59, %p60
    %p63 = scmp.ne.s32.totalorder %s46, %s62
    %p64 = scmp.eq.s32.totalorder %s15, 0
    %p65 = por %p63, %p64
    %s66 = ssub.s32 %s16, %s35
    %s67 = ssub.s32 %s17, %s31
    %s68 = sor.u32 %s66, %s67
    %p69 = scmp.eq.s32.totalorder %s68, 0
    %s71 = sadd.s32 %s70, 1
    %s72 = scalar_select %p69, %s70, %s71
    %p75 = pneg %p69
    %p76 = scmp.eq.s32.totalorder %s9, 1
    %p77 = por %p75, %p76
    %p78 = scmp.ne.s32.totalorder %s70, %s73
    %p79 = scmp.eq.s32.totalorder %s9, 0
    %p80 = por %p78, %p79
    %p81 = scmp.ne.s32.totalorder %s70, %s73
    %p82 = scmp.eq.s32.totalorder %s14, 1
    %p83 = por %p81, %p82
    %p84 = scmp.ne.s32.totalorder %s73, %s74
    %p85 = scmp.eq.s32.totalorder %s14, 0
    %p86 = por %p84, %p85
    %p87 = scmp.ne.s32.totalorder %s73, %s74
    %p88 = scmp.eq.s32.totalorder %s15, 1
    %p89 = por %p87, %p88
    %p91 = scmp.ne.s32.totalorder %s74, %s90
    %p92 = scmp.eq.s32.totalorder %s15, 0
    %p93 = por %p91, %p92
    %s94 = ssub.s32 %s16, %s35
    %s95 = ssub.s32 %s17, %s31
    %s96 = sor.u32 %s94, %s95
    %p97 = scmp.eq.s32.totalorder %s96, 0
    %s99 = sadd.s32 %s98, 1
    %s100 = scalar_select %p97, %s98, %s99
    %p103 = pneg %p97
    %p104 = scmp.eq.s32.totalorder %s9, 1
    %p105 = por %p103, %p104
    %p106 = scmp.ne.s32.totalorder %s98, %s101
    %p107 = scmp.eq.s32.totalorder %s9, 0
    %p108 = por %p106, %p107
    %p109 = scmp.ne.s32.totalorder %s98, %s101
    %p110 = scmp.eq.s32.totalorder %s14, 1
    %p111 = por %p109, %p110
    %p112 = scmp.ne.s32.totalorder %s101, %s102
    %p113 = scmp.eq.s32.totalorder %s14, 0
    %p114 = por %p112, %p113
    %p115 = scmp.ne.s32.totalorder %s101, %s102
    %p116 = scmp.eq.s32.totalorder %s15, 1
    %p117 = por %p115, %p116
    %p119 = scmp.ne.s32.totalorder %s102, %s118
    %p120 = scmp.eq.s32.totalorder %s15, 0
    %p121 = por %p119, %p120
    %p122 = scmp.le.s32.totalorder 1, %s9
    %p123 = scmp.lt.s32.totalorder %s9, 3
    %p124 = pnand %p122, %p123
    %p125 = pneg %p124
    // Predicated region
    $region9: #{image_discriminator.13} parent=5 // pred_check
      _
    $region10: #{image_discriminator.13} parent=5 // pred_check_branch
      %127 = sbr.rel (%p124) target = $region12
    $region11: #{image_discriminator.13} parent=5 // pred_region
      %s128 = ssub.s32 %s9, 1
    $region12: #{image_discriminator.13} parent=5 // pred_fallthru
      _
    %p129 = scmp.lt.s32.totalorder %s9, 2
    // Predicated region
    $region13: #{image_discriminator.13} parent=5 // pred_check
      %p130 = pneg %p129
    $region14: #{image_discriminator.13} parent=5 // pred_check_branch
      %132 = sbr.rel (%p130) target = $region16
    $region15: #{image_discriminator.13} parent=5 // pred_region
      // Predicated region
      $region17: #{image_discriminator.13} parent=15 // pred_check
        %p133 = pneg %p52
      $region18: #{image_discriminator.13} parent=15 // pred_check_branch
        %135 = sbr.rel (%p133) target = $region20
      $region19: #{image_discriminator.13} parent=15 // pred_region
        %s136 = smul.u32 8, %s18
        %p137 = scmp.lt.s32.totalorder %s16, 1
        %s138 = scalar_select %p137, %s16, 1
        %p139 = scmp.lt.s32.totalorder %s136, 7
        %s140 = scalar_select %p139, %s136, 7
        %p141 = scmp.lt.s32.totalorder %s17, 0
        %s142 = scalar_select %p141, %s17, 0
        %s143 = sadd.s32 %s142, %s140
        %s144 = smul.addr %s138, 8
        %s145 = sadd.s32 %s143, %s144
        %s146 = smul.addr %s145, 4
        %s147 = scalar_lea.vmem %s0, %s146
        %s148 = smul.u32 8, %s18
      $region20: #{image_discriminator.13} parent=15 // pred_fallthru
        _
    $region16: #{image_discriminator.13} parent=5 // pred_fallthru
      _
    %p149 = scmp.le.s32.totalorder 1, %s9
    %p150 = scmp.lt.s32.totalorder %s9, 3
    %p151 = pnand %p149, %p150
    %p152 = pneg %p151
    // Predicated region
    $region21: #{image_discriminator.13} parent=5 // pred_check
      _
    $region22: #{image_discriminator.13} parent=5 // pred_check_branch
      %154 = sbr.rel (%p151) target = $region24
    $region23: #{image_discriminator.13} parent=5 // pred_region
      %s155 = ssub.s32 %s9, 1
      %s156 = smul.u32 8, %s21
      %p157 = scmp.lt.s32.totalorder %s19, 1
      %s158 = scalar_select %p157, %s19, 1
      %p159 = scmp.lt.s32.totalorder %s156, 7
      %s160 = scalar_select %p159, %s156, 7
      %p161 = scmp.lt.s32.totalorder %s20, 0
      %s162 = scalar_select %p161, %s20, 0
      %s163 = sadd.s32 %s162, %s160
      %s164 = smul.addr %s158, 8
      %s165 = sadd.s32 %s163, %s164
      %s166 = smul.addr %s165, 4
      %s167 = scalar_lea.vmem %s0, %s166
      %p168 = pneg %p58
      %p169 = pneg %p55
      %p170 = pneg %p86
      %p171 = pneg %p83
      %p172 = scmp.lt.s32.totalorder %s19, 1
      %s173 = scalar_select %p172, %s19, 1
      %p174 = scmp.lt.s32.totalorder %s20, 0
      %s175 = scalar_select %p174, %s20, 0
      %s176 = sadd.s32 %s175, %s173
      %s177 = scalar_lea.vmem %s1, %s176
      %p178 = pneg %p114
      %p179 = pneg %p111
      %p180 = scmp.lt.s32.totalorder %s19, 1
      %s181 = scalar_select %p180, %s19, 1
      %p182 = scmp.lt.s32.totalorder %s20, 0
      %s183 = scalar_select %p182, %s20, 0
      %s184 = sadd.s32 %s183, %s181
      %s185 = scalar_lea.vmem %s2, %s184
      %s186 = smul.u32 8, %s21
      %p187 = scmp.lt.s32.totalorder %s19, 1
      %s188 = scalar_select %p187, %s19, 1
      %p189 = scmp.lt.s32.totalorder %s186, 7
      %s190 = scalar_select %p189, %s186, 7
      %p191 = scmp.lt.s32.totalorder %s20, 0
      %s192 = scalar_select %p191, %s20, 0
      %s193 = sadd.s32 %s192, %s190
      %s194 = smul.addr %s188, 8
      %s195 = sadd.s32 %s193, %s194
      %s196 = smul.addr %s195, 4
      %s197 = scalar_lea.vmem %s0, %s196
      %s198 = smul.u32 8, %s21
      %p199 = scmp.lt.s32.totalorder %s19, 1
      %s200 = scalar_select %p199, %s19, 1
      %p201 = scmp.lt.s32.totalorder %s20, 0
      %s202 = scalar_select %p201, %s20, 0
      %s203 = sadd.s32 %s202, %s200
      %s204 = scalar_lea.vmem %s1, %s203
      %p205 = scmp.lt.s32.totalorder %s19, 1
      %s206 = scalar_select %p205, %s19, 1
      %p207 = scmp.lt.s32.totalorder %s20, 0
      %s208 = scalar_select %p207, %s20, 0
      %s209 = sadd.s32 %s208, %s206
      %s210 = scalar_lea.vmem %s2, %s209
      %v211 = vld [vmem:[%s197] sm:$0xf]
      %v212 = vld [vmem:[%s197 + $0x4] sm:$0xf]
      %v213 = vld [vmem:[%s197 + $0x8] sm:$0xf]
      %v214 = vld [vmem:[%s197 + $0xc] sm:$0xf]
      %v215 = vld [vmem:[%s197 + $0x10] sm:$0xf]
      %v216 = vld [vmem:[%s197 + $0x14] sm:$0xf]
      %v217 = vld [vmem:[%s197 + $0x18] sm:$0xf]
      %v218 = vld [vmem:[%s197 + $0x1c] sm:$0xf]
      %v219 = vunpack.c.l.bf16 %v211
      %v220 = vunpack.c.l.bf16 %v212
      %v221 = vunpack.c.l.bf16 %v213
      %v222 = vunpack.c.l.bf16 %v214
      %v223 = vunpack.c.l.bf16 %v215
      %v224 = vunpack.c.l.bf16 %v216
      %v225 = vunpack.c.l.bf16 %v217
      %v226 = vunpack.c.l.bf16 %v218
      %p227 = scmp.eq.s32.totalorder %s21, 0
      // Predicated region
      $region25: #{image_discriminator.13} parent=23 // pred_check
        %p228 = pneg %p227
      $region26: #{image_discriminator.13} parent=23 // pred_check_branch
        %230 = sbr.rel (%p228) target = $region28
      $region27: #{image_discriminator.13} parent=23 // pred_region
        %231 = vst [vmem:[%s204] sm:$0x1] 0.0
        %232 = vst [vmem:[%s210] sm:$0x1] 0.0
      $region28: #{image_discriminator.13} parent=23 // pred_fallthru
        _
      %v233 = vld [vmem:[%s204] sm:$0x1]
      %v234 = vadd.f32 %v219, %v220
      %v235 = vadd.f32 %v234, %v221
      %v236 = vadd.f32 %v235, %v222
      %v237 = vadd.f32 %v236, %v223
      %v238 = vadd.f32 %v237, %v224
      %v239 = vadd.f32 %v238, %v225
      %v240 = vadd.f32 %v239, %v226
      %v241 = vrot.slane %v240, 4
      %v242 = vadd.f32 %v240, %v241
      %v243 = vrot.slane %v242, 2
      %v244 = vadd.f32 %v242, %v243
      %v245 = vrot.slane %v244, 1
      %v246 = vadd.f32 %v244, %v245
      %v247 = vadd.f32 %v233, %v246
      %248 = vst [vmem:[%s204] sm:$0x1] %v247
      %v249 = vld [vmem:[%s210] sm:$0x1]
      %v250 = vmul.f32 %v219, %v219
      %v251 = vmul.f32 %v220, %v220
      %v252 = vmul.f32 %v221, %v221
      %v253 = vmul.f32 %v222, %v222
      %v254 = vmul.f32 %v223, %v223
      %v255 = vmul.f32 %v224, %v224
      %v256 = vmul.f32 %v225, %v225
      %v257 = vmul.f32 %v226, %v226
      %v258 = vadd.f32 %v250, %v251
      %v259 = vadd.f32 %v258, %v252
      %v260 = vadd.f32 %v259, %v253
      %v261 = vadd.f32 %v260, %v254
      %v262 = vadd.f32 %v261, %v255
      %v263 = vadd.f32 %v262, %v256
      %v264 = vadd.f32 %v263, %v257
      %v265 = vrot.slane %v264, 4
      %v266 = vadd.f32 %v264, %v265
      %v267 = vrot.slane %v266, 2
      %v268 = vadd.f32 %v266, %v267
      %v269 = vrot.slane %v268, 1
      %v270 = vadd.f32 %v268, %v269
      %v271 = vadd.f32 %v249, %v270
      %272 = vst [vmem:[%s210] sm:$0x1] %v271
      // Predicated region
      $region29: #{image_discriminator.13} parent=23 // pred_check
        %p273 = pneg %p227
      $region30: #{image_discriminator.13} parent=23 // pred_check_branch
        %275 = sbr.rel (%p273) target = $region32
      $region31: #{image_discriminator.13} parent=23 // pred_region
        %v276 = vld [vmem:[%s204] sm:$0x1]
        %v277 = vrcp.pop 64.0
        %v278 = vmul.f32 64.0, %v277
        %v279 = vsub.f32 1.0, %v278
        %v280 = vmul.f32 %v277, %v279
        %v281 = vadd.f32 %v277, %v280
        %vm282 = vweird.f32 %v277
        %v283 = vsel %vm282, %v277, %v281
        %v284 = vmul.f32 %v276, %v283
        %v285 = vld [vmem:[%s210] sm:$0x1]
        %v286 = vmul.f32 %v285, %v283
        %v287 = vmul.f32 %v284, %v284
        %v288 = vsub.f32 %v286, %v287
        %289 = vst [vmem:[%s204] sm:$0x1] %v284
        %v290 = vadd.f32 %v288, 1e-05
        %v291 = vrsqrt.pop %v290
        %v292 = vmul.f32 %v291, %v290
        %v293 = vmul.f32 %v292, %v291
        %v294 = vmul.f32 0.5, %v293
        %v295 = vsub.f32 1.5, %v294
        %v296 = vmul.f32 %v291, %v295
        %vm297 = vweird.f32 %v290
        %vm298 = vweird.f32 %v291
        %vm299 = vmor %vm297, %vm298
        %v300 = vsel %vm299, %v291, %v296
        %301 = vst [vmem:[%s210] sm:$0x1] %v300
      $region32: #{image_discriminator.13} parent=23 // pred_fallthru
        _
      %p302 = scmp.lt.s32.totalorder %s19, 1
      %s303 = scalar_select %p302, %s19, 1
      %p304 = scmp.lt.s32.totalorder %s20, 0
      %s305 = scalar_select %p304, %s20, 0
      %s306 = sadd.s32 %s305, %s303
      %s307 = scalar_lea.vmem %s1, %s306
      %p308 = scmp.lt.s32.totalorder %s19, 1
      %s309 = scalar_select %p308, %s19, 1
      %p310 = scmp.lt.s32.totalorder %s20, 0
      %s311 = scalar_select %p310, %s20, 0
      %s312 = sadd.s32 %s311, %s309
      %s313 = scalar_lea.vmem %s2, %s312
      // Predicated region
      $region33: #{image_discriminator.13} parent=23 // pred_check
        %p314 = pneg %p83
      $region34: #{image_discriminator.13} parent=23 // pred_check_branch
        %316 = sbr.rel (%p314) target = $region36
      $region35: #{image_discriminator.13} parent=23 // pred_region
        _
      $region36: #{image_discriminator.13} parent=23 // pred_fallthru
        _
      // Predicated region
      $region37: #{image_discriminator.13} parent=23 // pred_check
        %p317 = pneg %p111
      $region38: #{image_discriminator.13} parent=23 // pred_check_branch
        %319 = sbr.rel (%p317) target = $region40
      $region39: #{image_discriminator.13} parent=23 // pred_region
        _
      $region40: #{image_discriminator.13} parent=23 // pred_fallthru
        _
    $region24: #{image_discriminator.13} parent=5 // pred_fallthru
      _
    %p320 = scmp.le.s32.totalorder 2, %s9
    // Predicated region
    $region41: #{image_discriminator.13} parent=5 // pred_check
      %p321 = pneg %p320
    $region42: #{image_discriminator.13} parent=5 // pred_check_branch
      %323 = sbr.rel (%p321) target = $region44
    $region43: #{image_discriminator.13} parent=5 // pred_region
      %s324 = ssub.s32 %s9, 2
      // Predicated region
      $region45: #{image_discriminator.13} parent=43 // pred_check
        %p325 = pneg %p89
      $region46: #{image_discriminator.13} parent=43 // pred_check_branch
        %327 = sbr.rel (%p325) target = $region48
      $region47: #{image_discriminator.13} parent=43 // pred_region
        %p328 = scmp.lt.s32.totalorder %s22, 1
        %s329 = scalar_select %p328, %s22, 1
        %p330 = scmp.lt.s32.totalorder %s23, 0
        %s331 = scalar_select %p330, %s23, 0
        %s332 = sadd.s32 %s331, %s329
        %s333 = scalar_lea.vmem %s1, %s332
      $region48: #{image_discriminator.13} parent=43 // pred_fallthru
        _
      // Predicated region
      $region49: #{image_discriminator.13} parent=43 // pred_check
        %p334 = pneg %p117
      $region50: #{image_discriminator.13} parent=43 // pred_check_branch
        %336 = sbr.rel (%p334) target = $region52
      $region51: #{image_discriminator.13} parent=43 // pred_region
        %p337 = scmp.lt.s32.totalorder %s22, 1
        %s338 = scalar_select %p337, %s22, 1
        %p339 = scmp.lt.s32.totalorder %s23, 0
        %s340 = scalar_select %p339, %s23, 0
        %s341 = sadd.s32 %s340, %s338
        %s342 = scalar_lea.vmem %s2, %s341
      $region52: #{image_discriminator.13} parent=43 // pred_fallthru
        _
    $region44: #{image_discriminator.13} parent=5 // pred_fallthru
      _
  $region6: #{image_discriminator.13} parent=0 // loop_footer
    %s13 = sadd.s32 1, %s9
  $region7: #{image_discriminator.13} parent=0 // loop_footer_branch
    %8 = sbr.rel target = $region3
  $region8: #{image_discriminator.13} parent=0 // loop_exit
    _

// kernel: image_discriminator.12
$region0: #{image_discriminator.12}
  #allocation0 [shape = 'u32[]', space=smem, size = 0x4, offset = 0x4, fixed_abs, tag = 'smem constant byte address 0x4 - core index']
  #allocation1 [shape = 'u32[72,128]{1,0:T(1,128)}', space=vmem, size = 0x9000, scoped, tag = 'internal scratch']
  #allocation2 [shape = 'f32[128,128]{1,0:T(8,128)}', space=vmem, size = 0x10000, scoped, tag = 'scratch operand']
  %s0 = inlined_call_operand.vmem [shape: bf16[128,1024], index: 0, kind: input, shape index: {}]
  %s1 = inlined_call_operand.vmem [shape: bf16[1024,128], index: 1, kind: input, shape index: {}]
  %s2 = inlined_call_operand.vmem [shape: bf16[128,128], index: 2, kind: output, shape index: {}]
  %s3 = sld [smem:[#allocation0]]
  $region72: #{image_discriminator.12} parent=0
    _
  %s5 = ssub.s32 1, %s3
  %s6 = scalar_select 0, %s5, %s3
  $region1: #{image_discriminator.12} parent=0
    #allocation3 [shape = 'u8[262144]{0}', space=vmem, size = 0x40000, scoped, tag = 'input window, operand 0']
    loop: start=0, step=1, limit=4
    $region2: #{image_discriminator.12} parent=1 // loop_pre_header
      _
    $region3: #{image_discriminator.12} parent=1 // loop_header
      %s8 = sphi 0, %s12
      %p9 = scmp.ge.s32.totalorder %s8, 4
      %s15 = sphi 0, %s34
      %s16 = sphi 0, %s30
      %s17 = sphi 0, %s26
      %s18 = sphi 0, %s15
      %s19 = sphi 0, %s16
      %s20 = sphi 0, %s17
      %s21 = sphi 0, %s18
      %s22 = sphi 0, %s19
      %s23 = sphi 0, %s20
      %s39 = sphi 0, %s41
      %s42 = sphi 0, %s39
      %s43 = sphi 0, %s42
      %s59 = sphi 0, %s43
      %s67 = sphi 0, %s69
      %s70 = sphi 0, %s67
      %s71 = sphi 0, %s70
      %s87 = sphi 0, %s71
      %s95 = sphi 0, %s97
      %s98 = sphi 0, %s95
      %s99 = sphi 0, %s98
      %s115 = sphi 0, %s99
    $region4: #{image_discriminator.12} parent=1 // loop_header_branch
      %11 = sbr.rel (%p9) target = $region8
    $region5: #{image_discriminator.12} parent=1 // loop_body
      %s13 = ssub.s32 %s8, 1
      %s14 = ssub.s32 %s8, 2
      %s24 = sadd.s32 1, %s17
      %p25 = scmp.ge.s32.totalorder %s24, 2
      %s26 = scalar_select %p25, 0, %s24
      %s27 = sadd.s32 1, %s16
      %s28 = scalar_select %p25, %s27, %s16
      %p29 = scmp.ge.s32.totalorder %s28, 1
      %s30 = scalar_select %p29, 0, %s28
      %s31 = sadd.s32 1, %s15
      %s32 = scalar_select %p29, %s31, %s15
      %p33 = scmp.ge.s32.totalorder %s32, 1
      %s34 = scalar_select %p33, 0, %s32
      %s35 = ssub.s32 %s15, %s34
      %s36 = ssub.s32 %s17, %s26
      %s37 = sor.u32 %s35, %s36
      %p38 = scmp.eq.s32.totalorder %s37, 0
      %s40 = sadd.s32 %s39, 1
      %s41 = scalar_select %p38, %s39, %s40
      %p44 = pneg %p38
      %p45 = scmp.eq.s32.totalorder %s8, 1
      %p46 = por %p44, %p45
      %p47 = scmp.ne.s32.totalorder %s39, %s42
      %p48 = scmp.eq.s32.totalorder %s8, 0
      %p49 = por %p47, %p48
      %p50 = scmp.ne.s32.totalorder %s39, %s42
      %p51 = scmp.eq.s32.totalorder %s13, 1
      %p52 = por %p50, %p51
      %p53 = scmp.ne.s32.totalorder %s42, %s43
      %p54 = scmp.eq.s32.totalorder %s13, 0
      %p55 = por %p53, %p54
      %p56 = scmp.ne.s32.totalorder %s42, %s43
      %p57 = scmp.eq.s32.totalorder %s14, 1
      %p58 = por %p56, %p57
      %p60 = scmp.ne.s32.totalorder %s43, %s59
      %p61 = scmp.eq.s32.totalorder %s14, 0
      %p62 = por %p60, %p61
      %s63 = ssub.s32 %s17, %s26
      %s64 = ssub.s32 %s16, %s30
      %s65 = sor.u32 %s63, %s64
      %p66 = scmp.eq.s32.totalorder %s65, 0
      %s68 = sadd.s32 %s67, 1
      %s69 = scalar_select %p66, %s67, %s68
      %p72 = pneg %p66
      %p73 = scmp.eq.s32.totalorder %s8, 1
      %p74 = por %p72, %p73
      %p75 = scmp.ne.s32.totalorder %s67, %s70
      %p76 = scmp.eq.s32.totalorder %s8, 0
      %p77 = por %p75, %p76
      %p78 = scmp.ne.s32.totalorder %s67, %s70
      %p79 = scmp.eq.s32.totalorder %s13, 1
      %p80 = por %p78, %p79
      %p81 = scmp.ne.s32.totalorder %s70, %s71
      %p82 = scmp.eq.s32.totalorder %s13, 0
      %p83 = por %p81, %p82
      %p84 = scmp.ne.s32.totalorder %s70, %s71
      %p85 = scmp.eq.s32.totalorder %s14, 1
      %p86 = por %p84, %p85
      %p88 = scmp.ne.s32.totalorder %s71, %s87
      %p89 = scmp.eq.s32.totalorder %s14, 0
      %p90 = por %p88, %p89
      %s91 = ssub.s32 %s15, %s34
      %s92 = ssub.s32 %s16, %s30
      %s93 = sor.u32 %s91, %s92
      %p94 = scmp.eq.s32.totalorder %s93, 0
      %s96 = sadd.s32 %s95, 1
      %s97 = scalar_select %p94, %s95, %s96
      %p100 = pneg %p94
      %p101 = scmp.eq.s32.totalorder %s8, 1
      %p102 = por %p100, %p101
      %p103 = scmp.ne.s32.totalorder %s95, %s98
      %p104 = scmp.eq.s32.totalorder %s8, 0
      %p105 = por %p103, %p104
      %p106 = scmp.ne.s32.totalorder %s95, %s98
      %p107 = scmp.eq.s32.totalorder %s13, 1
      %p108 = por %p106, %p107
      %p109 = scmp.ne.s32.totalorder %s98, %s99
      %p110 = scmp.eq.s32.totalorder %s13, 0
      %p111 = por %p109, %p110
      %p112 = scmp.ne.s32.totalorder %s98, %s99
      %p113 = scmp.eq.s32.totalorder %s14, 1
      %p114 = por %p112, %p113
      %p116 = scmp.ne.s32.totalorder %s99, %s115
      %p117 = scmp.eq.s32.totalorder %s14, 0
      %p118 = por %p116, %p117
      %p119 = scmp.le.s32.totalorder 1, %s8
      %p120 = scmp.lt.s32.totalorder %s8, 3
      %p121 = pnand %p119, %p120
      %p122 = pneg %p121
      // Predicated region
      $region9: #{image_discriminator.12} parent=5 // pred_check
        _
      $region10: #{image_discriminator.12} parent=5 // pred_check_branch
        %124 = sbr.rel (%p121) target = $region12
      $region11: #{image_discriminator.12} parent=5 // pred_region
        %s125 = ssub.s32 %s8, 1
      $region12: #{image_discriminator.12} parent=5 // pred_fallthru
        _
      %p126 = scmp.lt.s32.totalorder %s8, 2
      // Predicated region
      $region13: #{image_discriminator.12} parent=5 // pred_check
        %p127 = pneg %p126
      $region14: #{image_discriminator.12} parent=5 // pred_check_branch
        %129 = sbr.rel (%p127) target = $region16
      $region15: #{image_discriminator.12} parent=5 // pred_region
        // Predicated region
        $region17: #{image_discriminator.12} parent=15 // pred_check
          %p130 = pneg %p49
        $region18: #{image_discriminator.12} parent=15 // pred_check_branch
          %132 = sbr.rel (%p130) target = $region20
        $region19: #{image_discriminator.12} parent=15 // pred_region
          %s133 = sand.u32 %s39, 1
          %s134 = sand.u32 %s39, 1
          %s135 = smul.addr %s134, 256
          %s136 = scalar_lea.vmem [#allocation3], %s135
          %s137 = smul.u32 16, %s15
          %s138 = smul.u32 4, %s17
          %s139 = smul.addr %s137, 8
          %s140 = sadd.s32 %s138, %s139
          %s141 = smul.addr %s140, 4
          %s142 = scalar_lea.vmem %s0, %s141
          // Predicated region
          $region21: #{image_discriminator.12} parent=19 // pred_check
            _
          $region22: #{image_discriminator.12} parent=19 // pred_check_branch
            %144 = sbr.rel (0) target = $region24
          $region23: #{image_discriminator.12} parent=19 // pred_region
            // Predicated region
            $region25: #{image_discriminator.12} parent=23 // pred_check
              _
            $region26: #{image_discriminator.12} parent=23 // pred_check_branch
              %146 = sbr.rel (0) target = $region28
            $region27: #{image_discriminator.12} parent=23 // pred_region
              loop: start=0, step=1, limit=1
              $region29: #{image_discriminator.12} parent=27 // loop_pre_header
                _
              $region30: #{image_discriminator.12} parent=27 // loop_header
                %s148 = sphi 0, %s152
                %p149 = scmp.ge.s32.totalorder %s148, 1
                %s153 = sphi %s142, %s142
                %s154 = sphi %s136, %s136
              $region31: #{image_discriminator.12} parent=27 // loop_header_branch
                %151 = sbr.rel (%p149) target = $region35
              $region32: #{image_discriminator.12} parent=27 // loop_body
                %v155 = vld [vmem:[%s153] sm:$0xff]
                %156 = vst [vmem:[%s154] sm:$0xff] %v155
                %v157 = vld [vmem:[%s153 + $0x8] sm:$0xff]
                %158 = vst [vmem:[%s154 + $0x8] sm:$0xff] %v157
                %v159 = vld [vmem:[%s153 + $0x20] sm:$0xff]
                %160 = vst [vmem:[%s154 + $0x10] sm:$0xff] %v159
                %v161 = vld [vmem:[%s153 + $0x28] sm:$0xff]
                %162 = vst [vmem:[%s154 + $0x18] sm:$0xff] %v161
                %v163 = vld [vmem:[%s153 + $0x40] sm:$0xff]
                %164 = vst [vmem:[%s154 + $0x20] sm:$0xff] %v163
                %v165 = vld [vmem:[%s153 + $0x48] sm:$0xff]
                %166 = vst [vmem:[%s154 + $0x28] sm:$0xff] %v165
                %v167 = vld [vmem:[%s153 + $0x60] sm:$0xff]
                %168 = vst [vmem:[%s154 + $0x30] sm:$0xff] %v167
                %v169 = vld [vmem:[%s153 + $0x68] sm:$0xff]
                %170 = vst [vmem:[%s154 + $0x38] sm:$0xff] %v169
                %v171 = vld [vmem:[%s153 + $0x80] sm:$0xff]
                %172 = vst [vmem:[%s154 + $0x40] sm:$0xff] %v171
                %v173 = vld [vmem:[%s153 + $0x88] sm:$0xff]
                %174 = vst [vmem:[%s154 + $0x48] sm:$0xff] %v173
                %v175 = vld [vmem:[%s153 + $0xa0] sm:$0xff]
                %176 = vst [vmem:[%s154 + $0x50] sm:$0xff] %v175
                %v177 = vld [vmem:[%s153 + $0xa8] sm:$0xff]
                %178 = vst [vmem:[%s154 + $0x58] sm:$0xff] %v177
                %v179 = vld [vmem:[%s153 + $0xc0] sm:$0xff]
                %180 = vst [vmem:[%s154 + $0x60] sm:$0xff] %v179
                %v181 = vld [vmem:[%s153 + $0xc8] sm:$0xff]
                %182 = vst [vmem:[%s154 + $0x68] sm:$0xff] %v181
                %v183 = vld [vmem:[%s153 + $0xe0] sm:$0xff]
                %184 = vst [vmem:[%s154 + $0x70] sm:$0xff] %v183
                %v185 = vld [vmem:[%s153 + $0xe8] sm:$0xff]
                %186 = vst [vmem:[%s154 + $0x78] sm:$0xff] %v185
                %v187 = vld [vmem:[%s153 + $0x100] sm:$0xff]
                %188 = vst [vmem:[%s154 + $0x80] sm:$0xff] %v187
                %v189 = vld [vmem:[%s153 + $0x108] sm:$0xff]
                %190 = vst [vmem:[%s154 + $0x88] sm:$0xff] %v189
                %v191 = vld [vmem:[%s153 + $0x120] sm:$0xff]
                %192 = vst [vmem:[%s154 + $0x90] sm:$0xff] %v191
                %v193 = vld [vmem:[%s153 + $0x128] sm:$0xff]
                %194 = vst [vmem:[%s154 + $0x98] sm:$0xff] %v193
                %v195 = vld [vmem:[%s153 + $0x140] sm:$0xff]
                %196 = vst [vmem:[%s154 + $0xa0] sm:$0xff] %v195
                %v197 = vld [vmem:[%s153 + $0x148] sm:$0xff]
                %198 = vst [vmem:[%s154 + $0xa8] sm:$0xff] %v197
                %v199 = vld [vmem:[%s153 + $0x160] sm:$0xff]
                %200 = vst [vmem:[%s154 + $0xb0] sm:$0xff] %v199
                %v201 = vld [vmem:[%s153 + $0x168] sm:$0xff]
                %202 = vst [vmem:[%s154 + $0xb8] sm:$0xff] %v201
                %v203 = vld [vmem:[%s153 + $0x180] sm:$0xff]
                %204 = vst [vmem:[%s154 + $0xc0] sm:$0xff] %v203
                %v205 = vld [vmem:[%s153 + $0x188] sm:$0xff]
                %206 = vst [vmem:[%s154 + $0xc8] sm:$0xff] %v205
                %v207 = vld [vmem:[%s153 + $0x1a0] sm:$0xff]
                %208 = vst [vmem:[%s154 + $0xd0] sm:$0xff] %v207
                %v209 = vld [vmem:[%s153 + $0x1a8] sm:$0xff]
                %210 = vst [vmem:[%s154 + $0xd8] sm:$0xff] %v209
                %v211 = vld [vmem:[%s153 + $0x1c0] sm:$0xff]
                %212 = vst [vmem:[%s154 + $0xe0] sm:$0xff] %v211
                %v213 = vld [vmem:[%s153 + $0x1c8] sm:$0xff]
                %214 = vst [vmem:[%s154 + $0xe8] sm:$0xff] %v213
                %v215 = vld [vmem:[%s153 + $0x1e0] sm:$0xff]
                %216 = vst [vmem:[%s154 + $0xf0] sm:$0xff] %v215
                %v217 = vld [vmem:[%s153 + $0x1e8] sm:$0xff]
                %218 = vst [vmem:[%s154 + $0xf8] sm:$0xff] %v217
              $region33: #{image_discriminator.12} parent=27 // loop_footer
                %s152 = sadd.s32 1, %s148
              $region34: #{image_discriminator.12} parent=27 // loop_footer_branch
                %147 = sbr.rel target = $region30
              $region35: #{image_discriminator.12} parent=27 // loop_exit
                _
            $region28: #{image_discriminator.12} parent=23 // pred_fallthru
              _
            // Predicated region
            $region36: #{image_discriminator.12} parent=23 // pred_check
              _
            $region37: #{image_discriminator.12} parent=23 // pred_check_branch
              %220 = sbr.rel target = $region39
            $region38: #{image_discriminator.12} parent=23 // pred_region
              _
            $region39: #{image_discriminator.12} parent=23 // pred_fallthru
              _
          $region24: #{image_discriminator.12} parent=19 // pred_fallthru
            _
          %221 = vnop
        $region20: #{image_discriminator.12} parent=15 // pred_fallthru
          _
        // Predicated region
        $region40: #{image_discriminator.12} parent=15 // pred_check
          %p222 = pneg %p77
        $region41: #{image_discriminator.12} parent=15 // pred_check_branch
          %224 = sbr.rel (%p222) target = $region43
        $region42: #{image_discriminator.12} parent=15 // pred_region
          %s225 = smul.u32 64, %s17
          %p226 = scmp.lt.s32.totalorder %s225, 127
          %s227 = scalar_select %p226, %s225, 127
          %p228 = scmp.lt.s32.totalorder %s16, 0
          %s229 = scalar_select %p228, %s16, 0
          %s230 = sadd.s32 %s229, %s227
          %s231 = smul.addr %s230, 4
          %s232 = scalar_lea.vmem %s1, %s231
          %s233 = smul.u32 64, %s17
        $region43: #{image_discriminator.12} parent=15 // pred_fallthru
          _
      $region16: #{image_discriminator.12} parent=5 // pred_fallthru
        _
      %p234 = scmp.le.s32.totalorder 1, %s8
      %p235 = scmp.lt.s32.totalorder %s8, 3
      %p236 = pnand %p234, %p235
      %p237 = pneg %p236
      // Predicated region
      $region44: #{image_discriminator.12} parent=5 // pred_check
        _
      $region45: #{image_discriminator.12} parent=5 // pred_check_branch
        %239 = sbr.rel (%p236) target = $region47
      $region46: #{image_discriminator.12} parent=5 // pred_region
        %s240 = ssub.s32 %s8, 1
        %s241 = sand.u32 %s42, 1
        %s242 = sand.u32 %s42, 1
        %s243 = smul.addr %s242, 256
        %s244 = scalar_lea.vmem [#allocation3], %s243
        // Predicated region
        $region48: #{image_discriminator.12} parent=46 // pred_check
          %p245 = pneg %p55
        $region49: #{image_discriminator.12} parent=46 // pred_check_branch
          %247 = sbr.rel (%p245) target = $region51
        $region50: #{image_discriminator.12} parent=46 // pred_region
          _
        $region51: #{image_discriminator.12} parent=46 // pred_fallthru
          _
        %s248 = sand.u32 %s42, 1
        %s249 = sand.u32 %s42, 1
        %s250 = smul.addr %s249, 256
        %s251 = scalar_lea.vmem [#allocation3], %s250
        %p252 = pneg %p55
        %p253 = pneg %p52
        %s254 = smul.u32 64, %s20
        %p255 = scmp.lt.s32.totalorder %s254, 127
        %s256 = scalar_select %p255, %s254, 127
        %p257 = scmp.lt.s32.totalorder %s19, 0
        %s258 = scalar_select %p257, %s19, 0
        %s259 = sadd.s32 %s258, %s256
        %s260 = smul.addr %s259, 4
        %s261 = scalar_lea.vmem %s1, %s260
        %p262 = pneg %p83
        %p263 = pneg %p80
        %p264 = pneg %p111
        %p265 = pneg %p108
        %s266 = smul.u32 16, %s18
        %p267 = scmp.lt.s32.totalorder %s266, 15
        %s268 = scalar_select %p267, %s266, 15
        %p269 = scmp.lt.s32.totalorder %s19, 0
        %s270 = scalar_select %p269, %s19, 0
        %s271 = sadd.s32 %s270, %s268
        %s272 = smul.addr %s271, 4
        %s273 = scalar_lea.vmem %s2, %s272
        %s274 = smul.u32 16, %s18
        %s275 = smul.u32 4, %s20
        %s276 = smul.u32 64, %s20
        %p277 = scmp.lt.s32.totalorder %s276, 127
        %s278 = scalar_select %p277, %s276, 127
        %p279 = scmp.lt.s32.totalorder %s19, 0
        %s280 = scalar_select %p279, %s19, 0
        %s281 = sadd.s32 %s280, %s278
        %s282 = smul.addr %s281, 4
        %s283 = scalar_lea.vmem %s1, %s282
        %s284 = smul.u32 64, %s20
        %s285 = smul.u32 16, %s18
        %p286 = scmp.lt.s32.totalorder %s285, 15
        %s287 = scalar_select %p286, %s285, 15
        %p288 = scmp.lt.s32.totalorder %s19, 0
        %s289 = scalar_select %p288, %s19, 0
        %s290 = sadd.s32 %s289, %s287
        %s291 = smul.addr %s290, 4
        %s292 = scalar_lea.vmem %s2, %s291
        %s293 = smul.u32 16, %s18
        %p294 = scmp.eq.s32.totalorder %s20, 0
        // Predicated region
        $region52: #{image_discriminator.12} parent=46 // pred_check
          %p295 = pneg %p294
        $region53: #{image_discriminator.12} parent=46 // pred_check_branch
          %297 = sbr.rel (%p295) target = $region55
        $region54: #{image_discriminator.12} parent=46 // pred_region
          %298 = vst [vmem:[#allocation2] sm:$0xff] 0.0
          %299 = vst [vmem:[#allocation2 + $0x8] sm:$0xff] 0.0
          %300 = vst [vmem:[#allocation2 + $0x10] sm:$0xff] 0.0
          %301 = vst [vmem:[#allocation2 + $0x18] sm:$0xff] 0.0
          %302 = vst [vmem:[#allocation2 + $0x20] sm:$0xff] 0.0
          %303 = vst [vmem:[#allocation2 + $0x28] sm:$0xff] 0.0
          %304 = vst [vmem:[#allocation2 + $0x30] sm:$0xff] 0.0
          %305 = vst [vmem:[#allocation2 + $0x38] sm:$0xff] 0.0
          %306 = vst [vmem:[#allocation2 + $0x40] sm:$0xff] 0.0
          %307 = vst [vmem:[#allocation2 + $0x48] sm:$0xff] 0.0
          %308 = vst [vmem:[#allocation2 + $0x50] sm:$0xff] 0.0
          %309 = vst [vmem:[#allocation2 + $0x58] sm:$0xff] 0.0
          %310 = vst [vmem:[#allocation2 + $0x60] sm:$0xff] 0.0
          %311 = vst [vmem:[#allocation2 + $0x68] sm:$0xff] 0.0
          %312 = vst [vmem:[#allocation2 + $0x70] sm:$0xff] 0.0
          %313 = vst [vmem:[#allocation2 + $0x78] sm:$0xff] 0.0
        $region55: #{image_discriminator.12} parent=46 // pred_fallthru
          _
        %v314 = vld [vmem:[#allocation2] sm:$0xff]
        %v315 = vld [vmem:[#allocation2 + $0x8] sm:$0xff]
        %v316 = vld [vmem:[#allocation2 + $0x10] sm:$0xff]
        %v317 = vld [vmem:[#allocation2 + $0x18] sm:$0xff]
        %v318 = vld [vmem:[#allocation2 + $0x20] sm:$0xff]
        %v319 = vld [vmem:[#allocation2 + $0x28] sm:$0xff]
        %v320 = vld [vmem:[#allocation2 + $0x30] sm:$0xff]
        %v321 = vld [vmem:[#allocation2 + $0x38] sm:$0xff]
        %v322 = vld [vmem:[#allocation2 + $0x40] sm:$0xff]
        %v323 = vld [vmem:[#allocation2 + $0x48] sm:$0xff]
        %v324 = vld [vmem:[#allocation2 + $0x50] sm:$0xff]
        %v325 = vld [vmem:[#allocation2 + $0x58] sm:$0xff]
        %v326 = vld [vmem:[#allocation2 + $0x60] sm:$0xff]
        %v327 = vld [vmem:[#allocation2 + $0x68] sm:$0xff]
        %v328 = vld [vmem:[#allocation2 + $0x70] sm:$0xff]
        %v329 = vld [vmem:[#allocation2 + $0x78] sm:$0xff]
        %v330 = vld [vmem:[%s244] sm:$0xff]
        %v331 = vld [vmem:[%s244 + $0x8] sm:$0xff]
        %v332 = vld [vmem:[%s244 + $0x10] sm:$0xff]
        %v333 = vld [vmem:[%s244 + $0x18] sm:$0xff]
        %v334 = vld [vmem:[%s244 + $0x20] sm:$0xff]
        %v335 = vld [vmem:[%s244 + $0x28] sm:$0xff]
        %v336 = vld [vmem:[%s244 + $0x30] sm:$0xff]
        %v337 = vld [vmem:[%s244 + $0x38] sm:$0xff]
        %v338 = vld [vmem:[%s244 + $0x40] sm:$0xff]
        %v339 = vld [vmem:[%s244 + $0x48] sm:$0xff]
        %v340 = vld [vmem:[%s244 + $0x50] sm:$0xff]
        %v341 = vld [vmem:[%s244 + $0x58] sm:$0xff]
        %v342 = vld [vmem:[%s244 + $0x60] sm:$0xff]
        %v343 = vld [vmem:[%s244 + $0x68] sm:$0xff]
        %v344 = vld [vmem:[%s244 + $0x70] sm:$0xff]
        %v345 = vld [vmem:[%s244 + $0x78] sm:$0xff]
        %v346 = vld [vmem:[%s244 + $0x80] sm:$0xff]
        %v347 = vld [vmem:[%s244 + $0x88] sm:$0xff]
        %v348 = vld [vmem:[%s244 + $0x90] sm:$0xff]
        %v349 = vld [vmem:[%s244 + $0x98] sm:$0xff]
        %v350 = vld [vmem:[%s244 + $0xa0] sm:$0xff]
        %v351 = vld [vmem:[%s244 + $0xa8] sm:$0xff]
        %v352 = vld [vmem:[%s244 + $0xb0] sm:$0xff]
        %v353 = vld [vmem:[%s244 + $0xb8] sm:$0xff]
        %v354 = vld [vmem:[%s244 + $0xc0] sm:$0xff]
        %v355 = vld [vmem:[%s244 + $0xc8] sm:$0xff]
        %v356 = vld [vmem:[%s244 + $0xd0] sm:$0xff]
        %v357 = vld [vmem:[%s244 + $0xd8] sm:$0xff]
        %v358 = vld [vmem:[%s244 + $0xe0] sm:$0xff]
        %v359 = vld [vmem:[%s244 + $0xe8] sm:$0xff]
        %v360 = vld [vmem:[%s244 + $0xf0] sm:$0xff]
        %v361 = vld [vmem:[%s244 + $0xf8] sm:$0xff]
        %v362 = vld [vmem:[%s283] sm:$0xf]
        %v363 = vld [vmem:[%s283 + $0x4] sm:$0xf]
        %v364 = vld [vmem:[%s283 + $0x8] sm:$0xf]
        %v365 = vld [vmem:[%s283 + $0xc] sm:$0xf]
        %v366 = vld [vmem:[%s283 + $0x10] sm:$0xf]
        %v367 = vld [vmem:[%s283 + $0x14] sm:$0xf]
        %v368 = vld [vmem:[%s283 + $0x18] sm:$0xf]
        %v369 = vld [vmem:[%s283 + $0x1c] sm:$0xf]
        %v370 = vld [vmem:[%s283 + $0x20] sm:$0xf]
        %v371 = vld [vmem:[%s283 + $0x24] sm:$0xf]
        %v372 = vld [vmem:[%s283 + $0x28] sm:$0xf]
        %v373 = vld [vmem:[%s283 + $0x2c] sm:$0xf]
        %v374 = vld [vmem:[%s283 + $0x30] sm:$0xf]
        %v375 = vld [vmem:[%s283 + $0x34] sm:$0xf]
        %v376 = vld [vmem:[%s283 + $0x38] sm:$0xf]
        %v377 = vld [vmem:[%s283 + $0x3c] sm:$0xf]
        %v378 = vld [vmem:[%s283 + $0x40] sm:$0xf]
        %v379 = vld [vmem:[%s283 + $0x44] sm:$0xf]
        %v380 = vld [vmem:[%s283 + $0x48] sm:$0xf]
        %v381 = vld [vmem:[%s283 + $0x4c] sm:$0xf]
        %v382 = vld [vmem:[%s283 + $0x50] sm:$0xf]
        %v383 = vld [vmem:[%s283 + $0x54] sm:$0xf]
        %v384 = vld [vmem:[%s283 + $0x58] sm:$0xf]
        %v385 = vld [vmem:[%s283 + $0x5c] sm:$0xf]
        %v386 = vld [vmem:[%s283 + $0x60] sm:$0xf]
        %v387 = vld [vmem:[%s283 + $0x64] sm:$0xf]
        %v388 = vld [vmem:[%s283 + $0x68] sm:$0xf]
        %v389 = vld [vmem:[%s283 + $0x6c] sm:$0xf]
        %v390 = vld [vmem:[%s283 + $0x70] sm:$0xf]
        %v391 = vld [vmem:[%s283 + $0x74] sm:$0xf]
        %v392 = vld [vmem:[%s283 + $0x78] sm:$0xf]
        %v393 = vld [vmem:[%s283 + $0x7c] sm:$0xf]
        %v394 = vld [vmem:[%s283 + $0x80] sm:$0xf]
        %v395 = vld [vmem:[%s283 + $0x84] sm:$0xf]
        %v396 = vld [vmem:[%s283 + $0x88] sm:$0xf]
        %v397 = vld [vmem:[%s283 + $0x8c] sm:$0xf]
        %v398 = vld [vmem:[%s283 + $0x90] sm:$0xf]
        %v399 = vld [vmem:[%s283 + $0x94] sm:$0xf]
        %v400 = vld [vmem:[%s283 + $0x98] sm:$0xf]
        %v401 = vld [vmem:[%s283 + $0x9c] sm:$0xf]
        %v402 = vld [vmem:[%s283 + $0xa0] sm:$0xf]
        %v403 = vld [vmem:[%s283 + $0xa4] sm:$0xf]
        %v404 = vld [vmem:[%s283 + $0xa8] sm:$0xf]
        %v405 = vld [vmem:[%s283 + $0xac] sm:$0xf]
        %v406 = vld [vmem:[%s283 + $0xb0] sm:$0xf]
        %v407 = vld [vmem:[%s283 + $0xb4] sm:$0xf]
        %v408 = vld [vmem:[%s283 + $0xb8] sm:$0xf]
        %v409 = vld [vmem:[%s283 + $0xbc] sm:$0xf]
        %v410 = vld [vmem:[%s283 + $0xc0] sm:$0xf]
        %v411 = vld [vmem:[%s283 + $0xc4] sm:$0xf]
        %v412 = vld [vmem:[%s283 + $0xc8] sm:$0xf]
        %v413 = vld [vmem:[%s283 + $0xcc] sm:$0xf]
        %v414 = vld [vmem:[%s283 + $0xd0] sm:$0xf]
        %v415 = vld [vmem:[%s283 + $0xd4] sm:$0xf]
        %v416 = vld [vmem:[%s283 + $0xd8] sm:$0xf]
        %v417 = vld [vmem:[%s283 + $0xdc] sm:$0xf]
        %v418 = vld [vmem:[%s283 + $0xe0] sm:$0xf]
        %v419 = vld [vmem:[%s283 + $0xe4] sm:$0xf]
        %v420 = vld [vmem:[%s283 + $0xe8] sm:$0xf]
        %v421 = vld [vmem:[%s283 + $0xec] sm:$0xf]
        %v422 = vld [vmem:[%s283 + $0xf0] sm:$0xf]
        %v423 = vld [vmem:[%s283 + $0xf4] sm:$0xf]
        %v424 = vld [vmem:[%s283 + $0xf8] sm:$0xf]
        %v425 = vld [vmem:[%s283 + $0xfc] sm:$0xf]
        %v458 = vunpack.c.l.b16 %v330
        %v459 = vunpack.c.h.b16 %v330
        %v460 = vunpack.c.l.b16 %v331
        %v461 = vunpack.c.h.b16 %v331
        %v462 = vunpack.c.l.b16 %v332
        %v463 = vunpack.c.h.b16 %v332
        %v464 = vunpack.c.l.b16 %v333
        %v465 = vunpack.c.h.b16 %v333
        %v466 = vunpack.c.l.b16 %v334
        %v467 = vunpack.c.h.b16 %v334
        %v468 = vunpack.c.l.b16 %v335
        %v469 = vunpack.c.h.b16 %v335
        %v470 = vunpack.c.l.b16 %v336
        %v471 = vunpack.c.h.b16 %v336
        %v472 = vunpack.c.l.b16 %v337
        %v473 = vunpack.c.h.b16 %v337
        %v474 = vunpack.c.l.b16 %v338
        %v475 = vunpack.c.h.b16 %v338
        %v476 = vunpack.c.l.b16 %v339
        %v477 = vunpack.c.h.b16 %v339
        %v478 = vunpack.c.l.b16 %v340
        %v479 = vunpack.c.h.b16 %v340
        %v480 = vunpack.c.l.b16 %v341
        %v481 = vunpack.c.h.b16 %v341
        %v482 = vunpack.c.l.b16 %v342
        %v483 = vunpack.c.h.b16 %v342
        %v484 = vunpack.c.l.b16 %v343
        %v485 = vunpack.c.h.b16 %v343
        %v486 = vunpack.c.l.b16 %v344
        %v487 = vunpack.c.h.b16 %v344
        %v488 = vunpack.c.l.b16 %v345
        %v489 = vunpack.c.h.b16 %v345
        %v490 = vunpack.c.l.b16 %v346
        %v491 = vunpack.c.h.b16 %v346
        %v492 = vunpack.c.l.b16 %v347
        %v493 = vunpack.c.h.b16 %v347
        %v494 = vunpack.c.l.b16 %v348
        %v495 = vunpack.c.h.b16 %v348
        %v496 = vunpack.c.l.b16 %v349
        %v497 = vunpack.c.h.b16 %v349
        %v498 = vunpack.c.l.b16 %v350
        %v499 = vunpack.c.h.b16 %v350
        %v500 = vunpack.c.l.b16 %v351
        %v501 = vunpack.c.h.b16 %v351
        %v502 = vunpack.c.l.b16 %v352
        %v503 = vunpack.c.h.b16 %v352
        %v504 = vunpack.c.l.b16 %v353
        %v505 = vunpack.c.h.b16 %v353
        %v506 = vunpack.c.l.b16 %v354
        %v507 = vunpack.c.h.b16 %v354
        %v508 = vunpack.c.l.b16 %v355
        %v509 = vunpack.c.h.b16 %v355
        %v510 = vunpack.c.l.b16 %v356
        %v511 = vunpack.c.h.b16 %v356
        %v512 = vunpack.c.l.b16 %v357
        %v513 = vunpack.c.h.b16 %v357
        %v514 = vunpack.c.l.b16 %v358
        %v515 = vunpack.c.h.b16 %v358
        %v516 = vunpack.c.l.b16 %v359
        %v517 = vunpack.c.h.b16 %v359
        %v518 = vunpack.c.l.b16 %v360
        %v519 = vunpack.c.h.b16 %v360
        %v520 = vunpack.c.l.b16 %v361
        %v521 = vunpack.c.h.b16 %v361
        %v522 = vpack.c.b16 %v462, %v458
        %v523 = vpack.c.b16 %v463, %v459
        %v524 = vpack.c.b16 %v464, %v460
        %v525 = vpack.c.b16 %v465, %v461
        %v526 = vpack.c.b16 %v470, %v466
        %v527 = vpack.c.b16 %v471, %v467
        %v528 = vpack.c.b16 %v472, %v468
        %v529 = vpack.c.b16 %v473, %v469
        %v530 = vpack.c.b16 %v478, %v474
        %v531 = vpack.c.b16 %v479, %v475
        %v532 = vpack.c.b16 %v480, %v476
        %v533 = vpack.c.b16 %v481, %v477
        %v534 = vpack.c.b16 %v486, %v482
        %v535 = vpack.c.b16 %v487, %v483
        %v536 = vpack.c.b16 %v488, %v484
        %v537 = vpack.c.b16 %v489, %v485
        %v538 = vpack.c.b16 %v494, %v490
        %v539 = vpack.c.b16 %v495, %v491
        %v540 = vpack.c.b16 %v496, %v492
        %v541 = vpack.c.b16 %v497, %v493
        %v542 = vpack.c.b16 %v502, %v498
        %v543 = vpack.c.b16 %v503, %v499
        %v544 = vpack.c.b16 %v504, %v500
        %v545 = vpack.c.b16 %v505, %v501
        %v546 = vpack.c.b16 %v510, %v506
        %v547 = vpack.c.b16 %v511, %v507
        %v548 = vpack.c.b16 %v512, %v508
        %v549 = vpack.c.b16 %v513, %v509
        %v550 = vpack.c.b16 %v518, %v514
        %v551 = vpack.c.b16 %v519, %v515
        %v552 = vpack.c.b16 %v520, %v516
        %v553 = vpack.c.b16 %v521, %v517
        %v650 = vunpack.c.l.b16 %v362
        %v651 = vunpack.c.l.b16 %v363
        %v652 = vunpack.c.l.b16 %v364
        %v653 = vunpack.c.l.b16 %v365
        %v654 = vunpack.c.l.b16 %v366
        %v655 = vunpack.c.l.b16 %v367
        %v656 = vunpack.c.l.b16 %v368
        %v657 = vunpack.c.l.b16 %v369
        %v658 = vunpack.c.l.b16 %v370
        %v659 = vunpack.c.l.b16 %v371
        %v660 = vunpack.c.l.b16 %v372
        %v661 = vunpack.c.l.b16 %v373
        %v662 = vunpack.c.l.b16 %v374
        %v663 = vunpack.c.l.b16 %v375
        %v664 = vunpack.c.l.b16 %v376
        %v665 = vunpack.c.l.b16 %v377
        %v666 = vunpack.c.l.b16 %v378
        %v667 = vunpack.c.l.b16 %v379
        %v668 = vunpack.c.l.b16 %v380
        %v669 = vunpack.c.l.b16 %v381
        %v670 = vunpack.c.l.b16 %v382
        %v671 = vunpack.c.l.b16 %v383
        %v672 = vunpack.c.l.b16 %v384
        %v673 = vunpack.c.l.b16 %v385
        %v674 = vunpack.c.l.b16 %v386
        %v675 = vunpack.c.l.b16 %v387
        %v676 = vunpack.c.l.b16 %v388
        %v677 = vunpack.c.l.b16 %v389
        %v678 = vunpack.c.l.b16 %v390
        %v679 = vunpack.c.l.b16 %v391
        %v680 = vunpack.c.l.b16 %v392
        %v681 = vunpack.c.l.b16 %v393
        %v682 = vunpack.c.l.b16 %v394
        %v683 = vunpack.c.l.b16 %v395
        %v684 = vunpack.c.l.b16 %v396
        %v685 = vunpack.c.l.b16 %v397
        %v686 = vunpack.c.l.b16 %v398
        %v687 = vunpack.c.l.b16 %v399
        %v688 = vunpack.c.l.b16 %v400
        %v689 = vunpack.c.l.b16 %v401
        %v690 = vunpack.c.l.b16 %v402
        %v691 = vunpack.c.l.b16 %v403
        %v692 = vunpack.c.l.b16 %v404
        %v693 = vunpack.c.l.b16 %v405
        %v694 = vunpack.c.l.b16 %v406
        %v695 = vunpack.c.l.b16 %v407
        %v696 = vunpack.c.l.b16 %v408
        %v697 = vunpack.c.l.b16 %v409
        %v698 = vunpack.c.l.b16 %v410
        %v699 = vunpack.c.l.b16 %v411
        %v700 = vunpack.c.l.b16 %v412
        %v701 = vunpack.c.l.b16 %v413
        %v702 = vunpack.c.l.b16 %v414
        %v703 = vunpack.c.l.b16 %v415
        %v704 = vunpack.c.l.b16 %v416
        %v705 = vunpack.c.l.b16 %v417
        %v706 = vunpack.c.l.b16 %v418
        %v707 = vunpack.c.l.b16 %v419
        %v708 = vunpack.c.l.b16 %v420
        %v709 = vunpack.c.l.b16 %v421
        %v710 = vunpack.c.l.b16 %v422
        %v711 = vunpack.c.l.b16 %v423
        %v712 = vunpack.c.l.b16 %v424
        %v713 = vunpack.c.l.b16 %v425
        %v714 = vpack.c.b16 %v651, %v650
        %v715 = vpack.c.b16 %v653, %v652
        %v716 = vpack.c.b16 %v655, %v654
        %v717 = vpack.c.b16 %v657, %v656
        %v718 = vpack.c.b16 %v659, %v658
        %v719 = vpack.c.b16 %v661, %v660
        %v720 = vpack.c.b16 %v663, %v662
        %v721 = vpack.c.b16 %v665, %v664
        %v722 = vpack.c.b16 %v667, %v666
        %v723 = vpack.c.b16 %v669, %v668
        %v724 = vpack.c.b16 %v671, %v670
        %v725 = vpack.c.b16 %v673, %v672
        %v726 = vpack.c.b16 %v675, %v674
        %v727 = vpack.c.b16 %v677, %v676
        %v728 = vpack.c.b16 %v679, %v678
        %v729 = vpack.c.b16 %v681, %v680
        %v730 = vpack.c.b16 %v683, %v682
        %v731 = vpack.c.b16 %v685, %v684
        %v732 = vpack.c.b16 %v687, %v686
        %v733 = vpack.c.b16 %v689, %v688
        %v734 = vpack.c.b16 %v691, %v690
        %v735 = vpack.c.b16 %v693, %v692
        %v736 = vpack.c.b16 %v695, %v694
        %v737 = vpack.c.b16 %v697, %v696
        %v738 = vpack.c.b16 %v699, %v698
        %v739 = vpack.c.b16 %v701, %v700
        %v740 = vpack.c.b16 %v703, %v702
        %v741 = vpack.c.b16 %v705, %v704
        %v742 = vpack.c.b16 %v707, %v706
        %v743 = vpack.c.b16 %v709, %v708
        %v744 = vpack.c.b16 %v711, %v710
        %v745 = vpack.c.b16 %v713, %v712
        %778 = vmatpush.bf16.msra.mxu0 %v721
        %779 = vmatpush.bf16.msra.mxu0 %v720
        %780 = vmatpush.bf16.msra.mxu0 %v719
        %781 = vmatpush.bf16.msra.mxu0 %v718
        %782 = vmatpush.bf16.msra.mxu0 %v717
        %783 = vmatpush.bf16.msra.mxu0 %v716
        %784 = vmatpush.bf16.msra.mxu0 %v715
        %785 = vmatpush.bf16.msra.mxu0 %v714
        %786 = vmatmul.bf16.gmra.mxu0 %v522
        %v787 = vpop.f32.mrf.mxu0
        %v788 = vadd.f32 0.0, %v787
        %v789 = vpop.f32.mrf.mxu0
        %v790 = vadd.f32 0.0, %v789
        %791 = vmatmul.bf16.gmra.mxu0 %v526
        %v792 = vpop.f32.mrf.mxu0
        %v793 = vadd.f32 0.0, %v792
        %v794 = vpop.f32.mrf.mxu0
        %v795 = vadd.f32 0.0, %v794
        %796 = vmatmul.bf16.gmra.mxu0 %v530
        %v797 = vpop.f32.mrf.mxu0
        %v798 = vadd.f32 0.0, %v797
        %v799 = vpop.f32.mrf.mxu0
        %v800 = vadd.f32 0.0, %v799
        %801 = vmatmul.bf16.gmra.mxu0 %v534
        %v802 = vpop.f32.mrf.mxu0
        %v803 = vadd.f32 0.0, %v802
        %v804 = vpop.f32.mrf.mxu0
        %v805 = vadd.f32 0.0, %v804
        %806 = vmatmul.bf16.gmra.mxu0 %v538
        %v807 = vpop.f32.mrf.mxu0
        %v808 = vadd.f32 0.0, %v807
        %v809 = vpop.f32.mrf.mxu0
        %v810 = vadd.f32 0.0, %v809
        %811 = vmatmul.bf16.gmra.mxu0 %v542
        %v812 = vpop.f32.mrf.mxu0
        %v813 = vadd.f32 0.0, %v812
        %v814 = vpop.f32.mrf.mxu0
        %v815 = vadd.f32 0.0, %v814
        %816 = vmatmul.bf16.gmra.mxu0 %v546
        %v817 = vpop.f32.mrf.mxu0
        %v818 = vadd.f32 0.0, %v817
        %v819 = vpop.f32.mrf.mxu0
        %v820 = vadd.f32 0.0, %v819
        %821 = vmatmul.bf16.gmra.mxu0 %v550
        %v822 = vpop.f32.mrf.mxu0
        %v823 = vadd.f32 0.0, %v822
        %v824 = vpop.f32.mrf.mxu0
        %v825 = vadd.f32 0.0, %v824
        %826 = vdwg.mxu0
        %827 = vmatpush.bf16.msra.mxu0 %v729
        %828 = vmatpush.bf16.msra.mxu0 %v728
        %829 = vmatpush.bf16.msra.mxu0 %v727
        %830 = vmatpush.bf16.msra.mxu0 %v726
        %831 = vmatpush.bf16.msra.mxu0 %v725
        %832 = vmatpush.bf16.msra.mxu0 %v724
        %833 = vmatpush.bf16.msra.mxu0 %v723
        %834 = vmatpush.bf16.msra.mxu0 %v722
        %835 = vmatmul.bf16.gmra.mxu0 %v523
        %v836 = vpop.f32.mrf.mxu0
        %v837 = vadd.f32 %v788, %v836
        %v838 = vpop.f32.mrf.mxu0
        %v839 = vadd.f32 %v790, %v838
        %840 = vmatmul.bf16.gmra.mxu0 %v527
        %v841 = vpop.f32.mrf.mxu0
        %v842 = vadd.f32 %v793, %v841
        %v843 = vpop.f32.mrf.mxu0
        %v844 = vadd.f32 %v795, %v843
        %845 = vmatmul.bf16.gmra.mxu0 %v531
        %v846 = vpop.f32.mrf.mxu0
        %v847 = vadd.f32 %v798, %v846
        %v848 = vpop.f32.mrf.mxu0
        %v849 = vadd.f32 %v800, %v848
        %850 = vmatmul.bf16.gmra.mxu0 %v535
        %v851 = vpop.f32.mrf.mxu0
        %v852 = vadd.f32 %v803, %v851
        %v853 = vpop.f32.mrf.mxu0
        %v854 = vadd.f32 %v805, %v853
        %855 = vmatmul.bf16.gmra.mxu0 %v539
        %v856 = vpop.f32.mrf.mxu0
        %v857 = vadd.f32 %v808, %v856
        %v858 = vpop.f32.mrf.mxu0
        %v859 = vadd.f32 %v810, %v858
        %860 = vmatmul.bf16.gmra.mxu0 %v543
        %v861 = vpop.f32.mrf.mxu0
        %v862 = vadd.f32 %v813, %v861
        %v863 = vpop.f32.mrf.mxu0
        %v864 = vadd.f32 %v815, %v863
        %865 = vmatmul.bf16.gmra.mxu0 %v547
        %v866 = vpop.f32.mrf.mxu0
        %v867 = vadd.f32 %v818, %v866
        %v868 = vpop.f32.mrf.mxu0
        %v869 = vadd.f32 %v820, %v868
        %870 = vmatmul.bf16.gmra.mxu0 %v551
        %v871 = vpop.f32.mrf.mxu0
        %v872 = vadd.f32 %v823, %v871
        %v873 = vpop.f32.mrf.mxu0
        %v874 = vadd.f32 %v825, %v873
        %875 = vdwg.mxu0
        %876 = vmatpush.bf16.msra.mxu0 %v737
        %877 = vmatpush.bf16.msra.mxu0 %v736
        %878 = vmatpush.bf16.msra.mxu0 %v735
        %879 = vmatpush.bf16.msra.mxu0 %v734
        %880 = vmatpush.bf16.msra.mxu0 %v733
        %881 = vmatpush.bf16.msra.mxu0 %v732
        %882 = vmatpush.bf16.msra.mxu0 %v731
        %883 = vmatpush.bf16.msra.mxu0 %v730
        %884 = vmatmul.bf16.gmra.mxu0 %v524
        %v885 = vpop.f32.mrf.mxu0
        %v886 = vadd.f32 %v837, %v885
        %v887 = vpop.f32.mrf.mxu0
        %v888 = vadd.f32 %v839, %v887
        %889 = vmatmul.bf16.gmra.mxu0 %v528
        %v890 = vpop.f32.mrf.mxu0
        %v891 = vadd.f32 %v842, %v890
        %v892 = vpop.f32.mrf.mxu0
        %v893 = vadd.f32 %v844, %v892
        %894 = vmatmul.bf16.gmra.mxu0 %v532
        %v895 = vpop.f32.mrf.mxu0
        %v896 = vadd.f32 %v847, %v895
        %v897 = vpop.f32.mrf.mxu0
        %v898 = vadd.f32 %v849, %v897
        %899 = vmatmul.bf16.gmra.mxu0 %v536
        %v900 = vpop.f32.mrf.mxu0
        %v901 = vadd.f32 %v852, %v900
        %v902 = vpop.f32.mrf.mxu0
        %v903 = vadd.f32 %v854, %v902
        %904 = vmatmul.bf16.gmra.mxu0 %v540
        %v905 = vpop.f32.mrf.mxu0
        %v906 = vadd.f32 %v857, %v905
        %v907 = vpop.f32.mrf.mxu0
        %v908 = vadd.f32 %v859, %v907
        %909 = vmatmul.bf16.gmra.mxu0 %v544
        %v910 = vpop.f32.mrf.mxu0
        %v911 = vadd.f32 %v862, %v910
        %v912 = vpop.f32.mrf.mxu0
        %v913 = vadd.f32 %v864, %v912
        %914 = vmatmul.bf16.gmra.mxu0 %v548
        %v915 = vpop.f32.mrf.mxu0
        %v916 = vadd.f32 %v867, %v915
        %v917 = vpop.f32.mrf.mxu0
        %v918 = vadd.f32 %v869, %v917
        %919 = vmatmul.bf16.gmra.mxu0 %v552
        %v920 = vpop.f32.mrf.mxu0
        %v921 = vadd.f32 %v872, %v920
        %v922 = vpop.f32.mrf.mxu0
        %v923 = vadd.f32 %v874, %v922
        %924 = vdwg.mxu0
        %925 = vmatpush.bf16.msra.mxu0 %v745
        %926 = vmatpush.bf16.msra.mxu0 %v744
        %927 = vmatpush.bf16.msra.mxu0 %v743
        %928 = vmatpush.bf16.msra.mxu0 %v742
        %929 = vmatpush.bf16.msra.mxu0 %v741
        %930 = vmatpush.bf16.msra.mxu0 %v740
        %931 = vmatpush.bf16.msra.mxu0 %v739
        %932 = vmatpush.bf16.msra.mxu0 %v738
        %933 = vmatmul.bf16.gmra.mxu0 %v525
        %v934 = vpop.f32.mrf.mxu0
        %v935 = vadd.f32 %v886, %v934
        %v936 = vpop.f32.mrf.mxu0
        %v937 = vadd.f32 %v888, %v936
        %938 = vmatmul.bf16.gmra.mxu0 %v529
        %v939 = vpop.f32.mrf.mxu0
        %v940 = vadd.f32 %v891, %v939
        %v941 = vpop.f32.mrf.mxu0
        %v942 = vadd.f32 %v893, %v941
        %943 = vmatmul.bf16.gmra.mxu0 %v533
        %v944 = vpop.f32.mrf.mxu0
        %v945 = vadd.f32 %v896, %v944
        %v946 = vpop.f32.mrf.mxu0
        %v947 = vadd.f32 %v898, %v946
        %948 = vmatmul.bf16.gmra.mxu0 %v537
        %v949 = vpop.f32.mrf.mxu0
        %v950 = vadd.f32 %v901, %v949
        %v951 = vpop.f32.mrf.mxu0
        %v952 = vadd.f32 %v903, %v951
        %953 = vmatmul.bf16.gmra.mxu0 %v541
        %v954 = vpop.f32.mrf.mxu0
        %v955 = vadd.f32 %v906, %v954
        %v956 = vpop.f32.mrf.mxu0
        %v957 = vadd.f32 %v908, %v956
        %958 = vmatmul.bf16.gmra.mxu0 %v545
        %v959 = vpop.f32.mrf.mxu0
        %v960 = vadd.f32 %v911, %v959
        %v961 = vpop.f32.mrf.mxu0
        %v962 = vadd.f32 %v913, %v961
        %963 = vmatmul.bf16.gmra.mxu0 %v549
        %v964 = vpop.f32.mrf.mxu0
        %v965 = vadd.f32 %v916, %v964
        %v966 = vpop.f32.mrf.mxu0
        %v967 = vadd.f32 %v918, %v966
        %968 = vmatmul.bf16.gmra.mxu0 %v553
        %v969 = vpop.f32.mrf.mxu0
        %v970 = vadd.f32 %v921, %v969
        %v971 = vpop.f32.mrf.mxu0
        %v972 = vadd.f32 %v923, %v971
        %973 = vdwg.mxu0
        %v974 = vadd.f32 %v314, %v935
        %v975 = vadd.f32 %v315, %v937
        %v976 = vadd.f32 %v316, %v940
        %v977 = vadd.f32 %v317, %v942
        %v978 = vadd.f32 %v318, %v945
        %v979 = vadd.f32 %v319, %v947
        %v980 = vadd.f32 %v320, %v950
        %v981 = vadd.f32 %v321, %v952
        %v982 = vadd.f32 %v322, %v955
        %v983 = vadd.f32 %v323, %v957
        %v984 = vadd.f32 %v324, %v960
        %v985 = vadd.f32 %v325, %v962
        %v986 = vadd.f32 %v326, %v965
        %v987 = vadd.f32 %v327, %v967
        %v988 = vadd.f32 %v328, %v970
        %v989 = vadd.f32 %v329, %v972
        %990 = vst [vmem:[#allocation2] sm:$0xff] %v974
        %991 = vst [vmem:[#allocation2 + $0x8] sm:$0xff] %v975
        %992 = vst [vmem:[#allocation2 + $0x10] sm:$0xff] %v976
        %993 = vst [vmem:[#allocation2 + $0x18] sm:$0xff] %v977
        %994 = vst [vmem:[#allocation2 + $0x20] sm:$0xff] %v978
        %995 = vst [vmem:[#allocation2 + $0x28] sm:$0xff] %v979
        %996 = vst [vmem:[#allocation2 + $0x30] sm:$0xff] %v980
        %997 = vst [vmem:[#allocation2 + $0x38] sm:$0xff] %v981
        %998 = vst [vmem:[#allocation2 + $0x40] sm:$0xff] %v982
        %999 = vst [vmem:[#allocation2 + $0x48] sm:$0xff] %v983
        %1000 = vst [vmem:[#allocation2 + $0x50] sm:$0xff] %v984
        %1001 = vst [vmem:[#allocation2 + $0x58] sm:$0xff] %v985
        %1002 = vst [vmem:[#allocation2 + $0x60] sm:$0xff] %v986
        %1003 = vst [vmem:[#allocation2 + $0x68] sm:$0xff] %v987
        %1004 = vst [vmem:[#allocation2 + $0x70] sm:$0xff] %v988
        %1005 = vst [vmem:[#allocation2 + $0x78] sm:$0xff] %v989
        %p1006 = scmp.eq.s32.totalorder %s20, 1
        // Predicated region
        $region56: #{image_discriminator.12} parent=46 // pred_check
          %p1007 = pneg %p1006
        $region57: #{image_discriminator.12} parent=46 // pred_check_branch
          %1009 = sbr.rel (%p1007) target = $region59
        $region58: #{image_discriminator.12} parent=46 // pred_region
          %v1010 = vld [vmem:[#allocation2] sm:$0xff]
          %v1011 = vld [vmem:[#allocation2 + $0x8] sm:$0xff]
          %v1012 = vld [vmem:[#allocation2 + $0x10] sm:$0xff]
          %v1013 = vld [vmem:[#allocation2 + $0x18] sm:$0xff]
          %v1014 = vld [vmem:[#allocation2 + $0x20] sm:$0xff]
          %v1015 = vld [vmem:[#allocation2 + $0x28] sm:$0xff]
          %v1016 = vld [vmem:[#allocation2 + $0x30] sm:$0xff]
          %v1017 = vld [vmem:[#allocation2 + $0x38] sm:$0xff]
          %v1018 = vld [vmem:[#allocation2 + $0x40] sm:$0xff]
          %v1019 = vld [vmem:[#allocation2 + $0x48] sm:$0xff]
          %v1020 = vld [vmem:[#allocation2 + $0x50] sm:$0xff]
          %v1021 = vld [vmem:[#allocation2 + $0x58] sm:$0xff]
          %v1022 = vld [vmem:[#allocation2 + $0x60] sm:$0xff]
          %v1023 = vld [vmem:[#allocation2 + $0x68] sm:$0xff]
          %v1024 = vld [vmem:[#allocation2 + $0x70] sm:$0xff]
          %v1025 = vld [vmem:[#allocation2 + $0x78] sm:$0xff]
          %v1026 = vpack.c.bf16 %v1010, %v1010
          %v1027 = vpack.c.bf16 %v1011, %v1011
          %v1028 = vpack.c.bf16 %v1012, %v1012
          %v1029 = vpack.c.bf16 %v1013, %v1013
          %v1030 = vpack.c.bf16 %v1014, %v1014
          %v1031 = vpack.c.bf16 %v1015, %v1015
          %v1032 = vpack.c.bf16 %v1016, %v1016
          %v1033 = vpack.c.bf16 %v1017, %v1017
          %v1034 = vpack.c.bf16 %v1018, %v1018
          %v1035 = vpack.c.bf16 %v1019, %v1019
          %v1036 = vpack.c.bf16 %v1020, %v1020
          %v1037 = vpack.c.bf16 %v1021, %v1021
          %v1038 = vpack.c.bf16 %v1022, %v1022
          %v1039 = vpack.c.bf16 %v1023, %v1023
          %v1040 = vpack.c.bf16 %v1024, %v1024
          %v1041 = vpack.c.bf16 %v1025, %v1025
          %1042 = vst [vmem:[%s292] sm:$0xf] %v1026
          %1043 = vst [vmem:[%s292 + $0x4] sm:$0xf] %v1027
          %1044 = vst [vmem:[%s292 + $0x8] sm:$0xf] %v1028
          %1045 = vst [vmem:[%s292 + $0xc] sm:$0xf] %v1029
          %1046 = vst [vmem:[%s292 + $0x10] sm:$0xf] %v1030
          %1047 = vst [vmem:[%s292 + $0x14] sm:$0xf] %v1031
          %1048 = vst [vmem:[%s292 + $0x18] sm:$0xf] %v1032
          %1049 = vst [vmem:[%s292 + $0x1c] sm:$0xf] %v1033
          %1050 = vst [vmem:[%s292 + $0x20] sm:$0xf] %v1034
          %1051 = vst [vmem:[%s292 + $0x24] sm:$0xf] %v1035
          %1052 = vst [vmem:[%s292 + $0x28] sm:$0xf] %v1036
          %1053 = vst [vmem:[%s292 + $0x2c] sm:$0xf] %v1037
          %1054 = vst [vmem:[%s292 + $0x30] sm:$0xf] %v1038
          %1055 = vst [vmem:[%s292 + $0x34] sm:$0xf] %v1039
          %1056 = vst [vmem:[%s292 + $0x38] sm:$0xf] %v1040
          %1057 = vst [vmem:[%s292 + $0x3c] sm:$0xf] %v1041
        $region59: #{image_discriminator.12} parent=46 // pred_fallthru
          _
        %s1058 = smul.u32 16, %s18
        %p1059 = scmp.lt.s32.totalorder %s1058, 15
        %s1060 = scalar_select %p1059, %s1058, 15
        %p1061 = scmp.lt.s32.totalorder %s19, 0
        %s1062 = scalar_select %p1061, %s19, 0
        %s1063 = sadd.s32 %s1062, %s1060
        %s1064 = smul.addr %s1063, 4
        %s1065 = scalar_lea.vmem %s2, %s1064
        // Predicated region
        $region60: #{image_discriminator.12} parent=46 // pred_check
          %p1066 = pneg %p108
        $region61: #{image_discriminator.12} parent=46 // pred_check_branch
          %1068 = sbr.rel (%p1066) target = $region63
        $region62: #{image_discriminator.12} parent=46 // pred_region
          %s1069 = smul.u32 16, %s18
        $region63: #{image_discriminator.12} parent=46 // pred_fallthru
          _
        // Predicated region
        $region64: #{image_discriminator.12} parent=46 // pred_check
          %p1070 = pneg %p108
        $region65: #{image_discriminator.12} parent=46 // pred_check_branch
          %1072 = sbr.rel (%p1070) target = $region67
        $region66: #{image_discriminator.12} parent=46 // pred_region
          %s1073 = smul.u32 16, %s18
          %p1074 = scmp.lt.s32.totalorder %s1073, 15
          %s1075 = scalar_select %p1074, %s1073, 15
          %p1076 = scmp.lt.s32.totalorder %s19, 0
          %s1077 = scalar_select %p1076, %s19, 0
          %s1078 = sadd.s32 %s1077, %s1075
          %s1079 = smul.addr %s1078, 4
          %s1080 = scalar_lea.vmem %s2, %s1079
        $region67: #{image_discriminator.12} parent=46 // pred_fallthru
          _
      $region47: #{image_discriminator.12} parent=5 // pred_fallthru
        _
      %p1081 = scmp.le.s32.totalorder 2, %s8
      // Predicated region
      $region68: #{image_discriminator.12} parent=5 // pred_check
        %p1082 = pneg %p1081
      $region69: #{image_discriminator.12} parent=5 // pred_check_branch
        %1084 = sbr.rel (%p1082) target = $region71
      $region70: #{image_discriminator.12} parent=5 // pred_region
        %s1085 = ssub.s32 %s8, 2
      $region71: #{image_discriminator.12} parent=5 // pred_fallthru
        _
    $region6: #{image_discriminator.12} parent=1 // loop_footer
      %s12 = sadd.s32 1, %s8
    $region7: #{image_discriminator.12} parent=1 // loop_footer_branch
      %7 = sbr.rel target = $region3
    $region8: #{image_discriminator.12} parent=1 // loop_exit
      _

// kernel: image_discriminator.14
$region0: #{image_discriminator.14}
  #allocation0 [shape = 'u32[]', space=smem, size = 0x4, offset = 0x4, fixed_abs, tag = 'smem constant byte address 0x4 - core index']
  #allocation1 [shape = 'u32[72,128]{1,0:T(1,128)}', space=vmem, size = 0x9000, scoped, tag = 'internal scratch']
  %s0 = inlined_call_operand.vmem [shape: bf16[2,64,128], index: 0, kind: input, shape index: {}]
  %s1 = inlined_call_operand.vmem [shape: f32[2,1,128], index: 1, kind: input, shape index: {}]
  %s2 = inlined_call_operand.vmem [shape: f32[2,1,128], index: 2, kind: input, shape index: {}]
  %s3 = inlined_call_operand.vmem [shape: bf16[2,64,128], index: 3, kind: output, shape index: {}]
  %s4 = sld [smem:[#allocation0]]
  $region45: #{image_discriminator.14} parent=0
    _
  %s6 = ssub.s32 1, %s4
  %s7 = scalar_select 0, %s6, %s4
  loop: start=0, step=1, limit=4
  $region2: #{image_discriminator.14} parent=0 // loop_pre_header
    _
  $region3: #{image_discriminator.14} parent=0 // loop_header
    %s9 = sphi 0, %s13
    %p10 = scmp.ge.s32.totalorder %s9, 4
    %s16 = sphi 0, %s35
    %s17 = sphi 0, %s31
    %s18 = sphi 0, %s27
    %s19 = sphi 0, %s16
    %s20 = sphi 0, %s17
    %s21 = sphi 0, %s18
    %s22 = sphi 0, %s19
    %s23 = sphi 0, %s20
    %s24 = sphi 0, %s21
    %s42 = sphi 0, %s44
    %s45 = sphi 0, %s42
    %s46 = sphi 0, %s45
    %s62 = sphi 0, %s46
    %s70 = sphi 0, %s72
    %s73 = sphi 0, %s70
    %s74 = sphi 0, %s73
    %s90 = sphi 0, %s74
    %s98 = sphi 0, %s100
    %s101 = sphi 0, %s98
    %s102 = sphi 0, %s101
    %s118 = sphi 0, %s102
    %s128 = sphi 0, %s130
    %s131 = sphi 0, %s128
    %s132 = sphi 0, %s131
    %s148 = sphi 0, %s132
  $region4: #{image_discriminator.14} parent=0 // loop_header_branch
    %12 = sbr.rel (%p10) target = $region8
  $region5: #{image_discriminator.14} parent=0 // loop_body
    %s14 = ssub.s32 %s9, 1
    %s15 = ssub.s32 %s9, 2
    %s25 = sadd.s32 1, %s18
    %p26 = scmp.ge.s32.totalorder %s25, 1
    %s27 = scalar_select %p26, 0, %s25
    %s28 = sadd.s32 1, %s17
    %s29 = scalar_select %p26, %s28, %s17
    %p30 = scmp.ge.s32.totalorder %s29, 1
    %s31 = scalar_select %p30, 0, %s29
    %s32 = sadd.s32 1, %s16
    %s33 = scalar_select %p30, %s32, %s16
    %p34 = scmp.ge.s32.totalorder %s33, 2
    %s35 = scalar_select %p34, 0, %s33
    %s36 = ssub.s32 %s16, %s35
    %s37 = ssub.s32 %s18, %s27
    %s38 = sor.u32 %s36, %s37
    %s39 = ssub.s32 %s17, %s31
    %s40 = sor.u32 %s38, %s39
    %p41 = scmp.eq.s32.totalorder %s40, 0
    %s43 = sadd.s32 %s42, 1
    %s44 = scalar_select %p41, %s42, %s43
    %p47 = pneg %p41
    %p48 = scmp.eq.s32.totalorder %s9, 1
    %p49 = por %p47, %p48
    %p50 = scmp.ne.s32.totalorder %s42, %s45
    %p51 = scmp.eq.s32.totalorder %s9, 0
    %p52 = por %p50, %p51
    %p53 = scmp.ne.s32.totalorder %s42, %s45
    %p54 = scmp.eq.s32.totalorder %s14, 1
    %p55 = por %p53, %p54
    %p56 = scmp.ne.s32.totalorder %s45, %s46
    %p57 = scmp.eq.s32.totalorder %s14, 0
    %p58 = por %p56, %p57
    %p59 = scmp.ne.s32.totalorder %s45, %s46
    %p60 = scmp.eq.s32.totalorder %s15, 1
    %p61 = por %p59, %p60
    %p63 = scmp.ne.s32.totalorder %s46, %s62
    %p64 = scmp.eq.s32.totalorder %s15, 0
    %p65 = por %p63, %p64
    %s66 = ssub.s32 %s16, %s35
    %s67 = ssub.s32 %s17, %s31
    %s68 = sor.u32 %s66, %s67
    %p69 = scmp.eq.s32.totalorder %s68, 0
    %s71 = sadd.s32 %s70, 1
    %s72 = scalar_select %p69, %s70, %s71
    %p75 = pneg %p69
    %p76 = scmp.eq.s32.totalorder %s9, 1
    %p77 = por %p75, %p76
    %p78 = scmp.ne.s32.totalorder %s70, %s73
    %p79 = scmp.eq.s32.totalorder %s9, 0
    %p80 = por %p78, %p79
    %p81 = scmp.ne.s32.totalorder %s70, %s73
    %p82 = scmp.eq.s32.totalorder %s14, 1
    %p83 = por %p81, %p82
    %p84 = scmp.ne.s32.totalorder %s73, %s74
    %p85 = scmp.eq.s32.totalorder %s14, 0
    %p86 = por %p84, %p85
    %p87 = scmp.ne.s32.totalorder %s73, %s74
    %p88 = scmp.eq.s32.totalorder %s15, 1
    %p89 = por %p87, %p88
    %p91 = scmp.ne.s32.totalorder %s74, %s90
    %p92 = scmp.eq.s32.totalorder %s15, 0
    %p93 = por %p91, %p92
    %s94 = ssub.s32 %s16, %s35
    %s95 = ssub.s32 %s17, %s31
    %s96 = sor.u32 %s94, %s95
    %p97 = scmp.eq.s32.totalorder %s96, 0
    %s99 = sadd.s32 %s98, 1
    %s100 = scalar_select %p97, %s98, %s99
    %p103 = pneg %p97
    %p104 = scmp.eq.s32.totalorder %s9, 1
    %p105 = por %p103, %p104
    %p106 = scmp.ne.s32.totalorder %s98, %s101
    %p107 = scmp.eq.s32.totalorder %s9, 0
    %p108 = por %p106, %p107
    %p109 = scmp.ne.s32.totalorder %s98, %s101
    %p110 = scmp.eq.s32.totalorder %s14, 1
    %p111 = por %p109, %p110
    %p112 = scmp.ne.s32.totalorder %s101, %s102
    %p113 = scmp.eq.s32.totalorder %s14, 0
    %p114 = por %p112, %p113
    %p115 = scmp.ne.s32.totalorder %s101, %s102
    %p116 = scmp.eq.s32.totalorder %s15, 1
    %p117 = por %p115, %p116
    %p119 = scmp.ne.s32.totalorder %s102, %s118
    %p120 = scmp.eq.s32.totalorder %s15, 0
    %p121 = por %p119, %p120
    %s122 = ssub.s32 %s16, %s35
    %s123 = ssub.s32 %s18, %s27
    %s124 = sor.u32 %s122, %s123
    %s125 = ssub.s32 %s17, %s31
    %s126 = sor.u32 %s124, %s125
    %p127 = scmp.eq.s32.totalorder %s126, 0
    %s129 = sadd.s32 %s128, 1
    %s130 = scalar_select %p127, %s128, %s129
    %p133 = pneg %p127
    %p134 = scmp.eq.s32.totalorder %s9, 1
    %p135 = por %p133, %p134
    %p136 = scmp.ne.s32.totalorder %s128, %s131
    %p137 = scmp.eq.s32.totalorder %s9, 0
    %p138 = por %p136, %p137
    %p139 = scmp.ne.s32.totalorder %s128, %s131
    %p140 = scmp.eq.s32.totalorder %s14, 1
    %p141 = por %p139, %p140
    %p142 = scmp.ne.s32.totalorder %s131, %s132
    %p143 = scmp.eq.s32.totalorder %s14, 0
    %p144 = por %p142, %p143
    %p145 = scmp.ne.s32.totalorder %s131, %s132
    %p146 = scmp.eq.s32.totalorder %s15, 1
    %p147 = por %p145, %p146
    %p149 = scmp.ne.s32.totalorder %s132, %s148
    %p150 = scmp.eq.s32.totalorder %s15, 0
    %p151 = por %p149, %p150
    %p152 = scmp.le.s32.totalorder 1, %s9
    %p153 = scmp.lt.s32.totalorder %s9, 3
    %p154 = pnand %p152, %p153
    %p155 = pneg %p154
    // Predicated region
    $region9: #{image_discriminator.14} parent=5 // pred_check
      _
    $region10: #{image_discriminator.14} parent=5 // pred_check_branch
      %157 = sbr.rel (%p154) target = $region12
    $region11: #{image_discriminator.14} parent=5 // pred_region
      %s158 = ssub.s32 %s9, 1
    $region12: #{image_discriminator.14} parent=5 // pred_fallthru
      _
    %p159 = scmp.lt.s32.totalorder %s9, 2
    // Predicated region
    $region13: #{image_discriminator.14} parent=5 // pred_check
      %p160 = pneg %p159
    $region14: #{image_discriminator.14} parent=5 // pred_check_branch
      %162 = sbr.rel (%p160) target = $region16
    $region15: #{image_discriminator.14} parent=5 // pred_region
      // Predicated region
      $region17: #{image_discriminator.14} parent=15 // pred_check
        %p163 = pneg %p52
      $region18: #{image_discriminator.14} parent=15 // pred_check_branch
        %165 = sbr.rel (%p163) target = $region20
      $region19: #{image_discriminator.14} parent=15 // pred_region
        %s166 = smul.u32 8, %s18
        %p167 = scmp.lt.s32.totalorder %s16, 1
        %s168 = scalar_select %p167, %s16, 1
        %p169 = scmp.lt.s32.totalorder %s166, 7
        %s170 = scalar_select %p169, %s166, 7
        %p171 = scmp.lt.s32.totalorder %s17, 0
        %s172 = scalar_select %p171, %s17, 0
        %s173 = sadd.s32 %s172, %s170
        %s174 = smul.addr %s168, 8
        %s175 = sadd.s32 %s173, %s174
        %s176 = smul.addr %s175, 4
        %s177 = scalar_lea.vmem %s0, %s176
        %s178 = smul.u32 8, %s18
      $region20: #{image_discriminator.14} parent=15 // pred_fallthru
        _
      // Predicated region
      $region21: #{image_discriminator.14} parent=15 // pred_check
        %p179 = pneg %p80
      $region22: #{image_discriminator.14} parent=15 // pred_check_branch
        %181 = sbr.rel (%p179) target = $region24
      $region23: #{image_discriminator.14} parent=15 // pred_region
        %p182 = scmp.lt.s32.totalorder %s16, 1
        %s183 = scalar_select %p182, %s16, 1
        %p184 = scmp.lt.s32.totalorder %s17, 0
        %s185 = scalar_select %p184, %s17, 0
        %s186 = sadd.s32 %s185, %s183
        %s187 = scalar_lea.vmem %s1, %s186
      $region24: #{image_discriminator.14} parent=15 // pred_fallthru
        _
      // Predicated region
      $region25: #{image_discriminator.14} parent=15 // pred_check
        %p188 = pneg %p108
      $region26: #{image_discriminator.14} parent=15 // pred_check_branch
        %190 = sbr.rel (%p188) target = $region28
      $region27: #{image_discriminator.14} parent=15 // pred_region
        %p191 = scmp.lt.s32.totalorder %s16, 1
        %s192 = scalar_select %p191, %s16, 1
        %p193 = scmp.lt.s32.totalorder %s17, 0
        %s194 = scalar_select %p193, %s17, 0
        %s195 = sadd.s32 %s194, %s192
        %s196 = scalar_lea.vmem %s2, %s195
      $region28: #{image_discriminator.14} parent=15 // pred_fallthru
        _
    $region16: #{image_discriminator.14} parent=5 // pred_fallthru
      _
    %p197 = scmp.le.s32.totalorder 1, %s9
    %p198 = scmp.lt.s32.totalorder %s9, 3
    %p199 = pnand %p197, %p198
    %p200 = pneg %p199
    // Predicated region
    $region29: #{image_discriminator.14} parent=5 // pred_check
      _
    $region30: #{image_discriminator.14} parent=5 // pred_check_branch
      %202 = sbr.rel (%p199) target = $region32
    $region31: #{image_discriminator.14} parent=5 // pred_region
      %s203 = ssub.s32 %s9, 1
      %s204 = smul.u32 8, %s21
      %p205 = scmp.lt.s32.totalorder %s19, 1
      %s206 = scalar_select %p205, %s19, 1
      %p207 = scmp.lt.s32.totalorder %s204, 7
      %s208 = scalar_select %p207, %s204, 7
      %p209 = scmp.lt.s32.totalorder %s20, 0
      %s210 = scalar_select %p209, %s20, 0
      %s211 = sadd.s32 %s210, %s208
      %s212 = smul.addr %s206, 8
      %s213 = sadd.s32 %s211, %s212
      %s214 = smul.addr %s213, 4
      %s215 = scalar_lea.vmem %s0, %s214
      %p216 = pneg %p58
      %p217 = pneg %p55
      %p218 = scmp.lt.s32.totalorder %s19, 1
      %s219 = scalar_select %p218, %s19, 1
      %p220 = scmp.lt.s32.totalorder %s20, 0
      %s221 = scalar_select %p220, %s20, 0
      %s222 = sadd.s32 %s221, %s219
      %s223 = scalar_lea.vmem %s1, %s222
      %p224 = pneg %p86
      %p225 = pneg %p83
      %p226 = scmp.lt.s32.totalorder %s19, 1
      %s227 = scalar_select %p226, %s19, 1
      %p228 = scmp.lt.s32.totalorder %s20, 0
      %s229 = scalar_select %p228, %s20, 0
      %s230 = sadd.s32 %s229, %s227
      %s231 = scalar_lea.vmem %s2, %s230
      %p232 = pneg %p114
      %p233 = pneg %p111
      %p234 = pneg %p144
      %p235 = pneg %p141
      %s236 = smul.u32 8, %s21
      %p237 = scmp.lt.s32.totalorder %s19, 1
      %s238 = scalar_select %p237, %s19, 1
      %p239 = scmp.lt.s32.totalorder %s236, 7
      %s240 = scalar_select %p239, %s236, 7
      %p241 = scmp.lt.s32.totalorder %s20, 0
      %s242 = scalar_select %p241, %s20, 0
      %s243 = sadd.s32 %s242, %s240
      %s244 = smul.addr %s238, 8
      %s245 = sadd.s32 %s243, %s244
      %s246 = smul.addr %s245, 4
      %s247 = scalar_lea.vmem %s3, %s246
      %s248 = smul.u32 8, %s21
      %p249 = scmp.lt.s32.totalorder %s19, 1
      %s250 = scalar_select %p249, %s19, 1
      %p251 = scmp.lt.s32.totalorder %s248, 7
      %s252 = scalar_select %p251, %s248, 7
      %p253 = scmp.lt.s32.totalorder %s20, 0
      %s254 = scalar_select %p253, %s20, 0
      %s255 = sadd.s32 %s254, %s252
      %s256 = smul.addr %s250, 8
      %s257 = sadd.s32 %s255, %s256
      %s258 = smul.addr %s257, 4
      %s259 = scalar_lea.vmem %s0, %s258
      %s260 = smul.u32 8, %s21
      %p261 = scmp.lt.s32.totalorder %s19, 1
      %s262 = scalar_select %p261, %s19, 1
      %p263 = scmp.lt.s32.totalorder %s20, 0
      %s264 = scalar_select %p263, %s20, 0
      %s265 = sadd.s32 %s264, %s262
      %s266 = scalar_lea.vmem %s1, %s265
      %p267 = scmp.lt.s32.totalorder %s19, 1
      %s268 = scalar_select %p267, %s19, 1
      %p269 = scmp.lt.s32.totalorder %s20, 0
      %s270 = scalar_select %p269, %s20, 0
      %s271 = sadd.s32 %s270, %s268
      %s272 = scalar_lea.vmem %s2, %s271
      %s273 = smul.u32 8, %s21
      %p274 = scmp.lt.s32.totalorder %s19, 1
      %s275 = scalar_select %p274, %s19, 1
      %p276 = scmp.lt.s32.totalorder %s273, 7
      %s277 = scalar_select %p276, %s273, 7
      %p278 = scmp.lt.s32.totalorder %s20, 0
      %s279 = scalar_select %p278, %s20, 0
      %s280 = sadd.s32 %s279, %s277
      %s281 = smul.addr %s275, 8
      %s282 = sadd.s32 %s280, %s281
      %s283 = smul.addr %s282, 4
      %s284 = scalar_lea.vmem %s3, %s283
      %s285 = smul.u32 8, %s21
      %v286 = vld [vmem:[%s259] sm:$0xf]
      %v287 = vld [vmem:[%s259 + $0x4] sm:$0xf]
      %v288 = vld [vmem:[%s259 + $0x8] sm:$0xf]
      %v289 = vld [vmem:[%s259 + $0xc] sm:$0xf]
      %v290 = vld [vmem:[%s259 + $0x10] sm:$0xf]
      %v291 = vld [vmem:[%s259 + $0x14] sm:$0xf]
      %v292 = vld [vmem:[%s259 + $0x18] sm:$0xf]
      %v293 = vld [vmem:[%s259 + $0x1c] sm:$0xf]
      %v294 = vunpack.c.l.bf16 %v286
      %v295 = vunpack.c.l.bf16 %v287
      %v296 = vunpack.c.l.bf16 %v288
      %v297 = vunpack.c.l.bf16 %v289
      %v298 = vunpack.c.l.bf16 %v290
      %v299 = vunpack.c.l.bf16 %v291
      %v300 = vunpack.c.l.bf16 %v292
      %v301 = vunpack.c.l.bf16 %v293
      %v302 = vld [vmem:[%s266] sm:$0x1]
      %v304 = vperm.slane %v302, 0
      %v306 = vsub.f32 %v294, %v304
      %v307 = vsub.f32 %v295, %v304
      %v308 = vsub.f32 %v296, %v304
      %v309 = vsub.f32 %v297, %v304
      %v310 = vsub.f32 %v298, %v304
      %v311 = vsub.f32 %v299, %v304
      %v312 = vsub.f32 %v300, %v304
      %v313 = vsub.f32 %v301, %v304
      %v314 = vld [vmem:[%s272] sm:$0x1]
      %v316 = vperm.slane %v314, 0
      %v318 = vmul.f32 %v306, %v316
      %v319 = vmul.f32 %v307, %v316
      %v320 = vmul.f32 %v308, %v316
      %v321 = vmul.f32 %v309, %v316
      %v322 = vmul.f32 %v310, %v316
      %v323 = vmul.f32 %v311, %v316
      %v324 = vmul.f32 %v312, %v316
      %v325 = vmul.f32 %v313, %v316
      %vm326 = vcmp.gt.f32.partialorder %v318, 0.0
      %vm327 = vcmp.gt.f32.partialorder %v319, 0.0
      %vm328 = vcmp.gt.f32.partialorder %v320, 0.0
      %vm329 = vcmp.gt.f32.partialorder %v321, 0.0
      %vm330 = vcmp.gt.f32.partialorder %v322, 0.0
      %vm331 = vcmp.gt.f32.partialorder %v323, 0.0
      %vm332 = vcmp.gt.f32.partialorder %v324, 0.0
      %vm333 = vcmp.gt.f32.partialorder %v325, 0.0
      %v334 = vmul.f32 %v318, 0.2
      %v335 = vmul.f32 %v319, 0.2
      %v336 = vmul.f32 %v320, 0.2
      %v337 = vmul.f32 %v321, 0.2
      %v338 = vmul.f32 %v322, 0.2
      %v339 = vmul.f32 %v323, 0.2
      %v340 = vmul.f32 %v324, 0.2
      %v341 = vmul.f32 %v325, 0.2
      %v342 = vsel %vm326, %v318, %v334
      %v343 = vsel %vm327, %v319, %v335
      %v344 = vsel %vm328, %v320, %v336
      %v345 = vsel %vm329, %v321, %v337
      %v346 = vsel %vm330, %v322, %v338
      %v347 = vsel %vm331, %v323, %v339
      %v348 = vsel %vm332, %v324, %v340
      %v349 = vsel %vm333, %v325, %v341
      %v350 = vpack.c.bf16 %v342, %v342
      %v351 = vpack.c.bf16 %v343, %v343
      %v352 = vpack.c.bf16 %v344, %v344
      %v353 = vpack.c.bf16 %v345, %v345
      %v354 = vpack.c.bf16 %v346, %v346
      %v355 = vpack.c.bf16 %v347, %v347
      %v356 = vpack.c.bf16 %v348, %v348
      %v357 = vpack.c.bf16 %v349, %v349
      %358 = vst [vmem:[%s284] sm:$0xf] %v350
      %359 = vst [vmem:[%s284 + $0x4] sm:$0xf] %v351
      %360 = vst [vmem:[%s284 + $0x8] sm:$0xf] %v352
      %361 = vst [vmem:[%s284 + $0xc] sm:$0xf] %v353
      %362 = vst [vmem:[%s284 + $0x10] sm:$0xf] %v354
      %363 = vst [vmem:[%s284 + $0x14] sm:$0xf] %v355
      %364 = vst [vmem:[%s284 + $0x18] sm:$0xf] %v356
      %365 = vst [vmem:[%s284 + $0x1c] sm:$0xf] %v357
      %s366 = smul.u32 8, %s21
      %p367 = scmp.lt.s32.totalorder %s19, 1
      %s368 = scalar_select %p367, %s19, 1
      %p369 = scmp.lt.s32.totalorder %s366, 7
      %s370 = scalar_select %p369, %s366, 7
      %p371 = scmp.lt.s32.totalorder %s20, 0
      %s372 = scalar_select %p371, %s20, 0
      %s373 = sadd.s32 %s372, %s370
      %s374 = smul.addr %s368, 8
      %s375 = sadd.s32 %s373, %s374
      %s376 = smul.addr %s375, 4
      %s377 = scalar_lea.vmem %s3, %s376
      // Predicated region
      $region33: #{image_discriminator.14} parent=31 // pred_check
        %p378 = pneg %p141
      $region34: #{image_discriminator.14} parent=31 // pred_check_branch
        %380 = sbr.rel (%p378) target = $region36
      $region35: #{image_discriminator.14} parent=31 // pred_region
        %s381 = smul.u32 8, %s21
      $region36: #{image_discriminator.14} parent=31 // pred_fallthru
        _
    $region32: #{image_discriminator.14} parent=5 // pred_fallthru
      _
    %p382 = scmp.le.s32.totalorder 2, %s9
    // Predicated region
    $region37: #{image_discriminator.14} parent=5 // pred_check
      %p383 = pneg %p382
    $region38: #{image_discriminator.14} parent=5 // pred_check_branch
      %385 = sbr.rel (%p383) target = $region40
    $region39: #{image_discriminator.14} parent=5 // pred_region
      %s386 = ssub.s32 %s9, 2
      // Predicated region
      $region41: #{image_discriminator.14} parent=39 // pred_check
        %p387 = pneg %p147
      $region42: #{image_discriminator.14} parent=39 // pred_check_branch
        %389 = sbr.rel (%p387) target = $region44
      $region43: #{image_discriminator.14} parent=39 // pred_region
        %s390 = smul.u32 8, %s24
        %p391 = scmp.lt.s32.totalorder %s22, 1
        %s392 = scalar_select %p391, %s22, 1
        %p393 = scmp.lt.s32.totalorder %s390, 7
        %s394 = scalar_select %p393, %s390, 7
        %p395 = scmp.lt.s32.totalorder %s23, 0
        %s396 = scalar_select %p395, %s23, 0
        %s397 = sadd.s32 %s396, %s394
        %s398 = smul.addr %s392, 8
        %s399 = sadd.s32 %s397, %s398
        %s400 = smul.addr %s399, 4
        %s401 = scalar_lea.vmem %s3, %s400
      $region44: #{image_discriminator.14} parent=39 // pred_fallthru
        _
    $region40: #{image_discriminator.14} parent=5 // pred_fallthru
      _
  $region6: #{image_discriminator.14} parent=0 // loop_footer
    %s13 = sadd.s32 1, %s9
  $region7: #{image_discriminator.14} parent=0 // loop_footer_branch
    %8 = sbr.rel target = $region3
  $region8: #{image_discriminator.14} parent=0 // loop_exit
    _

// kernel: image_discriminator.16
$region0: #{image_discriminator.16}
  #allocation0 [shape = 'u32[]', space=smem, size = 0x4, offset = 0x4, fixed_abs, tag = 'smem constant byte address 0x4 - core index']
  #allocation1 [shape = 'u32[72,128]{1,0:T(1,128)}', space=vmem, size = 0x9000, scoped, tag = 'internal scratch']
  %s0 = inlined_call_operand.vmem [shape: bf16[2,16,256], index: 0, kind: input, shape index: {}]
  %s1 = inlined_call_operand.vmem [shape: f32[2,1,256], index: 1, kind: output, shape index: {0}]
  %s2 = inlined_call_operand.vmem [shape: f32[2,1,256], index: 2, kind: output, shape index: {1}]
  %3 = xla_tuple %s1, %s2
  %s4 = sld [smem:[#allocation0]]
  $region53: #{image_discriminator.16} parent=0
    _
  %s6 = ssub.s32 1, %s4
  %s7 = scalar_select 0, %s6, %s4
  loop: start=0, step=1, limit=4
  $region2: #{image_discriminator.16} parent=0 // loop_pre_header
    _
  $region3: #{image_discriminator.16} parent=0 // loop_header
    %s9 = sphi 0, %s13
    %p10 = scmp.ge.s32.totalorder %s9, 4
    %s16 = sphi 0, %s35
    %s17 = sphi 0, %s31
    %s18 = sphi 0, %s27
    %s19 = sphi 0, %s16
    %s20 = sphi 0, %s17
    %s21 = sphi 0, %s18
    %s22 = sphi 0, %s19
    %s23 = sphi 0, %s20
    %s24 = sphi 0, %s21
    %s42 = sphi 0, %s44
    %s45 = sphi 0, %s42
    %s46 = sphi 0, %s45
    %s62 = sphi 0, %s46
    %s70 = sphi 0, %s72
    %s73 = sphi 0, %s70
    %s74 = sphi 0, %s73
    %s90 = sphi 0, %s74
    %s98 = sphi 0, %s100
    %s101 = sphi 0, %s98
    %s102 = sphi 0, %s101
    %s118 = sphi 0, %s102
  $region4: #{image_discriminator.16} parent=0 // loop_header_branch
    %12 = sbr.rel (%p10) target = $region8
  $region5: #{image_discriminator.16} parent=0 // loop_body
    %s14 = ssub.s32 %s9, 1
    %s15 = ssub.s32 %s9, 2
    %s25 = sadd.s32 1, %s18
    %p26 = scmp.ge.s32.totalorder %s25, 1
    %s27 = scalar_select %p26, 0, %s25
    %s28 = sadd.s32 1, %s17
    %s29 = scalar_select %p26, %s28, %s17
    %p30 = scmp.ge.s32.totalorder %s29, 1
    %s31 = scalar_select %p30, 0, %s29
    %s32 = sadd.s32 1, %s16
    %s33 = scalar_select %p30, %s32, %s16
    %p34 = scmp.ge.s32.totalorder %s33, 2
    %s35 = scalar_select %p34, 0, %s33
    %s36 = ssub.s32 %s16, %s35
    %s37 = ssub.s32 %s18, %s27
    %s38 = sor.u32 %s36, %s37
    %s39 = ssub.s32 %s17, %s31
    %s40 = sor.u32 %s38, %s39
    %p41 = scmp.eq.s32.totalorder %s40, 0
    %s43 = sadd.s32 %s42, 1
    %s44 = scalar_select %p41, %s42, %s43
    %p47 = pneg %p41
    %p48 = scmp.eq.s32.totalorder %s9, 1
    %p49 = por %p47, %p48
    %p50 = scmp.ne.s32.totalorder %s42, %s45
    %p51 = scmp.eq.s32.totalorder %s9, 0
    %p52 = por %p50, %p51
    %p53 = scmp.ne.s32.totalorder %s42, %s45
    %p54 = scmp.eq.s32.totalorder %s14, 1
    %p55 = por %p53, %p54
    %p56 = scmp.ne.s32.totalorder %s45, %s46
    %p57 = scmp.eq.s32.totalorder %s14, 0
    %p58 = por %p56, %p57
    %p59 = scmp.ne.s32.totalorder %s45, %s46
    %p60 = scmp.eq.s32.totalorder %s15, 1
    %p61 = por %p59, %p60
    %p63 = scmp.ne.s32.totalorder %s46, %s62
    %p64 = scmp.eq.s32.totalorder %s15, 0
    %p65 = por %p63, %p64
    %s66 = ssub.s32 %s16, %s35
    %s67 = ssub.s32 %s17, %s31
    %s68 = sor.u32 %s66, %s67
    %p69 = scmp.eq.s32.totalorder %s68, 0
    %s71 = sadd.s32 %s70, 1
    %s72 = scalar_select %p69, %s70, %s71
    %p75 = pneg %p69
    %p76 = scmp.eq.s32.totalorder %s9, 1
    %p77 = por %p75, %p76
    %p78 = scmp.ne.s32.totalorder %s70, %s73
    %p79 = scmp.eq.s32.totalorder %s9, 0
    %p80 = por %p78, %p79
    %p81 = scmp.ne.s32.totalorder %s70, %s73
    %p82 = scmp.eq.s32.totalorder %s14, 1
    %p83 = por %p81, %p82
    %p84 = scmp.ne.s32.totalorder %s73, %s74
    %p85 = scmp.eq.s32.totalorder %s14, 0
    %p86 = por %p84, %p85
    %p87 = scmp.ne.s32.totalorder %s73, %s74
    %p88 = scmp.eq.s32.totalorder %s15, 1
    %p89 = por %p87, %p88
    %p91 = scmp.ne.s32.totalorder %s74, %s90
    %p92 = scmp.eq.s32.totalorder %s15, 0
    %p93 = por %p91, %p92
    %s94 = ssub.s32 %s16, %s35
    %s95 = ssub.s32 %s17, %s31
    %s96 = sor.u32 %s94, %s95
    %p97 = scmp.eq.s32.totalorder %s96, 0
    %s99 = sadd.s32 %s98, 1
    %s100 = scalar_select %p97, %s98, %s99
    %p103 = pneg %p97
    %p104 = scmp.eq.s32.totalorder %s9, 1
    %p105 = por %p103, %p104
    %p106 = scmp.ne.s32.totalorder %s98, %s101
    %p107 = scmp.eq.s32.totalorder %s9, 0
    %p108 = por %p106, %p107
    %p109 = scmp.ne.s32.totalorder %s98, %s101
    %p110 = scmp.eq.s32.totalorder %s14, 1
    %p111 = por %p109, %p110
    %p112 = scmp.ne.s32.totalorder %s101, %s102
    %p113 = scmp.eq.s32.totalorder %s14, 0
    %p114 = por %p112, %p113
    %p115 = scmp.ne.s32.totalorder %s101, %s102
    %p116 = scmp.eq.s32.totalorder %s15, 1
    %p117 = por %p115, %p116
    %p119 = scmp.ne.s32.totalorder %s102, %s118
    %p120 = scmp.eq.s32.totalorder %s15, 0
    %p121 = por %p119, %p120
    %p122 = scmp.le.s32.totalorder 1, %s9
    %p123 = scmp.lt.s32.totalorder %s9, 3
    %p124 = pnand %p122, %p123
    %p125 = pneg %p124
    // Predicated region
    $region9: #{image_discriminator.16} parent=5 // pred_check
      _
    $region10: #{image_discriminator.16} parent=5 // pred_check_branch
      %127 = sbr.rel (%p124) target = $region12
    $region11: #{image_discriminator.16} parent=5 // pred_region
      %s128 = ssub.s32 %s9, 1
    $region12: #{image_discriminator.16} parent=5 // pred_fallthru
      _
    %p129 = scmp.lt.s32.totalorder %s9, 2
    // Predicated region
    $region13: #{image_discriminator.16} parent=5 // pred_check
      %p130 = pneg %p129
    $region14: #{image_discriminator.16} parent=5 // pred_check_branch
      %132 = sbr.rel (%p130) target = $region16
    $region15: #{image_discriminator.16} parent=5 // pred_region
      // Predicated region
      $region17: #{image_discriminator.16} parent=15 // pred_check
        %p133 = pneg %p52
      $region18: #{image_discriminator.16} parent=15 // pred_check_branch
        %135 = sbr.rel (%p133) target = $region20
      $region19: #{image_discriminator.16} parent=15 // pred_region
        %s136 = smul.u32 2, %s18
        %s137 = smul.u32 2, %s17
        %p138 = scmp.lt.s32.totalorder %s16, 1
        %s139 = scalar_select %p138, %s16, 1
        %p140 = scmp.lt.s32.totalorder %s136, 1
        %s141 = scalar_select %p140, %s136, 1
        %p142 = scmp.lt.s32.totalorder %s137, 1
        %s143 = scalar_select %p142, %s137, 1
        %s144 = smul.addr %s141, 2
        %s145 = sadd.s32 %s143, %s144
        %s146 = smul.addr %s139, 4
        %s147 = sadd.s32 %s145, %s146
        %s148 = smul.addr %s147, 4
        %s149 = scalar_lea.vmem %s0, %s148
        %s150 = smul.u32 2, %s18
        %s151 = smul.u32 2, %s17
      $region20: #{image_discriminator.16} parent=15 // pred_fallthru
        _
    $region16: #{image_discriminator.16} parent=5 // pred_fallthru
      _
    %p152 = scmp.le.s32.totalorder 1, %s9
    %p153 = scmp.lt.s32.totalorder %s9, 3
    %p154 = pnand %p152, %p153
    %p155 = pneg %p154
    // Predicated region
    $region21: #{image_discriminator.16} parent=5 // pred_check
      _
    $region22: #{image_discriminator.16} parent=5 // pred_check_branch
      %157 = sbr.rel (%p154) target = $region24
    $region23: #{image_discriminator.16} parent=5 // pred_region
      %s158 = ssub.s32 %s9, 1
      %s159 = smul.u32 2, %s21
      %s160 = smul.u32 2, %s20
      %p161 = scmp.lt.s32.totalorder %s19, 1
      %s162 = scalar_select %p161, %s19, 1
      %p163 = scmp.lt.s32.totalorder %s159, 1
      %s164 = scalar_select %p163, %s159, 1
      %p165 = scmp.lt.s32.totalorder %s160, 1
      %s166 = scalar_select %p165, %s160, 1
      %s167 = smul.addr %s164, 2
      %s168 = sadd.s32 %s166, %s167
      %s169 = smul.addr %s162, 4
      %s170 = sadd.s32 %s168, %s169
      %s171 = smul.addr %s170, 4
      %s172 = scalar_lea.vmem %s0, %s171
      %p173 = pneg %p58
      %p174 = pneg %p55
      %p175 = pneg %p86
      %p176 = pneg %p83
      %s177 = smul.u32 2, %s20
      %p178 = scmp.lt.s32.totalorder %s19, 1
      %s179 = scalar_select %p178, %s19, 1
      %p180 = scmp.lt.s32.totalorder %s177, 1
      %s181 = scalar_select %p180, %s177, 1
      %s182 = smul.addr %s179, 2
      %s183 = sadd.s32 %s181, %s182
      %s184 = scalar_lea.vmem %s1, %s183
      %p185 = pneg %p114
      %p186 = pneg %p111
      %s187 = smul.u32 2, %s20
      %p188 = scmp.lt.s32.totalorder %s19, 1
      %s189 = scalar_select %p188, %s19, 1
      %p190 = scmp.lt.s32.totalorder %s187, 1
      %s191 = scalar_select %p190, %s187, 1
      %s192 = smul.addr %s189, 2
      %s193 = sadd.s32 %s191, %s192
      %s194 = scalar_lea.vmem %s2, %s193
      %s195 = smul.u32 2, %s21
      %s196 = smul.u32 2, %s20
      %p197 = scmp.lt.s32.totalorder %s19, 1
      %s198 = scalar_select %p197, %s19, 1
      %p199 = scmp.lt.s32.totalorder %s195, 1
      %s200 = scalar_select %p199, %s195, 1
      %p201 = scmp.lt.s32.totalorder %s196, 1
      %s202 = scalar_select %p201, %s196, 1
      %s203 = smul.addr %s200, 2
      %s204 = sadd.s32 %s202, %s203
      %s205 = smul.addr %s198, 4
      %s206 = sadd.s32 %s204, %s205
      %s207 = smul.addr %s206, 4
      %s208 = scalar_lea.vmem %s0, %s207
      %s209 = smul.u32 2, %s21
      %s210 = smul.u32 2, %s20
      %s211 = smul.u32 2, %s20
      %p212 = scmp.lt.s32.totalorder %s19, 1
      %s213 = scalar_select %p212, %s19, 1
      %p214 = scmp.lt.s32.totalorder %s211, 1
      %s215 = scalar_select %p214, %s211, 1
      %s216 = smul.addr %s213, 2
      %s217 = sadd.s32 %s215, %s216
      %s218 = scalar_lea.vmem %s1, %s217
      %s219 = smul.u32 2, %s20
      %s220 = smul.u32 2, %s20
      %p221 = scmp.lt.s32.totalorder %s19, 1
      %s222 = scalar_select %p221, %s19, 1
      %p223 = scmp.lt.s32.totalorder %s220, 1
      %s224 = scalar_select %p223, %s220, 1
      %s225 = smul.addr %s222, 2
      %s226 = sadd.s32 %s224, %s225
      %s227 = scalar_lea.vmem %s2, %s226
      %s228 = smul.u32 2, %s20
      %v229 = vld [vmem:[%s208] sm:$0xff]
      %v230 = vld [vmem:[%s208 + $0x8] sm:$0xff]
      %v231 = vunpack.c.l.bf16 %v229
      %v232 = vunpack.c.h.bf16 %v229
      %v233 = vunpack.c.l.bf16 %v230
      %v234 = vunpack.c.h.bf16 %v230
      %p235 = scmp.eq.s32.totalorder %s21, 0
      // Predicated region
      $region25: #{image_discriminator.16} parent=23 // pred_check
        %p236 = pneg %p235
      $region26: #{image_discriminator.16} parent=23 // pred_check_branch
        %238 = sbr.rel (%p236) target = $region28
      $region27: #{image_discriminator.16} parent=23 // pred_region
        %v239 = vlaneseq
        %vm240 = vcmp.ge.s32.totalorder %v239, 0
        %vm241 = vcmp.lt.s32.totalorder %v239, 256
        %vm242 = vmand %vm240, %vm241
        %243 = vst.msk [vmem:[%s218] sm:$0x3] %vm242, 0.0
        %244 = vst.msk [vmem:[%s227] sm:$0x3] %vm242, 0.0
      $region28: #{image_discriminator.16} parent=23 // pred_fallthru
        _
      %v245 = vld [vmem:[%s218] sm:$0x3]
      %v246 = vadd.f32 %v231, %v233
      %v247 = vrot.slane %v246, 4
      %v248 = vadd.f32 %v246, %v247
      %v249 = vrot.slane %v248, 2
      %v250 = vadd.f32 %v248, %v249
      %v251 = vrot.slane %v250, 1
      %v252 = vadd.f32 %v250, %v251
      %v253 = vadd.f32 %v232, %v234
      %v254 = vrot.slane %v253, 4
      %v255 = vadd.f32 %v253, %v254
      %v256 = vrot.slane %v255, 2
      %v257 = vadd.f32 %v255, %v256
      %v258 = vrot.slane %v257, 1
      %v259 = vadd.f32 %v257, %v258
      %v262 = vrot.slane %v259, 7
      %vm263 = vcmask 1040384
      %v264 = vsel %vm263, %v252, %v262
      %v266 = vadd.f32 %v245, %v264
      %v267 = vlaneseq
      %vm268 = vcmp.ge.s32.totalorder %v267, 0
      %vm269 = vcmp.lt.s32.totalorder %v267, 256
      %vm270 = vmand %vm268, %vm269
      %271 = vst.msk [vmem:[%s218] sm:$0x3] %vm270, %v266
      %v272 = vld [vmem:[%s227] sm:$0x3]
      %v273 = vmul.f32 %v231, %v231
      %v274 = vmul.f32 %v232, %v232
      %v275 = vmul.f32 %v233, %v233
      %v276 = vmul.f32 %v234, %v234
      %v277 = vadd.f32 %v273, %v275
      %v278 = vrot.slane %v277, 4
      %v279 = vadd.f32 %v277, %v278
      %v280 = vrot.slane %v279, 2
      %v281 = vadd.f32 %v279, %v280
      %v282 = vrot.slane %v281, 1
      %v283 = vadd.f32 %v281, %v282
      %v284 = vadd.f32 %v274, %v276
      %v285 = vrot.slane %v284, 4
      %v286 = vadd.f32 %v284, %v285
      %v287 = vrot.slane %v286, 2
      %v288 = vadd.f32 %v286, %v287
      %v289 = vrot.slane %v288, 1
      %v290 = vadd.f32 %v288, %v289
      %v293 = vrot.slane %v290, 7
      %v294 = vsel %vm263, %v283, %v293
      %v296 = vadd.f32 %v272, %v294
      %297 = vst.msk [vmem:[%s227] sm:$0x3] %vm270, %v296
      // Predicated region
      $region29: #{image_discriminator.16} parent=23 // pred_check
        %p298 = pneg %p235
      $region30: #{image_discriminator.16} parent=23 // pred_check_branch
        %300 = sbr.rel (%p298) target = $region32
      $region31: #{image_discriminator.16} parent=23 // pred_region
        %v301 = vld [vmem:[%s218] sm:$0x3]
        %v302 = vrcp.pop 16.0
        %v303 = vmul.f32 16.0, %v302
        %v304 = vsub.f32 1.0, %v303
        %v305 = vmul.f32 %v302, %v304
        %v306 = vadd.f32 %v302, %v305
        %vm307 = vweird.f32 %v302
        %v308 = vsel %vm307, %v302, %v306
        %v309 = vmul.f32 %v301, %v308
        %v310 = vld [vmem:[%s227] sm:$0x3]
        %v311 = vmul.f32 %v310, %v308
        %v312 = vmul.f32 %v309, %v309
        %v313 = vsub.f32 %v311, %v312
        %314 = vst.msk [vmem:[%s218] sm:$0x3] %vm270, %v309
        %v315 = vadd.f32 %v313, 1e-05
        %v316 = vrsqrt.pop %v315
        %v317 = vmul.f32 %v316, %v315
        %v318 = vmul.f32 %v317, %v316
        %v319 = vmul.f32 0.5, %v318
        %v320 = vsub.f32 1.5, %v319
        %v321 = vmul.f32 %v316, %v320
        %vm322 = vweird.f32 %v315
        %vm323 = vweird.f32 %v316
        %vm324 = vmor %vm322, %vm323
        %v325 = vsel %vm324, %v316, %v321
        %326 = vst.msk [vmem:[%s227] sm:$0x3] %vm270, %v325
      $region32: #{image_discriminator.16} parent=23 // pred_fallthru
        _
      %s327 = smul.u32 2, %s20
      %p328 = scmp.lt.s32.totalorder %s19, 1
      %s329 = scalar_select %p328, %s19, 1
      %p330 = scmp.lt.s32.totalorder %s327, 1
      %s331 = scalar_select %p330, %s327, 1
      %s332 = smul.addr %s329, 2
      %s333 = sadd.s32 %s331, %s332
      %s334 = scalar_lea.vmem %s1, %s333
      %s335 = smul.u32 2, %s20
      %p336 = scmp.lt.s32.totalorder %s19, 1
      %s337 = scalar_select %p336, %s19, 1
      %p338 = scmp.lt.s32.totalorder %s335, 1
      %s339 = scalar_select %p338, %s335, 1
      %s340 = smul.addr %s337, 2
      %s341 = sadd.s32 %s339, %s340
      %s342 = scalar_lea.vmem %s2, %s341
      // Predicated region
      $region33: #{image_discriminator.16} parent=23 // pred_check
        %p343 = pneg %p83
      $region34: #{image_discriminator.16} parent=23 // pred_check_branch
        %345 = sbr.rel (%p343) target = $region36
      $region35: #{image_discriminator.16} parent=23 // pred_region
        %s346 = smul.u32 2, %s20
      $region36: #{image_discriminator.16} parent=23 // pred_fallthru
        _
      // Predicated region
      $region37: #{image_discriminator.16} parent=23 // pred_check
        %p347 = pneg %p111
      $region38: #{image_discriminator.16} parent=23 // pred_check_branch
        %349 = sbr.rel (%p347) target = $region40
      $region39: #{image_discriminator.16} parent=23 // pred_region
        %s350 = smul.u32 2, %s20
      $region40: #{image_discriminator.16} parent=23 // pred_fallthru
        _
    $region24: #{image_discriminator.16} parent=5 // pred_fallthru
      _
    %p351 = scmp.le.s32.totalorder 2, %s9
    // Predicated region
    $region41: #{image_discriminator.16} parent=5 // pred_check
      %p352 = pneg %p351
    $region42: #{image_discriminator.16} parent=5 // pred_check_branch
      %354 = sbr.rel (%p352) target = $region44
    $region43: #{image_discriminator.16} parent=5 // pred_region
      %s355 = ssub.s32 %s9, 2
      // Predicated region
      $region45: #{image_discriminator.16} parent=43 // pred_check
        %p356 = pneg %p89
      $region46: #{image_discriminator.16} parent=43 // pred_check_branch
        %358 = sbr.rel (%p356) target = $region48
      $region47: #{image_discriminator.16} parent=43 // pred_region
        %s359 = smul.u32 2, %s23
        %p360 = scmp.lt.s32.totalorder %s22, 1
        %s361 = scalar_select %p360, %s22, 1
        %p362 = scmp.lt.s32.totalorder %s359, 1
        %s363 = scalar_select %p362, %s359, 1
        %s364 = smul.addr %s361, 2
        %s365 = sadd.s32 %s363, %s364
        %s366 = scalar_lea.vmem %s1, %s365
      $region48: #{image_discriminator.16} parent=43 // pred_fallthru
        _
      // Predicated region
      $region49: #{image_discriminator.16} parent=43 // pred_check
        %p367 = pneg %p117
      $region50: #{image_discriminator.16} parent=43 // pred_check_branch
        %369 = sbr.rel (%p367) target = $region52
      $region51: #{image_discriminator.16} parent=43 // pred_region
        %s370 = smul.u32 2, %s23
        %p371 = scmp.lt.s32.totalorder %s22, 1
        %s372 = scalar_select %p371, %s22, 1
        %p373 = scmp.lt.s32.totalorder %s370, 1
        %s374 = scalar_select %p373, %s370, 1
        %s375 = smul.addr %s372, 2
        %s376 = sadd.s32 %s374, %s375
        %s377 = scalar_lea.vmem %s2, %s376
      $region52: #{image_discriminator.16} parent=43 // pred_fallthru
        _
    $region44: #{image_discriminator.16} parent=5 // pred_fallthru
      _
  $region6: #{image_discriminator.16} parent=0 // loop_footer
    %s13 = sadd.s32 1, %s9
  $region7: #{image_discriminator.16} parent=0 // loop_footer_branch
    %8 = sbr.rel target = $region3
  $region8: #{image_discriminator.16} parent=0 // loop_exit
    _

// kernel: image_discriminator.15
$region0: #{image_discriminator.15}
  #allocation0 [shape = 'u32[]', space=smem, size = 0x4, offset = 0x4, fixed_abs, tag = 'smem constant byte address 0x4 - core index']
  #allocation1 [shape = 'u32[72,128]{1,0:T(1,128)}', space=vmem, size = 0x9000, scoped, tag = 'internal scratch']
  #allocation2 [shape = 'f32[32,256]{1,0:T(8,128)}', space=vmem, size = 0x8000, scoped, tag = 'scratch operand']
  %s0 = inlined_call_operand.vmem [shape: bf16[32,2048], index: 0, kind: input, shape index: {}]
  %s1 = inlined_call_operand.vmem [shape: bf16[2048,256], index: 1, kind: input, shape index: {}]
  %s2 = inlined_call_operand.vmem [shape: bf16[32,256], index: 2, kind: output, shape index: {}]
  %s3 = sld [smem:[#allocation0]]
  $region72: #{image_discriminator.15} parent=0
    _
  %s5 = ssub.s32 1, %s3
  %s6 = scalar_select 0, %s5, %s3
  $region1: #{image_discriminator.15} parent=0
    #allocation3 [shape = 'u8[65536]{0}', space=vmem, size = 0x10000, scoped, tag = 'input window, operand 0']
    loop: start=0, step=1, limit=6
    $region2: #{image_discriminator.15} parent=1 // loop_pre_header
      _
    $region3: #{image_discriminator.15} parent=1 // loop_header
      %s8 = sphi 0, %s12
      %p9 = scmp.ge.s32.totalorder %s8, 6
      %s15 = sphi 0, %s34
      %s16 = sphi 0, %s30
      %s17 = sphi 0, %s26
      %s18 = sphi 0, %s15
      %s19 = sphi 0, %s16
      %s20 = sphi 0, %s17
      %s21 = sphi 0, %s18
      %s22 = sphi 0, %s19
      %s23 = sphi 0, %s20
      %s39 = sphi 0, %s41
      %s42 = sphi 0, %s39
      %s43 = sphi 0, %s42
      %s59 = sphi 0, %s43
      %s67 = sphi 0, %s69
      %s70 = sphi 0, %s67
      %s71 = sphi 0, %s70
      %s87 = sphi 0, %s71
      %s95 = sphi 0, %s97
      %s98 = sphi 0, %s95
      %s99 = sphi 0, %s98
      %s115 = sphi 0, %s99
    $region4: #{image_discriminator.15} parent=1 // loop_header_branch
      %11 = sbr.rel (%p9) target = $region8
    $region5: #{image_discriminator.15} parent=1 // loop_body
      %s13 = ssub.s32 %s8, 1
      %s14 = ssub.s32 %s8, 2
      %s24 = sadd.s32 1, %s17
      %p25 = scmp.ge.s32.totalorder %s24, 4
      %s26 = scalar_select %p25, 0, %s24
      %s27 = sadd.s32 1, %s16
      %s28 = scalar_select %p25, %s27, %s16
      %p29 = scmp.ge.s32.totalorder %s28, 1
      %s30 = scalar_select %p29, 0, %s28
      %s31 = sadd.s32 1, %s15
      %s32 = scalar_select %p29, %s31, %s15
      %p33 = scmp.ge.s32.totalorder %s32, 1
      %s34 = scalar_select %p33, 0, %s32
      %s35 = ssub.s32 %s15, %s34
      %s36 = ssub.s32 %s17, %s26
      %s37 = sor.u32 %s35, %s36
      %p38 = scmp.eq.s32.totalorder %s37, 0
      %s40 = sadd.s32 %s39, 1
      %s41 = scalar_select %p38, %s39, %s40
      %p44 = pneg %p38
      %p45 = scmp.eq.s32.totalorder %s8, 3
      %p46 = por %p44, %p45
      %p47 = scmp.ne.s32.totalorder %s39, %s42
      %p48 = scmp.eq.s32.totalorder %s8, 0
      %p49 = por %p47, %p48
      %p50 = scmp.ne.s32.totalorder %s39, %s42
      %p51 = scmp.eq.s32.totalorder %s13, 3
      %p52 = por %p50, %p51
      %p53 = scmp.ne.s32.totalorder %s42, %s43
      %p54 = scmp.eq.s32.totalorder %s13, 0
      %p55 = por %p53, %p54
      %p56 = scmp.ne.s32.totalorder %s42, %s43
      %p57 = scmp.eq.s32.totalorder %s14, 3
      %p58 = por %p56, %p57
      %p60 = scmp.ne.s32.totalorder %s43, %s59
      %p61 = scmp.eq.s32.totalorder %s14, 0
      %p62 = por %p60, %p61
      %s63 = ssub.s32 %s17, %s26
      %s64 = ssub.s32 %s16, %s30
      %s65 = sor.u32 %s63, %s64
      %p66 = scmp.eq.s32.totalorder %s65, 0
      %s68 = sadd.s32 %s67, 1
      %s69 = scalar_select %p66, %s67, %s68
      %p72 = pneg %p66
      %p73 = scmp.eq.s32.totalorder %s8, 3
      %p74 = por %p72, %p73
      %p75 = scmp.ne.s32.totalorder %s67, %s70
      %p76 = scmp.eq.s32.totalorder %s8, 0
      %p77 = por %p75, %p76
      %p78 = scmp.ne.s32.totalorder %s67, %s70
      %p79 = scmp.eq.s32.totalorder %s13, 3
      %p80 = por %p78, %p79
      %p81 = scmp.ne.s32.totalorder %s70, %s71
      %p82 = scmp.eq.s32.totalorder %s13, 0
      %p83 = por %p81, %p82
      %p84 = scmp.ne.s32.totalorder %s70, %s71
      %p85 = scmp.eq.s32.totalorder %s14, 3
      %p86 = por %p84, %p85
      %p88 = scmp.ne.s32.totalorder %s71, %s87
      %p89 = scmp.eq.s32.totalorder %s14, 0
      %p90 = por %p88, %p89
      %s91 = ssub.s32 %s15, %s34
      %s92 = ssub.s32 %s16, %s30
      %s93 = sor.u32 %s91, %s92
      %p94 = scmp.eq.s32.totalorder %s93, 0
      %s96 = sadd.s32 %s95, 1
      %s97 = scalar_select %p94, %s95, %s96
      %p100 = pneg %p94
      %p101 = scmp.eq.s32.totalorder %s8, 3
      %p102 = por %p100, %p101
      %p103 = scmp.ne.s32.totalorder %s95, %s98
      %p104 = scmp.eq.s32.totalorder %s8, 0
      %p105 = por %p103, %p104
      %p106 = scmp.ne.s32.totalorder %s95, %s98
      %p107 = scmp.eq.s32.totalorder %s13, 3
      %p108 = por %p106, %p107
      %p109 = scmp.ne.s32.totalorder %s98, %s99
      %p110 = scmp.eq.s32.totalorder %s13, 0
      %p111 = por %p109, %p110
      %p112 = scmp.ne.s32.totalorder %s98, %s99
      %p113 = scmp.eq.s32.totalorder %s14, 3
      %p114 = por %p112, %p113
      %p116 = scmp.ne.s32.totalorder %s99, %s115
      %p117 = scmp.eq.s32.totalorder %s14, 0
      %p118 = por %p116, %p117
      %p119 = scmp.le.s32.totalorder 1, %s8
      %p120 = scmp.lt.s32.totalorder %s8, 5
      %p121 = pnand %p119, %p120
      %p122 = pneg %p121
      // Predicated region
      $region9: #{image_discriminator.15} parent=5 // pred_check
        _
      $region10: #{image_discriminator.15} parent=5 // pred_check_branch
        %124 = sbr.rel (%p121) target = $region12
      $region11: #{image_discriminator.15} parent=5 // pred_region
        %s125 = ssub.s32 %s8, 1
      $region12: #{image_discriminator.15} parent=5 // pred_fallthru
        _
      %p126 = scmp.lt.s32.totalorder %s8, 4
      // Predicated region
      $region13: #{image_discriminator.15} parent=5 // pred_check
        %p127 = pneg %p126
      $region14: #{image_discriminator.15} parent=5 // pred_check_branch
        %129 = sbr.rel (%p127) target = $region16
      $region15: #{image_discriminator.15} parent=5 // pred_region
        // Predicated region
        $region17: #{image_discriminator.15} parent=15 // pred_check
          %p130 = pneg %p49
        $region18: #{image_discriminator.15} parent=15 // pred_check_branch
          %132 = sbr.rel (%p130) target = $region20
        $region19: #{image_discriminator.15} parent=15 // pred_region
          %s133 = sand.u32 %s39, 1
          %s134 = sand.u32 %s39, 1
          %s135 = smul.addr %s134, 64
          %s136 = scalar_lea.vmem [#allocation3], %s135
          %s137 = smul.u32 4, %s15
          %s138 = smul.u32 4, %s17
          %s139 = smul.addr %s137, 16
          %s140 = sadd.s32 %s138, %s139
          %s141 = smul.addr %s140, 4
          %s142 = scalar_lea.vmem %s0, %s141
          // Predicated region
          $region21: #{image_discriminator.15} parent=19 // pred_check
            _
          $region22: #{image_discriminator.15} parent=19 // pred_check_branch
            %144 = sbr.rel (0) target = $region24
          $region23: #{image_discriminator.15} parent=19 // pred_region
            // Predicated region
            $region25: #{image_discriminator.15} parent=23 // pred_check
              _
            $region26: #{image_discriminator.15} parent=23 // pred_check_branch
              %146 = sbr.rel (0) target = $region28
            $region27: #{image_discriminator.15} parent=23 // pred_region
              loop: start=0, step=1, limit=1
              $region29: #{image_discriminator.15} parent=27 // loop_pre_header
                _
              $region30: #{image_discriminator.15} parent=27 // loop_header
                %s148 = sphi 0, %s152
                %p149 = scmp.ge.s32.totalorder %s148, 1
                %s153 = sphi %s142, %s142
                %s154 = sphi %s136, %s136
              $region31: #{image_discriminator.15} parent=27 // loop_header_branch
                %151 = sbr.rel (%p149) target = $region35
              $region32: #{image_discriminator.15} parent=27 // loop_body
                %v155 = vld [vmem:[%s153] sm:$0xff]
                %156 = vst [vmem:[%s154] sm:$0xff] %v155
                %v157 = vld [vmem:[%s153 + $0x8] sm:$0xff]
                %158 = vst [vmem:[%s154 + $0x8] sm:$0xff] %v157
                %v159 = vld [vmem:[%s153 + $0x40] sm:$0xff]
                %160 = vst [vmem:[%s154 + $0x10] sm:$0xff] %v159
                %v161 = vld [vmem:[%s153 + $0x48] sm:$0xff]
                %162 = vst [vmem:[%s154 + $0x18] sm:$0xff] %v161
                %v163 = vld [vmem:[%s153 + $0x80] sm:$0xff]
                %164 = vst [vmem:[%s154 + $0x20] sm:$0xff] %v163
                %v165 = vld [vmem:[%s153 + $0x88] sm:$0xff]
                %166 = vst [vmem:[%s154 + $0x28] sm:$0xff] %v165
                %v167 = vld [vmem:[%s153 + $0xc0] sm:$0xff]
                %168 = vst [vmem:[%s154 + $0x30] sm:$0xff] %v167
                %v169 = vld [vmem:[%s153 + $0xc8] sm:$0xff]
                %170 = vst [vmem:[%s154 + $0x38] sm:$0xff] %v169
              $region33: #{image_discriminator.15} parent=27 // loop_footer
                %s152 = sadd.s32 1, %s148
              $region34: #{image_discriminator.15} parent=27 // loop_footer_branch
                %147 = sbr.rel target = $region30
              $region35: #{image_discriminator.15} parent=27 // loop_exit
                _
            $region28: #{image_discriminator.15} parent=23 // pred_fallthru
              _
            // Predicated region
            $region36: #{image_discriminator.15} parent=23 // pred_check
              _
            $region37: #{image_discriminator.15} parent=23 // pred_check_branch
              %172 = sbr.rel target = $region39
            $region38: #{image_discriminator.15} parent=23 // pred_region
              _
            $region39: #{image_discriminator.15} parent=23 // pred_fallthru
              _
          $region24: #{image_discriminator.15} parent=19 // pred_fallthru
            _
          %173 = vnop
        $region20: #{image_discriminator.15} parent=15 // pred_fallthru
          _
        // Predicated region
        $region40: #{image_discriminator.15} parent=15 // pred_check
          %p174 = pneg %p77
        $region41: #{image_discriminator.15} parent=15 // pred_check_branch
          %176 = sbr.rel (%p174) target = $region43
        $region42: #{image_discriminator.15} parent=15 // pred_region
          %s177 = smul.u32 64, %s17
          %s178 = smul.u32 2, %s16
          %p179 = scmp.lt.s32.totalorder %s177, 255
          %s180 = scalar_select %p179, %s177, 255
          %p181 = scmp.lt.s32.totalorder %s178, 1
          %s182 = scalar_select %p181, %s178, 1
          %s183 = smul.addr %s180, 2
          %s184 = sadd.s32 %s182, %s183
          %s185 = smul.addr %s184, 4
          %s186 = scalar_lea.vmem %s1, %s185
          %s187 = smul.u32 64, %s17
          %s188 = smul.u32 2, %s16
        $region43: #{image_discriminator.15} parent=15 // pred_fallthru
          _
      $region16: #{image_discriminator.15} parent=5 // pred_fallthru
        _
      %p189 = scmp.le.s32.totalorder 1, %s8
      %p190 = scmp.lt.s32.totalorder %s8, 5
      %p191 = pnand %p189, %p190
      %p192 = pneg %p191
      // Predicated region
      $region44: #{image_discriminator.15} parent=5 // pred_check
        _
      $region45: #{image_discriminator.15} parent=5 // pred_check_branch
        %194 = sbr.rel (%p191) target = $region47
      $region46: #{image_discriminator.15} parent=5 // pred_region
        %s195 = ssub.s32 %s8, 1
        %s196 = sand.u32 %s42, 1
        %s197 = sand.u32 %s42, 1
        %s198 = smul.addr %s197, 64
        %s199 = scalar_lea.vmem [#allocation3], %s198
        // Predicated region
        $region48: #{image_discriminator.15} parent=46 // pred_check
          %p200 = pneg %p55
        $region49: #{image_discriminator.15} parent=46 // pred_check_branch
          %202 = sbr.rel (%p200) target = $region51
        $region50: #{image_discriminator.15} parent=46 // pred_region
          _
        $region51: #{image_discriminator.15} parent=46 // pred_fallthru
          _
        %s203 = sand.u32 %s42, 1
        %s204 = sand.u32 %s42, 1
        %s205 = smul.addr %s204, 64
        %s206 = scalar_lea.vmem [#allocation3], %s205
        %p207 = pneg %p55
        %p208 = pneg %p52
        %s209 = smul.u32 64, %s20
        %s210 = smul.u32 2, %s19
        %p211 = scmp.lt.s32.totalorder %s209, 255
        %s212 = scalar_select %p211, %s209, 255
        %p213 = scmp.lt.s32.totalorder %s210, 1
        %s214 = scalar_select %p213, %s210, 1
        %s215 = smul.addr %s212, 2
        %s216 = sadd.s32 %s214, %s215
        %s217 = smul.addr %s216, 4
        %s218 = scalar_lea.vmem %s1, %s217
        %p219 = pneg %p83
        %p220 = pneg %p80
        %p221 = pneg %p111
        %p222 = pneg %p108
        %s223 = smul.u32 4, %s18
        %s224 = smul.u32 2, %s19
        %p225 = scmp.lt.s32.totalorder %s223, 3
        %s226 = scalar_select %p225, %s223, 3
        %p227 = scmp.lt.s32.totalorder %s224, 1
        %s228 = scalar_select %p227, %s224, 1
        %s229 = smul.addr %s226, 2
        %s230 = sadd.s32 %s228, %s229
        %s231 = smul.addr %s230, 4
        %s232 = scalar_lea.vmem %s2, %s231
        %s233 = smul.u32 4, %s18
        %s234 = smul.u32 4, %s20
        %s235 = smul.u32 64, %s20
        %s236 = smul.u32 2, %s19
        %p237 = scmp.lt.s32.totalorder %s235, 255
        %s238 = scalar_select %p237, %s235, 255
        %p239 = scmp.lt.s32.totalorder %s236, 1
        %s240 = scalar_select %p239, %s236, 1
        %s241 = smul.addr %s238, 2
        %s242 = sadd.s32 %s240, %s241
        %s243 = smul.addr %s242, 4
        %s244 = scalar_lea.vmem %s1, %s243
        %s245 = smul.u32 64, %s20
        %s246 = smul.u32 2, %s19
        %s247 = smul.u32 4, %s18
        %s248 = smul.u32 2, %s19
        %p249 = scmp.lt.s32.totalorder %s247, 3
        %s250 = scalar_select %p249, %s247, 3
        %p251 = scmp.lt.s32.totalorder %s248, 1
        %s252 = scalar_select %p251, %s248, 1
        %s253 = smul.addr %s250, 2
        %s254 = sadd.s32 %s252, %s253
        %s255 = smul.addr %s254, 4
        %s256 = scalar_lea.vmem %s2, %s255
        %s257 = smul.u32 4, %s18
        %s258 = smul.u32 2, %s19
        %p259 = scmp.eq.s32.totalorder %s20, 0
        // Predicated region
        $region52: #{image_discriminator.15} parent=46 // pred_check
          %p260 = pneg %p259
        $region53: #{image_discriminator.15} parent=46 // pred_check_branch
          %262 = sbr.rel (%p260) target = $region55
        $region54: #{image_discriminator.15} parent=46 // pred_region
          %263 = vst [vmem:[#allocation2] sm:$0xff] 0.0
          %264 = vst [vmem:[#allocation2 + $0x8] sm:$0xff] 0.0
          %265 = vst [vmem:[#allocation2 + $0x10] sm:$0xff] 0.0
          %266 = vst [vmem:[#allocation2 + $0x18] sm:$0xff] 0.0
          %267 = vst [vmem:[#allocation2 + $0x20] sm:$0xff] 0.0
          %268 = vst [vmem:[#allocation2 + $0x28] sm:$0xff] 0.0
          %269 = vst [vmem:[#allocation2 + $0x30] sm:$0xff] 0.0
          %270 = vst [vmem:[#allocation2 + $0x38] sm:$0xff] 0.0
        $region55: #{image_discriminator.15} parent=46 // pred_fallthru
          _
        %v271 = vld [vmem:[#allocation2] sm:$0xff]
        %v272 = vld [vmem:[#allocation2 + $0x8] sm:$0xff]
        %v273 = vld [vmem:[#allocation2 + $0x10] sm:$0xff]
        %v274 = vld [vmem:[#allocation2 + $0x18] sm:$0xff]
        %v275 = vld [vmem:[#allocation2 + $0x20] sm:$0xff]
        %v276 = vld [vmem:[#allocation2 + $0x28] sm:$0xff]
        %v277 = vld [vmem:[#allocation2 + $0x30] sm:$0xff]
        %v278 = vld [vmem:[#allocation2 + $0x38] sm:$0xff]
        %v279 = vld [vmem:[%s199] sm:$0xff]
        %v280 = vld [vmem:[%s199 + $0x8] sm:$0xff]
        %v281 = vld [vmem:[%s199 + $0x10] sm:$0xff]
        %v282 = vld [vmem:[%s199 + $0x18] sm:$0xff]
        %v283 = vld [vmem:[%s199 + $0x20] sm:$0xff]
        %v284 = vld [vmem:[%s199 + $0x28] sm:$0xff]
        %v285 = vld [vmem:[%s199 + $0x30] sm:$0xff]
        %v286 = vld [vmem:[%s199 + $0x38] sm:$0xff]
        %v287 = vld [vmem:[%s244] sm:$0xff]
        %v288 = vld [vmem:[%s244 + $0x8] sm:$0xff]
        %v289 = vld [vmem:[%s244 + $0x10] sm:$0xff]
        %v290 = vld [vmem:[%s244 + $0x18] sm:$0xff]
        %v291 = vld [vmem:[%s244 + $0x20] sm:$0xff]
        %v292 = vld [vmem:[%s244 + $0x28] sm:$0xff]
        %v293 = vld [vmem:[%s244 + $0x30] sm:$0xff]
        %v294 = vld [vmem:[%s244 + $0x38] sm:$0xff]
        %v295 = vld [vmem:[%s244 + $0x40] sm:$0xff]
        %v296 = vld [vmem:[%s244 + $0x48] sm:$0xff]
        %v297 = vld [vmem:[%s244 + $0x50] sm:$0xff]
        %v298 = vld [vmem:[%s244 + $0x58] sm:$0xff]
        %v299 = vld [vmem:[%s244 + $0x60] sm:$0xff]
        %v300 = vld [vmem:[%s244 + $0x68] sm:$0xff]
        %v301 = vld [vmem:[%s244 + $0x70] sm:$0xff]
        %v302 = vld [vmem:[%s244 + $0x78] sm:$0xff]
        %v303 = vld [vmem:[%s244 + $0x80] sm:$0xff]
        %v304 = vld [vmem:[%s244 + $0x88] sm:$0xff]
        %v305 = vld [vmem:[%s244 + $0x90] sm:$0xff]
        %v306 = vld [vmem:[%s244 + $0x98] sm:$0xff]
        %v307 = vld [vmem:[%s244 + $0xa0] sm:$0xff]
        %v308 = vld [vmem:[%s244 + $0xa8] sm:$0xff]
        %v309 = vld [vmem:[%s244 + $0xb0] sm:$0xff]
        %v310 = vld [vmem:[%s244 + $0xb8] sm:$0xff]
        %v311 = vld [vmem:[%s244 + $0xc0] sm:$0xff]
        %v312 = vld [vmem:[%s244 + $0xc8] sm:$0xff]
        %v313 = vld [vmem:[%s244 + $0xd0] sm:$0xff]
        %v314 = vld [vmem:[%s244 + $0xd8] sm:$0xff]
        %v315 = vld [vmem:[%s244 + $0xe0] sm:$0xff]
        %v316 = vld [vmem:[%s244 + $0xe8] sm:$0xff]
        %v317 = vld [vmem:[%s244 + $0xf0] sm:$0xff]
        %v318 = vld [vmem:[%s244 + $0xf8] sm:$0xff]
        %v319 = vld [vmem:[%s244 + $0x100] sm:$0xff]
        %v320 = vld [vmem:[%s244 + $0x108] sm:$0xff]
        %v321 = vld [vmem:[%s244 + $0x110] sm:$0xff]
        %v322 = vld [vmem:[%s244 + $0x118] sm:$0xff]
        %v323 = vld [vmem:[%s244 + $0x120] sm:$0xff]
        %v324 = vld [vmem:[%s244 + $0x128] sm:$0xff]
        %v325 = vld [vmem:[%s244 + $0x130] sm:$0xff]
        %v326 = vld [vmem:[%s244 + $0x138] sm:$0xff]
        %v327 = vld [vmem:[%s244 + $0x140] sm:$0xff]
        %v328 = vld [vmem:[%s244 + $0x148] sm:$0xff]
        %v329 = vld [vmem:[%s244 + $0x150] sm:$0xff]
        %v330 = vld [vmem:[%s244 + $0x158] sm:$0xff]
        %v331 = vld [vmem:[%s244 + $0x160] sm:$0xff]
        %v332 = vld [vmem:[%s244 + $0x168] sm:$0xff]
        %v333 = vld [vmem:[%s244 + $0x170] sm:$0xff]
        %v334 = vld [vmem:[%s244 + $0x178] sm:$0xff]
        %v335 = vld [vmem:[%s244 + $0x180] sm:$0xff]
        %v336 = vld [vmem:[%s244 + $0x188] sm:$0xff]
        %v337 = vld [vmem:[%s244 + $0x190] sm:$0xff]
        %v338 = vld [vmem:[%s244 + $0x198] sm:$0xff]
        %v339 = vld [vmem:[%s244 + $0x1a0] sm:$0xff]
        %v340 = vld [vmem:[%s244 + $0x1a8] sm:$0xff]
        %v341 = vld [vmem:[%s244 + $0x1b0] sm:$0xff]
        %v342 = vld [vmem:[%s244 + $0x1b8] sm:$0xff]
        %v343 = vld [vmem:[%s244 + $0x1c0] sm:$0xff]
        %v344 = vld [vmem:[%s244 + $0x1c8] sm:$0xff]
        %v345 = vld [vmem:[%s244 + $0x1d0] sm:$0xff]
        %v346 = vld [vmem:[%s244 + $0x1d8] sm:$0xff]
        %v347 = vld [vmem:[%s244 + $0x1e0] sm:$0xff]
        %v348 = vld [vmem:[%s244 + $0x1e8] sm:$0xff]
        %v349 = vld [vmem:[%s244 + $0x1f0] sm:$0xff]
        %v350 = vld [vmem:[%s244 + $0x1f8] sm:$0xff]
        %v359 = vunpack.c.l.b16 %v279
        %v360 = vunpack.c.h.b16 %v279
        %v361 = vunpack.c.l.b16 %v280
        %v362 = vunpack.c.h.b16 %v280
        %v363 = vunpack.c.l.b16 %v281
        %v364 = vunpack.c.h.b16 %v281
        %v365 = vunpack.c.l.b16 %v282
        %v366 = vunpack.c.h.b16 %v282
        %v367 = vunpack.c.l.b16 %v283
        %v368 = vunpack.c.h.b16 %v283
        %v369 = vunpack.c.l.b16 %v284
        %v370 = vunpack.c.h.b16 %v284
        %v371 = vunpack.c.l.b16 %v285
        %v372 = vunpack.c.h.b16 %v285
        %v373 = vunpack.c.l.b16 %v286
        %v374 = vunpack.c.h.b16 %v286
        %v375 = vpack.c.b16 %v363, %v359
        %v376 = vpack.c.b16 %v364, %v360
        %v377 = vpack.c.b16 %v365, %v361
        %v378 = vpack.c.b16 %v366, %v362
        %v379 = vpack.c.b16 %v371, %v367
        %v380 = vpack.c.b16 %v372, %v368
        %v381 = vpack.c.b16 %v373, %v369
        %v382 = vpack.c.b16 %v374, %v370
        %v455 = vunpack.c.l.b16 %v287
        %v456 = vunpack.c.h.b16 %v287
        %v457 = vunpack.c.l.b16 %v288
        %v458 = vunpack.c.h.b16 %v288
        %v459 = vunpack.c.l.b16 %v289
        %v460 = vunpack.c.h.b16 %v289
        %v461 = vunpack.c.l.b16 %v290
        %v462 = vunpack.c.h.b16 %v290
        %v463 = vunpack.c.l.b16 %v291
        %v464 = vunpack.c.h.b16 %v291
        %v465 = vunpack.c.l.b16 %v292
        %v466 = vunpack.c.h.b16 %v292
        %v467 = vunpack.c.l.b16 %v293
        %v468 = vunpack.c.h.b16 %v293
        %v469 = vunpack.c.l.b16 %v294
        %v470 = vunpack.c.h.b16 %v294
        %v471 = vunpack.c.l.b16 %v295
        %v472 = vunpack.c.h.b16 %v295
        %v473 = vunpack.c.l.b16 %v296
        %v474 = vunpack.c.h.b16 %v296
        %v475 = vunpack.c.l.b16 %v297
        %v476 = vunpack.c.h.b16 %v297
        %v477 = vunpack.c.l.b16 %v298
        %v478 = vunpack.c.h.b16 %v298
        %v479 = vunpack.c.l.b16 %v299
        %v480 = vunpack.c.h.b16 %v299
        %v481 = vunpack.c.l.b16 %v300
        %v482 = vunpack.c.h.b16 %v300
        %v483 = vunpack.c.l.b16 %v301
        %v484 = vunpack.c.h.b16 %v301
        %v485 = vunpack.c.l.b16 %v302
        %v486 = vunpack.c.h.b16 %v302
        %v487 = vunpack.c.l.b16 %v303
        %v488 = vunpack.c.h.b16 %v303
        %v489 = vunpack.c.l.b16 %v304
        %v490 = vunpack.c.h.b16 %v304
        %v491 = vunpack.c.l.b16 %v305
        %v492 = vunpack.c.h.b16 %v305
        %v493 = vunpack.c.l.b16 %v306
        %v494 = vunpack.c.h.b16 %v306
        %v495 = vunpack.c.l.b16 %v307
        %v496 = vunpack.c.h.b16 %v307
        %v497 = vunpack.c.l.b16 %v308
        %v498 = vunpack.c.h.b16 %v308
        %v499 = vunpack.c.l.b16 %v309
        %v500 = vunpack.c.h.b16 %v309
        %v501 = vunpack.c.l.b16 %v310
        %v502 = vunpack.c.h.b16 %v310
        %v503 = vunpack.c.l.b16 %v311
        %v504 = vunpack.c.h.b16 %v311
        %v505 = vunpack.c.l.b16 %v312
        %v506 = vunpack.c.h.b16 %v312
        %v507 = vunpack.c.l.b16 %v313
        %v508 = vunpack.c.h.b16 %v313
        %v509 = vunpack.c.l.b16 %v314
        %v510 = vunpack.c.h.b16 %v314
        %v511 = vunpack.c.l.b16 %v315
        %v512 = vunpack.c.h.b16 %v315
        %v513 = vunpack.c.l.b16 %v316
        %v514 = vunpack.c.h.b16 %v316
        %v515 = vunpack.c.l.b16 %v317
        %v516 = vunpack.c.h.b16 %v317
        %v517 = vunpack.c.l.b16 %v318
        %v518 = vunpack.c.h.b16 %v318
        %v519 = vunpack.c.l.b16 %v319
        %v520 = vunpack.c.h.b16 %v319
        %v521 = vunpack.c.l.b16 %v320
        %v522 = vunpack.c.h.b16 %v320
        %v523 = vunpack.c.l.b16 %v321
        %v524 = vunpack.c.h.b16 %v321
        %v525 = vunpack.c.l.b16 %v322
        %v526 = vunpack.c.h.b16 %v322
        %v527 = vunpack.c.l.b16 %v323
        %v528 = vunpack.c.h.b16 %v323
        %v529 = vunpack.c.l.b16 %v324
        %v530 = vunpack.c.h.b16 %v324
        %v531 = vunpack.c.l.b16 %v325
        %v532 = vunpack.c.h.b16 %v325
        %v533 = vunpack.c.l.b16 %v326
        %v534 = vunpack.c.h.b16 %v326
        %v535 = vunpack.c.l.b16 %v327
        %v536 = vunpack.c.h.b16 %v327
        %v537 = vunpack.c.l.b16 %v328
        %v538 = vunpack.c.h.b16 %v328
        %v539 = vunpack.c.l.b16 %v329
        %v540 = vunpack.c.h.b16 %v329
        %v541 = vunpack.c.l.b16 %v330
        %v542 = vunpack.c.h.b16 %v330
        %v543 = vunpack.c.l.b16 %v331
        %v544 = vunpack.c.h.b16 %v331
        %v545 = vunpack.c.l.b16 %v332
        %v546 = vunpack.c.h.b16 %v332
        %v547 = vunpack.c.l.b16 %v333
        %v548 = vunpack.c.h.b16 %v333
        %v549 = vunpack.c.l.b16 %v334
        %v550 = vunpack.c.h.b16 %v334
        %v551 = vunpack.c.l.b16 %v335
        %v552 = vunpack.c.h.b16 %v335
        %v553 = vunpack.c.l.b16 %v336
        %v554 = vunpack.c.h.b16 %v336
        %v555 = vunpack.c.l.b16 %v337
        %v556 = vunpack.c.h.b16 %v337
        %v557 = vunpack.c.l.b16 %v338
        %v558 = vunpack.c.h.b16 %v338
        %v559 = vunpack.c.l.b16 %v339
        %v560 = vunpack.c.h.b16 %v339
        %v561 = vunpack.c.l.b16 %v340
        %v562 = vunpack.c.h.b16 %v340
        %v563 = vunpack.c.l.b16 %v341
        %v564 = vunpack.c.h.b16 %v341
        %v565 = vunpack.c.l.b16 %v342
        %v566 = vunpack.c.h.b16 %v342
        %v567 = vunpack.c.l.b16 %v343
        %v568 = vunpack.c.h.b16 %v343
        %v569 = vunpack.c.l.b16 %v344
        %v570 = vunpack.c.h.b16 %v344
        %v571 = vunpack.c.l.b16 %v345
        %v572 = vunpack.c.h.b16 %v345
        %v573 = vunpack.c.l.b16 %v346
        %v574 = vunpack.c.h.b16 %v346
        %v575 = vunpack.c.l.b16 %v347
        %v576 = vunpack.c.h.b16 %v347
        %v577 = vunpack.c.l.b16 %v348
        %v578 = vunpack.c.h.b16 %v348
        %v579 = vunpack.c.l.b16 %v349
        %v580 = vunpack.c.h.b16 %v349
        %v581 = vunpack.c.l.b16 %v350
        %v582 = vunpack.c.h.b16 %v350
        %v583 = vpack.c.b16 %v457, %v455
        %v584 = vpack.c.b16 %v458, %v456
        %v585 = vpack.c.b16 %v461, %v459
        %v586 = vpack.c.b16 %v462, %v460
        %v587 = vpack.c.b16 %v465, %v463
        %v588 = vpack.c.b16 %v466, %v464
        %v589 = vpack.c.b16 %v469, %v467
        %v590 = vpack.c.b16 %v470, %v468
        %v591 = vpack.c.b16 %v473, %v471
        %v592 = vpack.c.b16 %v474, %v472
        %v593 = vpack.c.b16 %v477, %v475
        %v594 = vpack.c.b16 %v478, %v476
        %v595 = vpack.c.b16 %v481, %v479
        %v596 = vpack.c.b16 %v482, %v480
        %v597 = vpack.c.b16 %v485, %v483
        %v598 = vpack.c.b16 %v486, %v484
        %v599 = vpack.c.b16 %v489, %v487
        %v600 = vpack.c.b16 %v490, %v488
        %v601 = vpack.c.b16 %v493, %v491
        %v602 = vpack.c.b16 %v494, %v492
        %v603 = vpack.c.b16 %v497, %v495
        %v604 = vpack.c.b16 %v498, %v496
        %v605 = vpack.c.b16 %v501, %v499
        %v606 = vpack.c.b16 %v502, %v500
        %v607 = vpack.c.b16 %v505, %v503
        %v608 = vpack.c.b16 %v506, %v504
        %v609 = vpack.c.b16 %v509, %v507
        %v610 = vpack.c.b16 %v510, %v508
        %v611 = vpack.c.b16 %v513, %v511
        %v612 = vpack.c.b16 %v514, %v512
        %v613 = vpack.c.b16 %v517, %v515
        %v614 = vpack.c.b16 %v518, %v516
        %v615 = vpack.c.b16 %v521, %v519
        %v616 = vpack.c.b16 %v522, %v520
        %v617 = vpack.c.b16 %v525, %v523
        %v618 = vpack.c.b16 %v526, %v524
        %v619 = vpack.c.b16 %v529, %v527
        %v620 = vpack.c.b16 %v530, %v528
        %v621 = vpack.c.b16 %v533, %v531
        %v622 = vpack.c.b16 %v534, %v532
        %v623 = vpack.c.b16 %v537, %v535
        %v624 = vpack.c.b16 %v538, %v536
        %v625 = vpack.c.b16 %v541, %v539
        %v626 = vpack.c.b16 %v542, %v540
        %v627 = vpack.c.b16 %v545, %v543
        %v628 = vpack.c.b16 %v546, %v544
        %v629 = vpack.c.b16 %v549, %v547
        %v630 = vpack.c.b16 %v550, %v548
        %v631 = vpack.c.b16 %v553, %v551
        %v632 = vpack.c.b16 %v554, %v552
        %v633 = vpack.c.b16 %v557, %v555
        %v634 = vpack.c.b16 %v558, %v556
        %v635 = vpack.c.b16 %v561, %v559
        %v636 = vpack.c.b16 %v562, %v560
        %v637 = vpack.c.b16 %v565, %v563
        %v638 = vpack.c.b16 %v566, %v564
        %v639 = vpack.c.b16 %v569, %v567
        %v640 = vpack.c.b16 %v570, %v568
        %v641 = vpack.c.b16 %v573, %v571
        %v642 = vpack.c.b16 %v574, %v572
        %v643 = vpack.c.b16 %v577, %v575
        %v644 = vpack.c.b16 %v578, %v576
        %v645 = vpack.c.b16 %v581, %v579
        %v646 = vpack.c.b16 %v582, %v580
        %711 = vmatpush.bf16.msra.mxu0 %v597
        %712 = vmatpush.bf16.msra.mxu0 %v595
        %713 = vmatpush.bf16.msra.mxu0 %v593
        %714 = vmatpush.bf16.msra.mxu0 %v591
        %715 = vmatpush.bf16.msra.mxu0 %v589
        %716 = vmatpush.bf16.msra.mxu0 %v587
        %717 = vmatpush.bf16.msra.mxu0 %v585
        %718 = vmatpush.bf16.msra.mxu0 %v583
        %719 = vmatmul.bf16.gmra.mxu0 %v375
        %v720 = vpop.f32.mrf.mxu0
        %v721 = vadd.f32 0.0, %v720
        %v722 = vpop.f32.mrf.mxu0
        %v723 = vadd.f32 0.0, %v722
        %724 = vmatmul.bf16.gmra.mxu0 %v379
        %v725 = vpop.f32.mrf.mxu0
        %v726 = vadd.f32 0.0, %v725
        %v727 = vpop.f32.mrf.mxu0
        %v728 = vadd.f32 0.0, %v727
        %729 = vdwg.mxu0
        %730 = vmatpush.bf16.msra.mxu0 %v613
        %731 = vmatpush.bf16.msra.mxu0 %v611
        %732 = vmatpush.bf16.msra.mxu0 %v609
        %733 = vmatpush.bf16.msra.mxu0 %v607
        %734 = vmatpush.bf16.msra.mxu0 %v605
        %735 = vmatpush.bf16.msra.mxu0 %v603
        %736 = vmatpush.bf16.msra.mxu0 %v601
        %737 = vmatpush.bf16.msra.mxu0 %v599
        %738 = vmatmul.bf16.gmra.mxu0 %v376
        %v739 = vpop.f32.mrf.mxu0
        %v740 = vadd.f32 %v721, %v739
        %v741 = vpop.f32.mrf.mxu0
        %v742 = vadd.f32 %v723, %v741
        %743 = vmatmul.bf16.gmra.mxu0 %v380
        %v744 = vpop.f32.mrf.mxu0
        %v745 = vadd.f32 %v726, %v744
        %v746 = vpop.f32.mrf.mxu0
        %v747 = vadd.f32 %v728, %v746
        %748 = vdwg.mxu0
        %749 = vmatpush.bf16.msra.mxu0 %v629
        %750 = vmatpush.bf16.msra.mxu0 %v627
        %751 = vmatpush.bf16.msra.mxu0 %v625
        %752 = vmatpush.bf16.msra.mxu0 %v623
        %753 = vmatpush.bf16.msra.mxu0 %v621
        %754 = vmatpush.bf16.msra.mxu0 %v619
        %755 = vmatpush.bf16.msra.mxu0 %v617
        %756 = vmatpush.bf16.msra.mxu0 %v615
        %757 = vmatmul.bf16.gmra.mxu0 %v377
        %v758 = vpop.f32.mrf.mxu0
        %v759 = vadd.f32 %v740, %v758
        %v760 = vpop.f32.mrf.mxu0
        %v761 = vadd.f32 %v742, %v760
        %762 = vmatmul.bf16.gmra.mxu0 %v381
        %v763 = vpop.f32.mrf.mxu0
        %v764 = vadd.f32 %v745, %v763
        %v765 = vpop.f32.mrf.mxu0
        %v766 = vadd.f32 %v747, %v765
        %767 = vdwg.mxu0
        %768 = vmatpush.bf16.msra.mxu0 %v645
        %769 = vmatpush.bf16.msra.mxu0 %v643
        %770 = vmatpush.bf16.msra.mxu0 %v641
        %771 = vmatpush.bf16.msra.mxu0 %v639
        %772 = vmatpush.bf16.msra.mxu0 %v637
        %773 = vmatpush.bf16.msra.mxu0 %v635
        %774 = vmatpush.bf16.msra.mxu0 %v633
        %775 = vmatpush.bf16.msra.mxu0 %v631
        %776 = vmatmul.bf16.gmra.mxu0 %v378
        %v777 = vpop.f32.mrf.mxu0
        %v778 = vadd.f32 %v759, %v777
        %v779 = vpop.f32.mrf.mxu0
        %v780 = vadd.f32 %v761, %v779
        %781 = vmatmul.bf16.gmra.mxu0 %v382
        %v782 = vpop.f32.mrf.mxu0
        %v783 = vadd.f32 %v764, %v782
        %v784 = vpop.f32.mrf.mxu0
        %v785 = vadd.f32 %v766, %v784
        %786 = vdwg.mxu0
        %787 = vmatpush.bf16.msra.mxu0 %v598
        %788 = vmatpush.bf16.msra.mxu0 %v596
        %789 = vmatpush.bf16.msra.mxu0 %v594
        %790 = vmatpush.bf16.msra.mxu0 %v592
        %791 = vmatpush.bf16.msra.mxu0 %v590
        %792 = vmatpush.bf16.msra.mxu0 %v588
        %793 = vmatpush.bf16.msra.mxu0 %v586
        %794 = vmatpush.bf16.msra.mxu0 %v584
        %795 = vmatmul.bf16.gmra.mxu0 %v375
        %v796 = vpop.f32.mrf.mxu0
        %v797 = vadd.f32 0.0, %v796
        %v798 = vpop.f32.mrf.mxu0
        %v799 = vadd.f32 0.0, %v798
        %800 = vmatmul.bf16.gmra.mxu0 %v379
        %v801 = vpop.f32.mrf.mxu0
        %v802 = vadd.f32 0.0, %v801
        %v803 = vpop.f32.mrf.mxu0
        %v804 = vadd.f32 0.0, %v803
        %805 = vdwg.mxu0
        %806 = vmatpush.bf16.msra.mxu0 %v614
        %807 = vmatpush.bf16.msra.mxu0 %v612
        %808 = vmatpush.bf16.msra.mxu0 %v610
        %809 = vmatpush.bf16.msra.mxu0 %v608
        %810 = vmatpush.bf16.msra.mxu0 %v606
        %811 = vmatpush.bf16.msra.mxu0 %v604
        %812 = vmatpush.bf16.msra.mxu0 %v602
        %813 = vmatpush.bf16.msra.mxu0 %v600
        %814 = vmatmul.bf16.gmra.mxu0 %v376
        %v815 = vpop.f32.mrf.mxu0
        %v816 = vadd.f32 %v797, %v815
        %v817 = vpop.f32.mrf.mxu0
        %v818 = vadd.f32 %v799, %v817
        %819 = vmatmul.bf16.gmra.mxu0 %v380
        %v820 = vpop.f32.mrf.mxu0
        %v821 = vadd.f32 %v802, %v820
        %v822 = vpop.f32.mrf.mxu0
        %v823 = vadd.f32 %v804, %v822
        %824 = vdwg.mxu0
        %825 = vmatpush.bf16.msra.mxu0 %v630
        %826 = vmatpush.bf16.msra.mxu0 %v628
        %827 = vmatpush.bf16.msra.mxu0 %v626
        %828 = vmatpush.bf16.msra.mxu0 %v624
        %829 = vmatpush.bf16.msra.mxu0 %v622
        %830 = vmatpush.bf16.msra.mxu0 %v620
        %831 = vmatpush.bf16.msra.mxu0 %v618
        %832 = vmatpush.bf16.msra.mxu0 %v616
        %833 = vmatmul.bf16.gmra.mxu0 %v377
        %v834 = vpop.f32.mrf.mxu0
        %v835 = vadd.f32 %v816, %v834
        %v836 = vpop.f32.mrf.mxu0
        %v837 = vadd.f32 %v818, %v836
        %838 = vmatmul.bf16.gmra.mxu0 %v381
        %v839 = vpop.f32.mrf.mxu0
        %v840 = vadd.f32 %v821, %v839
        %v841 = vpop.f32.mrf.mxu0
        %v842 = vadd.f32 %v823, %v841
        %843 = vdwg.mxu0
        %844 = vmatpush.bf16.msra.mxu0 %v646
        %845 = vmatpush.bf16.msra.mxu0 %v644
        %846 = vmatpush.bf16.msra.mxu0 %v642
        %847 = vmatpush.bf16.msra.mxu0 %v640
        %848 = vmatpush.bf16.msra.mxu0 %v638
        %849 = vmatpush.bf16.msra.mxu0 %v636
        %850 = vmatpush.bf16.msra.mxu0 %v634
        %851 = vmatpush.bf16.msra.mxu0 %v632
        %852 = vmatmul.bf16.gmra.mxu0 %v378
        %v853 = vpop.f32.mrf.mxu0
        %v854 = vadd.f32 %v835, %v853
        %v855 = vpop.f32.mrf.mxu0
        %v856 = vadd.f32 %v837, %v855
        %857 = vmatmul.bf16.gmra.mxu0 %v382
        %v858 = vpop.f32.mrf.mxu0
        %v859 = vadd.f32 %v840, %v858
        %v860 = vpop.f32.mrf.mxu0
        %v861 = vadd.f32 %v842, %v860
        %862 = vdwg.mxu0
        %v863 = vadd.f32 %v271, %v778
        %v864 = vadd.f32 %v272, %v854
        %v865 = vadd.f32 %v273, %v780
        %v866 = vadd.f32 %v274, %v856
        %v867 = vadd.f32 %v275, %v783
        %v868 = vadd.f32 %v276, %v859
        %v869 = vadd.f32 %v277, %v785
        %v870 = vadd.f32 %v278, %v861
        %871 = vst [vmem:[#allocation2] sm:$0xff] %v863
        %872 = vst [vmem:[#allocation2 + $0x8] sm:$0xff] %v864
        %873 = vst [vmem:[#allocation2 + $0x10] sm:$0xff] %v865
        %874 = vst [vmem:[#allocation2 + $0x18] sm:$0xff] %v866
        %875 = vst [vmem:[#allocation2 + $0x20] sm:$0xff] %v867
        %876 = vst [vmem:[#allocation2 + $0x28] sm:$0xff] %v868
        %877 = vst [vmem:[#allocation2 + $0x30] sm:$0xff] %v869
        %878 = vst [vmem:[#allocation2 + $0x38] sm:$0xff] %v870
        %p879 = scmp.eq.s32.totalorder %s20, 3
        // Predicated region
        $region56: #{image_discriminator.15} parent=46 // pred_check
          %p880 = pneg %p879
        $region57: #{image_discriminator.15} parent=46 // pred_check_branch
          %882 = sbr.rel (%p880) target = $region59
        $region58: #{image_discriminator.15} parent=46 // pred_region
          %v883 = vld [vmem:[#allocation2] sm:$0xff]
          %v884 = vld [vmem:[#allocation2 + $0x8] sm:$0xff]
          %v885 = vld [vmem:[#allocation2 + $0x10] sm:$0xff]
          %v886 = vld [vmem:[#allocation2 + $0x18] sm:$0xff]
          %v887 = vld [vmem:[#allocation2 + $0x20] sm:$0xff]
          %v888 = vld [vmem:[#allocation2 + $0x28] sm:$0xff]
          %v889 = vld [vmem:[#allocation2 + $0x30] sm:$0xff]
          %v890 = vld [vmem:[#allocation2 + $0x38] sm:$0xff]
          %v891 = vpack.c.bf16 %v884, %v883
          %v892 = vpack.c.bf16 %v886, %v885
          %v893 = vpack.c.bf16 %v888, %v887
          %v894 = vpack.c.bf16 %v890, %v889
          %895 = vst [vmem:[%s256] sm:$0xff] %v891
          %896 = vst [vmem:[%s256 + $0x8] sm:$0xff] %v892
          %897 = vst [vmem:[%s256 + $0x10] sm:$0xff] %v893
          %898 = vst [vmem:[%s256 + $0x18] sm:$0xff] %v894
        $region59: #{image_discriminator.15} parent=46 // pred_fallthru
          _
        %s899 = smul.u32 4, %s18
        %s900 = smul.u32 2, %s19
        %p901 = scmp.lt.s32.totalorder %s899, 3
        %s902 = scalar_select %p901, %s899, 3
        %p903 = scmp.lt.s32.totalorder %s900, 1
        %s904 = scalar_select %p903, %s900, 1
        %s905 = smul.addr %s902, 2
        %s906 = sadd.s32 %s904, %s905
        %s907 = smul.addr %s906, 4
        %s908 = scalar_lea.vmem %s2, %s907
        // Predicated region
        $region60: #{image_discriminator.15} parent=46 // pred_check
          %p909 = pneg %p108
        $region61: #{image_discriminator.15} parent=46 // pred_check_branch
          %911 = sbr.rel (%p909) target = $region63
        $region62: #{image_discriminator.15} parent=46 // pred_region
          %s912 = smul.u32 4, %s18
          %s913 = smul.u32 2, %s19
        $region63: #{image_discriminator.15} parent=46 // pred_fallthru
          _
        // Predicated region
        $region64: #{image_discriminator.15} parent=46 // pred_check
          %p914 = pneg %p108
        $region65: #{image_discriminator.15} parent=46 // pred_check_branch
          %916 = sbr.rel (%p914) target = $region67
        $region66: #{image_discriminator.15} parent=46 // pred_region
          %s917 = smul.u32 4, %s18
          %s918 = smul.u32 2, %s19
          %p919 = scmp.lt.s32.totalorder %s917, 3
          %s920 = scalar_select %p919, %s917, 3
          %p921 = scmp.lt.s32.totalorder %s918, 1
          %s922 = scalar_select %p921, %s918, 1
          %s923 = smul.addr %s920, 2
          %s924 = sadd.s32 %s922, %s923
          %s925 = smul.addr %s924, 4
          %s926 = scalar_lea.vmem %s2, %s925
        $region67: #{image_discriminator.15} parent=46 // pred_fallthru
          _
      $region47: #{image_discriminator.15} parent=5 // pred_fallthru
        _
      %p927 = scmp.le.s32.totalorder 2, %s8
      // Predicated region
      $region68: #{image_discriminator.15} parent=5 // pred_check
        %p928 = pneg %p927
      $region69: #{image_discriminator.15} parent=5 // pred_check_branch
        %930 = sbr.rel (%p928) target = $region71
      $region70: #{image_discriminator.15} parent=5 // pred_region
        %s931 = ssub.s32 %s8, 2
      $region71: #{image_discriminator.15} parent=5 // pred_fallthru
        _
    $region6: #{image_discriminator.15} parent=1 // loop_footer
      %s12 = sadd.s32 1, %s8
    $region7: #{image_discriminator.15} parent=1 // loop_footer_branch
      %7 = sbr.rel target = $region3
    $region8: #{image_discriminator.15} parent=1 // loop_exit
      _

// kernel: image_discriminator.17
$region0: #{image_discriminator.17}
  #allocation0 [shape = 'u32[]', space=smem, size = 0x4, offset = 0x4, fixed_abs, tag = 'smem constant byte address 0x4 - core index']
  #allocation1 [shape = 'u32[72,128]{1,0:T(1,128)}', space=vmem, size = 0x9000, scoped, tag = 'internal scratch']
  %s0 = inlined_call_operand.vmem [shape: bf16[2,16,256], index: 0, kind: input, shape index: {}]
  %s1 = inlined_call_operand.vmem [shape: f32[2,1,256], index: 1, kind: input, shape index: {}]
  %s2 = inlined_call_operand.vmem [shape: f32[2,1,256], index: 2, kind: input, shape index: {}]
  %s3 = inlined_call_operand.vmem [shape: bf16[2,16,256], index: 3, kind: output, shape index: {}]
  %s4 = sld [smem:[#allocation0]]
  $region45: #{image_discriminator.17} parent=0
    _
  %s6 = ssub.s32 1, %s4
  %s7 = scalar_select 0, %s6, %s4
  loop: start=0, step=1, limit=4
  $region2: #{image_discriminator.17} parent=0 // loop_pre_header
    _
  $region3: #{image_discriminator.17} parent=0 // loop_header
    %s9 = sphi 0, %s13
    %p10 = scmp.ge.s32.totalorder %s9, 4
    %s16 = sphi 0, %s35
    %s17 = sphi 0, %s31
    %s18 = sphi 0, %s27
    %s19 = sphi 0, %s16
    %s20 = sphi 0, %s17
    %s21 = sphi 0, %s18
    %s22 = sphi 0, %s19
    %s23 = sphi 0, %s20
    %s24 = sphi 0, %s21
    %s42 = sphi 0, %s44
    %s45 = sphi 0, %s42
    %s46 = sphi 0, %s45
    %s62 = sphi 0, %s46
    %s70 = sphi 0, %s72
    %s73 = sphi 0, %s70
    %s74 = sphi 0, %s73
    %s90 = sphi 0, %s74
    %s98 = sphi 0, %s100
    %s101 = sphi 0, %s98
    %s102 = sphi 0, %s101
    %s118 = sphi 0, %s102
    %s128 = sphi 0, %s130
    %s131 = sphi 0, %s128
    %s132 = sphi 0, %s131
    %s148 = sphi 0, %s132
  $region4: #{image_discriminator.17} parent=0 // loop_header_branch
    %12 = sbr.rel (%p10) target = $region8
  $region5: #{image_discriminator.17} parent=0 // loop_body
    %s14 = ssub.s32 %s9, 1
    %s15 = ssub.s32 %s9, 2
    %s25 = sadd.s32 1, %s18
    %p26 = scmp.ge.s32.totalorder %s25, 1
    %s27 = scalar_select %p26, 0, %s25
    %s28 = sadd.s32 1, %s17
    %s29 = scalar_select %p26, %s28, %s17
    %p30 = scmp.ge.s32.totalorder %s29, 1
    %s31 = scalar_select %p30, 0, %s29
    %s32 = sadd.s32 1, %s16
    %s33 = scalar_select %p30, %s32, %s16
    %p34 = scmp.ge.s32.totalorder %s33, 2
    %s35 = scalar_select %p34, 0, %s33
    %s36 = ssub.s32 %s16, %s35
    %s37 = ssub.s32 %s18, %s27
    %s38 = sor.u32 %s36, %s37
    %s39 = ssub.s32 %s17, %s31
    %s40 = sor.u32 %s38, %s39
    %p41 = scmp.eq.s32.totalorder %s40, 0
    %s43 = sadd.s32 %s42, 1
    %s44 = scalar_select %p41, %s42, %s43
    %p47 = pneg %p41
    %p48 = scmp.eq.s32.totalorder %s9, 1
    %p49 = por %p47, %p48
    %p50 = scmp.ne.s32.totalorder %s42, %s45
    %p51 = scmp.eq.s32.totalorder %s9, 0
    %p52 = por %p50, %p51
    %p53 = scmp.ne.s32.totalorder %s42, %s45
    %p54 = scmp.eq.s32.totalorder %s14, 1
    %p55 = por %p53, %p54
    %p56 = scmp.ne.s32.totalorder %s45, %s46
    %p57 = scmp.eq.s32.totalorder %s14, 0
    %p58 = por %p56, %p57
    %p59 = scmp.ne.s32.totalorder %s45, %s46
    %p60 = scmp.eq.s32.totalorder %s15, 1
    %p61 = por %p59, %p60
    %p63 = scmp.ne.s32.totalorder %s46, %s62
    %p64 = scmp.eq.s32.totalorder %s15, 0
    %p65 = por %p63, %p64
    %s66 = ssub.s32 %s16, %s35
    %s67 = ssub.s32 %s17, %s31
    %s68 = sor.u32 %s66, %s67
    %p69 = scmp.eq.s32.totalorder %s68, 0
    %s71 = sadd.s32 %s70, 1
    %s72 = scalar_select %p69, %s70, %s71
    %p75 = pneg %p69
    %p76 = scmp.eq.s32.totalorder %s9, 1
    %p77 = por %p75, %p76
    %p78 = scmp.ne.s32.totalorder %s70, %s73
    %p79 = scmp.eq.s32.totalorder %s9, 0
    %p80 = por %p78, %p79
    %p81 = scmp.ne.s32.totalorder %s70, %s73
    %p82 = scmp.eq.s32.totalorder %s14, 1
    %p83 = por %p81, %p82
    %p84 = scmp.ne.s32.totalorder %s73, %s74
    %p85 = scmp.eq.s32.totalorder %s14, 0
    %p86 = por %p84, %p85
    %p87 = scmp.ne.s32.totalorder %s73, %s74
    %p88 = scmp.eq.s32.totalorder %s15, 1
    %p89 = por %p87, %p88
    %p91 = scmp.ne.s32.totalorder %s74, %s90
    %p92 = scmp.eq.s32.totalorder %s15, 0
    %p93 = por %p91, %p92
    %s94 = ssub.s32 %s16, %s35
    %s95 = ssub.s32 %s17, %s31
    %s96 = sor.u32 %s94, %s95
    %p97 = scmp.eq.s32.totalorder %s96, 0
    %s99 = sadd.s32 %s98, 1
    %s100 = scalar_select %p97, %s98, %s99
    %p103 = pneg %p97
    %p104 = scmp.eq.s32.totalorder %s9, 1
    %p105 = por %p103, %p104
    %p106 = scmp.ne.s32.totalorder %s98, %s101
    %p107 = scmp.eq.s32.totalorder %s9, 0
    %p108 = por %p106, %p107
    %p109 = scmp.ne.s32.totalorder %s98, %s101
    %p110 = scmp.eq.s32.totalorder %s14, 1
    %p111 = por %p109, %p110
    %p112 = scmp.ne.s32.totalorder %s101, %s102
    %p113 = scmp.eq.s32.totalorder %s14, 0
    %p114 = por %p112, %p113
    %p115 = scmp.ne.s32.totalorder %s101, %s102
    %p116 = scmp.eq.s32.totalorder %s15, 1
    %p117 = por %p115, %p116
    %p119 = scmp.ne.s32.totalorder %s102, %s118
    %p120 = scmp.eq.s32.totalorder %s15, 0
    %p121 = por %p119, %p120
    %s122 = ssub.s32 %s16, %s35
    %s123 = ssub.s32 %s18, %s27
    %s124 = sor.u32 %s122, %s123
    %s125 = ssub.s32 %s17, %s31
    %s126 = sor.u32 %s124, %s125
    %p127 = scmp.eq.s32.totalorder %s126, 0
    %s129 = sadd.s32 %s128, 1
    %s130 = scalar_select %p127, %s128, %s129
    %p133 = pneg %p127
    %p134 = scmp.eq.s32.totalorder %s9, 1
    %p135 = por %p133, %p134
    %p136 = scmp.ne.s32.totalorder %s128, %s131
    %p137 = scmp.eq.s32.totalorder %s9, 0
    %p138 = por %p136, %p137
    %p139 = scmp.ne.s32.totalorder %s128, %s131
    %p140 = scmp.eq.s32.totalorder %s14, 1
    %p141 = por %p139, %p140
    %p142 = scmp.ne.s32.totalorder %s131, %s132
    %p143 = scmp.eq.s32.totalorder %s14, 0
    %p144 = por %p142, %p143
    %p145 = scmp.ne.s32.totalorder %s131, %s132
    %p146 = scmp.eq.s32.totalorder %s15, 1
    %p147 = por %p145, %p146
    %p149 = scmp.ne.s32.totalorder %s132, %s148
    %p150 = scmp.eq.s32.totalorder %s15, 0
    %p151 = por %p149, %p150
    %p152 = scmp.le.s32.totalorder 1, %s9
    %p153 = scmp.lt.s32.totalorder %s9, 3
    %p154 = pnand %p152, %p153
    %p155 = pneg %p154
    // Predicated region
    $region9: #{image_discriminator.17} parent=5 // pred_check
      _
    $region10: #{image_discriminator.17} parent=5 // pred_check_branch
      %157 = sbr.rel (%p154) target = $region12
    $region11: #{image_discriminator.17} parent=5 // pred_region
      %s158 = ssub.s32 %s9, 1
    $region12: #{image_discriminator.17} parent=5 // pred_fallthru
      _
    %p159 = scmp.lt.s32.totalorder %s9, 2
    // Predicated region
    $region13: #{image_discriminator.17} parent=5 // pred_check
      %p160 = pneg %p159
    $region14: #{image_discriminator.17} parent=5 // pred_check_branch
      %162 = sbr.rel (%p160) target = $region16
    $region15: #{image_discriminator.17} parent=5 // pred_region
      // Predicated region
      $region17: #{image_discriminator.17} parent=15 // pred_check
        %p163 = pneg %p52
      $region18: #{image_discriminator.17} parent=15 // pred_check_branch
        %165 = sbr.rel (%p163) target = $region20
      $region19: #{image_discriminator.17} parent=15 // pred_region
        %s166 = smul.u32 2, %s18
        %s167 = smul.u32 2, %s17
        %p168 = scmp.lt.s32.totalorder %s16, 1
        %s169 = scalar_select %p168, %s16, 1
        %p170 = scmp.lt.s32.totalorder %s166, 1
        %s171 = scalar_select %p170, %s166, 1
        %p172 = scmp.lt.s32.totalorder %s167, 1
        %s173 = scalar_select %p172, %s167, 1
        %s174 = smul.addr %s171, 2
        %s175 = sadd.s32 %s173, %s174
        %s176 = smul.addr %s169, 4
        %s177 = sadd.s32 %s175, %s176
        %s178 = smul.addr %s177, 4
        %s179 = scalar_lea.vmem %s0, %s178
        %s180 = smul.u32 2, %s18
        %s181 = smul.u32 2, %s17
      $region20: #{image_discriminator.17} parent=15 // pred_fallthru
        _
      // Predicated region
      $region21: #{image_discriminator.17} parent=15 // pred_check
        %p182 = pneg %p80
      $region22: #{image_discriminator.17} parent=15 // pred_check_branch
        %184 = sbr.rel (%p182) target = $region24
      $region23: #{image_discriminator.17} parent=15 // pred_region
        %s185 = smul.u32 2, %s17
        %p186 = scmp.lt.s32.totalorder %s16, 1
        %s187 = scalar_select %p186, %s16, 1
        %p188 = scmp.lt.s32.totalorder %s185, 1
        %s189 = scalar_select %p188, %s185, 1
        %s190 = smul.addr %s187, 2
        %s191 = sadd.s32 %s189, %s190
        %s192 = scalar_lea.vmem %s1, %s191
        %s193 = smul.u32 2, %s17
      $region24: #{image_discriminator.17} parent=15 // pred_fallthru
        _
      // Predicated region
      $region25: #{image_discriminator.17} parent=15 // pred_check
        %p194 = pneg %p108
      $region26: #{image_discriminator.17} parent=15 // pred_check_branch
        %196 = sbr.rel (%p194) target = $region28
      $region27: #{image_discriminator.17} parent=15 // pred_region
        %s197 = smul.u32 2, %s17
        %p198 = scmp.lt.s32.totalorder %s16, 1
        %s199 = scalar_select %p198, %s16, 1
        %p200 = scmp.lt.s32.totalorder %s197, 1
        %s201 = scalar_select %p200, %s197, 1
        %s202 = smul.addr %s199, 2
        %s203 = sadd.s32 %s201, %s202
        %s204 = scalar_lea.vmem %s2, %s203
        %s205 = smul.u32 2, %s17
      $region28: #{image_discriminator.17} parent=15 // pred_fallthru
        _
    $region16: #{image_discriminator.17} parent=5 // pred_fallthru
      _
    %p206 = scmp.le.s32.totalorder 1, %s9
    %p207 = scmp.lt.s32.totalorder %s9, 3
    %p208 = pnand %p206, %p207
    %p209 = pneg %p208
    // Predicated region
    $region29: #{image_discriminator.17} parent=5 // pred_check
      _
    $region30: #{image_discriminator.17} parent=5 // pred_check_branch
      %211 = sbr.rel (%p208) target = $region32
    $region31: #{image_discriminator.17} parent=5 // pred_region
      %s212 = ssub.s32 %s9, 1
      %s213 = smul.u32 2, %s21
      %s214 = smul.u32 2, %s20
      %p215 = scmp.lt.s32.totalorder %s19, 1
      %s216 = scalar_select %p215, %s19, 1
      %p217 = scmp.lt.s32.totalorder %s213, 1
      %s218 = scalar_select %p217, %s213, 1
      %p219 = scmp.lt.s32.totalorder %s214, 1
      %s220 = scalar_select %p219, %s214, 1
      %s221 = smul.addr %s218, 2
      %s222 = sadd.s32 %s220, %s221
      %s223 = smul.addr %s216, 4
      %s224 = sadd.s32 %s222, %s223
      %s225 = smul.addr %s224, 4
      %s226 = scalar_lea.vmem %s0, %s225
      %p227 = pneg %p58
      %p228 = pneg %p55
      %s229 = smul.u32 2, %s20
      %p230 = scmp.lt.s32.totalorder %s19, 1
      %s231 = scalar_select %p230, %s19, 1
      %p232 = scmp.lt.s32.totalorder %s229, 1
      %s233 = scalar_select %p232, %s229, 1
      %s234 = smul.addr %s231, 2
      %s235 = sadd.s32 %s233, %s234
      %s236 = scalar_lea.vmem %s1, %s235
      %p237 = pneg %p86
      %p238 = pneg %p83
      %s239 = smul.u32 2, %s20
      %p240 = scmp.lt.s32.totalorder %s19, 1
      %s241 = scalar_select %p240, %s19, 1
      %p242 = scmp.lt.s32.totalorder %s239, 1
      %s243 = scalar_select %p242, %s239, 1
      %s244 = smul.addr %s241, 2
      %s245 = sadd.s32 %s243, %s244
      %s246 = scalar_lea.vmem %s2, %s245
      %p247 = pneg %p114
      %p248 = pneg %p111
      %p249 = pneg %p144
      %p250 = pneg %p141
      %s251 = smul.u32 2, %s21
      %s252 = smul.u32 2, %s20
      %p253 = scmp.lt.s32.totalorder %s19, 1
      %s254 = scalar_select %p253, %s19, 1
      %p255 = scmp.lt.s32.totalorder %s251, 1
      %s256 = scalar_select %p255, %s251, 1
      %p257 = scmp.lt.s32.totalorder %s252, 1
      %s258 = scalar_select %p257, %s252, 1
      %s259 = smul.addr %s256, 2
      %s260 = sadd.s32 %s258, %s259
      %s261 = smul.addr %s254, 4
      %s262 = sadd.s32 %s260, %s261
      %s263 = smul.addr %s262, 4
      %s264 = scalar_lea.vmem %s3, %s263
      %s265 = smul.u32 2, %s21
      %s266 = smul.u32 2, %s20
      %p267 = scmp.lt.s32.totalorder %s19, 1
      %s268 = scalar_select %p267, %s19, 1
      %p269 = scmp.lt.s32.totalorder %s265, 1
      %s270 = scalar_select %p269, %s265, 1
      %p271 = scmp.lt.s32.totalorder %s266, 1
      %s272 = scalar_select %p271, %s266, 1
      %s273 = smul.addr %s270, 2
      %s274 = sadd.s32 %s272, %s273
      %s275 = smul.addr %s268, 4
      %s276 = sadd.s32 %s274, %s275
      %s277 = smul.addr %s276, 4
      %s278 = scalar_lea.vmem %s0, %s277
      %s279 = smul.u32 2, %s21
      %s280 = smul.u32 2, %s20
      %s281 = smul.u32 2, %s20
      %p282 = scmp.lt.s32.totalorder %s19, 1
      %s283 = scalar_select %p282, %s19, 1
      %p284 = scmp.lt.s32.totalorder %s281, 1
      %s285 = scalar_select %p284, %s281, 1
      %s286 = smul.addr %s283, 2
      %s287 = sadd.s32 %s285, %s286
      %s288 = scalar_lea.vmem %s1, %s287
      %s289 = smul.u32 2, %s20
      %s290 = smul.u32 2, %s20
      %p291 = scmp.lt.s32.totalorder %s19, 1
      %s292 = scalar_select %p291, %s19, 1
      %p293 = scmp.lt.s32.totalorder %s290, 1
      %s294 = scalar_select %p293, %s290, 1
      %s295 = smul.addr %s292, 2
      %s296 = sadd.s32 %s294, %s295
      %s297 = scalar_lea.vmem %s2, %s296
      %s298 = smul.u32 2, %s20
      %s299 = smul.u32 2, %s21
      %s300 = smul.u32 2, %s20
      %p301 = scmp.lt.s32.totalorder %s19, 1
      %s302 = scalar_select %p301, %s19, 1
      %p303 = scmp.lt.s32.totalorder %s299, 1
      %s304 = scalar_select %p303, %s299, 1
      %p305 = scmp.lt.s32.totalorder %s300, 1
      %s306 = scalar_select %p305, %s300, 1
      %s307 = smul.addr %s304, 2
      %s308 = sadd.s32 %s306, %s307
      %s309 = smul.addr %s302, 4
      %s310 = sadd.s32 %s308, %s309
      %s311 = smul.addr %s310, 4
      %s312 = scalar_lea.vmem %s3, %s311
      %s313 = smul.u32 2, %s21
      %s314 = smul.u32 2, %s20
      %v315 = vld [vmem:[%s278] sm:$0xff]
      %v316 = vld [vmem:[%s278 + $0x8] sm:$0xff]
      %v317 = vunpack.c.l.bf16 %v315
      %v318 = vunpack.c.h.bf16 %v315
      %v319 = vunpack.c.l.bf16 %v316
      %v320 = vunpack.c.h.bf16 %v316
      %v321 = vld [vmem:[%s288] sm:$0x3]
      %v323 = vperm.slane %v321, 0
      %v324 = vperm.slane %v321, 1
      %v327 = vsub.f32 %v317, %v323
      %v328 = vsub.f32 %v318, %v324
      %v329 = vsub.f32 %v319, %v323
      %v330 = vsub.f32 %v320, %v324
      %v331 = vld [vmem:[%s297] sm:$0x3]
      %v333 = vperm.slane %v331, 0
      %v334 = vperm.slane %v331, 1
      %v337 = vmul.f32 %v327, %v333
      %v338 = vmul.f32 %v328, %v334
      %v339 = vmul.f32 %v329, %v333
      %v340 = vmul.f32 %v330, %v334
      %vm341 = vcmp.gt.f32.partialorder %v337, 0.0
      %vm342 = vcmp.gt.f32.partialorder %v338, 0.0
      %vm343 = vcmp.gt.f32.partialorder %v339, 0.0
      %vm344 = vcmp.gt.f32.partialorder %v340, 0.0
      %v345 = vmul.f32 %v337, 0.2
      %v346 = vmul.f32 %v338, 0.2
      %v347 = vmul.f32 %v339, 0.2
      %v348 = vmul.f32 %v340, 0.2
      %v349 = vsel %vm341, %v337, %v345
      %v350 = vsel %vm342, %v338, %v346
      %v351 = vsel %vm343, %v339, %v347
      %v352 = vsel %vm344, %v340, %v348
      %v353 = vpack.c.bf16 %v350, %v349
      %v354 = vpack.c.bf16 %v352, %v351
      %355 = vst [vmem:[%s312] sm:$0xff] %v353
      %356 = vst [vmem:[%s312 + $0x8] sm:$0xff] %v354
      %s357 = smul.u32 2, %s21
      %s358 = smul.u32 2, %s20
      %p359 = scmp.lt.s32.totalorder %s19, 1
      %s360 = scalar_select %p359, %s19, 1
      %p361 = scmp.lt.s32.totalorder %s357, 1
      %s362 = scalar_select %p361, %s357, 1
      %p363 = scmp.lt.s32.totalorder %s358, 1
      %s364 = scalar_select %p363, %s358, 1
      %s365 = smul.addr %s362, 2
      %s366 = sadd.s32 %s364, %s365
      %s367 = smul.addr %s360, 4
      %s368 = sadd.s32 %s366, %s367
      %s369 = smul.addr %s368, 4
      %s370 = scalar_lea.vmem %s3, %s369
      // Predicated region
      $region33: #{image_discriminator.17} parent=31 // pred_check
        %p371 = pneg %p141
      $region34: #{image_discriminator.17} parent=31 // pred_check_branch
        %373 = sbr.rel (%p371) target = $region36
      $region35: #{image_discriminator.17} parent=31 // pred_region
        %s374 = smul.u32 2, %s21
        %s375 = smul.u32 2, %s20
      $region36: #{image_discriminator.17} parent=31 // pred_fallthru
        _
    $region32: #{image_discriminator.17} parent=5 // pred_fallthru
      _
    %p376 = scmp.le.s32.totalorder 2, %s9
    // Predicated region
    $region37: #{image_discriminator.17} parent=5 // pred_check
      %p377 = pneg %p376
    $region38: #{image_discriminator.17} parent=5 // pred_check_branch
      %379 = sbr.rel (%p377) target = $region40
    $region39: #{image_discriminator.17} parent=5 // pred_region
      %s380 = ssub.s32 %s9, 2
      // Predicated region
      $region41: #{image_discriminator.17} parent=39 // pred_check
        %p381 = pneg %p147
      $region42: #{image_discriminator.17} parent=39 // pred_check_branch
        %383 = sbr.rel (%p381) target = $region44
      $region43: #{image_discriminator.17} parent=39 // pred_region
        %s384 = smul.u32 2, %s24
        %s385 = smul.u32 2, %s23
        %p386 = scmp.lt.s32.totalorder %s22, 1
        %s387 = scalar_select %p386, %s22, 1
        %p388 = scmp.lt.s32.totalorder %s384, 1
        %s389 = scalar_select %p388, %s384, 1
        %p390 = scmp.lt.s32.totalorder %s385, 1
        %s391 = scalar_select %p390, %s385, 1
        %s392 = smul.addr %s389, 2
        %s393 = sadd.s32 %s391, %s392
        %s394 = smul.addr %s387, 4
        %s395 = sadd.s32 %s393, %s394
        %s396 = smul.addr %s395, 4
        %s397 = scalar_lea.vmem %s3, %s396
      $region44: #{image_discriminator.17} parent=39 // pred_fallthru
        _
    $region40: #{image_discriminator.17} parent=5 // pred_fallthru
      _
  $region6: #{image_discriminator.17} parent=0 // loop_footer
    %s13 = sadd.s32 1, %s9
  $region7: #{image_discriminator.17} parent=0 // loop_footer_branch
    %8 = sbr.rel target = $region3
  $region8: #{image_discriminator.17} parent=0 // loop_exit
    _

// kernel: image_discriminator.18
$region0: #{image_discriminator.18}
  #allocation0 [shape = 'u32[]', space=smem, size = 0x4, offset = 0x4, fixed_abs, tag = 'smem constant byte address 0x4 - core index']
  #allocation1 [shape = 'u32[72,128]{1,0:T(1,128)}', space=vmem, size = 0x9000, scoped, tag = 'internal scratch']
  #allocation2 [shape = 'f32[24,512]{1,0:T(8,128)}', space=vmem, size = 0xc000, scoped, tag = 'scratch operand']
  %s0 = inlined_call_operand.vmem [shape: bf16[24,4096], index: 0, kind: input, shape index: {}]
  %s1 = inlined_call_operand.vmem [shape: bf16[4096,512], index: 1, kind: input, shape index: {}]
  %s2 = inlined_call_operand.vmem [shape: bf16[24,512], index: 2, kind: output, shape index: {}]
  %s3 = sld [smem:[#allocation0]]
  $region72: #{image_discriminator.18} parent=0
    _
  %s5 = ssub.s32 1, %s3
  %s6 = scalar_select 0, %s5, %s3
  $region1: #{image_discriminator.18} parent=0
    #allocation3 [shape = 'u8[49152]{0}', space=vmem, size = 0xc000, scoped, tag = 'input window, operand 0']
    loop: start=0, step=1, limit=10
    $region2: #{image_discriminator.18} parent=1 // loop_pre_header
      _
    $region3: #{image_discriminator.18} parent=1 // loop_header
      %s8 = sphi 0, %s12
      %p9 = scmp.ge.s32.totalorder %s8, 10
      %s15 = sphi 0, %s34
      %s16 = sphi 0, %s30
      %s17 = sphi 0, %s26
      %s18 = sphi 0, %s15
      %s19 = sphi 0, %s16
      %s20 = sphi 0, %s17
      %s21 = sphi 0, %s18
      %s22 = sphi 0, %s19
      %s23 = sphi 0, %s20
      %s39 = sphi 0, %s41
      %s42 = sphi 0, %s39
      %s43 = sphi 0, %s42
      %s59 = sphi 0, %s43
      %s67 = sphi 0, %s69
      %s70 = sphi 0, %s67
      %s71 = sphi 0, %s70
      %s87 = sphi 0, %s71
      %s95 = sphi 0, %s97
      %s98 = sphi 0, %s95
      %s99 = sphi 0, %s98
      %s115 = sphi 0, %s99
    $region4: #{image_discriminator.18} parent=1 // loop_header_branch
      %11 = sbr.rel (%p9) target = $region8
    $region5: #{image_discriminator.18} parent=1 // loop_body
      %s13 = ssub.s32 %s8, 1
      %s14 = ssub.s32 %s8, 2
      %s24 = sadd.s32 1, %s17
      %p25 = scmp.ge.s32.totalorder %s24, 8
      %s26 = scalar_select %p25, 0, %s24
      %s27 = sadd.s32 1, %s16
      %s28 = scalar_select %p25, %s27, %s16
      %p29 = scmp.ge.s32.totalorder %s28, 1
      %s30 = scalar_select %p29, 0, %s28
      %s31 = sadd.s32 1, %s15
      %s32 = scalar_select %p29, %s31, %s15
      %p33 = scmp.ge.s32.totalorder %s32, 1
      %s34 = scalar_select %p33, 0, %s32
      %s35 = ssub.s32 %s15, %s34
      %s36 = ssub.s32 %s17, %s26
      %s37 = sor.u32 %s35, %s36
      %p38 = scmp.eq.s32.totalorder %s37, 0
      %s40 = sadd.s32 %s39, 1
      %s41 = scalar_select %p38, %s39, %s40
      %p44 = pneg %p38
      %p45 = scmp.eq.s32.totalorder %s8, 7
      %p46 = por %p44, %p45
      %p47 = scmp.ne.s32.totalorder %s39, %s42
      %p48 = scmp.eq.s32.totalorder %s8, 0
      %p49 = por %p47, %p48
      %p50 = scmp.ne.s32.totalorder %s39, %s42
      %p51 = scmp.eq.s32.totalorder %s13, 7
      %p52 = por %p50, %p51
      %p53 = scmp.ne.s32.totalorder %s42, %s43
      %p54 = scmp.eq.s32.totalorder %s13, 0
      %p55 = por %p53, %p54
      %p56 = scmp.ne.s32.totalorder %s42, %s43
      %p57 = scmp.eq.s32.totalorder %s14, 7
      %p58 = por %p56, %p57
      %p60 = scmp.ne.s32.totalorder %s43, %s59
      %p61 = scmp.eq.s32.totalorder %s14, 0
      %p62 = por %p60, %p61
      %s63 = ssub.s32 %s17, %s26
      %s64 = ssub.s32 %s16, %s30
      %s65 = sor.u32 %s63, %s64
      %p66 = scmp.eq.s32.totalorder %s65, 0
      %s68 = sadd.s32 %s67, 1
      %s69 = scalar_select %p66, %s67, %s68
      %p72 = pneg %p66
      %p73 = scmp.eq.s32.totalorder %s8, 7
      %p74 = por %p72, %p73
      %p75 = scmp.ne.s32.totalorder %s67, %s70
      %p76 = scmp.eq.s32.totalorder %s8, 0
      %p77 = por %p75, %p76
      %p78 = scmp.ne.s32.totalorder %s67, %s70
      %p79 = scmp.eq.s32.totalorder %s13, 7
      %p80 = por %p78, %p79
      %p81 = scmp.ne.s32.totalorder %s70, %s71
      %p82 = scmp.eq.s32.totalorder %s13, 0
      %p83 = por %p81, %p82
      %p84 = scmp.ne.s32.totalorder %s70, %s71
      %p85 = scmp.eq.s32.totalorder %s14, 7
      %p86 = por %p84, %p85
      %p88 = scmp.ne.s32.totalorder %s71, %s87
      %p89 = scmp.eq.s32.totalorder %s14, 0
      %p90 = por %p88, %p89
      %s91 = ssub.s32 %s15, %s34
      %s92 = ssub.s32 %s16, %s30
      %s93 = sor.u32 %s91, %s92
      %p94 = scmp.eq.s32.totalorder %s93, 0
      %s96 = sadd.s32 %s95, 1
      %s97 = scalar_select %p94, %s95, %s96
      %p100 = pneg %p94
      %p101 = scmp.eq.s32.totalorder %s8, 7
      %p102 = por %p100, %p101
      %p103 = scmp.ne.s32.totalorder %s95, %s98
      %p104 = scmp.eq.s32.totalorder %s8, 0
      %p105 = por %p103, %p104
      %p106 = scmp.ne.s32.totalorder %s95, %s98
      %p107 = scmp.eq.s32.totalorder %s13, 7
      %p108 = por %p106, %p107
      %p109 = scmp.ne.s32.totalorder %s98, %s99
      %p110 = scmp.eq.s32.totalorder %s13, 0
      %p111 = por %p109, %p110
      %p112 = scmp.ne.s32.totalorder %s98, %s99
      %p113 = scmp.eq.s32.totalorder %s14, 7
      %p114 = por %p112, %p113
      %p116 = scmp.ne.s32.totalorder %s99, %s115
      %p117 = scmp.eq.s32.totalorder %s14, 0
      %p118 = por %p116, %p117
      %p119 = scmp.le.s32.totalorder 1, %s8
      %p120 = scmp.lt.s32.totalorder %s8, 9
      %p121 = pnand %p119, %p120
      %p122 = pneg %p121
      // Predicated region
      $region9: #{image_discriminator.18} parent=5 // pred_check
        _
      $region10: #{image_discriminator.18} parent=5 // pred_check_branch
        %124 = sbr.rel (%p121) target = $region12
      $region11: #{image_discriminator.18} parent=5 // pred_region
        %s125 = ssub.s32 %s8, 1
      $region12: #{image_discriminator.18} parent=5 // pred_fallthru
        _
      %p126 = scmp.lt.s32.totalorder %s8, 8
      // Predicated region
      $region13: #{image_discriminator.18} parent=5 // pred_check
        %p127 = pneg %p126
      $region14: #{image_discriminator.18} parent=5 // pred_check_branch
        %129 = sbr.rel (%p127) target = $region16
      $region15: #{image_discriminator.18} parent=5 // pred_region
        // Predicated region
        $region17: #{image_discriminator.18} parent=15 // pred_check
          %p130 = pneg %p49
        $region18: #{image_discriminator.18} parent=15 // pred_check_branch
          %132 = sbr.rel (%p130) target = $region20
        $region19: #{image_discriminator.18} parent=15 // pred_region
          %s133 = sand.u32 %s39, 1
          %s134 = sand.u32 %s39, 1
          %s135 = smul.addr %s134, 48
          %s136 = scalar_lea.vmem [#allocation3], %s135
          %s137 = smul.u32 3, %s15
          %s138 = smul.u32 4, %s17
          %s139 = smul.addr %s137, 32
          %s140 = sadd.s32 %s138, %s139
          %s141 = smul.addr %s140, 4
          %s142 = scalar_lea.vmem %s0, %s141
          // Predicated region
          $region21: #{image_discriminator.18} parent=19 // pred_check
            _
          $region22: #{image_discriminator.18} parent=19 // pred_check_branch
            %144 = sbr.rel (0) target = $region24
          $region23: #{image_discriminator.18} parent=19 // pred_region
            // Predicated region
            $region25: #{image_discriminator.18} parent=23 // pred_check
              _
            $region26: #{image_discriminator.18} parent=23 // pred_check_branch
              %146 = sbr.rel (0) target = $region28
            $region27: #{image_discriminator.18} parent=23 // pred_region
              loop: start=0, step=1, limit=1
              $region29: #{image_discriminator.18} parent=27 // loop_pre_header
                _
              $region30: #{image_discriminator.18} parent=27 // loop_header
                %s148 = sphi 0, %s152
                %p149 = scmp.ge.s32.totalorder %s148, 1
                %s153 = sphi %s142, %s142
                %s154 = sphi %s136, %s136
              $region31: #{image_discriminator.18} parent=27 // loop_header_branch
                %151 = sbr.rel (%p149) target = $region35
              $region32: #{image_discriminator.18} parent=27 // loop_body
                %v155 = vld [vmem:[%s153] sm:$0xff]
                %156 = vst [vmem:[%s154] sm:$0xff] %v155
                %v157 = vld [vmem:[%s153 + $0x8] sm:$0xff]
                %158 = vst [vmem:[%s154 + $0x8] sm:$0xff] %v157
                %v159 = vld [vmem:[%s153 + $0x80] sm:$0xff]
                %160 = vst [vmem:[%s154 + $0x10] sm:$0xff] %v159
                %v161 = vld [vmem:[%s153 + $0x88] sm:$0xff]
                %162 = vst [vmem:[%s154 + $0x18] sm:$0xff] %v161
                %v163 = vld [vmem:[%s153 + $0x100] sm:$0xff]
                %164 = vst [vmem:[%s154 + $0x20] sm:$0xff] %v163
                %v165 = vld [vmem:[%s153 + $0x108] sm:$0xff]
                %166 = vst [vmem:[%s154 + $0x28] sm:$0xff] %v165
              $region33: #{image_discriminator.18} parent=27 // loop_footer
                %s152 = sadd.s32 1, %s148
              $region34: #{image_discriminator.18} parent=27 // loop_footer_branch
                %147 = sbr.rel target = $region30
              $region35: #{image_discriminator.18} parent=27 // loop_exit
                _
            $region28: #{image_discriminator.18} parent=23 // pred_fallthru
              _
            // Predicated region
            $region36: #{image_discriminator.18} parent=23 // pred_check
              _
            $region37: #{image_discriminator.18} parent=23 // pred_check_branch
              %168 = sbr.rel target = $region39
            $region38: #{image_discriminator.18} parent=23 // pred_region
              _
            $region39: #{image_discriminator.18} parent=23 // pred_fallthru
              _
          $region24: #{image_discriminator.18} parent=19 // pred_fallthru
            _
          %169 = vnop
        $region20: #{image_discriminator.18} parent=15 // pred_fallthru
          _
        // Predicated region
        $region40: #{image_discriminator.18} parent=15 // pred_check
          %p170 = pneg %p77
        $region41: #{image_discriminator.18} parent=15 // pred_check_branch
          %172 = sbr.rel (%p170) target = $region43
        $region42: #{image_discriminator.18} parent=15 // pred_region
          %s173 = smul.u32 64, %s17
          %s174 = smul.u32 4, %s16
          %p175 = scmp.lt.s32.totalorder %s173, 511
          %s176 = scalar_select %p175, %s173, 511
          %p177 = scmp.lt.s32.totalorder %s174, 3
          %s178 = scalar_select %p177, %s174, 3
          %s179 = smul.addr %s176, 4
          %s180 = sadd.s32 %s178, %s179
          %s181 = smul.addr %s180, 4
          %s182 = scalar_lea.vmem %s1, %s181
          %s183 = smul.u32 64, %s17
          %s184 = smul.u32 4, %s16
        $region43: #{image_discriminator.18} parent=15 // pred_fallthru
          _
      $region16: #{image_discriminator.18} parent=5 // pred_fallthru
        _
      %p185 = scmp.le.s32.totalorder 1, %s8
      %p186 = scmp.lt.s32.totalorder %s8, 9
      %p187 = pnand %p185, %p186
      %p188 = pneg %p187
      // Predicated region
      $region44: #{image_discriminator.18} parent=5 // pred_check
        _
      $region45: #{image_discriminator.18} parent=5 // pred_check_branch
        %190 = sbr.rel (%p187) target = $region47
      $region46: #{image_discriminator.18} parent=5 // pred_region
        %s191 = ssub.s32 %s8, 1
        %s192 = sand.u32 %s42, 1
        %s193 = sand.u32 %s42, 1
        %s194 = smul.addr %s193, 48
        %s195 = scalar_lea.vmem [#allocation3], %s194
        // Predicated region
        $region48: #{image_discriminator.18} parent=46 // pred_check
          %p196 = pneg %p55
        $region49: #{image_discriminator.18} parent=46 // pred_check_branch
          %198 = sbr.rel (%p196) target = $region51
        $region50: #{image_discriminator.18} parent=46 // pred_region
          _
        $region51: #{image_discriminator.18} parent=46 // pred_fallthru
          _
        %s199 = sand.u32 %s42, 1
        %s200 = sand.u32 %s42, 1
        %s201 = smul.addr %s200, 48
        %s202 = scalar_lea.vmem [#allocation3], %s201
        %p203 = pneg %p55
        %p204 = pneg %p52
        %s205 = smul.u32 64, %s20
        %s206 = smul.u32 4, %s19
        %p207 = scmp.lt.s32.totalorder %s205, 511
        %s208 = scalar_select %p207, %s205, 511
        %p209 = scmp.lt.s32.totalorder %s206, 3
        %s210 = scalar_select %p209, %s206, 3
        %s211 = smul.addr %s208, 4
        %s212 = sadd.s32 %s210, %s211
        %s213 = smul.addr %s212, 4
        %s214 = scalar_lea.vmem %s1, %s213
        %p215 = pneg %p83
        %p216 = pneg %p80
        %p217 = pneg %p111
        %p218 = pneg %p108
        %s219 = smul.u32 3, %s18
        %s220 = smul.u32 4, %s19
        %p221 = scmp.lt.s32.totalorder %s219, 2
        %s222 = scalar_select %p221, %s219, 2
        %p223 = scmp.lt.s32.totalorder %s220, 3
        %s224 = scalar_select %p223, %s220, 3
        %s225 = smul.addr %s222, 4
        %s226 = sadd.s32 %s224, %s225
        %s227 = smul.addr %s226, 4
        %s228 = scalar_lea.vmem %s2, %s227
        %s229 = smul.u32 3, %s18
        %s230 = smul.u32 4, %s20
        %s231 = smul.u32 64, %s20
        %s232 = smul.u32 4, %s19
        %p233 = scmp.lt.s32.totalorder %s231, 511
        %s234 = scalar_select %p233, %s231, 511
        %p235 = scmp.lt.s32.totalorder %s232, 3
        %s236 = scalar_select %p235, %s232, 3
        %s237 = smul.addr %s234, 4
        %s238 = sadd.s32 %s236, %s237
        %s239 = smul.addr %s238, 4
        %s240 = scalar_lea.vmem %s1, %s239
        %s241 = smul.u32 64, %s20
        %s242 = smul.u32 4, %s19
        %s243 = smul.u32 3, %s18
        %s244 = smul.u32 4, %s19
        %p245 = scmp.lt.s32.totalorder %s243, 2
        %s246 = scalar_select %p245, %s243, 2
        %p247 = scmp.lt.s32.totalorder %s244, 3
        %s248 = scalar_select %p247, %s244, 3
        %s249 = smul.addr %s246, 4
        %s250 = sadd.s32 %s248, %s249
        %s251 = smul.addr %s250, 4
        %s252 = scalar_lea.vmem %s2, %s251
        %s253 = smul.u32 3, %s18
        %s254 = smul.u32 4, %s19
        %p255 = scmp.eq.s32.totalorder %s20, 0
        // Predicated region
        $region52: #{image_discriminator.18} parent=46 // pred_check
          %p256 = pneg %p255
        $region53: #{image_discriminator.18} parent=46 // pred_check_branch
          %258 = sbr.rel (%p256) target = $region55
        $region54: #{image_discriminator.18} parent=46 // pred_region
          %259 = vst [vmem:[#allocation2] sm:$0xff] 0.0
          %260 = vst [vmem:[#allocation2 + $0x8] sm:$0xff] 0.0
          %261 = vst [vmem:[#allocation2 + $0x10] sm:$0xff] 0.0
          %262 = vst [vmem:[#allocation2 + $0x18] sm:$0xff] 0.0
          %263 = vst [vmem:[#allocation2 + $0x20] sm:$0xff] 0.0
          %264 = vst [vmem:[#allocation2 + $0x28] sm:$0xff] 0.0
          %265 = vst [vmem:[#allocation2 + $0x30] sm:$0xff] 0.0
          %266 = vst [vmem:[#allocation2 + $0x38] sm:$0xff] 0.0
          %267 = vst [vmem:[#allocation2 + $0x40] sm:$0xff] 0.0
          %268 = vst [vmem:[#allocation2 + $0x48] sm:$0xff] 0.0
          %269 = vst [vmem:[#allocation2 + $0x50] sm:$0xff] 0.0
          %270 = vst [vmem:[#allocation2 + $0x58] sm:$0xff] 0.0
        $region55: #{image_discriminator.18} parent=46 // pred_fallthru
          _
        %v271 = vld [vmem:[#allocation2] sm:$0xff]
        %v272 = vld [vmem:[#allocation2 + $0x8] sm:$0xff]
        %v273 = vld [vmem:[#allocation2 + $0x10] sm:$0xff]
        %v274 = vld [vmem:[#allocation2 + $0x18] sm:$0xff]
        %v275 = vld [vmem:[#allocation2 + $0x20] sm:$0xff]
        %v276 = vld [vmem:[#allocation2 + $0x28] sm:$0xff]
        %v277 = vld [vmem:[#allocation2 + $0x30] sm:$0xff]
        %v278 = vld [vmem:[#allocation2 + $0x38] sm:$0xff]
        %v279 = vld [vmem:[#allocation2 + $0x40] sm:$0xff]
        %v280 = vld [vmem:[#allocation2 + $0x48] sm:$0xff]
        %v281 = vld [vmem:[#allocation2 + $0x50] sm:$0xff]
        %v282 = vld [vmem:[#allocation2 + $0x58] sm:$0xff]
        %v283 = vld [vmem:[%s195] sm:$0xff]
        %v284 = vld [vmem:[%s195 + $0x8] sm:$0xff]
        %v285 = vld [vmem:[%s195 + $0x10] sm:$0xff]
        %v286 = vld [vmem:[%s195 + $0x18] sm:$0xff]
        %v287 = vld [vmem:[%s195 + $0x20] sm:$0xff]
        %v288 = vld [vmem:[%s195 + $0x28] sm:$0xff]
        %v289 = vld [vmem:[%s240] sm:$0xff]
        %v290 = vld [vmem:[%s240 + $0x8] sm:$0xff]
        %v291 = vld [vmem:[%s240 + $0x10] sm:$0xff]
        %v292 = vld [vmem:[%s240 + $0x18] sm:$0xff]
        %v293 = vld [vmem:[%s240 + $0x20] sm:$0xff]
        %v294 = vld [vmem:[%s240 + $0x28] sm:$0xff]
        %v295 = vld [vmem:[%s240 + $0x30] sm:$0xff]
        %v296 = vld [vmem:[%s240 + $0x38] sm:$0xff]
        %v297 = vld [vmem:[%s240 + $0x40] sm:$0xff]
        %v298 = vld [vmem:[%s240 + $0x48] sm:$0xff]
        %v299 = vld [vmem:[%s240 + $0x50] sm:$0xff]
        %v300 = vld [vmem:[%s240 + $0x58] sm:$0xff]
        %v301 = vld [vmem:[%s240 + $0x60] sm:$0xff]
        %v302 = vld [vmem:[%s240 + $0x68] sm:$0xff]
        %v303 = vld [vmem:[%s240 + $0x70] sm:$0xff]
        %v304 = vld [vmem:[%s240 + $0x78] sm:$0xff]
        %v305 = vld [vmem:[%s240 + $0x80] sm:$0xff]
        %v306 = vld [vmem:[%s240 + $0x88] sm:$0xff]
        %v307 = vld [vmem:[%s240 + $0x90] sm:$0xff]
        %v308 = vld [vmem:[%s240 + $0x98] sm:$0xff]
        %v309 = vld [vmem:[%s240 + $0xa0] sm:$0xff]
        %v310 = vld [vmem:[%s240 + $0xa8] sm:$0xff]
        %v311 = vld [vmem:[%s240 + $0xb0] sm:$0xff]
        %v312 = vld [vmem:[%s240 + $0xb8] sm:$0xff]
        %v313 = vld [vmem:[%s240 + $0xc0] sm:$0xff]
        %v314 = vld [vmem:[%s240 + $0xc8] sm:$0xff]
        %v315 = vld [vmem:[%s240 + $0xd0] sm:$0xff]
        %v316 = vld [vmem:[%s240 + $0xd8] sm:$0xff]
        %v317 = vld [vmem:[%s240 + $0xe0] sm:$0xff]
        %v318 = vld [vmem:[%s240 + $0xe8] sm:$0xff]
        %v319 = vld [vmem:[%s240 + $0xf0] sm:$0xff]
        %v320 = vld [vmem:[%s240 + $0xf8] sm:$0xff]
        %v321 = vld [vmem:[%s240 + $0x100] sm:$0xff]
        %v322 = vld [vmem:[%s240 + $0x108] sm:$0xff]
        %v323 = vld [vmem:[%s240 + $0x110] sm:$0xff]
        %v324 = vld [vmem:[%s240 + $0x118] sm:$0xff]
        %v325 = vld [vmem:[%s240 + $0x120] sm:$0xff]
        %v326 = vld [vmem:[%s240 + $0x128] sm:$0xff]
        %v327 = vld [vmem:[%s240 + $0x130] sm:$0xff]
        %v328 = vld [vmem:[%s240 + $0x138] sm:$0xff]
        %v329 = vld [vmem:[%s240 + $0x140] sm:$0xff]
        %v330 = vld [vmem:[%s240 + $0x148] sm:$0xff]
        %v331 = vld [vmem:[%s240 + $0x150] sm:$0xff]
        %v332 = vld [vmem:[%s240 + $0x158] sm:$0xff]
        %v333 = vld [vmem:[%s240 + $0x160] sm:$0xff]
        %v334 = vld [vmem:[%s240 + $0x168] sm:$0xff]
        %v335 = vld [vmem:[%s240 + $0x170] sm:$0xff]
        %v336 = vld [vmem:[%s240 + $0x178] sm:$0xff]
        %v337 = vld [vmem:[%s240 + $0x180] sm:$0xff]
        %v338 = vld [vmem:[%s240 + $0x188] sm:$0xff]
        %v339 = vld [vmem:[%s240 + $0x190] sm:$0xff]
        %v340 = vld [vmem:[%s240 + $0x198] sm:$0xff]
        %v341 = vld [vmem:[%s240 + $0x1a0] sm:$0xff]
        %v342 = vld [vmem:[%s240 + $0x1a8] sm:$0xff]
        %v343 = vld [vmem:[%s240 + $0x1b0] sm:$0xff]
        %v344 = vld [vmem:[%s240 + $0x1b8] sm:$0xff]
        %v345 = vld [vmem:[%s240 + $0x1c0] sm:$0xff]
        %v346 = vld [vmem:[%s240 + $0x1c8] sm:$0xff]
        %v347 = vld [vmem:[%s240 + $0x1d0] sm:$0xff]
        %v348 = vld [vmem:[%s240 + $0x1d8] sm:$0xff]
        %v349 = vld [vmem:[%s240 + $0x1e0] sm:$0xff]
        %v350 = vld [vmem:[%s240 + $0x1e8] sm:$0xff]
        %v351 = vld [vmem:[%s240 + $0x1f0] sm:$0xff]
        %v352 = vld [vmem:[%s240 + $0x1f8] sm:$0xff]
        %v353 = vld [vmem:[%s240 + $0x200] sm:$0xff]
        %v354 = vld [vmem:[%s240 + $0x208] sm:$0xff]
        %v355 = vld [vmem:[%s240 + $0x210] sm:$0xff]
        %v356 = vld [vmem:[%s240 + $0x218] sm:$0xff]
        %v357 = vld [vmem:[%s240 + $0x220] sm:$0xff]
        %v358 = vld [vmem:[%s240 + $0x228] sm:$0xff]
        %v359 = vld [vmem:[%s240 + $0x230] sm:$0xff]
        %v360 = vld [vmem:[%s240 + $0x238] sm:$0xff]
        %v361 = vld [vmem:[%s240 + $0x240] sm:$0xff]
        %v362 = vld [vmem:[%s240 + $0x248] sm:$0xff]
        %v363 = vld [vmem:[%s240 + $0x250] sm:$0xff]
        %v364 = vld [vmem:[%s240 + $0x258] sm:$0xff]
        %v365 = vld [vmem:[%s240 + $0x260] sm:$0xff]
        %v366 = vld [vmem:[%s240 + $0x268] sm:$0xff]
        %v367 = vld [vmem:[%s240 + $0x270] sm:$0xff]
        %v368 = vld [vmem:[%s240 + $0x278] sm:$0xff]
        %v369 = vld [vmem:[%s240 + $0x280] sm:$0xff]
        %v370 = vld [vmem:[%s240 + $0x288] sm:$0xff]
        %v371 = vld [vmem:[%s240 + $0x290] sm:$0xff]
        %v372 = vld [vmem:[%s240 + $0x298] sm:$0xff]
        %v373 = vld [vmem:[%s240 + $0x2a0] sm:$0xff]
        %v374 = vld [vmem:[%s240 + $0x2a8] sm:$0xff]
        %v375 = vld [vmem:[%s240 + $0x2b0] sm:$0xff]
        %v376 = vld [vmem:[%s240 + $0x2b8] sm:$0xff]
        %v377 = vld [vmem:[%s240 + $0x2c0] sm:$0xff]
        %v378 = vld [vmem:[%s240 + $0x2c8] sm:$0xff]
        %v379 = vld [vmem:[%s240 + $0x2d0] sm:$0xff]
        %v380 = vld [vmem:[%s240 + $0x2d8] sm:$0xff]
        %v381 = vld [vmem:[%s240 + $0x2e0] sm:$0xff]
        %v382 = vld [vmem:[%s240 + $0x2e8] sm:$0xff]
        %v383 = vld [vmem:[%s240 + $0x2f0] sm:$0xff]
        %v384 = vld [vmem:[%s240 + $0x2f8] sm:$0xff]
        %v385 = vld [vmem:[%s240 + $0x300] sm:$0xff]
        %v386 = vld [vmem:[%s240 + $0x308] sm:$0xff]
        %v387 = vld [vmem:[%s240 + $0x310] sm:$0xff]
        %v388 = vld [vmem:[%s240 + $0x318] sm:$0xff]
        %v389 = vld [vmem:[%s240 + $0x320] sm:$0xff]
        %v390 = vld [vmem:[%s240 + $0x328] sm:$0xff]
        %v391 = vld [vmem:[%s240 + $0x330] sm:$0xff]
        %v392 = vld [vmem:[%s240 + $0x338] sm:$0xff]
        %v393 = vld [vmem:[%s240 + $0x340] sm:$0xff]
        %v394 = vld [vmem:[%s240 + $0x348] sm:$0xff]
        %v395 = vld [vmem:[%s240 + $0x350] sm:$0xff]
        %v396 = vld [vmem:[%s240 + $0x358] sm:$0xff]
        %v397 = vld [vmem:[%s240 + $0x360] sm:$0xff]
        %v398 = vld [vmem:[%s240 + $0x368] sm:$0xff]
        %v399 = vld [vmem:[%s240 + $0x370] sm:$0xff]
        %v400 = vld [vmem:[%s240 + $0x378] sm:$0xff]
        %v401 = vld [vmem:[%s240 + $0x380] sm:$0xff]
        %v402 = vld [vmem:[%s240 + $0x388] sm:$0xff]
        %v403 = vld [vmem:[%s240 + $0x390] sm:$0xff]
        %v404 = vld [vmem:[%s240 + $0x398] sm:$0xff]
        %v405 = vld [vmem:[%s240 + $0x3a0] sm:$0xff]
        %v406 = vld [vmem:[%s240 + $0x3a8] sm:$0xff]
        %v407 = vld [vmem:[%s240 + $0x3b0] sm:$0xff]
        %v408 = vld [vmem:[%s240 + $0x3b8] sm:$0xff]
        %v409 = vld [vmem:[%s240 + $0x3c0] sm:$0xff]
        %v410 = vld [vmem:[%s240 + $0x3c8] sm:$0xff]
        %v411 = vld [vmem:[%s240 + $0x3d0] sm:$0xff]
        %v412 = vld [vmem:[%s240 + $0x3d8] sm:$0xff]
        %v413 = vld [vmem:[%s240 + $0x3e0] sm:$0xff]
        %v414 = vld [vmem:[%s240 + $0x3e8] sm:$0xff]
        %v415 = vld [vmem:[%s240 + $0x3f0] sm:$0xff]
        %v416 = vld [vmem:[%s240 + $0x3f8] sm:$0xff]
        %v423 = vunpack.c.l.b16 %v283
        %v424 = vunpack.c.h.b16 %v283
        %v425 = vunpack.c.l.b16 %v284
        %v426 = vunpack.c.h.b16 %v284
        %v427 = vunpack.c.l.b16 %v285
        %v428 = vunpack.c.h.b16 %v285
        %v429 = vunpack.c.l.b16 %v286
        %v430 = vunpack.c.h.b16 %v286
        %v431 = vunpack.c.l.b16 %v287
        %v432 = vunpack.c.h.b16 %v287
        %v433 = vunpack.c.l.b16 %v288
        %v434 = vunpack.c.h.b16 %v288
        %v435 = vpack.c.b16 %v427, %v423
        %v436 = vpack.c.b16 %v428, %v424
        %v437 = vpack.c.b16 %v429, %v425
        %v438 = vpack.c.b16 %v430, %v426
        %v439 = vpack.c.b16 %v431, %v431
        %v440 = vpack.c.b16 %v432, %v432
        %v441 = vpack.c.b16 %v433, %v433
        %v442 = vpack.c.b16 %v434, %v434
        %v579 = vunpack.c.l.b16 %v289
        %v580 = vunpack.c.h.b16 %v289
        %v581 = vunpack.c.l.b16 %v290
        %v582 = vunpack.c.h.b16 %v290
        %v583 = vunpack.c.l.b16 %v291
        %v584 = vunpack.c.h.b16 %v291
        %v585 = vunpack.c.l.b16 %v292
        %v586 = vunpack.c.h.b16 %v292
        %v587 = vunpack.c.l.b16 %v293
        %v588 = vunpack.c.h.b16 %v293
        %v589 = vunpack.c.l.b16 %v294
        %v590 = vunpack.c.h.b16 %v294
        %v591 = vunpack.c.l.b16 %v295
        %v592 = vunpack.c.h.b16 %v295
        %v593 = vunpack.c.l.b16 %v296
        %v594 = vunpack.c.h.b16 %v296
        %v595 = vunpack.c.l.b16 %v297
        %v596 = vunpack.c.h.b16 %v297
        %v597 = vunpack.c.l.b16 %v298
        %v598 = vunpack.c.h.b16 %v298
        %v599 = vunpack.c.l.b16 %v299
        %v600 = vunpack.c.h.b16 %v299
        %v601 = vunpack.c.l.b16 %v300
        %v602 = vunpack.c.h.b16 %v300
        %v603 = vunpack.c.l.b16 %v301
        %v604 = vunpack.c.h.b16 %v301
        %v605 = vunpack.c.l.b16 %v302
        %v606 = vunpack.c.h.b16 %v302
        %v607 = vunpack.c.l.b16 %v303
        %v608 = vunpack.c.h.b16 %v303
        %v609 = vunpack.c.l.b16 %v304
        %v610 = vunpack.c.h.b16 %v304
        %v611 = vunpack.c.l.b16 %v305
        %v612 = vunpack.c.h.b16 %v305
        %v613 = vunpack.c.l.b16 %v306
        %v614 = vunpack.c.h.b16 %v306
        %v615 = vunpack.c.l.b16 %v307
        %v616 = vunpack.c.h.b16 %v307
        %v617 = vunpack.c.l.b16 %v308
        %v618 = vunpack.c.h.b16 %v308
        %v619 = vunpack.c.l.b16 %v309
        %v620 = vunpack.c.h.b16 %v309
        %v621 = vunpack.c.l.b16 %v310
        %v622 = vunpack.c.h.b16 %v310
        %v623 = vunpack.c.l.b16 %v311
        %v624 = vunpack.c.h.b16 %v311
        %v625 = vunpack.c.l.b16 %v312
        %v626 = vunpack.c.h.b16 %v312
        %v627 = vunpack.c.l.b16 %v313
        %v628 = vunpack.c.h.b16 %v313
        %v629 = vunpack.c.l.b16 %v314
        %v630 = vunpack.c.h.b16 %v314
        %v631 = vunpack.c.l.b16 %v315
        %v632 = vunpack.c.h.b16 %v315
        %v633 = vunpack.c.l.b16 %v316
        %v634 = vunpack.c.h.b16 %v316
        %v635 = vunpack.c.l.b16 %v317
        %v636 = vunpack.c.h.b16 %v317
        %v637 = vunpack.c.l.b16 %v318
        %v638 = vunpack.c.h.b16 %v318
        %v639 = vunpack.c.l.b16 %v319
        %v640 = vunpack.c.h.b16 %v319
        %v641 = vunpack.c.l.b16 %v320
        %v642 = vunpack.c.h.b16 %v320
        %v643 = vunpack.c.l.b16 %v321
        %v644 = vunpack.c.h.b16 %v321
        %v645 = vunpack.c.l.b16 %v322
        %v646 = vunpack.c.h.b16 %v322
        %v647 = vunpack.c.l.b16 %v323
        %v648 = vunpack.c.h.b16 %v323
        %v649 = vunpack.c.l.b16 %v324
        %v650 = vunpack.c.h.b16 %v324
        %v651 = vunpack.c.l.b16 %v325
        %v652 = vunpack.c.h.b16 %v325
        %v653 = vunpack.c.l.b16 %v326
        %v654 = vunpack.c.h.b16 %v326
        %v655 = vunpack.c.l.b16 %v327
        %v656 = vunpack.c.h.b16 %v327
        %v657 = vunpack.c.l.b16 %v328
        %v658 = vunpack.c.h.b16 %v328
        %v659 = vunpack.c.l.b16 %v329
        %v660 = vunpack.c.h.b16 %v329
        %v661 = vunpack.c.l.b16 %v330
        %v662 = vunpack.c.h.b16 %v330
        %v663 = vunpack.c.l.b16 %v331
        %v664 = vunpack.c.h.b16 %v331
        %v665 = vunpack.c.l.b16 %v332
        %v666 = vunpack.c.h.b16 %v332
        %v667 = vunpack.c.l.b16 %v333
        %v668 = vunpack.c.h.b16 %v333
        %v669 = vunpack.c.l.b16 %v334
        %v670 = vunpack.c.h.b16 %v334
        %v671 = vunpack.c.l.b16 %v335
        %v672 = vunpack.c.h.b16 %v335
        %v673 = vunpack.c.l.b16 %v336
        %v674 = vunpack.c.h.b16 %v336
        %v675 = vunpack.c.l.b16 %v337
        %v676 = vunpack.c.h.b16 %v337
        %v677 = vunpack.c.l.b16 %v338
        %v678 = vunpack.c.h.b16 %v338
        %v679 = vunpack.c.l.b16 %v339
        %v680 = vunpack.c.h.b16 %v339
        %v681 = vunpack.c.l.b16 %v340
        %v682 = vunpack.c.h.b16 %v340
        %v683 = vunpack.c.l.b16 %v341
        %v684 = vunpack.c.h.b16 %v341
        %v685 = vunpack.c.l.b16 %v342
        %v686 = vunpack.c.h.b16 %v342
        %v687 = vunpack.c.l.b16 %v343
        %v688 = vunpack.c.h.b16 %v343
        %v689 = vunpack.c.l.b16 %v344
        %v690 = vunpack.c.h.b16 %v344
        %v691 = vunpack.c.l.b16 %v345
        %v692 = vunpack.c.h.b16 %v345
        %v693 = vunpack.c.l.b16 %v346
        %v694 = vunpack.c.h.b16 %v346
        %v695 = vunpack.c.l.b16 %v347
        %v696 = vunpack.c.h.b16 %v347
        %v697 = vunpack.c.l.b16 %v348
        %v698 = vunpack.c.h.b16 %v348
        %v699 = vunpack.c.l.b16 %v349
        %v700 = vunpack.c.h.b16 %v349
        %v701 = vunpack.c.l.b16 %v350
        %v702 = vunpack.c.h.b16 %v350
        %v703 = vunpack.c.l.b16 %v351
        %v704 = vunpack.c.h.b16 %v351
        %v705 = vunpack.c.l.b16 %v352
        %v706 = vunpack.c.h.b16 %v352
        %v707 = vunpack.c.l.b16 %v353
        %v708 = vunpack.c.h.b16 %v353
        %v709 = vunpack.c.l.b16 %v354
        %v710 = vunpack.c.h.b16 %v354
        %v711 = vunpack.c.l.b16 %v355
        %v712 = vunpack.c.h.b16 %v355
        %v713 = vunpack.c.l.b16 %v356
        %v714 = vunpack.c.h.b16 %v356
        %v715 = vunpack.c.l.b16 %v357
        %v716 = vunpack.c.h.b16 %v357
        %v717 = vunpack.c.l.b16 %v358
        %v718 = vunpack.c.h.b16 %v358
        %v719 = vunpack.c.l.b16 %v359
        %v720 = vunpack.c.h.b16 %v359
        %v721 = vunpack.c.l.b16 %v360
        %v722 = vunpack.c.h.b16 %v360
        %v723 = vunpack.c.l.b16 %v361
        %v724 = vunpack.c.h.b16 %v361
        %v725 = vunpack.c.l.b16 %v362
        %v726 = vunpack.c.h.b16 %v362
        %v727 = vunpack.c.l.b16 %v363
        %v728 = vunpack.c.h.b16 %v363
        %v729 = vunpack.c.l.b16 %v364
        %v730 = vunpack.c.h.b16 %v364
        %v731 = vunpack.c.l.b16 %v365
        %v732 = vunpack.c.h.b16 %v365
        %v733 = vunpack.c.l.b16 %v366
        %v734 = vunpack.c.h.b16 %v366
        %v735 = vunpack.c.l.b16 %v367
        %v736 = vunpack.c.h.b16 %v367
        %v737 = vunpack.c.l.b16 %v368
        %v738 = vunpack.c.h.b16 %v368
        %v739 = vunpack.c.l.b16 %v369
        %v740 = vunpack.c.h.b16 %v369
        %v741 = vunpack.c.l.b16 %v370
        %v742 = vunpack.c.h.b16 %v370
        %v743 = vunpack.c.l.b16 %v371
        %v744 = vunpack.c.h.b16 %v371
        %v745 = vunpack.c.l.b16 %v372
        %v746 = vunpack.c.h.b16 %v372
        %v747 = vunpack.c.l.b16 %v373
        %v748 = vunpack.c.h.b16 %v373
        %v749 = vunpack.c.l.b16 %v374
        %v750 = vunpack.c.h.b16 %v374
        %v751 = vunpack.c.l.b16 %v375
        %v752 = vunpack.c.h.b16 %v375
        %v753 = vunpack.c.l.b16 %v376
        %v754 = vunpack.c.h.b16 %v376
        %v755 = vunpack.c.l.b16 %v377
        %v756 = vunpack.c.h.b16 %v377
        %v757 = vunpack.c.l.b16 %v378
        %v758 = vunpack.c.h.b16 %v378
        %v759 = vunpack.c.l.b16 %v379
        %v760 = vunpack.c.h.b16 %v379
        %v761 = vunpack.c.l.b16 %v380
        %v762 = vunpack.c.h.b16 %v380
        %v763 = vunpack.c.l.b16 %v381
        %v764 = vunpack.c.h.b16 %v381
        %v765 = vunpack.c.l.b16 %v382
        %v766 = vunpack.c.h.b16 %v382
        %v767 = vunpack.c.l.b16 %v383
        %v768 = vunpack.c.h.b16 %v383
        %v769 = vunpack.c.l.b16 %v384
        %v770 = vunpack.c.h.b16 %v384
        %v771 = vunpack.c.l.b16 %v385
        %v772 = vunpack.c.h.b16 %v385
        %v773 = vunpack.c.l.b16 %v386
        %v774 = vunpack.c.h.b16 %v386
        %v775 = vunpack.c.l.b16 %v387
        %v776 = vunpack.c.h.b16 %v387
        %v777 = vunpack.c.l.b16 %v388
        %v778 = vunpack.c.h.b16 %v388
        %v779 = vunpack.c.l.b16 %v389
        %v780 = vunpack.c.h.b16 %v389
        %v781 = vunpack.c.l.b16 %v390
        %v782 = vunpack.c.h.b16 %v390
        %v783 = vunpack.c.l.b16 %v391
        %v784 = vunpack.c.h.b16 %v391
        %v785 = vunpack.c.l.b16 %v392
        %v786 = vunpack.c.h.b16 %v392
        %v787 = vunpack.c.l.b16 %v393
        %v788 = vunpack.c.h.b16 %v393
        %v789 = vunpack.c.l.b16 %v394
        %v790 = vunpack.c.h.b16 %v394
        %v791 = vunpack.c.l.b16 %v395
        %v792 = vunpack.c.h.b16 %v395
        %v793 = vunpack.c.l.b16 %v396
        %v794 = vunpack.c.h.b16 %v396
        %v795 = vunpack.c.l.b16 %v397
        %v796 = vunpack.c.h.b16 %v397
        %v797 = vunpack.c.l.b16 %v398
        %v798 = vunpack.c.h.b16 %v398
        %v799 = vunpack.c.l.b16 %v399
        %v800 = vunpack.c.h.b16 %v399
        %v801 = vunpack.c.l.b16 %v400
        %v802 = vunpack.c.h.b16 %v400
        %v803 = vunpack.c.l.b16 %v401
        %v804 = vunpack.c.h.b16 %v401
        %v805 = vunpack.c.l.b16 %v402
        %v806 = vunpack.c.h.b16 %v402
        %v807 = vunpack.c.l.b16 %v403
        %v808 = vunpack.c.h.b16 %v403
        %v809 = vunpack.c.l.b16 %v404
        %v810 = vunpack.c.h.b16 %v404
        %v811 = vunpack.c.l.b16 %v405
        %v812 = vunpack.c.h.b16 %v405
        %v813 = vunpack.c.l.b16 %v406
        %v814 = vunpack.c.h.b16 %v406
        %v815 = vunpack.c.l.b16 %v407
        %v816 = vunpack.c.h.b16 %v407
        %v817 = vunpack.c.l.b16 %v408
        %v818 = vunpack.c.h.b16 %v408
        %v819 = vunpack.c.l.b16 %v409
        %v820 = vunpack.c.h.b16 %v409
        %v821 = vunpack.c.l.b16 %v410
        %v822 = vunpack.c.h.b16 %v410
        %v823 = vunpack.c.l.b16 %v411
        %v824 = vunpack.c.h.b16 %v411
        %v825 = vunpack.c.l.b16 %v412
        %v826 = vunpack.c.h.b16 %v412
        %v827 = vunpack.c.l.b16 %v413
        %v828 = vunpack.c.h.b16 %v413
        %v829 = vunpack.c.l.b16 %v414
        %v830 = vunpack.c.h.b16 %v414
        %v831 = vunpack.c.l.b16 %v415
        %v832 = vunpack.c.h.b16 %v415
        %v833 = vunpack.c.l.b16 %v416
        %v834 = vunpack.c.h.b16 %v416
        %v835 = vpack.c.b16 %v583, %v579
        %v836 = vpack.c.b16 %v584, %v580
        %v837 = vpack.c.b16 %v585, %v581
        %v838 = vpack.c.b16 %v586, %v582
        %v839 = vpack.c.b16 %v591, %v587
        %v840 = vpack.c.b16 %v592, %v588
        %v841 = vpack.c.b16 %v593, %v589
        %v842 = vpack.c.b16 %v594, %v590
        %v843 = vpack.c.b16 %v599, %v595
        %v844 = vpack.c.b16 %v600, %v596
        %v845 = vpack.c.b16 %v601, %v597
        %v846 = vpack.c.b16 %v602, %v598
        %v847 = vpack.c.b16 %v607, %v603
        %v848 = vpack.c.b16 %v608, %v604
        %v849 = vpack.c.b16 %v609, %v605
        %v850 = vpack.c.b16 %v610, %v606
        %v851 = vpack.c.b16 %v615, %v611
        %v852 = vpack.c.b16 %v616, %v612
        %v853 = vpack.c.b16 %v617, %v613
        %v854 = vpack.c.b16 %v618, %v614
        %v855 = vpack.c.b16 %v623, %v619
        %v856 = vpack.c.b16 %v624, %v620
        %v857 = vpack.c.b16 %v625, %v621
        %v858 = vpack.c.b16 %v626, %v622
        %v859 = vpack.c.b16 %v631, %v627
        %v860 = vpack.c.b16 %v632, %v628
        %v861 = vpack.c.b16 %v633, %v629
        %v862 = vpack.c.b16 %v634, %v630
        %v863 = vpack.c.b16 %v639, %v635
        %v864 = vpack.c.b16 %v640, %v636
        %v865 = vpack.c.b16 %v641, %v637
        %v866 = vpack.c.b16 %v642, %v638
        %v867 = vpack.c.b16 %v647, %v643
        %v868 = vpack.c.b16 %v648, %v644
        %v869 = vpack.c.b16 %v649, %v645
        %v870 = vpack.c.b16 %v650, %v646
        %v871 = vpack.c.b16 %v655, %v651
        %v872 = vpack.c.b16 %v656, %v652
        %v873 = vpack.c.b16 %v657, %v653
        %v874 = vpack.c.b16 %v658, %v654
        %v875 = vpack.c.b16 %v663, %v659
        %v876 = vpack.c.b16 %v664, %v660
        %v877 = vpack.c.b16 %v665, %v661
        %v878 = vpack.c.b16 %v666, %v662
        %v879 = vpack.c.b16 %v671, %v667
        %v880 = vpack.c.b16 %v672, %v668
        %v881 = vpack.c.b16 %v673, %v669
        %v882 = vpack.c.b16 %v674, %v670
        %v883 = vpack.c.b16 %v679, %v675
        %v884 = vpack.c.b16 %v680, %v676
        %v885 = vpack.c.b16 %v681, %v677
        %v886 = vpack.c.b16 %v682, %v678
        %v887 = vpack.c.b16 %v687, %v683
        %v888 = vpack.c.b16 %v688, %v684
        %v889 = vpack.c.b16 %v689, %v685
        %v890 = vpack.c.b16 %v690, %v686
        %v891 = vpack.c.b16 %v695, %v691
        %v892 = vpack.c.b16 %v696, %v692
        %v893 = vpack.c.b16 %v697, %v693
        %v894 = vpack.c.b16 %v698, %v694
        %v895 = vpack.c.b16 %v703, %v699
        %v896 = vpack.c.b16 %v704, %v700
        %v897 = vpack.c.b16 %v705, %v701
        %v898 = vpack.c.b16 %v706, %v702
        %v899 = vpack.c.b16 %v711, %v707
        %v900 = vpack.c.b16 %v712, %v708
        %v901 = vpack.c.b16 %v713, %v709
        %v902 = vpack.c.b16 %v714, %v710
        %v903 = vpack.c.b16 %v719, %v715
        %v904 = vpack.c.b16 %v720, %v716
        %v905 = vpack.c.b16 %v721, %v717
        %v906 = vpack.c.b16 %v722, %v718
        %v907 = vpack.c.b16 %v727, %v723
        %v908 = vpack.c.b16 %v728, %v724
        %v909 = vpack.c.b16 %v729, %v725
        %v910 = vpack.c.b16 %v730, %v726
        %v911 = vpack.c.b16 %v735, %v731
        %v912 = vpack.c.b16 %v736, %v732
        %v913 = vpack.c.b16 %v737, %v733
        %v914 = vpack.c.b16 %v738, %v734
        %v915 = vpack.c.b16 %v743, %v739
        %v916 = vpack.c.b16 %v744, %v740
        %v917 = vpack.c.b16 %v745, %v741
        %v918 = vpack.c.b16 %v746, %v742
        %v919 = vpack.c.b16 %v751, %v747
        %v920 = vpack.c.b16 %v752, %v748
        %v921 = vpack.c.b16 %v753, %v749
        %v922 = vpack.c.b16 %v754, %v750
        %v923 = vpack.c.b16 %v759, %v755
        %v924 = vpack.c.b16 %v760, %v756
        %v925 = vpack.c.b16 %v761, %v757
        %v926 = vpack.c.b16 %v762, %v758
        %v927 = vpack.c.b16 %v767, %v763
        %v928 = vpack.c.b16 %v768, %v764
        %v929 = vpack.c.b16 %v769, %v765
        %v930 = vpack.c.b16 %v770, %v766
        %v931 = vpack.c.b16 %v775, %v771
        %v932 = vpack.c.b16 %v776, %v772
        %v933 = vpack.c.b16 %v777, %v773
        %v934 = vpack.c.b16 %v778, %v774
        %v935 = vpack.c.b16 %v783, %v779
        %v936 = vpack.c.b16 %v784, %v780
        %v937 = vpack.c.b16 %v785, %v781
        %v938 = vpack.c.b16 %v786, %v782
        %v939 = vpack.c.b16 %v791, %v787
        %v940 = vpack.c.b16 %v792, %v788
        %v941 = vpack.c.b16 %v793, %v789
        %v942 = vpack.c.b16 %v794, %v790
        %v943 = vpack.c.b16 %v799, %v795
        %v944 = vpack.c.b16 %v800, %v796
        %v945 = vpack.c.b16 %v801, %v797
        %v946 = vpack.c.b16 %v802, %v798
        %v947 = vpack.c.b16 %v807, %v803
        %v948 = vpack.c.b16 %v808, %v804
        %v949 = vpack.c.b16 %v809, %v805
        %v950 = vpack.c.b16 %v810, %v806
        %v951 = vpack.c.b16 %v815, %v811
        %v952 = vpack.c.b16 %v816, %v812
        %v953 = vpack.c.b16 %v817, %v813
        %v954 = vpack.c.b16 %v818, %v814
        %v955 = vpack.c.b16 %v823, %v819
        %v956 = vpack.c.b16 %v824, %v820
        %v957 = vpack.c.b16 %v825, %v821
        %v958 = vpack.c.b16 %v826, %v822
        %v959 = vpack.c.b16 %v831, %v827
        %v960 = vpack.c.b16 %v832, %v828
        %v961 = vpack.c.b16 %v833, %v829
        %v962 = vpack.c.b16 %v834, %v830
        %1091 = vmatpush.bf16.msra.mxu0 %v863
        %1092 = vmatpush.bf16.msra.mxu0 %v859
        %1093 = vmatpush.bf16.msra.mxu0 %v855
        %1094 = vmatpush.bf16.msra.mxu0 %v851
        %1095 = vmatpush.bf16.msra.mxu0 %v847
        %1096 = vmatpush.bf16.msra.mxu0 %v843
        %1097 = vmatpush.bf16.msra.mxu0 %v839
        %1098 = vmatpush.bf16.msra.mxu0 %v835
        %1099 = vmatmul.bf16.gmra.mxu0 %v435
        %v1100 = vpop.f32.mrf.mxu0
        %v1101 = vadd.f32 0.0, %v1100
        %v1102 = vpop.f32.mrf.mxu0
        %v1103 = vadd.f32 0.0, %v1102
        %1104 = vmatmul.bf16.gmra.mxu0 %v439
        %v1105 = vpop.f32.mrf.mxu0
        %v1106 = vadd.f32 0.0, %v1105
        %v1107 = vpop.f32.mrf.mxu0
        %1108 = vdwg.mxu0
        %1109 = vmatpush.bf16.msra.mxu0 %v895
        %1110 = vmatpush.bf16.msra.mxu0 %v891
        %1111 = vmatpush.bf16.msra.mxu0 %v887
        %1112 = vmatpush.bf16.msra.mxu0 %v883
        %1113 = vmatpush.bf16.msra.mxu0 %v879
        %1114 = vmatpush.bf16.msra.mxu0 %v875
        %1115 = vmatpush.bf16.msra.mxu0 %v871
        %1116 = vmatpush.bf16.msra.mxu0 %v867
        %1117 = vmatmul.bf16.gmra.mxu0 %v436
        %v1118 = vpop.f32.mrf.mxu0
        %v1119 = vadd.f32 %v1101, %v1118
        %v1120 = vpop.f32.mrf.mxu0
        %v1121 = vadd.f32 %v1103, %v1120
        %1122 = vmatmul.bf16.gmra.mxu0 %v440
        %v1123 = vpop.f32.mrf.mxu0
        %v1124 = vadd.f32 %v1106, %v1123
        %v1125 = vpop.f32.mrf.mxu0
        %1126 = vdwg.mxu0
        %1127 = vmatpush.bf16.msra.mxu0 %v927
        %1128 = vmatpush.bf16.msra.mxu0 %v923
        %1129 = vmatpush.bf16.msra.mxu0 %v919
        %1130 = vmatpush.bf16.msra.mxu0 %v915
        %1131 = vmatpush.bf16.msra.mxu0 %v911
        %1132 = vmatpush.bf16.msra.mxu0 %v907
        %1133 = vmatpush.bf16.msra.mxu0 %v903
        %1134 = vmatpush.bf16.msra.mxu0 %v899
        %1135 = vmatmul.bf16.gmra.mxu0 %v437
        %v1136 = vpop.f32.mrf.mxu0
        %v1137 = vadd.f32 %v1119, %v1136
        %v1138 = vpop.f32.mrf.mxu0
        %v1139 = vadd.f32 %v1121, %v1138
        %1140 = vmatmul.bf16.gmra.mxu0 %v441
        %v1141 = vpop.f32.mrf.mxu0
        %v1142 = vadd.f32 %v1124, %v1141
        %v1143 = vpop.f32.mrf.mxu0
        %1144 = vdwg.mxu0
        %1145 = vmatpush.bf16.msra.mxu0 %v959
        %1146 = vmatpush.bf16.msra.mxu0 %v955
        %1147 = vmatpush.bf16.msra.mxu0 %v951
        %1148 = vmatpush.bf16.msra.mxu0 %v947
        %1149 = vmatpush.bf16.msra.mxu0 %v943
        %1150 = vmatpush.bf16.msra.mxu0 %v939
        %1151 = vmatpush.bf16.msra.mxu0 %v935
        %1152 = vmatpush.bf16.msra.mxu0 %v931
        %1153 = vmatmul.bf16.gmra.mxu0 %v438
        %v1154 = vpop.f32.mrf.mxu0
        %v1155 = vadd.f32 %v1137, %v1154
        %v1156 = vpop.f32.mrf.mxu0
        %v1157 = vadd.f32 %v1139, %v1156
        %1158 = vmatmul.bf16.gmra.mxu0 %v442
        %v1159 = vpop.f32.mrf.mxu0
        %v1160 = vadd.f32 %v1142, %v1159
        %v1161 = vpop.f32.mrf.mxu0
        %1162 = vdwg.mxu0
        %1163 = vmatpush.bf16.msra.mxu0 %v864
        %1164 = vmatpush.bf16.msra.mxu0 %v860
        %1165 = vmatpush.bf16.msra.mxu0 %v856
        %1166 = vmatpush.bf16.msra.mxu0 %v852
        %1167 = vmatpush.bf16.msra.mxu0 %v848
        %1168 = vmatpush.bf16.msra.mxu0 %v844
        %1169 = vmatpush.bf16.msra.mxu0 %v840
        %1170 = vmatpush.bf16.msra.mxu0 %v836
        %1171 = vmatmul.bf16.gmra.mxu0 %v435
        %v1172 = vpop.f32.mrf.mxu0
        %v1173 = vadd.f32 0.0, %v1172
        %v1174 = vpop.f32.mrf.mxu0
        %v1175 = vadd.f32 0.0, %v1174
        %1176 = vmatmul.bf16.gmra.mxu0 %v439
        %v1177 = vpop.f32.mrf.mxu0
        %v1178 = vadd.f32 0.0, %v1177
        %v1179 = vpop.f32.mrf.mxu0
        %1180 = vdwg.mxu0
        %1181 = vmatpush.bf16.msra.mxu0 %v896
        %1182 = vmatpush.bf16.msra.mxu0 %v892
        %1183 = vmatpush.bf16.msra.mxu0 %v888
        %1184 = vmatpush.bf16.msra.mxu0 %v884
        %1185 = vmatpush.bf16.msra.mxu0 %v880
        %1186 = vmatpush.bf16.msra.mxu0 %v876
        %1187 = vmatpush.bf16.msra.mxu0 %v872
        %1188 = vmatpush.bf16.msra.mxu0 %v868
        %1189 = vmatmul.bf16.gmra.mxu0 %v436
        %v1190 = vpop.f32.mrf.mxu0
        %v1191 = vadd.f32 %v1173, %v1190
        %v1192 = vpop.f32.mrf.mxu0
        %v1193 = vadd.f32 %v1175, %v1192
        %1194 = vmatmul.bf16.gmra.mxu0 %v440
        %v1195 = vpop.f32.mrf.mxu0
        %v1196 = vadd.f32 %v1178, %v1195
        %v1197 = vpop.f32.mrf.mxu0
        %1198 = vdwg.mxu0
        %1199 = vmatpush.bf16.msra.mxu0 %v928
        %1200 = vmatpush.bf16.msra.mxu0 %v924
        %1201 = vmatpush.bf16.msra.mxu0 %v920
        %1202 = vmatpush.bf16.msra.mxu0 %v916
        %1203 = vmatpush.bf16.msra.mxu0 %v912
        %1204 = vmatpush.bf16.msra.mxu0 %v908
        %1205 = vmatpush.bf16.msra.mxu0 %v904
        %1206 = vmatpush.bf16.msra.mxu0 %v900
        %1207 = vmatmul.bf16.gmra.mxu0 %v437
        %v1208 = vpop.f32.mrf.mxu0
        %v1209 = vadd.f32 %v1191, %v1208
        %v1210 = vpop.f32.mrf.mxu0
        %v1211 = vadd.f32 %v1193, %v1210
        %1212 = vmatmul.bf16.gmra.mxu0 %v441
        %v1213 = vpop.f32.mrf.mxu0
        %v1214 = vadd.f32 %v1196, %v1213
        %v1215 = vpop.f32.mrf.mxu0
        %1216 = vdwg.mxu0
        %1217 = vmatpush.bf16.msra.mxu0 %v960
        %1218 = vmatpush.bf16.msra.mxu0 %v956
        %1219 = vmatpush.bf16.msra.mxu0 %v952
        %1220 = vmatpush.bf16.msra.mxu0 %v948
        %1221 = vmatpush.bf16.msra.mxu0 %v944
        %1222 = vmatpush.bf16.msra.mxu0 %v940
        %1223 = vmatpush.bf16.msra.mxu0 %v936
        %1224 = vmatpush.bf16.msra.mxu0 %v932
        %1225 = vmatmul.bf16.gmra.mxu0 %v438
        %v1226 = vpop.f32.mrf.mxu0
        %v1227 = vadd.f32 %v1209, %v1226
        %v1228 = vpop.f32.mrf.mxu0
        %v1229 = vadd.f32 %v1211, %v1228
        %1230 = vmatmul.bf16.gmra.mxu0 %v442
        %v1231 = vpop.f32.mrf.mxu0
        %v1232 = vadd.f32 %v1214, %v1231
        %v1233 = vpop.f32.mrf.mxu0
        %1234 = vdwg.mxu0
        %1235 = vmatpush.bf16.msra.mxu0 %v865
        %1236 = vmatpush.bf16.msra.mxu0 %v861
        %1237 = vmatpush.bf16.msra.mxu0 %v857
        %1238 = vmatpush.bf16.msra.mxu0 %v853
        %1239 = vmatpush.bf16.msra.mxu0 %v849
        %1240 = vmatpush.bf16.msra.mxu0 %v845
        %1241 = vmatpush.bf16.msra.mxu0 %v841
        %1242 = vmatpush.bf16.msra.mxu0 %v837
        %1243 = vmatmul.bf16.gmra.mxu0 %v435
        %v1244 = vpop.f32.mrf.mxu0
        %v1245 = vadd.f32 0.0, %v1244
        %v1246 = vpop.f32.mrf.mxu0
        %v1247 = vadd.f32 0.0, %v1246
        %1248 = vmatmul.bf16.gmra.mxu0 %v439
        %v1249 = vpop.f32.mrf.mxu0
        %v1250 = vadd.f32 0.0, %v1249
        %v1251 = vpop.f32.mrf.mxu0
        %1252 = vdwg.mxu0
        %1253 = vmatpush.bf16.msra.mxu0 %v897
        %1254 = vmatpush.bf16.msra.mxu0 %v893
        %1255 = vmatpush.bf16.msra.mxu0 %v889
        %1256 = vmatpush.bf16.msra.mxu0 %v885
        %1257 = vmatpush.bf16.msra.mxu0 %v881
        %1258 = vmatpush.bf16.msra.mxu0 %v877
        %1259 = vmatpush.bf16.msra.mxu0 %v873
        %1260 = vmatpush.bf16.msra.mxu0 %v869
        %1261 = vmatmul.bf16.gmra.mxu0 %v436
        %v1262 = vpop.f32.mrf.mxu0
        %v1263 = vadd.f32 %v1245, %v1262
        %v1264 = vpop.f32.mrf.mxu0
        %v1265 = vadd.f32 %v1247, %v1264
        %1266 = vmatmul.bf16.gmra.mxu0 %v440
        %v1267 = vpop.f32.mrf.mxu0
        %v1268 = vadd.f32 %v1250, %v1267
        %v1269 = vpop.f32.mrf.mxu0
        %1270 = vdwg.mxu0
        %1271 = vmatpush.bf16.msra.mxu0 %v929
        %1272 = vmatpush.bf16.msra.mxu0 %v925
        %1273 = vmatpush.bf16.msra.mxu0 %v921
        %1274 = vmatpush.bf16.msra.mxu0 %v917
        %1275 = vmatpush.bf16.msra.mxu0 %v913
        %1276 = vmatpush.bf16.msra.mxu0 %v909
        %1277 = vmatpush.bf16.msra.mxu0 %v905
        %1278 = vmatpush.bf16.msra.mxu0 %v901
        %1279 = vmatmul.bf16.gmra.mxu0 %v437
        %v1280 = vpop.f32.mrf.mxu0
        %v1281 = vadd.f32 %v1263, %v1280
        %v1282 = vpop.f32.mrf.mxu0
        %v1283 = vadd.f32 %v1265, %v1282
        %1284 = vmatmul.bf16.gmra.mxu0 %v441
        %v1285 = vpop.f32.mrf.mxu0
        %v1286 = vadd.f32 %v1268, %v1285
        %v1287 = vpop.f32.mrf.mxu0
        %1288 = vdwg.mxu0
        %1289 = vmatpush.bf16.msra.mxu0 %v961
        %1290 = vmatpush.bf16.msra.mxu0 %v957
        %1291 = vmatpush.bf16.msra.mxu0 %v953
        %1292 = vmatpush.bf16.msra.mxu0 %v949
        %1293 = vmatpush.bf16.msra.mxu0 %v945
        %1294 = vmatpush.bf16.msra.mxu0 %v941
        %1295 = vmatpush.bf16.msra.mxu0 %v937
        %1296 = vmatpush.bf16.msra.mxu0 %v933
        %1297 = vmatmul.bf16.gmra.mxu0 %v438
        %v1298 = vpop.f32.mrf.mxu0
        %v1299 = vadd.f32 %v1281, %v1298
        %v1300 = vpop.f32.mrf.mxu0
        %v1301 = vadd.f32 %v1283, %v1300
        %1302 = vmatmul.bf16.gmra.mxu0 %v442
        %v1303 = vpop.f32.mrf.mxu0
        %v1304 = vadd.f32 %v1286, %v1303
        %v1305 = vpop.f32.mrf.mxu0
        %1306 = vdwg.mxu0
        %1307 = vmatpush.bf16.msra.mxu0 %v866
        %1308 = vmatpush.bf16.msra.mxu0 %v862
        %1309 = vmatpush.bf16.msra.mxu0 %v858
        %1310 = vmatpush.bf16.msra.mxu0 %v854
        %1311 = vmatpush.bf16.msra.mxu0 %v850
        %1312 = vmatpush.bf16.msra.mxu0 %v846
        %1313 = vmatpush.bf16.msra.mxu0 %v842
        %1314 = vmatpush.bf16.msra.mxu0 %v838
        %1315 = vmatmul.bf16.gmra.mxu0 %v435
        %v1316 = vpop.f32.mrf.mxu0
        %v1317 = vadd.f32 0.0, %v1316
        %v1318 = vpop.f32.mrf.mxu0
        %v1319 = vadd.f32 0.0, %v1318
        %1320 = vmatmul.bf16.gmra.mxu0 %v439
        %v1321 = vpop.f32.mrf.mxu0
        %v1322 = vadd.f32 0.0, %v1321
        %v1323 = vpop.f32.mrf.mxu0
        %1324 = vdwg.mxu0
        %1325 = vmatpush.bf16.msra.mxu0 %v898
        %1326 = vmatpush.bf16.msra.mxu0 %v894
        %1327 = vmatpush.bf16.msra.mxu0 %v890
        %1328 = vmatpush.bf16.msra.mxu0 %v886
        %1329 = vmatpush.bf16.msra.mxu0 %v882
        %1330 = vmatpush.bf16.msra.mxu0 %v878
        %1331 = vmatpush.bf16.msra.mxu0 %v874
        %1332 = vmatpush.bf16.msra.mxu0 %v870
        %1333 = vmatmul.bf16.gmra.mxu0 %v436
        %v1334 = vpop.f32.mrf.mxu0
        %v1335 = vadd.f32 %v1317, %v1334
        %v1336 = vpop.f32.mrf.mxu0
        %v1337 = vadd.f32 %v1319, %v1336
        %1338 = vmatmul.bf16.gmra.mxu0 %v440
        %v1339 = vpop.f32.mrf.mxu0
        %v1340 = vadd.f32 %v1322, %v1339
        %v1341 = vpop.f32.mrf.mxu0
        %1342 = vdwg.mxu0
        %1343 = vmatpush.bf16.msra.mxu0 %v930
        %1344 = vmatpush.bf16.msra.mxu0 %v926
        %1345 = vmatpush.bf16.msra.mxu0 %v922
        %1346 = vmatpush.bf16.msra.mxu0 %v918
        %1347 = vmatpush.bf16.msra.mxu0 %v914
        %1348 = vmatpush.bf16.msra.mxu0 %v910
        %1349 = vmatpush.bf16.msra.mxu0 %v906
        %1350 = vmatpush.bf16.msra.mxu0 %v902
        %1351 = vmatmul.bf16.gmra.mxu0 %v437
        %v1352 = vpop.f32.mrf.mxu0
        %v1353 = vadd.f32 %v1335, %v1352
        %v1354 = vpop.f32.mrf.mxu0
        %v1355 = vadd.f32 %v1337, %v1354
        %1356 = vmatmul.bf16.gmra.mxu0 %v441
        %v1357 = vpop.f32.mrf.mxu0
        %v1358 = vadd.f32 %v1340, %v1357
        %v1359 = vpop.f32.mrf.mxu0
        %1360 = vdwg.mxu0
        %1361 = vmatpush.bf16.msra.mxu0 %v962
        %1362 = vmatpush.bf16.msra.mxu0 %v958
        %1363 = vmatpush.bf16.msra.mxu0 %v954
        %1364 = vmatpush.bf16.msra.mxu0 %v950
        %1365 = vmatpush.bf16.msra.mxu0 %v946
        %1366 = vmatpush.bf16.msra.mxu0 %v942
        %1367 = vmatpush.bf16.msra.mxu0 %v938
        %1368 = vmatpush.bf16.msra.mxu0 %v934
        %1369 = vmatmul.bf16.gmra.mxu0 %v438
        %v1370 = vpop.f32.mrf.mxu0
        %v1371 = vadd.f32 %v1353, %v1370
        %v1372 = vpop.f32.mrf.mxu0
        %v1373 = vadd.f32 %v1355, %v1372
        %1374 = vmatmul.bf16.gmra.mxu0 %v442
        %v1375 = vpop.f32.mrf.mxu0
        %v1376 = vadd.f32 %v1358, %v1375
        %v1377 = vpop.f32.mrf.mxu0
        %1378 = vdwg.mxu0
        %v1379 = vadd.f32 %v271, %v1155
        %v1380 = vadd.f32 %v272, %v1227
        %v1381 = vadd.f32 %v273, %v1299
        %v1382 = vadd.f32 %v274, %v1371
        %v1383 = vadd.f32 %v275, %v1157
        %v1384 = vadd.f32 %v276, %v1229
        %v1385 = vadd.f32 %v277, %v1301
        %v1386 = vadd.f32 %v278, %v1373
        %v1387 = vadd.f32 %v279, %v1160
        %v1388 = vadd.f32 %v280, %v1232
        %v1389 = vadd.f32 %v281, %v1304
        %v1390 = vadd.f32 %v282, %v1376
        %1391 = vst [vmem:[#allocation2] sm:$0xff] %v1379
        %1392 = vst [vmem:[#allocation2 + $0x8] sm:$0xff] %v1380
        %1393 = vst [vmem:[#allocation2 + $0x10] sm:$0xff] %v1381
        %1394 = vst [vmem:[#allocation2 + $0x18] sm:$0xff] %v1382
        %1395 = vst [vmem:[#allocation2 + $0x20] sm:$0xff] %v1383
        %1396 = vst [vmem:[#allocation2 + $0x28] sm:$0xff] %v1384
        %1397 = vst [vmem:[#allocation2 + $0x30] sm:$0xff] %v1385
        %1398 = vst [vmem:[#allocation2 + $0x38] sm:$0xff] %v1386
        %1399 = vst [vmem:[#allocation2 + $0x40] sm:$0xff] %v1387
        %1400 = vst [vmem:[#allocation2 + $0x48] sm:$0xff] %v1388
        %1401 = vst [vmem:[#allocation2 + $0x50] sm:$0xff] %v1389
        %1402 = vst [vmem:[#allocation2 + $0x58] sm:$0xff] %v1390
        %p1403 = scmp.eq.s32.totalorder %s20, 7
        // Predicated region
        $region56: #{image_discriminator.18} parent=46 // pred_check
          %p1404 = pneg %p1403
        $region57: #{image_discriminator.18} parent=46 // pred_check_branch
          %1406 = sbr.rel (%p1404) target = $region59
        $region58: #{image_discriminator.18} parent=46 // pred_region
          %v1407 = vld [vmem:[#allocation2] sm:$0xff]
          %v1408 = vld [vmem:[#allocation2 + $0x8] sm:$0xff]
          %v1409 = vld [vmem:[#allocation2 + $0x10] sm:$0xff]
          %v1410 = vld [vmem:[#allocation2 + $0x18] sm:$0xff]
          %v1411 = vld [vmem:[#allocation2 + $0x20] sm:$0xff]
          %v1412 = vld [vmem:[#allocation2 + $0x28] sm:$0xff]
          %v1413 = vld [vmem:[#allocation2 + $0x30] sm:$0xff]
          %v1414 = vld [vmem:[#allocation2 + $0x38] sm:$0xff]
          %v1415 = vld [vmem:[#allocation2 + $0x40] sm:$0xff]
          %v1416 = vld [vmem:[#allocation2 + $0x48] sm:$0xff]
          %v1417 = vld [vmem:[#allocation2 + $0x50] sm:$0xff]
          %v1418 = vld [vmem:[#allocation2 + $0x58] sm:$0xff]
          %v1419 = vpack.c.bf16 %v1408, %v1407
          %v1420 = vpack.c.bf16 %v1410, %v1409
          %v1421 = vpack.c.bf16 %v1412, %v1411
          %v1422 = vpack.c.bf16 %v1414, %v1413
          %v1423 = vpack.c.bf16 %v1416, %v1415
          %v1424 = vpack.c.bf16 %v1418, %v1417
          %1425 = vst [vmem:[%s252] sm:$0xff] %v1419
          %1426 = vst [vmem:[%s252 + $0x8] sm:$0xff] %v1420
          %1427 = vst [vmem:[%s252 + $0x10] sm:$0xff] %v1421
          %1428 = vst [vmem:[%s252 + $0x18] sm:$0xff] %v1422
          %1429 = vst [vmem:[%s252 + $0x20] sm:$0xff] %v1423
          %1430 = vst [vmem:[%s252 + $0x28] sm:$0xff] %v1424
        $region59: #{image_discriminator.18} parent=46 // pred_fallthru
          _
        %s1431 = smul.u32 3, %s18
        %s1432 = smul.u32 4, %s19
        %p1433 = scmp.lt.s32.totalorder %s1431, 2
        %s1434 = scalar_select %p1433, %s1431, 2
        %p1435 = scmp.lt.s32.totalorder %s1432, 3
        %s1436 = scalar_select %p1435, %s1432, 3
        %s1437 = smul.addr %s1434, 4
        %s1438 = sadd.s32 %s1436, %s1437
        %s1439 = smul.addr %s1438, 4
        %s1440 = scalar_lea.vmem %s2, %s1439
        // Predicated region
        $region60: #{image_discriminator.18} parent=46 // pred_check
          %p1441 = pneg %p108
        $region61: #{image_discriminator.18} parent=46 // pred_check_branch
          %1443 = sbr.rel (%p1441) target = $region63
        $region62: #{image_discriminator.18} parent=46 // pred_region
          %s1444 = smul.u32 3, %s18
          %s1445 = smul.u32 4, %s19
        $region63: #{image_discriminator.18} parent=46 // pred_fallthru
          _
        // Predicated region
        $region64: #{image_discriminator.18} parent=46 // pred_check
          %p1446 = pneg %p108
        $region65: #{image_discriminator.18} parent=46 // pred_check_branch
          %1448 = sbr.rel (%p1446) target = $region67
        $region66: #{image_discriminator.18} parent=46 // pred_region
          %s1449 = smul.u32 3, %s18
          %s1450 = smul.u32 4, %s19
          %p1451 = scmp.lt.s32.totalorder %s1449, 2
          %s1452 = scalar_select %p1451, %s1449, 2
          %p1453 = scmp.lt.s32.totalorder %s1450, 3
          %s1454 = scalar_select %p1453, %s1450, 3
          %s1455 = smul.addr %s1452, 4
          %s1456 = sadd.s32 %s1454, %s1455
          %s1457 = smul.addr %s1456, 4
          %s1458 = scalar_lea.vmem %s2, %s1457
        $region67: #{image_discriminator.18} parent=46 // pred_fallthru
          _
      $region47: #{image_discriminator.18} parent=5 // pred_fallthru
        _
      %p1459 = scmp.le.s32.totalorder 2, %s8
      // Predicated region
      $region68: #{image_discriminator.18} parent=5 // pred_check
        %p1460 = pneg %p1459
      $region69: #{image_discriminator.18} parent=5 // pred_check_branch
        %1462 = sbr.rel (%p1460) target = $region71
      $region70: #{image_discriminator.18} parent=5 // pred_region
        %s1463 = ssub.s32 %s8, 2
      $region71: #{image_discriminator.18} parent=5 // pred_fallthru
        _
    $region6: #{image_discriminator.18} parent=1 // loop_footer
      %s12 = sadd.s32 1, %s8
    $region7: #{image_discriminator.18} parent=1 // loop_footer_branch
      %7 = sbr.rel target = $region3
    $region8: #{image_discriminator.18} parent=1 // loop_exit
      _

// kernel: image_discriminator.19
$region0: #{image_discriminator.19}
  #allocation0 [shape = 'u32[]', space=smem, size = 0x4, offset = 0x4, fixed_abs, tag = 'smem constant byte address 0x4 - core index']
  #allocation1 [shape = 'u32[72,128]{1,0:T(1,128)}', space=vmem, size = 0x9000, scoped, tag = 'internal scratch']
  %s0 = inlined_call_operand.vmem [shape: bf16[2,9,512], index: 0, kind: input, shape index: {}]
  %s1 = inlined_call_operand.vmem [shape: f32[2,1,512], index: 1, kind: output, shape index: {0}]
  %s2 = inlined_call_operand.vmem [shape: f32[2,1,512], index: 2, kind: output, shape index: {1}]
  %3 = xla_tuple %s1, %s2
  %s4 = sld [smem:[#allocation0]]
  $region91: #{image_discriminator.19} parent=0
    _
  %s6 = ssub.s32 1, %s4
  %s7 = scalar_select 0, %s6, %s4
  $region1: #{image_discriminator.19} parent=0
    #allocation2 [shape = 'u8[16384]{0}', space=vmem, size = 0x4000, scoped, tag = 'input window, operand 0']
    loop: start=0, step=1, limit=6
    $region2: #{image_discriminator.19} parent=1 // loop_pre_header
      _
    $region3: #{image_discriminator.19} parent=1 // loop_header
      %s9 = sphi 0, %s13
      %p10 = scmp.ge.s32.totalorder %s9, 6
      %s16 = sphi 0, %s35
      %s17 = sphi 0, %s31
      %s18 = sphi 0, %s27
      %s19 = sphi 0, %s16
      %s20 = sphi 0, %s17
      %s21 = sphi 0, %s18
      %s22 = sphi 0, %s19
      %s23 = sphi 0, %s20
      %s24 = sphi 0, %s21
      %s42 = sphi 0, %s44
      %s45 = sphi 0, %s42
      %s46 = sphi 0, %s45
      %s62 = sphi 0, %s46
      %s70 = sphi 0, %s72
      %s73 = sphi 0, %s70
      %s74 = sphi 0, %s73
      %s90 = sphi 0, %s74
      %s98 = sphi 0, %s100
      %s101 = sphi 0, %s98
      %s102 = sphi 0, %s101
      %s118 = sphi 0, %s102
    $region4: #{image_discriminator.19} parent=1 // loop_header_branch
      %12 = sbr.rel (%p10) target = $region8
    $region5: #{image_discriminator.19} parent=1 // loop_body
      %s14 = ssub.s32 %s9, 1
      %s15 = ssub.s32 %s9, 2
      %s25 = sadd.s32 1, %s18
      %p26 = scmp.ge.s32.totalorder %s25, 1
      %s27 = scalar_select %p26, 0, %s25
      %s28 = sadd.s32 1, %s17
      %s29 = scalar_select %p26, %s28, %s17
      %p30 = scmp.ge.s32.totalorder %s29, 2
      %s31 = scalar_select %p30, 0, %s29
      %s32 = sadd.s32 1, %s16
      %s33 = scalar_select %p30, %s32, %s16
      %p34 = scmp.ge.s32.totalorder %s33, 2
      %s35 = scalar_select %p34, 0, %s33
      %s36 = ssub.s32 %s16, %s35
      %s37 = ssub.s32 %s18, %s27
      %s38 = sor.u32 %s36, %s37
      %s39 = ssub.s32 %s17, %s31
      %s40 = sor.u32 %s38, %s39
      %p41 = scmp.eq.s32.totalorder %s40, 0
      %s43 = sadd.s32 %s42, 1
      %s44 = scalar_select %p41, %s42, %s43
      %p47 = pneg %p41
      %p48 = scmp.eq.s32.totalorder %s9, 3
      %p49 = por %p47, %p48
      %p50 = scmp.ne.s32.totalorder %s42, %s45
      %p51 = scmp.eq.s32.totalorder %s9, 0
      %p52 = por %p50, %p51
      %p53 = scmp.ne.s32.totalorder %s42, %s45
      %p54 = scmp.eq.s32.totalorder %s14, 3
      %p55 = por %p53, %p54
      %p56 = scmp.ne.s32.totalorder %s45, %s46
      %p57 = scmp.eq.s32.totalorder %s14, 0
      %p58 = por %p56, %p57
      %p59 = scmp.ne.s32.totalorder %s45, %s46
      %p60 = scmp.eq.s32.totalorder %s15, 3
      %p61 = por %p59, %p60
      %p63 = scmp.ne.s32.totalorder %s46, %s62
      %p64 = scmp.eq.s32.totalorder %s15, 0
      %p65 = por %p63, %p64
      %s66 = ssub.s32 %s16, %s35
      %s67 = ssub.s32 %s17, %s31
      %s68 = sor.u32 %s66, %s67
      %p69 = scmp.eq.s32.totalorder %s68, 0
      %s71 = sadd.s32 %s70, 1
      %s72 = scalar_select %p69, %s70, %s71
      %p75 = pneg %p69
      %p76 = scmp.eq.s32.totalorder %s9, 3
      %p77 = por %p75, %p76
      %p78 = scmp.ne.s32.totalorder %s70, %s73
      %p79 = scmp.eq.s32.totalorder %s9, 0
      %p80 = por %p78, %p79
      %p81 = scmp.ne.s32.totalorder %s70, %s73
      %p82 = scmp.eq.s32.totalorder %s14, 3
      %p83 = por %p81, %p82
      %p84 = scmp.ne.s32.totalorder %s73, %s74
      %p85 = scmp.eq.s32.totalorder %s14, 0
      %p86 = por %p84, %p85
      %p87 = scmp.ne.s32.totalorder %s73, %s74
      %p88 = scmp.eq.s32.totalorder %s15, 3
      %p89 = por %p87, %p88
      %p91 = scmp.ne.s32.totalorder %s74, %s90
      %p92 = scmp.eq.s32.totalorder %s15, 0
      %p93 = por %p91, %p92
      %s94 = ssub.s32 %s16, %s35
      %s95 = ssub.s32 %s17, %s31
      %s96 = sor.u32 %s94, %s95
      %p97 = scmp.eq.s32.totalorder %s96, 0
      %s99 = sadd.s32 %s98, 1
      %s100 = scalar_select %p97, %s98, %s99
      %p103 = pneg %p97
      %p104 = scmp.eq.s32.totalorder %s9, 3
      %p105 = por %p103, %p104
      %p106 = scmp.ne.s32.totalorder %s98, %s101
      %p107 = scmp.eq.s32.totalorder %s9, 0
      %p108 = por %p106, %p107
      %p109 = scmp.ne.s32.totalorder %s98, %s101
      %p110 = scmp.eq.s32.totalorder %s14, 3
      %p111 = por %p109, %p110
      %p112 = scmp.ne.s32.totalorder %s101, %s102
      %p113 = scmp.eq.s32.totalorder %s14, 0
      %p114 = por %p112, %p113
      %p115 = scmp.ne.s32.totalorder %s101, %s102
      %p116 = scmp.eq.s32.totalorder %s15, 3
      %p117 = por %p115, %p116
      %p119 = scmp.ne.s32.totalorder %s102, %s118
      %p120 = scmp.eq.s32.totalorder %s15, 0
      %p121 = por %p119, %p120
      %p122 = scmp.le.s32.totalorder 1, %s9
      %p123 = scmp.lt.s32.totalorder %s9, 5
      %p124 = pnand %p122, %p123
      %p125 = pneg %p124
      // Predicated region
      $region9: #{image_discriminator.19} parent=5 // pred_check
        _
      $region10: #{image_discriminator.19} parent=5 // pred_check_branch
        %127 = sbr.rel (%p124) target = $region12
      $region11: #{image_discriminator.19} parent=5 // pred_region
        %s128 = ssub.s32 %s9, 1
      $region12: #{image_discriminator.19} parent=5 // pred_fallthru
        _
      %p129 = scmp.lt.s32.totalorder %s9, 4
      // Predicated region
      $region13: #{image_discriminator.19} parent=5 // pred_check
        %p130 = pneg %p129
      $region14: #{image_discriminator.19} parent=5 // pred_check_branch
        %132 = sbr.rel (%p130) target = $region16
      $region15: #{image_discriminator.19} parent=5 // pred_region
        // Predicated region
        $region17: #{image_discriminator.19} parent=15 // pred_check
          %p133 = pneg %p52
        $region18: #{image_discriminator.19} parent=15 // pred_check_branch
          %135 = sbr.rel (%p133) target = $region20
        $region19: #{image_discriminator.19} parent=15 // pred_region
          %s136 = sand.u32 %s42, 1
          %s137 = sand.u32 %s42, 1
          %s138 = smul.addr %s137, 16
          %s139 = scalar_lea.vmem [#allocation2], %s138
          %s140 = smul.u32 2, %s18
          %s141 = smul.u32 2, %s17
          %s142 = smul.addr %s140, 4
          %s143 = sadd.s32 %s141, %s142
          %s144 = smul.addr %s16, 8
          %s145 = sadd.s32 %s143, %s144
          %s146 = smul.addr %s145, 4
          %s147 = scalar_lea.vmem %s0, %s146
          // Predicated region
          $region21: #{image_discriminator.19} parent=19 // pred_check
            _
          $region22: #{image_discriminator.19} parent=19 // pred_check_branch
            %149 = sbr.rel (0) target = $region24
          $region23: #{image_discriminator.19} parent=19 // pred_region
            // Predicated region
            $region25: #{image_discriminator.19} parent=23 // pred_check
              _
            $region26: #{image_discriminator.19} parent=23 // pred_check_branch
              %151 = sbr.rel (0) target = $region28
            $region27: #{image_discriminator.19} parent=23 // pred_region
              // Predicated region
              $region40: #{image_discriminator.19} parent=27 // pred_check
                _
              $region41: #{image_discriminator.19} parent=27 // pred_check_branch
                %169 = sbr.rel (0) target = $region43
              $region42: #{image_discriminator.19} parent=27 // pred_region
                loop: start=0, step=1, limit=1
                $region44: #{image_discriminator.19} parent=42 // loop_pre_header
                  _
                $region45: #{image_discriminator.19} parent=42 // loop_header
                  %s171 = sphi 0, %s175
                  %p172 = scmp.ge.s32.totalorder %s171, 1
                  %s176 = sphi %s147, %s147
                  %s177 = sphi %s139, %s139
                $region46: #{image_discriminator.19} parent=42 // loop_header_branch
                  %174 = sbr.rel (%p172) target = $region50
                $region47: #{image_discriminator.19} parent=42 // loop_body
                  %v178 = vld [vmem:[%s176] sm:$0xff]
                  %179 = vst [vmem:[%s177] sm:$0xff] %v178
                  %v180 = vld [vmem:[%s176 + $0x10] sm:$0xff]
                  %181 = vst [vmem:[%s177 + $0x8] sm:$0xff] %v180
                $region48: #{image_discriminator.19} parent=42 // loop_footer
                  %s175 = sadd.s32 1, %s171
                $region49: #{image_discriminator.19} parent=42 // loop_footer_branch
                  %170 = sbr.rel target = $region45
                $region50: #{image_discriminator.19} parent=42 // loop_exit
                  _
              $region43: #{image_discriminator.19} parent=27 // pred_fallthru
                _
              // Predicated region
              $region51: #{image_discriminator.19} parent=27 // pred_check
                _
              $region52: #{image_discriminator.19} parent=27 // pred_check_branch
                %183 = sbr.rel target = $region54
              $region53: #{image_discriminator.19} parent=27 // pred_region
                _
              $region54: #{image_discriminator.19} parent=27 // pred_fallthru
                _
            $region28: #{image_discriminator.19} parent=23 // pred_fallthru
              _
            // Predicated region
            $region29: #{image_discriminator.19} parent=23 // pred_check
              _
            $region30: #{image_discriminator.19} parent=23 // pred_check_branch
              %153 = sbr.rel target = $region32
            $region31: #{image_discriminator.19} parent=23 // pred_region
              %s155 = ssub.s32 256, 1
              loop: start=0, step=1, limit=1
              $region33: #{image_discriminator.19} parent=31 // loop_pre_header
                _
              $region34: #{image_discriminator.19} parent=31 // loop_header
                %s157 = sphi 0, %s161
                %p158 = scmp.ge.s32.totalorder %s157, 1
                %s162 = sphi %s147, %s147
                %s163 = sphi %s139, %s139
              $region35: #{image_discriminator.19} parent=31 // loop_header_branch
                %160 = sbr.rel (%p158) target = $region39
              $region36: #{image_discriminator.19} parent=31 // loop_body
                %v164 = vld [vmem:[%s162] sm:%s155]
                %165 = vst [vmem:[%s163] sm:%s155] %v164
                %v166 = vld [vmem:[%s162 + $0x10] sm:%s155]
                %167 = vst [vmem:[%s163 + $0x8] sm:%s155] %v166
              $region37: #{image_discriminator.19} parent=31 // loop_footer
                %s161 = sadd.s32 1, %s157
              $region38: #{image_discriminator.19} parent=31 // loop_footer_branch
                %156 = sbr.rel target = $region34
              $region39: #{image_discriminator.19} parent=31 // loop_exit
                _
            $region32: #{image_discriminator.19} parent=23 // pred_fallthru
              _
          $region24: #{image_discriminator.19} parent=19 // pred_fallthru
            _
          %184 = vnop
        $region20: #{image_discriminator.19} parent=15 // pred_fallthru
          _
      $region16: #{image_discriminator.19} parent=5 // pred_fallthru
        _
      %p185 = scmp.le.s32.totalorder 1, %s9
      %p186 = scmp.lt.s32.totalorder %s9, 5
      %p187 = pnand %p185, %p186
      %p188 = pneg %p187
      // Predicated region
      $region55: #{image_discriminator.19} parent=5 // pred_check
        _
      $region56: #{image_discriminator.19} parent=5 // pred_check_branch
        %190 = sbr.rel (%p187) target = $region58
      $region57: #{image_discriminator.19} parent=5 // pred_region
        %s191 = ssub.s32 %s9, 1
        %s192 = sand.u32 %s45, 1
        %s193 = sand.u32 %s45, 1
        %s194 = smul.addr %s193, 16
        %s195 = scalar_lea.vmem [#allocation2], %s194
        // Predicated region
        $region59: #{image_discriminator.19} parent=57 // pred_check
          %p196 = pneg %p58
        $region60: #{image_discriminator.19} parent=57 // pred_check_branch
          %198 = sbr.rel (%p196) target = $region62
        $region61: #{image_discriminator.19} parent=57 // pred_region
          _
        $region62: #{image_discriminator.19} parent=57 // pred_fallthru
          _
        %s199 = sand.u32 %s45, 1
        %s200 = sand.u32 %s45, 1
        %s201 = smul.addr %s200, 16
        %s202 = scalar_lea.vmem [#allocation2], %s201
        %p203 = pneg %p58
        %p204 = pneg %p55
        %p205 = pneg %p86
        %p206 = pneg %p83
        %s207 = smul.u32 2, %s20
        %p208 = scmp.lt.s32.totalorder %s19, 1
        %s209 = scalar_select %p208, %s19, 1
        %p210 = scmp.lt.s32.totalorder %s207, 3
        %s211 = scalar_select %p210, %s207, 3
        %s212 = smul.addr %s209, 4
        %s213 = sadd.s32 %s211, %s212
        %s214 = scalar_lea.vmem %s1, %s213
        %p215 = pneg %p114
        %p216 = pneg %p111
        %s217 = smul.u32 2, %s20
        %p218 = scmp.lt.s32.totalorder %s19, 1
        %s219 = scalar_select %p218, %s19, 1
        %p220 = scmp.lt.s32.totalorder %s217, 3
        %s221 = scalar_select %p220, %s217, 3
        %s222 = smul.addr %s219, 4
        %s223 = sadd.s32 %s221, %s222
        %s224 = scalar_lea.vmem %s2, %s223
        %s225 = smul.u32 2, %s21
        %s226 = smul.u32 2, %s20
        %s227 = smul.u32 2, %s20
        %p228 = scmp.lt.s32.totalorder %s19, 1
        %s229 = scalar_select %p228, %s19, 1
        %p230 = scmp.lt.s32.totalorder %s227, 3
        %s231 = scalar_select %p230, %s227, 3
        %s232 = smul.addr %s229, 4
        %s233 = sadd.s32 %s231, %s232
        %s234 = scalar_lea.vmem %s1, %s233
        %s235 = smul.u32 2, %s20
        %s236 = smul.u32 2, %s20
        %p237 = scmp.lt.s32.totalorder %s19, 1
        %s238 = scalar_select %p237, %s19, 1
        %p239 = scmp.lt.s32.totalorder %s236, 3
        %s240 = scalar_select %p239, %s236, 3
        %s241 = smul.addr %s238, 4
        %s242 = sadd.s32 %s240, %s241
        %s243 = scalar_lea.vmem %s2, %s242
        %s244 = smul.u32 2, %s20
        %v245 = vld [vmem:[%s195] sm:$0xff]
        %v246 = vld [vmem:[%s195 + $0x8] sm:$0x11]
        %v247 = vunpack.c.l.bf16 %v245
        %v248 = vunpack.c.h.bf16 %v245
        %v249 = vunpack.c.l.bf16 %v246
        %v250 = vunpack.c.h.bf16 %v246
        %p251 = scmp.eq.s32.totalorder %s21, 0
        // Predicated region
        $region63: #{image_discriminator.19} parent=57 // pred_check
          %p252 = pneg %p251
        $region64: #{image_discriminator.19} parent=57 // pred_check_branch
          %254 = sbr.rel (%p252) target = $region66
        $region65: #{image_discriminator.19} parent=57 // pred_region
          %v255 = vlaneseq
          %vm256 = vcmp.ge.s32.totalorder %v255, 0
          %vm257 = vcmp.lt.s32.totalorder %v255, 256
          %vm258 = vmand %vm256, %vm257
          %259 = vst.msk [vmem:[%s234] sm:$0x3] %vm258, 0.0
          %260 = vst.msk [vmem:[%s243] sm:$0x3] %vm258, 0.0
        $region66: #{image_discriminator.19} parent=57 // pred_fallthru
          _
        %v261 = vld [vmem:[%s234] sm:$0x3]
        %vm262 = vcmask 1040384
        %v263 = vsel %vm262, %v249, 0.0
        %v264 = vadd.f32 %v247, %v263
        %v265 = vrot.slane %v264, 4
        %v266 = vadd.f32 %v264, %v265
        %v267 = vrot.slane %v266, 2
        %v268 = vadd.f32 %v266, %v267
        %v269 = vrot.slane %v268, 1
        %v270 = vadd.f32 %v268, %v269
        %v271 = vsel %vm262, %v250, 0.0
        %v272 = vadd.f32 %v248, %v271
        %v273 = vrot.slane %v272, 4
        %v274 = vadd.f32 %v272, %v273
        %v275 = vrot.slane %v274, 2
        %v276 = vadd.f32 %v274, %v275
        %v277 = vrot.slane %v276, 1
        %v278 = vadd.f32 %v276, %v277
        %v281 = vrot.slane %v278, 7
        %v282 = vsel %vm262, %v270, %v281
        %v284 = vadd.f32 %v261, %v282
        %v285 = vlaneseq
        %vm286 = vcmp.ge.s32.totalorder %v285, 0
        %vm287 = vcmp.lt.s32.totalorder %v285, 256
        %vm288 = vmand %vm286, %vm287
        %289 = vst.msk [vmem:[%s234] sm:$0x3] %vm288, %v284
        %v290 = vld [vmem:[%s243] sm:$0x3]
        %v291 = vmul.f32 %v247, %v247
        %v292 = vmul.f32 %v248, %v248
        %v293 = vmul.f32 %v249, %v249
        %v294 = vmul.f32 %v250, %v250
        %v295 = vsel %vm262, %v293, 0.0
        %v296 = vadd.f32 %v291, %v295
        %v297 = vrot.slane %v296, 4
        %v298 = vadd.f32 %v296, %v297
        %v299 = vrot.slane %v298, 2
        %v300 = vadd.f32 %v298, %v299
        %v301 = vrot.slane %v300, 1
        %v302 = vadd.f32 %v300, %v301
        %v303 = vsel %vm262, %v294, 0.0
        %v304 = vadd.f32 %v292, %v303
        %v305 = vrot.slane %v304, 4
        %v306 = vadd.f32 %v304, %v305
        %v307 = vrot.slane %v306, 2
        %v308 = vadd.f32 %v306, %v307
        %v309 = vrot.slane %v308, 1
        %v310 = vadd.f32 %v308, %v309
        %v313 = vrot.slane %v310, 7
        %v314 = vsel %vm262, %v302, %v313
        %v316 = vadd.f32 %v290, %v314
        %317 = vst.msk [vmem:[%s243] sm:$0x3] %vm288, %v316
        // Predicated region
        $region67: #{image_discriminator.19} parent=57 // pred_check
          %p318 = pneg %p251
        $region68: #{image_discriminator.19} parent=57 // pred_check_branch
          %320 = sbr.rel (%p318) target = $region70
        $region69: #{image_discriminator.19} parent=57 // pred_region
          %v321 = vld [vmem:[%s234] sm:$0x3]
          %v322 = vrcp.pop 9.0
          %v323 = vmul.f32 9.0, %v322
          %v324 = vsub.f32 1.0, %v323
          %v325 = vmul.f32 %v322, %v324
          %v326 = vadd.f32 %v322, %v325
          %vm327 = vweird.f32 %v322
          %v328 = vsel %vm327, %v322, %v326
          %v329 = vmul.f32 %v321, %v328
          %v330 = vld [vmem:[%s243] sm:$0x3]
          %v331 = vmul.f32 %v330, %v328
          %v332 = vmul.f32 %v329, %v329
          %v333 = vsub.f32 %v331, %v332
          %334 = vst.msk [vmem:[%s234] sm:$0x3] %vm288, %v329
          %v335 = vadd.f32 %v333, 1e-05
          %v336 = vrsqrt.pop %v335
          %v337 = vmul.f32 %v336, %v335
          %v338 = vmul.f32 %v337, %v336
          %v339 = vmul.f32 0.5, %v338
          %v340 = vsub.f32 1.5, %v339
          %v341 = vmul.f32 %v336, %v340
          %vm342 = vweird.f32 %v335
          %vm343 = vweird.f32 %v336
          %vm344 = vmor %vm342, %vm343
          %v345 = vsel %vm344, %v336, %v341
          %346 = vst.msk [vmem:[%s243] sm:$0x3] %vm288, %v345
        $region70: #{image_discriminator.19} parent=57 // pred_fallthru
          _
        %s347 = smul.u32 2, %s20
        %p348 = scmp.lt.s32.totalorder %s19, 1
        %s349 = scalar_select %p348, %s19, 1
        %p350 = scmp.lt.s32.totalorder %s347, 3
        %s351 = scalar_select %p350, %s347, 3
        %s352 = smul.addr %s349, 4
        %s353 = sadd.s32 %s351, %s352
        %s354 = scalar_lea.vmem %s1, %s353
        %s355 = smul.u32 2, %s20
        %p356 = scmp.lt.s32.totalorder %s19, 1
        %s357 = scalar_select %p356, %s19, 1
        %p358 = scmp.lt.s32.totalorder %s355, 3
        %s359 = scalar_select %p358, %s355, 3
        %s360 = smul.addr %s357, 4
        %s361 = sadd.s32 %s359, %s360
        %s362 = scalar_lea.vmem %s2, %s361
        // Predicated region
        $region71: #{image_discriminator.19} parent=57 // pred_check
          %p363 = pneg %p83
        $region72: #{image_discriminator.19} parent=57 // pred_check_branch
          %365 = sbr.rel (%p363) target = $region74
        $region73: #{image_discriminator.19} parent=57 // pred_region
          %s366 = smul.u32 2, %s20
        $region74: #{image_discriminator.19} parent=57 // pred_fallthru
          _
        // Predicated region
        $region75: #{image_discriminator.19} parent=57 // pred_check
          %p367 = pneg %p111
        $region76: #{image_discriminator.19} parent=57 // pred_check_branch
          %369 = sbr.rel (%p367) target = $region78
        $region77: #{image_discriminator.19} parent=57 // pred_region
          %s370 = smul.u32 2, %s20
        $region78: #{image_discriminator.19} parent=57 // pred_fallthru
          _
      $region58: #{image_discriminator.19} parent=5 // pred_fallthru
        _
      %p371 = scmp.le.s32.totalorder 2, %s9
      // Predicated region
      $region79: #{image_discriminator.19} parent=5 // pred_check
        %p372 = pneg %p371
      $region80: #{image_discriminator.19} parent=5 // pred_check_branch
        %374 = sbr.rel (%p372) target = $region82
      $region81: #{image_discriminator.19} parent=5 // pred_region
        %s375 = ssub.s32 %s9, 2
        // Predicated region
        $region83: #{image_discriminator.19} parent=81 // pred_check
          %p376 = pneg %p89
        $region84: #{image_discriminator.19} parent=81 // pred_check_branch
          %378 = sbr.rel (%p376) target = $region86
        $region85: #{image_discriminator.19} parent=81 // pred_region
          %s379 = smul.u32 2, %s23
          %p380 = scmp.lt.s32.totalorder %s22, 1
          %s381 = scalar_select %p380, %s22, 1
          %p382 = scmp.lt.s32.totalorder %s379, 3
          %s383 = scalar_select %p382, %s379, 3
          %s384 = smul.addr %s381, 4
          %s385 = sadd.s32 %s383, %s384
          %s386 = scalar_lea.vmem %s1, %s385
        $region86: #{image_discriminator.19} parent=81 // pred_fallthru
          _
        // Predicated region
        $region87: #{image_discriminator.19} parent=81 // pred_check
          %p387 = pneg %p117
        $region88: #{image_discriminator.19} parent=81 // pred_check_branch
          %389 = sbr.rel (%p387) target = $region90
        $region89: #{image_discriminator.19} parent=81 // pred_region
          %s390 = smul.u32 2, %s23
          %p391 = scmp.lt.s32.totalorder %s22, 1
          %s392 = scalar_select %p391, %s22, 1
          %p393 = scmp.lt.s32.totalorder %s390, 3
          %s394 = scalar_select %p393, %s390, 3
          %s395 = smul.addr %s392, 4
          %s396 = sadd.s32 %s394, %s395
          %s397 = scalar_lea.vmem %s2, %s396
        $region90: #{image_discriminator.19} parent=81 // pred_fallthru
          _
      $region82: #{image_discriminator.19} parent=5 // pred_fallthru
        _
    $region6: #{image_discriminator.19} parent=1 // loop_footer
      %s13 = sadd.s32 1, %s9
    $region7: #{image_discriminator.19} parent=1 // loop_footer_branch
      %8 = sbr.rel target = $region3
    $region8: #{image_discriminator.19} parent=1 // loop_exit
      _

// kernel: image_discriminator.20
$region0: #{image_discriminator.20}
  #allocation0 [shape = 'u32[]', space=smem, size = 0x4, offset = 0x4, fixed_abs, tag = 'smem constant byte address 0x4 - core index']
  #allocation1 [shape = 'u32[72,128]{1,0:T(1,128)}', space=vmem, size = 0x9000, scoped, tag = 'internal scratch']
  %s0 = inlined_call_operand.vmem [shape: bf16[2,9,512], index: 0, kind: input, shape index: {}]
  %s1 = inlined_call_operand.vmem [shape: f32[2,1,512], index: 1, kind: input, shape index: {}]
  %s2 = inlined_call_operand.vmem [shape: f32[2,1,512], index: 2, kind: input, shape index: {}]
  %s3 = inlined_call_operand.vmem [shape: bf16[2,9,512], index: 3, kind: output, shape index: {}]
  %s4 = sld [smem:[#allocation0]]
  $region117: #{image_discriminator.20} parent=0
    _
  %s6 = ssub.s32 1, %s4
  %s7 = scalar_select 0, %s6, %s4
  $region1: #{image_discriminator.20} parent=0
    #allocation2 [shape = 'u8[16384]{0}', space=vmem, size = 0x4000, scoped, tag = 'input window, operand 0']
    #allocation3 [shape = 'u8[16384]{0}', space=vmem, size = 0x4000, scoped, tag = 'output window, operand 0']
    loop: start=0, step=1, limit=6
    $region2: #{image_discriminator.20} parent=1 // loop_pre_header
      _
    $region3: #{image_discriminator.20} parent=1 // loop_header
      %s9 = sphi 0, %s13
      %p10 = scmp.ge.s32.totalorder %s9, 6
      %s16 = sphi 0, %s35
      %s17 = sphi 0, %s31
      %s18 = sphi 0, %s27
      %s19 = sphi 0, %s16
      %s20 = sphi 0, %s17
      %s21 = sphi 0, %s18
      %s22 = sphi 0, %s19
      %s23 = sphi 0, %s20
      %s24 = sphi 0, %s21
      %s42 = sphi 0, %s44
      %s45 = sphi 0, %s42
      %s46 = sphi 0, %s45
      %s62 = sphi 0, %s46
      %s70 = sphi 0, %s72
      %s73 = sphi 0, %s70
      %s74 = sphi 0, %s73
      %s90 = sphi 0, %s74
      %s98 = sphi 0, %s100
      %s101 = sphi 0, %s98
      %s102 = sphi 0, %s101
      %s118 = sphi 0, %s102
      %s128 = sphi 0, %s130
      %s131 = sphi 0, %s128
      %s132 = sphi 0, %s131
      %s148 = sphi 0, %s132
    $region4: #{image_discriminator.20} parent=1 // loop_header_branch
      %12 = sbr.rel (%p10) target = $region8
    $region5: #{image_discriminator.20} parent=1 // loop_body
      %s14 = ssub.s32 %s9, 1
      %s15 = ssub.s32 %s9, 2
      %s25 = sadd.s32 1, %s18
      %p26 = scmp.ge.s32.totalorder %s25, 1
      %s27 = scalar_select %p26, 0, %s25
      %s28 = sadd.s32 1, %s17
      %s29 = scalar_select %p26, %s28, %s17
      %p30 = scmp.ge.s32.totalorder %s29, 2
      %s31 = scalar_select %p30, 0, %s29
      %s32 = sadd.s32 1, %s16
      %s33 = scalar_select %p30, %s32, %s16
      %p34 = scmp.ge.s32.totalorder %s33, 2
      %s35 = scalar_select %p34, 0, %s33
      %s36 = ssub.s32 %s16, %s35
      %s37 = ssub.s32 %s18, %s27
      %s38 = sor.u32 %s36, %s37
      %s39 = ssub.s32 %s17, %s31
      %s40 = sor.u32 %s38, %s39
      %p41 = scmp.eq.s32.totalorder %s40, 0
      %s43 = sadd.s32 %s42, 1
      %s44 = scalar_select %p41, %s42, %s43
      %p47 = pneg %p41
      %p48 = scmp.eq.s32.totalorder %s9, 3
      %p49 = por %p47, %p48
      %p50 = scmp.ne.s32.totalorder %s42, %s45
      %p51 = scmp.eq.s32.totalorder %s9, 0
      %p52 = por %p50, %p51
      %p53 = scmp.ne.s32.totalorder %s42, %s45
      %p54 = scmp.eq.s32.totalorder %s14, 3
      %p55 = por %p53, %p54
      %p56 = scmp.ne.s32.totalorder %s45, %s46
      %p57 = scmp.eq.s32.totalorder %s14, 0
      %p58 = por %p56, %p57
      %p59 = scmp.ne.s32.totalorder %s45, %s46
      %p60 = scmp.eq.s32.totalorder %s15, 3
      %p61 = por %p59, %p60
      %p63 = scmp.ne.s32.totalorder %s46, %s62
      %p64 = scmp.eq.s32.totalorder %s15, 0
      %p65 = por %p63, %p64
      %s66 = ssub.s32 %s16, %s35
      %s67 = ssub.s32 %s17, %s31
      %s68 = sor.u32 %s66, %s67
      %p69 = scmp.eq.s32.totalorder %s68, 0
      %s71 = sadd.s32 %s70, 1
      %s72 = scalar_select %p69, %s70, %s71
      %p75 = pneg %p69
      %p76 = scmp.eq.s32.totalorder %s9, 3
      %p77 = por %p75, %p76
      %p78 = scmp.ne.s32.totalorder %s70, %s73
      %p79 = scmp.eq.s32.totalorder %s9, 0
      %p80 = por %p78, %p79
      %p81 = scmp.ne.s32.totalorder %s70, %s73
      %p82 = scmp.eq.s32.totalorder %s14, 3
      %p83 = por %p81, %p82
      %p84 = scmp.ne.s32.totalorder %s73, %s74
      %p85 = scmp.eq.s32.totalorder %s14, 0
      %p86 = por %p84, %p85
      %p87 = scmp.ne.s32.totalorder %s73, %s74
      %p88 = scmp.eq.s32.totalorder %s15, 3
      %p89 = por %p87, %p88
      %p91 = scmp.ne.s32.totalorder %s74, %s90
      %p92 = scmp.eq.s32.totalorder %s15, 0
      %p93 = por %p91, %p92
      %s94 = ssub.s32 %s16, %s35
      %s95 = ssub.s32 %s17, %s31
      %s96 = sor.u32 %s94, %s95
      %p97 = scmp.eq.s32.totalorder %s96, 0
      %s99 = sadd.s32 %s98, 1
      %s100 = scalar_select %p97, %s98, %s99
      %p103 = pneg %p97
      %p104 = scmp.eq.s32.totalorder %s9, 3
      %p105 = por %p103, %p104
      %p106 = scmp.ne.s32.totalorder %s98, %s101
      %p107 = scmp.eq.s32.totalorder %s9, 0
      %p108 = por %p106, %p107
      %p109 = scmp.ne.s32.totalorder %s98, %s101
      %p110 = scmp.eq.s32.totalorder %s14, 3
      %p111 = por %p109, %p110
      %p112 = scmp.ne.s32.totalorder %s101, %s102
      %p113 = scmp.eq.s32.totalorder %s14, 0
      %p114 = por %p112, %p113
      %p115 = scmp.ne.s32.totalorder %s101, %s102
      %p116 = scmp.eq.s32.totalorder %s15, 3
      %p117 = por %p115, %p116
      %p119 = scmp.ne.s32.totalorder %s102, %s118
      %p120 = scmp.eq.s32.totalorder %s15, 0
      %p121 = por %p119, %p120
      %s122 = ssub.s32 %s16, %s35
      %s123 = ssub.s32 %s18, %s27
      %s124 = sor.u32 %s122, %s123
      %s125 = ssub.s32 %s17, %s31
      %s126 = sor.u32 %s124, %s125
      %p127 = scmp.eq.s32.totalorder %s126, 0
      %s129 = sadd.s32 %s128, 1
      %s130 = scalar_select %p127, %s128, %s129
      %p133 = pneg %p127
      %p134 = scmp.eq.s32.totalorder %s9, 3
      %p135 = por %p133, %p134
      %p136 = scmp.ne.s32.totalorder %s128, %s131
      %p137 = scmp.eq.s32.totalorder %s9, 0
      %p138 = por %p136, %p137
      %p139 = scmp.ne.s32.totalorder %s128, %s131
      %p140 = scmp.eq.s32.totalorder %s14, 3
      %p141 = por %p139, %p140
      %p142 = scmp.ne.s32.totalorder %s131, %s132
      %p143 = scmp.eq.s32.totalorder %s14, 0
      %p144 = por %p142, %p143
      %p145 = scmp.ne.s32.totalorder %s131, %s132
      %p146 = scmp.eq.s32.totalorder %s15, 3
      %p147 = por %p145, %p146
      %p149 = scmp.ne.s32.totalorder %s132, %s148
      %p150 = scmp.eq.s32.totalorder %s15, 0
      %p151 = por %p149, %p150
      %p152 = scmp.le.s32.totalorder 1, %s9
      %p153 = scmp.lt.s32.totalorder %s9, 5
      %p154 = pnand %p152, %p153
      %p155 = pneg %p154
      // Predicated region
      $region9: #{image_discriminator.20} parent=5 // pred_check
        _
      $region10: #{image_discriminator.20} parent=5 // pred_check_branch
        %157 = sbr.rel (%p154) target = $region12
      $region11: #{image_discriminator.20} parent=5 // pred_region
        %s158 = ssub.s32 %s9, 1
      $region12: #{image_discriminator.20} parent=5 // pred_fallthru
        _
      %p159 = scmp.lt.s32.totalorder %s9, 4
      // Predicated region
      $region13: #{image_discriminator.20} parent=5 // pred_check
        %p160 = pneg %p159
      $region14: #{image_discriminator.20} parent=5 // pred_check_branch
        %162 = sbr.rel (%p160) target = $region16
      $region15: #{image_discriminator.20} parent=5 // pred_region
        // Predicated region
        $region17: #{image_discriminator.20} parent=15 // pred_check
          %p163 = pneg %p52
        $region18: #{image_discriminator.20} parent=15 // pred_check_branch
          %165 = sbr.rel (%p163) target = $region20
        $region19: #{image_discriminator.20} parent=15 // pred_region
          %s166 = sand.u32 %s42, 1
          %s167 = sand.u32 %s42, 1
          %s168 = smul.addr %s167, 16
          %s169 = scalar_lea.vmem [#allocation2], %s168
          %s170 = smul.u32 2, %s18
          %s171 = smul.u32 2, %s17
          %s172 = smul.addr %s170, 4
          %s173 = sadd.s32 %s171, %s172
          %s174 = smul.addr %s16, 8
          %s175 = sadd.s32 %s173, %s174
          %s176 = smul.addr %s175, 4
          %s177 = scalar_lea.vmem %s0, %s176
          // Predicated region
          $region21: #{image_discriminator.20} parent=19 // pred_check
            _
          $region22: #{image_discriminator.20} parent=19 // pred_check_branch
            %179 = sbr.rel (0) target = $region24
          $region23: #{image_discriminator.20} parent=19 // pred_region
            // Predicated region
            $region25: #{image_discriminator.20} parent=23 // pred_check
              _
            $region26: #{image_discriminator.20} parent=23 // pred_check_branch
              %181 = sbr.rel (0) target = $region28
            $region27: #{image_discriminator.20} parent=23 // pred_region
              // Predicated region
              $region40: #{image_discriminator.20} parent=27 // pred_check
                _
              $region41: #{image_discriminator.20} parent=27 // pred_check_branch
                %199 = sbr.rel (0) target = $region43
              $region42: #{image_discriminator.20} parent=27 // pred_region
                loop: start=0, step=1, limit=1
                $region44: #{image_discriminator.20} parent=42 // loop_pre_header
                  _
                $region45: #{image_discriminator.20} parent=42 // loop_header
                  %s201 = sphi 0, %s205
                  %p202 = scmp.ge.s32.totalorder %s201, 1
                  %s206 = sphi %s177, %s177
                  %s207 = sphi %s169, %s169
                $region46: #{image_discriminator.20} parent=42 // loop_header_branch
                  %204 = sbr.rel (%p202) target = $region50
                $region47: #{image_discriminator.20} parent=42 // loop_body
                  %v208 = vld [vmem:[%s206] sm:$0xff]
                  %209 = vst [vmem:[%s207] sm:$0xff] %v208
                  %v210 = vld [vmem:[%s206 + $0x10] sm:$0xff]
                  %211 = vst [vmem:[%s207 + $0x8] sm:$0xff] %v210
                $region48: #{image_discriminator.20} parent=42 // loop_footer
                  %s205 = sadd.s32 1, %s201
                $region49: #{image_discriminator.20} parent=42 // loop_footer_branch
                  %200 = sbr.rel target = $region45
                $region50: #{image_discriminator.20} parent=42 // loop_exit
                  _
              $region43: #{image_discriminator.20} parent=27 // pred_fallthru
                _
              // Predicated region
              $region51: #{image_discriminator.20} parent=27 // pred_check
                _
              $region52: #{image_discriminator.20} parent=27 // pred_check_branch
                %213 = sbr.rel target = $region54
              $region53: #{image_discriminator.20} parent=27 // pred_region
                _
              $region54: #{image_discriminator.20} parent=27 // pred_fallthru
                _
            $region28: #{image_discriminator.20} parent=23 // pred_fallthru
              _
            // Predicated region
            $region29: #{image_discriminator.20} parent=23 // pred_check
              _
            $region30: #{image_discriminator.20} parent=23 // pred_check_branch
              %183 = sbr.rel target = $region32
            $region31: #{image_discriminator.20} parent=23 // pred_region
              %s185 = ssub.s32 256, 1
              loop: start=0, step=1, limit=1
              $region33: #{image_discriminator.20} parent=31 // loop_pre_header
                _
              $region34: #{image_discriminator.20} parent=31 // loop_header
                %s187 = sphi 0, %s191
                %p188 = scmp.ge.s32.totalorder %s187, 1
                %s192 = sphi %s177, %s177
                %s193 = sphi %s169, %s169
              $region35: #{image_discriminator.20} parent=31 // loop_header_branch
                %190 = sbr.rel (%p188) target = $region39
              $region36: #{image_discriminator.20} parent=31 // loop_body
                %v194 = vld [vmem:[%s192] sm:%s185]
                %195 = vst [vmem:[%s193] sm:%s185] %v194
                %v196 = vld [vmem:[%s192 + $0x10] sm:%s185]
                %197 = vst [vmem:[%s193 + $0x8] sm:%s185] %v196
              $region37: #{image_discriminator.20} parent=31 // loop_footer
                %s191 = sadd.s32 1, %s187
              $region38: #{image_discriminator.20} parent=31 // loop_footer_branch
                %186 = sbr.rel target = $region34
              $region39: #{image_discriminator.20} parent=31 // loop_exit
                _
            $region32: #{image_discriminator.20} parent=23 // pred_fallthru
              _
          $region24: #{image_discriminator.20} parent=19 // pred_fallthru
            _
          %214 = vnop
        $region20: #{image_discriminator.20} parent=15 // pred_fallthru
          _
        // Predicated region
        $region55: #{image_discriminator.20} parent=15 // pred_check
          %p215 = pneg %p80
        $region56: #{image_discriminator.20} parent=15 // pred_check_branch
          %217 = sbr.rel (%p215) target = $region58
        $region57: #{image_discriminator.20} parent=15 // pred_region
          %s218 = smul.u32 2, %s17
          %p219 = scmp.lt.s32.totalorder %s16, 1
          %s220 = scalar_select %p219, %s16, 1
          %p221 = scmp.lt.s32.totalorder %s218, 3
          %s222 = scalar_select %p221, %s218, 3
          %s223 = smul.addr %s220, 4
          %s224 = sadd.s32 %s222, %s223
          %s225 = scalar_lea.vmem %s1, %s224
          %s226 = smul.u32 2, %s17
        $region58: #{image_discriminator.20} parent=15 // pred_fallthru
          _
        // Predicated region
        $region59: #{image_discriminator.20} parent=15 // pred_check
          %p227 = pneg %p108
        $region60: #{image_discriminator.20} parent=15 // pred_check_branch
          %229 = sbr.rel (%p227) target = $region62
        $region61: #{image_discriminator.20} parent=15 // pred_region
          %s230 = smul.u32 2, %s17
          %p231 = scmp.lt.s32.totalorder %s16, 1
          %s232 = scalar_select %p231, %s16, 1
          %p233 = scmp.lt.s32.totalorder %s230, 3
          %s234 = scalar_select %p233, %s230, 3
          %s235 = smul.addr %s232, 4
          %s236 = sadd.s32 %s234, %s235
          %s237 = scalar_lea.vmem %s2, %s236
          %s238 = smul.u32 2, %s17
        $region62: #{image_discriminator.20} parent=15 // pred_fallthru
          _
      $region16: #{image_discriminator.20} parent=5 // pred_fallthru
        _
      %p239 = scmp.le.s32.totalorder 1, %s9
      %p240 = scmp.lt.s32.totalorder %s9, 5
      %p241 = pnand %p239, %p240
      %p242 = pneg %p241
      // Predicated region
      $region63: #{image_discriminator.20} parent=5 // pred_check
        _
      $region64: #{image_discriminator.20} parent=5 // pred_check_branch
        %244 = sbr.rel (%p241) target = $region66
      $region65: #{image_discriminator.20} parent=5 // pred_region
        %s245 = ssub.s32 %s9, 1
        %s246 = sand.u32 %s45, 1
        %s247 = sand.u32 %s45, 1
        %s248 = smul.addr %s247, 16
        %s249 = scalar_lea.vmem [#allocation2], %s248
        // Predicated region
        $region67: #{image_discriminator.20} parent=65 // pred_check
          %p250 = pneg %p58
        $region68: #{image_discriminator.20} parent=65 // pred_check_branch
          %252 = sbr.rel (%p250) target = $region70
        $region69: #{image_discriminator.20} parent=65 // pred_region
          _
        $region70: #{image_discriminator.20} parent=65 // pred_fallthru
          _
        %s253 = sand.u32 %s45, 1
        %s254 = sand.u32 %s45, 1
        %s255 = smul.addr %s254, 16
        %s256 = scalar_lea.vmem [#allocation2], %s255
        %p257 = pneg %p58
        %p258 = pneg %p55
        %s259 = smul.u32 2, %s20
        %p260 = scmp.lt.s32.totalorder %s19, 1
        %s261 = scalar_select %p260, %s19, 1
        %p262 = scmp.lt.s32.totalorder %s259, 3
        %s263 = scalar_select %p262, %s259, 3
        %s264 = smul.addr %s261, 4
        %s265 = sadd.s32 %s263, %s264
        %s266 = scalar_lea.vmem %s1, %s265
        %p267 = pneg %p86
        %p268 = pneg %p83
        %s269 = smul.u32 2, %s20
        %p270 = scmp.lt.s32.totalorder %s19, 1
        %s271 = scalar_select %p270, %s19, 1
        %p272 = scmp.lt.s32.totalorder %s269, 3
        %s273 = scalar_select %p272, %s269, 3
        %s274 = smul.addr %s271, 4
        %s275 = sadd.s32 %s273, %s274
        %s276 = scalar_lea.vmem %s2, %s275
        %p277 = pneg %p114
        %p278 = pneg %p111
        %p279 = pneg %p144
        %p280 = pneg %p141
        %s281 = sand.u32 %s131, 1
        %s282 = sand.u32 %s131, 1
        %s283 = smul.addr %s282, 16
        %s284 = scalar_lea.vmem [#allocation3], %s283
        %s285 = smul.u32 2, %s21
        %s286 = smul.u32 2, %s20
        %s287 = smul.u32 2, %s20
        %p288 = scmp.lt.s32.totalorder %s19, 1
        %s289 = scalar_select %p288, %s19, 1
        %p290 = scmp.lt.s32.totalorder %s287, 3
        %s291 = scalar_select %p290, %s287, 3
        %s292 = smul.addr %s289, 4
        %s293 = sadd.s32 %s291, %s292
        %s294 = scalar_lea.vmem %s1, %s293
        %s295 = smul.u32 2, %s20
        %s296 = smul.u32 2, %s20
        %p297 = scmp.lt.s32.totalorder %s19, 1
        %s298 = scalar_select %p297, %s19, 1
        %p299 = scmp.lt.s32.totalorder %s296, 3
        %s300 = scalar_select %p299, %s296, 3
        %s301 = smul.addr %s298, 4
        %s302 = sadd.s32 %s300, %s301
        %s303 = scalar_lea.vmem %s2, %s302
        %s304 = smul.u32 2, %s20
        %s305 = smul.u32 2, %s21
        %s306 = smul.u32 2, %s20
        %v307 = vld [vmem:[%s249] sm:$0xff]
        %v308 = vld [vmem:[%s249 + $0x8] sm:$0x11]
        %v309 = vunpack.c.l.bf16 %v307
        %v310 = vunpack.c.h.bf16 %v307
        %v311 = vunpack.c.l.bf16 %v308
        %v312 = vunpack.c.h.bf16 %v308
        %v313 = vld [vmem:[%s294] sm:$0x3]
        %v315 = vperm.slane %v313, 0
        %v316 = vperm.slane %v313, 1
        %v319 = vsub.f32 %v309, %v315
        %v320 = vsub.f32 %v310, %v316
        %v321 = vsub.f32 %v311, %v315
        %v322 = vsub.f32 %v312, %v316
        %v323 = vld [vmem:[%s303] sm:$0x3]
        %v325 = vperm.slane %v323, 0
        %v326 = vperm.slane %v323, 1
        %v329 = vmul.f32 %v319, %v325
        %v330 = vmul.f32 %v320, %v326
        %v331 = vmul.f32 %v321, %v325
        %v332 = vmul.f32 %v322, %v326
        %vm333 = vcmp.gt.f32.partialorder %v329, 0.0
        %vm334 = vcmp.gt.f32.partialorder %v330, 0.0
        %vm335 = vcmp.gt.f32.partialorder %v331, 0.0
        %vm336 = vcmp.gt.f32.partialorder %v332, 0.0
        %v337 = vmul.f32 %v329, 0.2
        %v338 = vmul.f32 %v330, 0.2
        %v339 = vmul.f32 %v331, 0.2
        %v340 = vmul.f32 %v332, 0.2
        %v341 = vsel %vm333, %v329, %v337
        %v342 = vsel %vm334, %v330, %v338
        %v343 = vsel %vm335, %v331, %v339
        %v344 = vsel %vm336, %v332, %v340
        %v345 = vpack.c.bf16 %v342, %v341
        %v346 = vpack.c.bf16 %v344, %v343
        %347 = vst [vmem:[%s284] sm:$0xff] %v345
        %vm348 = vcmask 1040384
        %vm349 = vsmask.f32 256
        %vm350 = vmand %vm348, %vm349
        %vm351 = vcmask 1044484
        %vm352 = vsmask.f32 4352
        %vm353 = vmand %vm351, %vm352
        %vm354 = vmor %vm353, %vm350
        %v355 = vld [vmem:[%s284 + $0x8] sm:$0x11]
        %v356 = vsel %vm354, %v346, %v355
        %357 = vst [vmem:[%s284 + $0x8] sm:$0x11] %v356
        %s358 = sand.u32 %s131, 1
        %s359 = sand.u32 %s131, 1
        %s360 = smul.addr %s359, 16
        %s361 = scalar_lea.vmem [#allocation3], %s360
        // Predicated region
        $region71: #{image_discriminator.20} parent=65 // pred_check
          %p362 = pneg %p141
        $region72: #{image_discriminator.20} parent=65 // pred_check_branch
          %364 = sbr.rel (%p362) target = $region74
        $region73: #{image_discriminator.20} parent=65 // pred_region
          %s365 = smul.u32 2, %s21
          %s366 = smul.u32 2, %s20
          %s367 = smul.addr %s365, 4
          %s368 = sadd.s32 %s366, %s367
          %s369 = smul.addr %s19, 8
          %s370 = sadd.s32 %s368, %s369
          %s371 = smul.addr %s370, 4
          %s372 = scalar_lea.vmem %s3, %s371
          // Predicated region
          $region75: #{image_discriminator.20} parent=73 // pred_check
            _
          $region76: #{image_discriminator.20} parent=73 // pred_check_branch
            %374 = sbr.rel (0) target = $region78
          $region77: #{image_discriminator.20} parent=73 // pred_region
            // Predicated region
            $region79: #{image_discriminator.20} parent=77 // pred_check
              _
            $region80: #{image_discriminator.20} parent=77 // pred_check_branch
              %376 = sbr.rel (0) target = $region82
            $region81: #{image_discriminator.20} parent=77 // pred_region
              // Predicated region
              $region94: #{image_discriminator.20} parent=81 // pred_check
                _
              $region95: #{image_discriminator.20} parent=81 // pred_check_branch
                %394 = sbr.rel (0) target = $region97
              $region96: #{image_discriminator.20} parent=81 // pred_region
                loop: start=0, step=1, limit=1
                $region98: #{image_discriminator.20} parent=96 // loop_pre_header
                  _
                $region99: #{image_discriminator.20} parent=96 // loop_header
                  %s396 = sphi 0, %s400
                  %p397 = scmp.ge.s32.totalorder %s396, 1
                  %s401 = sphi %s361, %s361
                  %s402 = sphi %s372, %s372
                $region100: #{image_discriminator.20} parent=96 // loop_header_branch
                  %399 = sbr.rel (%p397) target = $region104
                $region101: #{image_discriminator.20} parent=96 // loop_body
                  %v403 = vld [vmem:[%s401] sm:$0xff]
                  %404 = vst [vmem:[%s402] sm:$0xff] %v403
                  %v405 = vld [vmem:[%s401 + $0x8] sm:$0xff]
                  %406 = vst [vmem:[%s402 + $0x10] sm:$0xff] %v405
                $region102: #{image_discriminator.20} parent=96 // loop_footer
                  %s400 = sadd.s32 1, %s396
                $region103: #{image_discriminator.20} parent=96 // loop_footer_branch
                  %395 = sbr.rel target = $region99
                $region104: #{image_discriminator.20} parent=96 // loop_exit
                  _
              $region97: #{image_discriminator.20} parent=81 // pred_fallthru
                _
              // Predicated region
              $region105: #{image_discriminator.20} parent=81 // pred_check
                _
              $region106: #{image_discriminator.20} parent=81 // pred_check_branch
                %408 = sbr.rel target = $region108
              $region107: #{image_discriminator.20} parent=81 // pred_region
                _
              $region108: #{image_discriminator.20} parent=81 // pred_fallthru
                _
            $region82: #{image_discriminator.20} parent=77 // pred_fallthru
              _
            // Predicated region
            $region83: #{image_discriminator.20} parent=77 // pred_check
              _
            $region84: #{image_discriminator.20} parent=77 // pred_check_branch
              %378 = sbr.rel target = $region86
            $region85: #{image_discriminator.20} parent=77 // pred_region
              %s380 = ssub.s32 256, 1
              loop: start=0, step=1, limit=1
              $region87: #{image_discriminator.20} parent=85 // loop_pre_header
                _
              $region88: #{image_discriminator.20} parent=85 // loop_header
                %s382 = sphi 0, %s386
                %p383 = scmp.ge.s32.totalorder %s382, 1
                %s387 = sphi %s361, %s361
                %s388 = sphi %s372, %s372
              $region89: #{image_discriminator.20} parent=85 // loop_header_branch
                %385 = sbr.rel (%p383) target = $region93
              $region90: #{image_discriminator.20} parent=85 // loop_body
                %v389 = vld [vmem:[%s387] sm:%s380]
                %390 = vst [vmem:[%s388] sm:%s380] %v389
                %v391 = vld [vmem:[%s387 + $0x8] sm:%s380]
                %392 = vst [vmem:[%s388 + $0x10] sm:%s380] %v391
              $region91: #{image_discriminator.20} parent=85 // loop_footer
                %s386 = sadd.s32 1, %s382
              $region92: #{image_discriminator.20} parent=85 // loop_footer_branch
                %381 = sbr.rel target = $region88
              $region93: #{image_discriminator.20} parent=85 // loop_exit
                _
            $region86: #{image_discriminator.20} parent=77 // pred_fallthru
              _
          $region78: #{image_discriminator.20} parent=73 // pred_fallthru
            _
          %409 = vnop
        $region74: #{image_discriminator.20} parent=65 // pred_fallthru
          _
      $region66: #{image_discriminator.20} parent=5 // pred_fallthru
        _
      %p410 = scmp.le.s32.totalorder 2, %s9
      // Predicated region
      $region109: #{image_discriminator.20} parent=5 // pred_check
        %p411 = pneg %p410
      $region110: #{image_discriminator.20} parent=5 // pred_check_branch
        %413 = sbr.rel (%p411) target = $region112
      $region111: #{image_discriminator.20} parent=5 // pred_region
        %s414 = ssub.s32 %s9, 2
        // Predicated region
        $region113: #{image_discriminator.20} parent=111 // pred_check
          %p415 = pneg %p147
        $region114: #{image_discriminator.20} parent=111 // pred_check_branch
          %417 = sbr.rel (%p415) target = $region116
        $region115: #{image_discriminator.20} parent=111 // pred_region
          %s418 = sand.u32 %s132, 1
          %s419 = sand.u32 %s132, 1
          %s420 = smul.addr %s419, 16
          %s421 = scalar_lea.vmem [#allocation3], %s420
        $region116: #{image_discriminator.20} parent=111 // pred_fallthru
          _
      $region112: #{image_discriminator.20} parent=5 // pred_fallthru
        _
    $region6: #{image_discriminator.20} parent=1 // loop_footer
      %s13 = sadd.s32 1, %s9
    $region7: #{image_discriminator.20} parent=1 // loop_footer_branch
      %8 = sbr.rel target = $region3
    $region8: #{image_discriminator.20} parent=1 // loop_exit
      _

// kernel: image_discriminator.21
$region0: #{image_discriminator.21}
  #allocation0 [shape = 'u32[]', space=smem, size = 0x4, offset = 0x4, fixed_abs, tag = 'smem constant byte address 0x4 - core index']
  #allocation1 [shape = 'u32[72,128]{1,0:T(1,128)}', space=vmem, size = 0x9000, scoped, tag = 'internal scratch']
  #allocation2 [shape = 'f32[8,1]{1,0:T(8,128)}', space=vmem, size = 0x1000, scoped, tag = 'scratch operand']
  %s0 = inlined_call_operand.vmem [shape: bf16[8,8192], index: 0, kind: input, shape index: {}]
  %s1 = inlined_call_operand.vmem [shape: f32[1,8192], index: 1, kind: input, shape index: {}]
  %s2 = inlined_call_operand.vmem [shape: f32[8,1], index: 2, kind: output, shape index: {}]
  %s3 = sld [smem:[#allocation0]]
  $region49: #{image_discriminator.21} parent=0
    _
  %s5 = ssub.s32 1, %s3
  %s6 = scalar_select 0, %s5, %s3
  loop: start=0, step=1, limit=18
  $region2: #{image_discriminator.21} parent=0 // loop_pre_header
    _
  $region3: #{image_discriminator.21} parent=0 // loop_header
    %s8 = sphi 0, %s12
    %p9 = scmp.ge.s32.totalorder %s8, 18
    %s15 = sphi 0, %s27
    %s16 = sphi 0, %s23
    %s17 = sphi 0, %s15
    %s18 = sphi 0, %s16
    %s19 = sphi 0, %s17
    %s20 = sphi 0, %s18
    %s32 = sphi 0, %s34
    %s35 = sphi 0, %s32
    %s36 = sphi 0, %s35
    %s52 = sphi 0, %s36
    %s58 = sphi 0, %s60
    %s61 = sphi 0, %s58
    %s62 = sphi 0, %s61
    %s78 = sphi 0, %s62
    %s84 = sphi 0, %s86
    %s87 = sphi 0, %s84
    %s88 = sphi 0, %s87
    %s104 = sphi 0, %s88
  $region4: #{image_discriminator.21} parent=0 // loop_header_branch
    %11 = sbr.rel (%p9) target = $region8
  $region5: #{image_discriminator.21} parent=0 // loop_body
    %s13 = ssub.s32 %s8, 1
    %s14 = ssub.s32 %s8, 2
    %s21 = sadd.s32 1, %s16
    %p22 = scmp.ge.s32.totalorder %s21, 16
    %s23 = scalar_select %p22, 0, %s21
    %s24 = sadd.s32 1, %s15
    %s25 = scalar_select %p22, %s24, %s15
    %p26 = scmp.ge.s32.totalorder %s25, 1
    %s27 = scalar_select %p26, 0, %s25
    %s28 = ssub.s32 %s15, %s27
    %s29 = ssub.s32 %s16, %s23
    %s30 = sor.u32 %s28, %s29
    %p31 = scmp.eq.s32.totalorder %s30, 0
    %s33 = sadd.s32 %s32, 1
    %s34 = scalar_select %p31, %s32, %s33
    %p37 = pneg %p31
    %p38 = scmp.eq.s32.totalorder %s8, 15
    %p39 = por %p37, %p38
    %p40 = scmp.ne.s32.totalorder %s32, %s35
    %p41 = scmp.eq.s32.totalorder %s8, 0
    %p42 = por %p40, %p41
    %p43 = scmp.ne.s32.totalorder %s32, %s35
    %p44 = scmp.eq.s32.totalorder %s13, 15
    %p45 = por %p43, %p44
    %p46 = scmp.ne.s32.totalorder %s35, %s36
    %p47 = scmp.eq.s32.totalorder %s13, 0
    %p48 = por %p46, %p47
    %p49 = scmp.ne.s32.totalorder %s35, %s36
    %p50 = scmp.eq.s32.totalorder %s14, 15
    %p51 = por %p49, %p50
    %p53 = scmp.ne.s32.totalorder %s36, %s52
    %p54 = scmp.eq.s32.totalorder %s14, 0
    %p55 = por %p53, %p54
    %s56 = ssub.s32 %s16, %s23
    %p57 = scmp.eq.s32.totalorder %s56, 0
    %s59 = sadd.s32 %s58, 1
    %s60 = scalar_select %p57, %s58, %s59
    %p63 = pneg %p57
    %p64 = scmp.eq.s32.totalorder %s8, 15
    %p65 = por %p63, %p64
    %p66 = scmp.ne.s32.totalorder %s58, %s61
    %p67 = scmp.eq.s32.totalorder %s8, 0
    %p68 = por %p66, %p67
    %p69 = scmp.ne.s32.totalorder %s58, %s61
    %p70 = scmp.eq.s32.totalorder %s13, 15
    %p71 = por %p69, %p70
    %p72 = scmp.ne.s32.totalorder %s61, %s62
    %p73 = scmp.eq.s32.totalorder %s13, 0
    %p74 = por %p72, %p73
    %p75 = scmp.ne.s32.totalorder %s61, %s62
    %p76 = scmp.eq.s32.totalorder %s14, 15
    %p77 = por %p75, %p76
    %p79 = scmp.ne.s32.totalorder %s62, %s78
    %p80 = scmp.eq.s32.totalorder %s14, 0
    %p81 = por %p79, %p80
    %s82 = ssub.s32 %s15, %s27
    %p83 = scmp.eq.s32.totalorder %s82, 0
    %s85 = sadd.s32 %s84, 1
    %s86 = scalar_select %p83, %s84, %s85
    %p89 = pneg %p83
    %p90 = scmp.eq.s32.totalorder %s8, 15
    %p91 = por %p89, %p90
    %p92 = scmp.ne.s32.totalorder %s84, %s87
    %p93 = scmp.eq.s32.totalorder %s8, 0
    %p94 = por %p92, %p93
    %p95 = scmp.ne.s32.totalorder %s84, %s87
    %p96 = scmp.eq.s32.totalorder %s13, 15
    %p97 = por %p95, %p96
    %p98 = scmp.ne.s32.totalorder %s87, %s88
    %p99 = scmp.eq.s32.totalorder %s13, 0
    %p100 = por %p98, %p99
    %p101 = scmp.ne.s32.totalorder %s87, %s88
    %p102 = scmp.eq.s32.totalorder %s14, 15
    %p103 = por %p101, %p102
    %p105 = scmp.ne.s32.totalorder %s88, %s104
    %p106 = scmp.eq.s32.totalorder %s14, 0
    %p107 = por %p105, %p106
    %p108 = scmp.le.s32.totalorder 1, %s8
    %p109 = scmp.lt.s32.totalorder %s8, 17
    %p110 = pnand %p108, %p109
    %p111 = pneg %p110
    // Predicated region
    $region9: #{image_discriminator.21} parent=5 // pred_check
      _
    $region10: #{image_discriminator.21} parent=5 // pred_check_branch
      %113 = sbr.rel (%p110) target = $region12
    $region11: #{image_discriminator.21} parent=5 // pred_region
      %s114 = ssub.s32 %s8, 1
    $region12: #{image_discriminator.21} parent=5 // pred_fallthru
      _
    %p115 = scmp.lt.s32.totalorder %s8, 16
    // Predicated region
    $region13: #{image_discriminator.21} parent=5 // pred_check
      %p116 = pneg %p115
    $region14: #{image_discriminator.21} parent=5 // pred_check_branch
      %118 = sbr.rel (%p116) target = $region16
    $region15: #{image_discriminator.21} parent=5 // pred_region
      // Predicated region
      $region17: #{image_discriminator.21} parent=15 // pred_check
        %p119 = pneg %p42
      $region18: #{image_discriminator.21} parent=15 // pred_check_branch
        %121 = sbr.rel (%p119) target = $region20
      $region19: #{image_discriminator.21} parent=15 // pred_region
        %s122 = smul.u32 4, %s16
        %p123 = scmp.lt.s32.totalorder %s15, 0
        %s124 = scalar_select %p123, %s15, 0
        %p125 = scmp.lt.s32.totalorder %s122, 63
        %s126 = scalar_select %p125, %s122, 63
        %s127 = smul.addr %s124, 64
        %s128 = sadd.s32 %s126, %s127
        %s129 = smul.addr %s128, 4
        %s130 = scalar_lea.vmem %s0, %s129
        %s131 = smul.u32 4, %s16
      $region20: #{image_discriminator.21} parent=15 // pred_fallthru
        _
      // Predicated region
      $region21: #{image_discriminator.21} parent=15 // pred_check
        %p132 = pneg %p68
      $region22: #{image_discriminator.21} parent=15 // pred_check_branch
        %134 = sbr.rel (%p132) target = $region24
      $region23: #{image_discriminator.21} parent=15 // pred_region
        %s135 = smul.u32 4, %s16
        %p136 = scmp.lt.s32.totalorder %s135, 63
        %s137 = scalar_select %p136, %s135, 63
        %s138 = scalar_lea.vmem %s1, %s137
        %s139 = smul.u32 4, %s16
      $region24: #{image_discriminator.21} parent=15 // pred_fallthru
        _
    $region16: #{image_discriminator.21} parent=5 // pred_fallthru
      _
    %p140 = scmp.le.s32.totalorder 1, %s8
    %p141 = scmp.lt.s32.totalorder %s8, 17
    %p142 = pnand %p140, %p141
    %p143 = pneg %p142
    // Predicated region
    $region25: #{image_discriminator.21} parent=5 // pred_check
      _
    $region26: #{image_discriminator.21} parent=5 // pred_check_branch
      %145 = sbr.rel (%p142) target = $region28
    $region27: #{image_discriminator.21} parent=5 // pred_region
      %s146 = ssub.s32 %s8, 1
      %s147 = smul.u32 4, %s18
      %p148 = scmp.lt.s32.totalorder %s17, 0
      %s149 = scalar_select %p148, %s17, 0
      %p150 = scmp.lt.s32.totalorder %s147, 63
      %s151 = scalar_select %p150, %s147, 63
      %s152 = smul.addr %s149, 64
      %s153 = sadd.s32 %s151, %s152
      %s154 = smul.addr %s153, 4
      %s155 = scalar_lea.vmem %s0, %s154
      %p156 = pneg %p48
      %p157 = pneg %p45
      %s158 = smul.u32 4, %s18
      %p159 = scmp.lt.s32.totalorder %s158, 63
      %s160 = scalar_select %p159, %s158, 63
      %s161 = scalar_lea.vmem %s1, %s160
      %p162 = pneg %p74
      %p163 = pneg %p71
      %p164 = pneg %p100
      %p165 = pneg %p97
      %p166 = scmp.lt.s32.totalorder %s17, 0
      %s167 = scalar_select %p166, %s17, 0
      %s168 = smul.addr %s167, 8
      %s169 = scalar_lea.vmem %s2, %s168
      %s170 = smul.u32 4, %s18
      %p171 = scmp.lt.s32.totalorder %s17, 0
      %s172 = scalar_select %p171, %s17, 0
      %p173 = scmp.lt.s32.totalorder %s170, 63
      %s174 = scalar_select %p173, %s170, 63
      %s175 = smul.addr %s172, 64
      %s176 = sadd.s32 %s174, %s175
      %s177 = smul.addr %s176, 4
      %s178 = scalar_lea.vmem %s0, %s177
      %s179 = smul.u32 4, %s18
      %s180 = smul.u32 4, %s18
      %p181 = scmp.lt.s32.totalorder %s180, 63
      %s182 = scalar_select %p181, %s180, 63
      %s183 = scalar_lea.vmem %s1, %s182
      %s184 = smul.u32 4, %s18
      %p185 = scmp.lt.s32.totalorder %s17, 0
      %s186 = scalar_select %p185, %s17, 0
      %s187 = smul.addr %s186, 8
      %s188 = scalar_lea.vmem %s2, %s187
      %p189 = scmp.eq.s32.totalorder %s18, 0
      // Predicated region
      $region29: #{image_discriminator.21} parent=27 // pred_check
        %p190 = pneg %p189
      $region30: #{image_discriminator.21} parent=27 // pred_check_branch
        %192 = sbr.rel (%p190) target = $region32
      $region31: #{image_discriminator.21} parent=27 // pred_region
        %vm193 = vcmask 7168
        %194 = vst.msk [vmem:[#allocation2] sm:$0xff] %vm193, 0.0
      $region32: #{image_discriminator.21} parent=27 // pred_fallthru
        _
      %v195 = vld [vmem:[%s178] sm:$0xff]
      %v196 = vld [vmem:[%s178 + $0x8] sm:$0xff]
      %v197 = vunpack.c.l.bf16 %v195
      %v198 = vunpack.c.h.bf16 %v195
      %v199 = vunpack.c.l.bf16 %v196
      %v200 = vunpack.c.h.bf16 %v196
      %v201 = vld [vmem:[#allocation2] sm:$0xff]
      %v202 = vld [vmem:[%s183] sm:$0xf]
      %v204 = vperm.slane %v202, 0
      %v205 = vperm.slane %v202, 1
      %v206 = vperm.slane %v202, 2
      %v207 = vperm.slane %v202, 3
      %v212 = vmul.f32 %v197, %v204
      %v213 = vmul.f32 %v198, %v205
      %v214 = vmul.f32 %v199, %v206
      %v215 = vmul.f32 %v200, %v207
      %v216 = vadd.f32 %v212, %v213
      %v217 = vadd.f32 %v216, %v214
      %v218 = vadd.f32 %v217, %v215
      %219 = vadd.xlane.f32.xlu0 %v218
      %v220 = vpop.xlane.xlu0 %219
      %v221 = vadd.f32 %v201, %v220
      %vm222 = vcmask 7168
      %223 = vst.msk [vmem:[#allocation2] sm:$0xff] %vm222, %v221
      %p224 = scmp.eq.s32.totalorder %s18, 15
      // Predicated region
      $region33: #{image_discriminator.21} parent=27 // pred_check
        %p225 = pneg %p224
      $region34: #{image_discriminator.21} parent=27 // pred_check_branch
        %227 = sbr.rel (%p225) target = $region36
      $region35: #{image_discriminator.21} parent=27 // pred_region
        %v228 = vld [vmem:[#allocation2] sm:$0xff]
        %229 = vst.msk [vmem:[%s188] sm:$0xff] %vm222, %v228
      $region36: #{image_discriminator.21} parent=27 // pred_fallthru
        _
      %p230 = scmp.lt.s32.totalorder %s17, 0
      %s231 = scalar_select %p230, %s17, 0
      %s232 = smul.addr %s231, 8
      %s233 = scalar_lea.vmem %s2, %s232
      // Predicated region
      $region37: #{image_discriminator.21} parent=27 // pred_check
        %p234 = pneg %p97
      $region38: #{image_discriminator.21} parent=27 // pred_check_branch
        %236 = sbr.rel (%p234) target = $region40
      $region39: #{image_discriminator.21} parent=27 // pred_region
        _
      $region40: #{image_discriminator.21} parent=27 // pred_fallthru
        _
      // Predicated region
      $region41: #{image_discriminator.21} parent=27 // pred_check
        %p237 = pneg %p97
      $region42: #{image_discriminator.21} parent=27 // pred_check_branch
        %239 = sbr.rel (%p237) target = $region44
      $region43: #{image_discriminator.21} parent=27 // pred_region
        %p240 = scmp.lt.s32.totalorder %s17, 0
        %s241 = scalar_select %p240, %s17, 0
        %s242 = smul.addr %s241, 8
        %s243 = scalar_lea.vmem %s2, %s242
      $region44: #{image_discriminator.21} parent=27 // pred_fallthru
        _
    $region28: #{image_discriminator.21} parent=5 // pred_fallthru
      _
    %p244 = scmp.le.s32.totalorder 2, %s8
    // Predicated region
    $region45: #{image_discriminator.21} parent=5 // pred_check
      %p245 = pneg %p244
    $region46: #{image_discriminator.21} parent=5 // pred_check_branch
      %247 = sbr.rel (%p245) target = $region48
    $region47: #{image_discriminator.21} parent=5 // pred_region
      %s248 = ssub.s32 %s8, 2
    $region48: #{image_discriminator.21} parent=5 // pred_fallthru
      _
  $region6: #{image_discriminator.21} parent=0 // loop_footer
    %s12 = sadd.s32 1, %s8
  $region7: #{image_discriminator.21} parent=0 // loop_footer_branch
    %7 = sbr.rel target = $region3
  $region8: #{image_discriminator.21} parent=0 // loop_exit
    _

</llo_original>
